<compile_context>
chip_gen: v7x
topology: tpu7x:2x2x1
jax: 0.10.0
libtpu: 0.0.40
codegen_flags: <defaults>
</compile_context>

<pallas_src>
import jax
import jax.numpy as jnp
from jax.experimental import pallas as pl


# ---------------------------------------------------------------------------
# Pallas kernels: matmul + bias + LeakyReLU (+ BatchNorm) fused epilogue
# ---------------------------------------------------------------------------
def _conv_lrelu_bn_kernel(a_ref, w_ref, b_ref, o_ref):
    # y = LeakyReLU(patches @ w + b, 0.2)
    y = (
        jnp.dot(a_ref[...], w_ref[...], preferred_element_type=jnp.float32)
        + b_ref[...]
    )
    y = jnp.where(y >= 0.0, y, 0.2 * y)
    # Training-mode BatchNorm over all rows (N*Ho*Wo) per channel,
    # biased variance, gamma=1, beta=0, eps=1e-5.  The whole (M, Cout)
    # block lives in this kernel (no grid), so the stats are global.
    mean = jnp.mean(y, axis=0, keepdims=True)
    var = jnp.mean(jnp.square(y - mean), axis=0, keepdims=True)
    o_ref[...] = (y - mean) * jax.lax.rsqrt(var + 1e-5)


def _conv_lrelu_kernel(a_ref, w_ref, b_ref, o_ref):
    # Last layer: no BatchNorm, just LeakyReLU.
    y = (
        jnp.dot(a_ref[...], w_ref[...], preferred_element_type=jnp.float32)
        + b_ref[...]
    )
    o_ref[...] = jnp.where(y >= 0.0, y, 0.2 * y)


def fused_conv_layer(patches, w, b, *, with_bn):
    """patches: (M, K), w: (K, Cout), b: (Cout,) -> (M, Cout) float32."""
    M, K = patches.shape
    Cout = w.shape[1]
    kernel = _conv_lrelu_bn_kernel if with_bn else _conv_lrelu_kernel
    return pl.pallas_call(
        kernel,
        out_shape=jax.ShapeDtypeStruct((M, Cout), jnp.float32),
        in_specs=[
            pl.BlockSpec((M, K), lambda: (0, 0)),
            pl.BlockSpec((K, Cout), lambda: (0, 0)),
            pl.BlockSpec((1, Cout), lambda: (0, 0)),
        ],
        out_specs=pl.BlockSpec((M, Cout), lambda: (0, 0)),
    )(
        patches.astype(jnp.float32),
        w.astype(jnp.float32),
        b.reshape(1, Cout).astype(jnp.float32),
    )


# ---------------------------------------------------------------------------
# Glue: NHWC im2col (plain JAX, no compute; no stack / 6-D transpose)
# ---------------------------------------------------------------------------
def im2col_nhwc(x, k, s, p):
    """x: (N, H, W, C) -> (N*Ho*Wo, k*k*C) patches, Ho, Wo.

    Column ordering is (kh, kw, C); the conv weights below are flattened
    to the same ordering."""
    N, H, W, C = x.shape
    xp = jnp.pad(x, ((0, 0), (p, p), (p, p), (0, 0)))
    Ho = (H + 2 * p - k) // s + 1
    Wo = (W + 2 * p - k) // s + 1
    cols = []
    for i in range(k):
        for j in range(k):
            cols.append(xp[:, i:i + s * Ho:s, j:j + s * Wo:s, :])  # (N,Ho,Wo,C)
    patches = jnp.concatenate(cols, axis=-1)  # (N, Ho, Wo, k*k*C)
    return patches.reshape(N * Ho * Wo, k * k * C), Ho, Wo


# ---------------------------------------------------------------------------
# Parameters (deterministic, synthetic; PyTorch layout -> matmul layout)
# ---------------------------------------------------------------------------
def make_params(key):
    keys = jax.random.split(key, 6)

    def conv_w(k, cout, cin, kh, kw):
        # PyTorch layout (Cout, Cin, kh, kw) -> (kh*kw*Cin, Cout) to match
        # the (kh, kw, C) patch column ordering of im2col_nhwc.
        w = jax.random.normal(k, (cout, cin, kh, kw), jnp.float32) * 0.05
        return jnp.transpose(w, (2, 3, 1, 0)).reshape(kh * kw * cin, cout)

    return {
        "conv1_w": conv_w(keys[0], 4, 1, 5, 5),
        "conv1_b": jax.random.normal(keys[1], (4,), jnp.float32) * 0.05,
        "conv2_w": conv_w(keys[2], 16, 4, 3, 3),
        "conv2_b": jax.random.normal(keys[3], (16,), jnp.float32) * 0.05,
        "conv3_w": conv_w(keys[4], 64, 16, 3, 3),
        "conv3_b": jax.random.normal(keys[5], (64,), jnp.float32) * 0.05,
    }


# ---------------------------------------------------------------------------
# Cond forward: (N, 1, 64, 64) NCHW -> (N, 64, 8, 8) NCHW
# ---------------------------------------------------------------------------
def cond_forward(params, x):
    N = x.shape[0]
    y = jnp.transpose(x, (0, 2, 3, 1))  # one NCHW -> NHWC conversion

    # conv1 (1->4, k5, s2, p2) -> LeakyReLU -> BN1   [fused in one kernel]
    p, Ho, Wo = im2col_nhwc(y, 5, 2, 2)
    y = fused_conv_layer(p, params["conv1_w"], params["conv1_b"], with_bn=True)
    y = y.reshape(N, Ho, Wo, 4)                      # free (contiguous) reshape

    # conv2 (4->16, k3, s2, p1) -> LeakyReLU -> BN2  [fused in one kernel]
    p, Ho, Wo = im2col_nhwc(y, 3, 2, 1)
    y = fused_conv_layer(p, params["conv2_w"], params["conv2_b"], with_bn=True)
    y = y.reshape(N, Ho, Wo, 16)

    # conv3 (16->64, k3, s2, p1) -> LeakyReLU        [fused in one kernel]
    p, Ho, Wo = im2col_nhwc(y, 3, 2, 1)
    y = fused_conv_layer(p, params["conv3_w"], params["conv3_b"], with_bn=False)
    y = y.reshape(N, Ho, Wo, 64)

    # single NHWC -> NCHW transpose to match the PyTorch output layout
    return jnp.transpose(y, (0, 3, 1, 2))            # (N, 64, 8, 8)


# ---------------------------------------------------------------------------
if __name__ == "__main__":
    key = jax.random.PRNGKey(0)
    pkey, xkey = jax.random.split(key)
    params = make_params(pkey)

    # module contract: input (-1, 1, 64, 64); batch = 2
    x = jax.random.normal(xkey, (2, 1, 64, 64), jnp.float32)

    forward = jax.jit(cond_forward)
    out = forward(params, x)
    jax.block_until_ready(out)

    assert out.shape == (2, 64, 8, 8), out.shape
    assert out.dtype == jnp.float32, out.dtype
    print("KERNEL_OK")
</pallas_src>

<mosaic_0001>
module attributes {stable_mosaic.version = 11 : i64} {
  func.func @_conv_lrelu_bn_kernel(%arg0: memref<2048x25xf32, #tpu.memory_space<vmem>>, %arg1: memref<25x4xf32, #tpu.memory_space<vmem>>, %arg2: memref<1x4xf32, #tpu.memory_space<vmem>>, %arg3: memref<2048x4xf32, #tpu.memory_space<vmem>>) attributes {dimension_semantics = [], scalar_prefetch = 0 : i64, scratch_operands = 0 : i64, tpu.core_type = #tpu.core_type<tc>} {
    %c0 = arith.constant 0 : index
    %c0_0 = arith.constant 0 : index
    %0 = vector.load %arg0[%c0, %c0_0] : memref<2048x25xf32, #tpu.memory_space<vmem>>, vector<2048x25xf32>
    %c0_1 = arith.constant 0 : index
    %c0_2 = arith.constant 0 : index
    %1 = vector.load %arg1[%c0_1, %c0_2] : memref<25x4xf32, #tpu.memory_space<vmem>>, vector<25x4xf32>
    %cst = arith.constant dense<0.000000e+00> : vector<2048x4xf32>
    %2 = tpu.matmul %0, %1, %cst {dimension_numbers = #tpu.dot_dimension_numbers<[1], [0], [0], [1], [0, 0, 1, 1], [], []>} : vector<2048x25xf32>, vector<25x4xf32>, vector<2048x4xf32> -> vector<2048x4xf32>
    %c0_3 = arith.constant 0 : index
    %c0_4 = arith.constant 0 : index
    %3 = vector.load %arg2[%c0_3, %c0_4] : memref<1x4xf32, #tpu.memory_space<vmem>>, vector<1x4xf32>
    %4 = vector.broadcast %3 : vector<1x4xf32> to vector<2048x4xf32>
    %5 = arith.addf %2, %4 : vector<2048x4xf32>
    %cst_5 = arith.constant 0.000000e+00 : f32
    %6 = vector.broadcast %cst_5 : f32 to vector<2048x4xf32>
    %7 = arith.cmpf oge, %5, %6 : vector<2048x4xf32>
    %cst_6 = arith.constant 2.000000e-01 : f32
    %8 = vector.broadcast %cst_6 : f32 to vector<2048x4xf32>
    %9 = arith.mulf %8, %5 : vector<2048x4xf32>
    %10 = arith.select %7, %5, %9 : vector<2048x4xi1>, vector<2048x4xf32>
    %cst_7 = arith.constant dense<0.000000e+00> : vector<4xf32>
    %11 = vector.multi_reduction <add>, %10, %cst_7 [0] : vector<2048x4xf32> to vector<4xf32>
    %12 = vector.shape_cast %11 : vector<4xf32> to vector<1x4xf32>
    %cst_8 = arith.constant 2.048000e+03 : f32
    %13 = vector.broadcast %cst_8 : f32 to vector<1x4xf32>
    %14 = arith.divf %12, %13 : vector<1x4xf32>
    %15 = vector.broadcast %14 : vector<1x4xf32> to vector<2048x4xf32>
    %16 = arith.subf %10, %15 : vector<2048x4xf32>
    %17 = arith.mulf %16, %16 : vector<2048x4xf32>
    %cst_9 = arith.constant dense<0.000000e+00> : vector<4xf32>
    %18 = vector.multi_reduction <add>, %17, %cst_9 [0] : vector<2048x4xf32> to vector<4xf32>
    %19 = vector.shape_cast %18 : vector<4xf32> to vector<1x4xf32>
    %cst_10 = arith.constant 2.048000e+03 : f32
    %20 = vector.broadcast %cst_10 : f32 to vector<1x4xf32>
    %21 = arith.divf %19, %20 : vector<1x4xf32>
    %22 = vector.broadcast %14 : vector<1x4xf32> to vector<2048x4xf32>
    %23 = arith.subf %10, %22 : vector<2048x4xf32>
    %cst_11 = arith.constant 9.99999974E-6 : f32
    %24 = vector.broadcast %cst_11 : f32 to vector<1x4xf32>
    %25 = arith.addf %21, %24 : vector<1x4xf32>
    %26 = math.rsqrt %25 : vector<1x4xf32>
    %27 = vector.broadcast %26 : vector<1x4xf32> to vector<2048x4xf32>
    %28 = arith.mulf %23, %27 : vector<2048x4xf32>
    %c0_12 = arith.constant 0 : index
    %c0_13 = arith.constant 0 : index
    %29 = vector.load %arg3[%c0_12, %c0_13] : memref<2048x4xf32, #tpu.memory_space<vmem>>, vector<2048x4xf32>
    tpu.vector_store %arg3[%c0_12, %c0_13], %28 {strides = array<i32>} : memref<2048x4xf32, #tpu.memory_space<vmem>>, vector<2048x4xf32>,
    return
  }
}

module attributes {stable_mosaic.version = 11 : i64} {
  func.func @_conv_lrelu_bn_kernel(%arg0: memref<512x36xf32, #tpu.memory_space<vmem>>, %arg1: memref<36x16xf32, #tpu.memory_space<vmem>>, %arg2: memref<1x16xf32, #tpu.memory_space<vmem>>, %arg3: memref<512x16xf32, #tpu.memory_space<vmem>>) attributes {dimension_semantics = [], scalar_prefetch = 0 : i64, scratch_operands = 0 : i64, tpu.core_type = #tpu.core_type<tc>} {
    %c0 = arith.constant 0 : index
    %c0_0 = arith.constant 0 : index
    %0 = vector.load %arg0[%c0, %c0_0] : memref<512x36xf32, #tpu.memory_space<vmem>>, vector<512x36xf32>
    %c0_1 = arith.constant 0 : index
    %c0_2 = arith.constant 0 : index
    %1 = vector.load %arg1[%c0_1, %c0_2] : memref<36x16xf32, #tpu.memory_space<vmem>>, vector<36x16xf32>
    %cst = arith.constant dense<0.000000e+00> : vector<512x16xf32>
    %2 = tpu.matmul %0, %1, %cst {dimension_numbers = #tpu.dot_dimension_numbers<[1], [0], [0], [1], [0, 0, 1, 1], [], []>} : vector<512x36xf32>, vector<36x16xf32>, vector<512x16xf32> -> vector<512x16xf32>
    %c0_3 = arith.constant 0 : index
    %c0_4 = arith.constant 0 : index
    %3 = vector.load %arg2[%c0_3, %c0_4] : memref<1x16xf32, #tpu.memory_space<vmem>>, vector<1x16xf32>
    %4 = vector.broadcast %3 : vector<1x16xf32> to vector<512x16xf32>
    %5 = arith.addf %2, %4 : vector<512x16xf32>
    %cst_5 = arith.constant 0.000000e+00 : f32
    %6 = vector.broadcast %cst_5 : f32 to vector<512x16xf32>
    %7 = arith.cmpf oge, %5, %6 : vector<512x16xf32>
    %cst_6 = arith.constant 2.000000e-01 : f32
    %8 = vector.broadcast %cst_6 : f32 to vector<512x16xf32>
    %9 = arith.mulf %8, %5 : vector<512x16xf32>
    %10 = arith.select %7, %5, %9 : vector<512x16xi1>, vector<512x16xf32>
    %cst_7 = arith.constant dense<0.000000e+00> : vector<16xf32>
    %11 = vector.multi_reduction <add>, %10, %cst_7 [0] : vector<512x16xf32> to vector<16xf32>
    %12 = vector.shape_cast %11 : vector<16xf32> to vector<1x16xf32>
    %cst_8 = arith.constant 5.120000e+02 : f32
    %13 = vector.broadcast %cst_8 : f32 to vector<1x16xf32>
    %14 = arith.divf %12, %13 : vector<1x16xf32>
    %15 = vector.broadcast %14 : vector<1x16xf32> to vector<512x16xf32>
    %16 = arith.subf %10, %15 : vector<512x16xf32>
    %17 = arith.mulf %16, %16 : vector<512x16xf32>
    %cst_9 = arith.constant dense<0.000000e+00> : vector<16xf32>
    %18 = vector.multi_reduction <add>, %17, %cst_9 [0] : vector<512x16xf32> to vector<16xf32>
    %19 = vector.shape_cast %18 : vector<16xf32> to vector<1x16xf32>
    %cst_10 = arith.constant 5.120000e+02 : f32
    %20 = vector.broadcast %cst_10 : f32 to vector<1x16xf32>
    %21 = arith.divf %19, %20 : vector<1x16xf32>
    %22 = vector.broadcast %14 : vector<1x16xf32> to vector<512x16xf32>
    %23 = arith.subf %10, %22 : vector<512x16xf32>
    %cst_11 = arith.constant 9.99999974E-6 : f32
    %24 = vector.broadcast %cst_11 : f32 to vector<1x16xf32>
    %25 = arith.addf %21, %24 : vector<1x16xf32>
    %26 = math.rsqrt %25 : vector<1x16xf32>
    %27 = vector.broadcast %26 : vector<1x16xf32> to vector<512x16xf32>
    %28 = arith.mulf %23, %27 : vector<512x16xf32>
    %c0_12 = arith.constant 0 : index
    %c0_13 = arith.constant 0 : index
    %29 = vector.load %arg3[%c0_12, %c0_13] : memref<512x16xf32, #tpu.memory_space<vmem>>, vector<512x16xf32>
    tpu.vector_store %arg3[%c0_12, %c0_13], %28 {strides = array<i32>} : memref<512x16xf32, #tpu.memory_space<vmem>>, vector<512x16xf32>,
    return
  }
}

module attributes {stable_mosaic.version = 11 : i64} {
  func.func @_conv_lrelu_kernel(%arg0: memref<128x144xf32, #tpu.memory_space<vmem>>, %arg1: memref<144x64xf32, #tpu.memory_space<vmem>>, %arg2: memref<1x64xf32, #tpu.memory_space<vmem>>, %arg3: memref<128x64xf32, #tpu.memory_space<vmem>>) attributes {dimension_semantics = [], scalar_prefetch = 0 : i64, scratch_operands = 0 : i64, tpu.core_type = #tpu.core_type<tc>} {
    %c0 = arith.constant 0 : index
    %c0_0 = arith.constant 0 : index
    %0 = vector.load %arg0[%c0, %c0_0] : memref<128x144xf32, #tpu.memory_space<vmem>>, vector<128x144xf32>
    %c0_1 = arith.constant 0 : index
    %c0_2 = arith.constant 0 : index
    %1 = vector.load %arg1[%c0_1, %c0_2] : memref<144x64xf32, #tpu.memory_space<vmem>>, vector<144x64xf32>
    %cst = arith.constant dense<0.000000e+00> : vector<128x64xf32>
    %2 = tpu.matmul %0, %1, %cst {dimension_numbers = #tpu.dot_dimension_numbers<[1], [0], [0], [1], [0, 0, 1, 1], [], []>} : vector<128x144xf32>, vector<144x64xf32>, vector<128x64xf32> -> vector<128x64xf32>
    %c0_3 = arith.constant 0 : index
    %c0_4 = arith.constant 0 : index
    %3 = vector.load %arg2[%c0_3, %c0_4] : memref<1x64xf32, #tpu.memory_space<vmem>>, vector<1x64xf32>
    %4 = vector.broadcast %3 : vector<1x64xf32> to vector<128x64xf32>
    %5 = arith.addf %2, %4 : vector<128x64xf32>
    %cst_5 = arith.constant 0.000000e+00 : f32
    %6 = vector.broadcast %cst_5 : f32 to vector<128x64xf32>
    %7 = arith.cmpf oge, %5, %6 : vector<128x64xf32>
    %cst_6 = arith.constant 2.000000e-01 : f32
    %8 = vector.broadcast %cst_6 : f32 to vector<128x64xf32>
    %9 = arith.mulf %8, %5 : vector<128x64xf32>
    %10 = arith.select %7, %5, %9 : vector<128x64xi1>, vector<128x64xf32>
    %c0_7 = arith.constant 0 : index
    %c0_8 = arith.constant 0 : index
    %11 = vector.load %arg3[%c0_7, %c0_8] : memref<128x64xf32, #tpu.memory_space<vmem>>, vector<128x64xf32>
    tpu.vector_store %arg3[%c0_7, %c0_8], %10 {strides = array<i32>} : memref<128x64xf32, #tpu.memory_space<vmem>>, vector<128x64xf32>,
    return
  }
}

</mosaic_0001>

<llo_original>
// kernel: cond_forward.4
$region0: #{cond_forward.4}
  #allocation0 [shape = 'u32[]', space=smem, size = 0x4, offset = 0x4, fixed_abs, tag = 'smem constant byte address 0x4 - core index']
  #allocation1 [shape = 'u32[144,128]{1,0:T(1,128)}', space=vmem, size = 0x12000, scoped, tag = 'internal scratch']
  %s0 = inlined_call_operand.vmem [shape: f32[512,36], index: 0, kind: input, shape index: {}]
  %s1 = inlined_call_operand.vmem [shape: f32[36,16], index: 1, kind: input, shape index: {}]
  %s2 = inlined_call_operand.vmem [shape: f32[1,16], index: 2, kind: input, shape index: {}]
  %s3 = inlined_call_operand.vmem [shape: f32[512,16], index: 3, kind: output, shape index: {}]
  %s4 = sld [smem:[#allocation0]]
  $region22: #{cond_forward.4} parent=0
    _
  %s6 = ssub.s32 1, %s4
  %s7 = scalar_select 0, %s6, %s4
  // Predicated region
  $region2: #{cond_forward.4} parent=0 // pred_check
    _
  $region3: #{cond_forward.4} parent=0 // pred_check_branch
    %9 = sbr.rel (0) target = $region5
  $region4: #{cond_forward.4} parent=0 // pred_region
    _
  $region5: #{cond_forward.4} parent=0 // pred_fallthru
    _
  // Predicated region
  $region6: #{cond_forward.4} parent=0 // pred_check
    _
  $region7: #{cond_forward.4} parent=0 // pred_check_branch
    %11 = sbr.rel (0) target = $region9
  $region8: #{cond_forward.4} parent=0 // pred_region
    _
  $region9: #{cond_forward.4} parent=0 // pred_fallthru
    _
  // Predicated region
  $region10: #{cond_forward.4} parent=0 // pred_check
    _
  $region11: #{cond_forward.4} parent=0 // pred_check_branch
    %13 = sbr.rel (0) target = $region13
  $region12: #{cond_forward.4} parent=0 // pred_region
    _
  $region13: #{cond_forward.4} parent=0 // pred_fallthru
    _
  %v14 = vld [vmem:[%s0] sm:$0xff]
  %v15 = vld [vmem:[%s0 + $0x8] sm:$0xff]
  %v16 = vld [vmem:[%s0 + $0x10] sm:$0xff]
  %v17 = vld [vmem:[%s0 + $0x18] sm:$0xff]
  %v18 = vld [vmem:[%s0 + $0x20] sm:$0xff]
  %v19 = vld [vmem:[%s0 + $0x28] sm:$0xff]
  %v20 = vld [vmem:[%s0 + $0x30] sm:$0xff]
  %v21 = vld [vmem:[%s0 + $0x38] sm:$0xff]
  %v22 = vld [vmem:[%s0 + $0x40] sm:$0xff]
  %v23 = vld [vmem:[%s0 + $0x48] sm:$0xff]
  %v24 = vld [vmem:[%s0 + $0x50] sm:$0xff]
  %v25 = vld [vmem:[%s0 + $0x58] sm:$0xff]
  %v26 = vld [vmem:[%s0 + $0x60] sm:$0xff]
  %v27 = vld [vmem:[%s0 + $0x68] sm:$0xff]
  %v28 = vld [vmem:[%s0 + $0x70] sm:$0xff]
  %v29 = vld [vmem:[%s0 + $0x78] sm:$0xff]
  %v30 = vld [vmem:[%s0 + $0x80] sm:$0xff]
  %v31 = vld [vmem:[%s0 + $0x88] sm:$0xff]
  %v32 = vld [vmem:[%s0 + $0x90] sm:$0xff]
  %v33 = vld [vmem:[%s0 + $0x98] sm:$0xff]
  %v34 = vld [vmem:[%s0 + $0xa0] sm:$0xff]
  %v35 = vld [vmem:[%s0 + $0xa8] sm:$0xff]
  %v36 = vld [vmem:[%s0 + $0xb0] sm:$0xff]
  %v37 = vld [vmem:[%s0 + $0xb8] sm:$0xff]
  %v38 = vld [vmem:[%s0 + $0xc0] sm:$0xff]
  %v39 = vld [vmem:[%s0 + $0xc8] sm:$0xff]
  %v40 = vld [vmem:[%s0 + $0xd0] sm:$0xff]
  %v41 = vld [vmem:[%s0 + $0xd8] sm:$0xff]
  %v42 = vld [vmem:[%s0 + $0xe0] sm:$0xff]
  %v43 = vld [vmem:[%s0 + $0xe8] sm:$0xff]
  %v44 = vld [vmem:[%s0 + $0xf0] sm:$0xff]
  %v45 = vld [vmem:[%s0 + $0xf8] sm:$0xff]
  %v46 = vld [vmem:[%s0 + $0x100] sm:$0xff]
  %v47 = vld [vmem:[%s0 + $0x108] sm:$0xff]
  %v48 = vld [vmem:[%s0 + $0x110] sm:$0xff]
  %v49 = vld [vmem:[%s0 + $0x118] sm:$0xff]
  %v50 = vld [vmem:[%s0 + $0x120] sm:$0xff]
  %v51 = vld [vmem:[%s0 + $0x128] sm:$0xff]
  %v52 = vld [vmem:[%s0 + $0x130] sm:$0xff]
  %v53 = vld [vmem:[%s0 + $0x138] sm:$0xff]
  %v54 = vld [vmem:[%s0 + $0x140] sm:$0xff]
  %v55 = vld [vmem:[%s0 + $0x148] sm:$0xff]
  %v56 = vld [vmem:[%s0 + $0x150] sm:$0xff]
  %v57 = vld [vmem:[%s0 + $0x158] sm:$0xff]
  %v58 = vld [vmem:[%s0 + $0x160] sm:$0xff]
  %v59 = vld [vmem:[%s0 + $0x168] sm:$0xff]
  %v60 = vld [vmem:[%s0 + $0x170] sm:$0xff]
  %v61 = vld [vmem:[%s0 + $0x178] sm:$0xff]
  %v62 = vld [vmem:[%s0 + $0x180] sm:$0xff]
  %v63 = vld [vmem:[%s0 + $0x188] sm:$0xff]
  %v64 = vld [vmem:[%s0 + $0x190] sm:$0xff]
  %v65 = vld [vmem:[%s0 + $0x198] sm:$0xff]
  %v66 = vld [vmem:[%s0 + $0x1a0] sm:$0xff]
  %v67 = vld [vmem:[%s0 + $0x1a8] sm:$0xff]
  %v68 = vld [vmem:[%s0 + $0x1b0] sm:$0xff]
  %v69 = vld [vmem:[%s0 + $0x1b8] sm:$0xff]
  %v70 = vld [vmem:[%s0 + $0x1c0] sm:$0xff]
  %v71 = vld [vmem:[%s0 + $0x1c8] sm:$0xff]
  %v72 = vld [vmem:[%s0 + $0x1d0] sm:$0xff]
  %v73 = vld [vmem:[%s0 + $0x1d8] sm:$0xff]
  %v74 = vld [vmem:[%s0 + $0x1e0] sm:$0xff]
  %v75 = vld [vmem:[%s0 + $0x1e8] sm:$0xff]
  %v76 = vld [vmem:[%s0 + $0x1f0] sm:$0xff]
  %v77 = vld [vmem:[%s0 + $0x1f8] sm:$0xff]
  %v78 = vld [vmem:[%s1] sm:$0xff]
  %v79 = vld [vmem:[%s1 + $0x8] sm:$0xff]
  %v80 = vld [vmem:[%s1 + $0x10] sm:$0xff]
  %v81 = vld [vmem:[%s1 + $0x18] sm:$0xff]
  %v82 = vld [vmem:[%s1 + $0x20] sm:$0xf]
  %v83 = vld [vmem:[%s2] sm:$0x1]
  %v85 = vlaneseq
  %v86 = vshrl.u32 %v85, 7
  %v87 = vsub.s32 0, %v86
  %v88 = vrot.slane %v83, %v87
  %vm90 = vcmask 293888
  %v92 = vsel %vm90, %v14, 0
  %v95 = vsel %vm90, %v15, 0
  %v98 = vsel %vm90, %v16, 0
  %v101 = vsel %vm90, %v17, 0
  %v104 = vsel %vm90, %v18, 0
  %v107 = vsel %vm90, %v19, 0
  %v110 = vsel %vm90, %v20, 0
  %v113 = vsel %vm90, %v21, 0
  %v116 = vsel %vm90, %v22, 0
  %v119 = vsel %vm90, %v23, 0
  %v122 = vsel %vm90, %v24, 0
  %v125 = vsel %vm90, %v25, 0
  %v128 = vsel %vm90, %v26, 0
  %v131 = vsel %vm90, %v27, 0
  %v134 = vsel %vm90, %v28, 0
  %v137 = vsel %vm90, %v29, 0
  %v140 = vsel %vm90, %v30, 0
  %v143 = vsel %vm90, %v31, 0
  %v146 = vsel %vm90, %v32, 0
  %v149 = vsel %vm90, %v33, 0
  %v152 = vsel %vm90, %v34, 0
  %v155 = vsel %vm90, %v35, 0
  %v158 = vsel %vm90, %v36, 0
  %v161 = vsel %vm90, %v37, 0
  %v164 = vsel %vm90, %v38, 0
  %v167 = vsel %vm90, %v39, 0
  %v170 = vsel %vm90, %v40, 0
  %v173 = vsel %vm90, %v41, 0
  %v176 = vsel %vm90, %v42, 0
  %v179 = vsel %vm90, %v43, 0
  %v182 = vsel %vm90, %v44, 0
  %v185 = vsel %vm90, %v45, 0
  %v188 = vsel %vm90, %v46, 0
  %v191 = vsel %vm90, %v47, 0
  %v194 = vsel %vm90, %v48, 0
  %v197 = vsel %vm90, %v49, 0
  %v200 = vsel %vm90, %v50, 0
  %v203 = vsel %vm90, %v51, 0
  %v206 = vsel %vm90, %v52, 0
  %v209 = vsel %vm90, %v53, 0
  %v212 = vsel %vm90, %v54, 0
  %v215 = vsel %vm90, %v55, 0
  %v218 = vsel %vm90, %v56, 0
  %v221 = vsel %vm90, %v57, 0
  %v224 = vsel %vm90, %v58, 0
  %v227 = vsel %vm90, %v59, 0
  %v230 = vsel %vm90, %v60, 0
  %v233 = vsel %vm90, %v61, 0
  %v236 = vsel %vm90, %v62, 0
  %v239 = vsel %vm90, %v63, 0
  %v242 = vsel %vm90, %v64, 0
  %v245 = vsel %vm90, %v65, 0
  %v248 = vsel %vm90, %v66, 0
  %v251 = vsel %vm90, %v67, 0
  %v254 = vsel %vm90, %v68, 0
  %v257 = vsel %vm90, %v69, 0
  %v260 = vsel %vm90, %v70, 0
  %v263 = vsel %vm90, %v71, 0
  %v266 = vsel %vm90, %v72, 0
  %v269 = vsel %vm90, %v73, 0
  %v272 = vsel %vm90, %v74, 0
  %v275 = vsel %vm90, %v75, 0
  %v278 = vsel %vm90, %v76, 0
  %v281 = vsel %vm90, %v77, 0
  %vm283 = vcmask 1043456
  %v285 = vsel %vm283, %v82, 0
  %287 = vmatprep.subr.mxu0 0.0
  %288 = vmatpush1.msra.mxu0 %v78
  %289 = vmatprep.subr.mxu0 0.0
  %290 = vmatpush1.msra.mxu0 %v79
  %291 = vmatprep.subr.mxu0 0.0
  %292 = vmatpush1.msra.mxu0 %v80
  %293 = vmatprep.subr.mxu0 0.0
  %294 = vmatpush1.msra.mxu0 %v81
  %295 = vmatprep.subr.mxu0 0.0
  %296 = vmatpush1.msra.mxu0 %v285
  %297 = vmatprep.subr.mxu0 0.0
  %298 = vmatpush1.msra.mxu0 0.0
  %299 = vmatprep.subr.mxu0 0.0
  %300 = vmatpush1.msra.mxu0 0.0
  %301 = vmatprep.subr.mxu0 0.0
  %302 = vmatpush1.msra.mxu0 0.0
  %303 = vmatprep.subr.mxu0 0.0
  %304 = vmatpush1.msra.mxu0 0.0
  %305 = vmatprep.subr.mxu0 0.0
  %306 = vmatpush1.msra.mxu0 0.0
  %307 = vmatprep.subr.mxu0 0.0
  %308 = vmatpush1.msra.mxu0 0.0
  %309 = vmatprep.subr.mxu0 0.0
  %310 = vmatpush1.msra.mxu0 0.0
  %311 = vmatprep.subr.mxu0 0.0
  %312 = vmatpush1.msra.mxu0 0.0
  %313 = vmatprep.subr.mxu0 0.0
  %314 = vmatpush1.msra.mxu0 0.0
  %315 = vmatprep.subr.mxu0 0.0
  %316 = vmatpush1.msra.mxu0 0.0
  %317 = vmatprep.subr.mxu0 0.0
  %318 = vmatpush1.msra.mxu0 0.0
  %319 = vmatprep.subr.mxu0 0.0
  %320 = vmatpush1.msra.mxu0 0.0
  %321 = vmatprep.subr.mxu0 0.0
  %322 = vmatpush1.msra.mxu0 0.0
  %323 = vmatprep.subr.mxu0 0.0
  %324 = vmatpush1.msra.mxu0 0.0
  %325 = vmatprep.subr.mxu0 0.0
  %326 = vmatpush1.msra.mxu0 0.0
  %327 = vmatprep.subr.mxu0 0.0
  %328 = vmatpush1.msra.mxu0 0.0
  %329 = vmatprep.subr.mxu0 0.0
  %330 = vmatpush1.msra.mxu0 0.0
  %331 = vmatprep.subr.mxu0 0.0
  %332 = vmatpush1.msra.mxu0 0.0
  %333 = vmatprep.subr.mxu0 0.0
  %334 = vmatpush1.msra.mxu0 0.0
  %335 = vmatprep.subr.mxu0 0.0
  %336 = vmatpush1.msra.mxu0 0.0
  %337 = vmatprep.subr.mxu0 0.0
  %338 = vmatpush1.msra.mxu0 0.0
  %339 = vmatprep.subr.mxu0 0.0
  %340 = vmatpush1.msra.mxu0 0.0
  %341 = vmatprep.subr.mxu0 0.0
  %342 = vmatpush1.msra.mxu0 0.0
  %343 = vmatprep.subr.mxu0 0.0
  %344 = vmatpush1.msra.mxu0 0.0
  %345 = vmatprep.subr.mxu0 0.0
  %346 = vmatpush1.msra.mxu0 0.0
  %347 = vmatprep.subr.mxu0 0.0
  %348 = vmatpush1.msra.mxu0 0.0
  %349 = vmatprep.subr.mxu0 0.0
  %350 = vmatpush1.msra.mxu0 0.0
  %351 = vmatprep.mubr.f32.mxu0 0.0
  %352 = vmatmul.mubr.f32.gmra.mrb[0].mxu0 %v92
  %v353 = vpop.f32.mrb[0].mxu0
  %v354 = vadd.f32 %v88, %v353
  %v355 = vpop.f32.mrb[0].mxu0
  %356 = vmatprep.mubr.f32.mxu0 0.0
  %357 = vmatmul.mubr.f32.gmra.mrb[0].mxu0 %v95
  %v358 = vpop.f32.mrb[0].mxu0
  %v359 = vadd.f32 %v88, %v358
  %v360 = vpop.f32.mrb[0].mxu0
  %361 = vmatprep.mubr.f32.mxu0 0.0
  %362 = vmatmul.mubr.f32.gmra.mrb[0].mxu0 %v98
  %v363 = vpop.f32.mrb[0].mxu0
  %v364 = vadd.f32 %v88, %v363
  %v365 = vpop.f32.mrb[0].mxu0
  %366 = vmatprep.mubr.f32.mxu0 0.0
  %367 = vmatmul.mubr.f32.gmra.mrb[0].mxu0 %v101
  %v368 = vpop.f32.mrb[0].mxu0
  %v369 = vadd.f32 %v88, %v368
  %v370 = vpop.f32.mrb[0].mxu0
  %371 = vmatprep.mubr.f32.mxu0 0.0
  %372 = vmatmul.mubr.f32.gmra.mrb[0].mxu0 %v104
  %v373 = vpop.f32.mrb[0].mxu0
  %v374 = vadd.f32 %v88, %v373
  %v375 = vpop.f32.mrb[0].mxu0
  %376 = vmatprep.mubr.f32.mxu0 0.0
  %377 = vmatmul.mubr.f32.gmra.mrb[0].mxu0 %v107
  %v378 = vpop.f32.mrb[0].mxu0
  %v379 = vadd.f32 %v88, %v378
  %v380 = vpop.f32.mrb[0].mxu0
  %381 = vmatprep.mubr.f32.mxu0 0.0
  %382 = vmatmul.mubr.f32.gmra.mrb[0].mxu0 %v110
  %v383 = vpop.f32.mrb[0].mxu0
  %v384 = vadd.f32 %v88, %v383
  %v385 = vpop.f32.mrb[0].mxu0
  %386 = vmatprep.mubr.f32.mxu0 0.0
  %387 = vmatmul.mubr.f32.gmra.mrb[0].mxu0 %v113
  %v388 = vpop.f32.mrb[0].mxu0
  %v389 = vadd.f32 %v88, %v388
  %v390 = vpop.f32.mrb[0].mxu0
  %391 = vmatprep.mubr.f32.mxu0 0.0
  %392 = vmatmul.mubr.f32.gmra.mrb[0].mxu0 %v116
  %v393 = vpop.f32.mrb[0].mxu0
  %v394 = vadd.f32 %v88, %v393
  %v395 = vpop.f32.mrb[0].mxu0
  %396 = vmatprep.mubr.f32.mxu0 0.0
  %397 = vmatmul.mubr.f32.gmra.mrb[0].mxu0 %v119
  %v398 = vpop.f32.mrb[0].mxu0
  %v399 = vadd.f32 %v88, %v398
  %v400 = vpop.f32.mrb[0].mxu0
  %401 = vmatprep.mubr.f32.mxu0 0.0
  %402 = vmatmul.mubr.f32.gmra.mrb[0].mxu0 %v122
  %v403 = vpop.f32.mrb[0].mxu0
  %v404 = vadd.f32 %v88, %v403
  %v405 = vpop.f32.mrb[0].mxu0
  %406 = vmatprep.mubr.f32.mxu0 0.0
  %407 = vmatmul.mubr.f32.gmra.mrb[0].mxu0 %v125
  %v408 = vpop.f32.mrb[0].mxu0
  %v409 = vadd.f32 %v88, %v408
  %v410 = vpop.f32.mrb[0].mxu0
  %411 = vmatprep.mubr.f32.mxu0 0.0
  %412 = vmatmul.mubr.f32.gmra.mrb[0].mxu0 %v128
  %v413 = vpop.f32.mrb[0].mxu0
  %v414 = vadd.f32 %v88, %v413
  %v415 = vpop.f32.mrb[0].mxu0
  %416 = vmatprep.mubr.f32.mxu0 0.0
  %417 = vmatmul.mubr.f32.gmra.mrb[0].mxu0 %v131
  %v418 = vpop.f32.mrb[0].mxu0
  %v419 = vadd.f32 %v88, %v418
  %v420 = vpop.f32.mrb[0].mxu0
  %421 = vmatprep.mubr.f32.mxu0 0.0
  %422 = vmatmul.mubr.f32.gmra.mrb[0].mxu0 %v134
  %v423 = vpop.f32.mrb[0].mxu0
  %v424 = vadd.f32 %v88, %v423
  %v425 = vpop.f32.mrb[0].mxu0
  %426 = vmatprep.mubr.f32.mxu0 0.0
  %427 = vmatmul.mubr.f32.gmra.mrb[0].mxu0 %v137
  %v428 = vpop.f32.mrb[0].mxu0
  %v429 = vadd.f32 %v88, %v428
  %v430 = vpop.f32.mrb[0].mxu0
  %431 = vmatprep.mubr.f32.mxu0 0.0
  %432 = vmatmul.mubr.f32.gmra.mrb[0].mxu0 %v140
  %v433 = vpop.f32.mrb[0].mxu0
  %v434 = vadd.f32 %v88, %v433
  %v435 = vpop.f32.mrb[0].mxu0
  %436 = vmatprep.mubr.f32.mxu0 0.0
  %437 = vmatmul.mubr.f32.gmra.mrb[0].mxu0 %v143
  %v438 = vpop.f32.mrb[0].mxu0
  %v439 = vadd.f32 %v88, %v438
  %v440 = vpop.f32.mrb[0].mxu0
  %441 = vmatprep.mubr.f32.mxu0 0.0
  %442 = vmatmul.mubr.f32.gmra.mrb[0].mxu0 %v146
  %v443 = vpop.f32.mrb[0].mxu0
  %v444 = vadd.f32 %v88, %v443
  %v445 = vpop.f32.mrb[0].mxu0
  %446 = vmatprep.mubr.f32.mxu0 0.0
  %447 = vmatmul.mubr.f32.gmra.mrb[0].mxu0 %v149
  %v448 = vpop.f32.mrb[0].mxu0
  %v449 = vadd.f32 %v88, %v448
  %v450 = vpop.f32.mrb[0].mxu0
  %451 = vmatprep.mubr.f32.mxu0 0.0
  %452 = vmatmul.mubr.f32.gmra.mrb[0].mxu0 %v152
  %v453 = vpop.f32.mrb[0].mxu0
  %v454 = vadd.f32 %v88, %v453
  %v455 = vpop.f32.mrb[0].mxu0
  %456 = vmatprep.mubr.f32.mxu0 0.0
  %457 = vmatmul.mubr.f32.gmra.mrb[0].mxu0 %v155
  %v458 = vpop.f32.mrb[0].mxu0
  %v459 = vadd.f32 %v88, %v458
  %v460 = vpop.f32.mrb[0].mxu0
  %461 = vmatprep.mubr.f32.mxu0 0.0
  %462 = vmatmul.mubr.f32.gmra.mrb[0].mxu0 %v158
  %v463 = vpop.f32.mrb[0].mxu0
  %v464 = vadd.f32 %v88, %v463
  %v465 = vpop.f32.mrb[0].mxu0
  %466 = vmatprep.mubr.f32.mxu0 0.0
  %467 = vmatmul.mubr.f32.gmra.mrb[0].mxu0 %v161
  %v468 = vpop.f32.mrb[0].mxu0
  %v469 = vadd.f32 %v88, %v468
  %v470 = vpop.f32.mrb[0].mxu0
  %471 = vmatprep.mubr.f32.mxu0 0.0
  %472 = vmatmul.mubr.f32.gmra.mrb[0].mxu0 %v164
  %v473 = vpop.f32.mrb[0].mxu0
  %v474 = vadd.f32 %v88, %v473
  %v475 = vpop.f32.mrb[0].mxu0
  %476 = vmatprep.mubr.f32.mxu0 0.0
  %477 = vmatmul.mubr.f32.gmra.mrb[0].mxu0 %v167
  %v478 = vpop.f32.mrb[0].mxu0
  %v479 = vadd.f32 %v88, %v478
  %v480 = vpop.f32.mrb[0].mxu0
  %481 = vmatprep.mubr.f32.mxu0 0.0
  %482 = vmatmul.mubr.f32.gmra.mrb[0].mxu0 %v170
  %v483 = vpop.f32.mrb[0].mxu0
  %v484 = vadd.f32 %v88, %v483
  %v485 = vpop.f32.mrb[0].mxu0
  %486 = vmatprep.mubr.f32.mxu0 0.0
  %487 = vmatmul.mubr.f32.gmra.mrb[0].mxu0 %v173
  %v488 = vpop.f32.mrb[0].mxu0
  %v489 = vadd.f32 %v88, %v488
  %v490 = vpop.f32.mrb[0].mxu0
  %491 = vmatprep.mubr.f32.mxu0 0.0
  %492 = vmatmul.mubr.f32.gmra.mrb[0].mxu0 %v176
  %v493 = vpop.f32.mrb[0].mxu0
  %v494 = vadd.f32 %v88, %v493
  %v495 = vpop.f32.mrb[0].mxu0
  %496 = vmatprep.mubr.f32.mxu0 0.0
  %497 = vmatmul.mubr.f32.gmra.mrb[0].mxu0 %v179
  %v498 = vpop.f32.mrb[0].mxu0
  %v499 = vadd.f32 %v88, %v498
  %v500 = vpop.f32.mrb[0].mxu0
  %501 = vmatprep.mubr.f32.mxu0 0.0
  %502 = vmatmul.mubr.f32.gmra.mrb[0].mxu0 %v182
  %v503 = vpop.f32.mrb[0].mxu0
  %v504 = vadd.f32 %v88, %v503
  %v505 = vpop.f32.mrb[0].mxu0
  %506 = vmatprep.mubr.f32.mxu0 0.0
  %507 = vmatmul.mubr.f32.gmra.mrb[0].mxu0 %v185
  %v508 = vpop.f32.mrb[0].mxu0
  %v509 = vadd.f32 %v88, %v508
  %v510 = vpop.f32.mrb[0].mxu0
  %511 = vmatprep.mubr.f32.mxu0 0.0
  %512 = vmatmul.mubr.f32.gmra.mrb[0].mxu0 %v188
  %v513 = vpop.f32.mrb[0].mxu0
  %v514 = vadd.f32 %v88, %v513
  %v515 = vpop.f32.mrb[0].mxu0
  %516 = vmatprep.mubr.f32.mxu0 0.0
  %517 = vmatmul.mubr.f32.gmra.mrb[0].mxu0 %v191
  %v518 = vpop.f32.mrb[0].mxu0
  %v519 = vadd.f32 %v88, %v518
  %v520 = vpop.f32.mrb[0].mxu0
  %521 = vmatprep.mubr.f32.mxu0 0.0
  %522 = vmatmul.mubr.f32.gmra.mrb[0].mxu0 %v194
  %v523 = vpop.f32.mrb[0].mxu0
  %v524 = vadd.f32 %v88, %v523
  %v525 = vpop.f32.mrb[0].mxu0
  %526 = vmatprep.mubr.f32.mxu0 0.0
  %527 = vmatmul.mubr.f32.gmra.mrb[0].mxu0 %v197
  %v528 = vpop.f32.mrb[0].mxu0
  %v529 = vadd.f32 %v88, %v528
  %v530 = vpop.f32.mrb[0].mxu0
  %531 = vmatprep.mubr.f32.mxu0 0.0
  %532 = vmatmul.mubr.f32.gmra.mrb[0].mxu0 %v200
  %v533 = vpop.f32.mrb[0].mxu0
  %v534 = vadd.f32 %v88, %v533
  %v535 = vpop.f32.mrb[0].mxu0
  %536 = vmatprep.mubr.f32.mxu0 0.0
  %537 = vmatmul.mubr.f32.gmra.mrb[0].mxu0 %v203
  %v538 = vpop.f32.mrb[0].mxu0
  %v539 = vadd.f32 %v88, %v538
  %v540 = vpop.f32.mrb[0].mxu0
  %541 = vmatprep.mubr.f32.mxu0 0.0
  %542 = vmatmul.mubr.f32.gmra.mrb[0].mxu0 %v206
  %v543 = vpop.f32.mrb[0].mxu0
  %v544 = vadd.f32 %v88, %v543
  %v545 = vpop.f32.mrb[0].mxu0
  %546 = vmatprep.mubr.f32.mxu0 0.0
  %547 = vmatmul.mubr.f32.gmra.mrb[0].mxu0 %v209
  %v548 = vpop.f32.mrb[0].mxu0
  %v549 = vadd.f32 %v88, %v548
  %v550 = vpop.f32.mrb[0].mxu0
  %551 = vmatprep.mubr.f32.mxu0 0.0
  %552 = vmatmul.mubr.f32.gmra.mrb[0].mxu0 %v212
  %v553 = vpop.f32.mrb[0].mxu0
  %v554 = vadd.f32 %v88, %v553
  %v555 = vpop.f32.mrb[0].mxu0
  %556 = vmatprep.mubr.f32.mxu0 0.0
  %557 = vmatmul.mubr.f32.gmra.mrb[0].mxu0 %v215
  %v558 = vpop.f32.mrb[0].mxu0
  %v559 = vadd.f32 %v88, %v558
  %v560 = vpop.f32.mrb[0].mxu0
  %561 = vmatprep.mubr.f32.mxu0 0.0
  %562 = vmatmul.mubr.f32.gmra.mrb[0].mxu0 %v218
  %v563 = vpop.f32.mrb[0].mxu0
  %v564 = vadd.f32 %v88, %v563
  %v565 = vpop.f32.mrb[0].mxu0
  %566 = vmatprep.mubr.f32.mxu0 0.0
  %567 = vmatmul.mubr.f32.gmra.mrb[0].mxu0 %v221
  %v568 = vpop.f32.mrb[0].mxu0
  %v569 = vadd.f32 %v88, %v568
  %v570 = vpop.f32.mrb[0].mxu0
  %571 = vmatprep.mubr.f32.mxu0 0.0
  %572 = vmatmul.mubr.f32.gmra.mrb[0].mxu0 %v224
  %v573 = vpop.f32.mrb[0].mxu0
  %v574 = vadd.f32 %v88, %v573
  %v575 = vpop.f32.mrb[0].mxu0
  %576 = vmatprep.mubr.f32.mxu0 0.0
  %577 = vmatmul.mubr.f32.gmra.mrb[0].mxu0 %v227
  %v578 = vpop.f32.mrb[0].mxu0
  %v579 = vadd.f32 %v88, %v578
  %v580 = vpop.f32.mrb[0].mxu0
  %581 = vmatprep.mubr.f32.mxu0 0.0
  %582 = vmatmul.mubr.f32.gmra.mrb[0].mxu0 %v230
  %v583 = vpop.f32.mrb[0].mxu0
  %v584 = vadd.f32 %v88, %v583
  %v585 = vpop.f32.mrb[0].mxu0
  %586 = vmatprep.mubr.f32.mxu0 0.0
  %587 = vmatmul.mubr.f32.gmra.mrb[0].mxu0 %v233
  %v588 = vpop.f32.mrb[0].mxu0
  %v589 = vadd.f32 %v88, %v588
  %v590 = vpop.f32.mrb[0].mxu0
  %591 = vmatprep.mubr.f32.mxu0 0.0
  %592 = vmatmul.mubr.f32.gmra.mrb[0].mxu0 %v236
  %v593 = vpop.f32.mrb[0].mxu0
  %v594 = vadd.f32 %v88, %v593
  %v595 = vpop.f32.mrb[0].mxu0
  %596 = vmatprep.mubr.f32.mxu0 0.0
  %597 = vmatmul.mubr.f32.gmra.mrb[0].mxu0 %v239
  %v598 = vpop.f32.mrb[0].mxu0
  %v599 = vadd.f32 %v88, %v598
  %v600 = vpop.f32.mrb[0].mxu0
  %601 = vmatprep.mubr.f32.mxu0 0.0
  %602 = vmatmul.mubr.f32.gmra.mrb[0].mxu0 %v242
  %v603 = vpop.f32.mrb[0].mxu0
  %v604 = vadd.f32 %v88, %v603
  %v605 = vpop.f32.mrb[0].mxu0
  %606 = vmatprep.mubr.f32.mxu0 0.0
  %607 = vmatmul.mubr.f32.gmra.mrb[0].mxu0 %v245
  %v608 = vpop.f32.mrb[0].mxu0
  %v609 = vadd.f32 %v88, %v608
  %v610 = vpop.f32.mrb[0].mxu0
  %611 = vmatprep.mubr.f32.mxu0 0.0
  %612 = vmatmul.mubr.f32.gmra.mrb[0].mxu0 %v248
  %v613 = vpop.f32.mrb[0].mxu0
  %v614 = vadd.f32 %v88, %v613
  %v615 = vpop.f32.mrb[0].mxu0
  %616 = vmatprep.mubr.f32.mxu0 0.0
  %617 = vmatmul.mubr.f32.gmra.mrb[0].mxu0 %v251
  %v618 = vpop.f32.mrb[0].mxu0
  %v619 = vadd.f32 %v88, %v618
  %v620 = vpop.f32.mrb[0].mxu0
  %621 = vmatprep.mubr.f32.mxu0 0.0
  %622 = vmatmul.mubr.f32.gmra.mrb[0].mxu0 %v254
  %v623 = vpop.f32.mrb[0].mxu0
  %v624 = vadd.f32 %v88, %v623
  %v625 = vpop.f32.mrb[0].mxu0
  %626 = vmatprep.mubr.f32.mxu0 0.0
  %627 = vmatmul.mubr.f32.gmra.mrb[0].mxu0 %v257
  %v628 = vpop.f32.mrb[0].mxu0
  %v629 = vadd.f32 %v88, %v628
  %v630 = vpop.f32.mrb[0].mxu0
  %631 = vmatprep.mubr.f32.mxu0 0.0
  %632 = vmatmul.mubr.f32.gmra.mrb[0].mxu0 %v260
  %v633 = vpop.f32.mrb[0].mxu0
  %v634 = vadd.f32 %v88, %v633
  %v635 = vpop.f32.mrb[0].mxu0
  %636 = vmatprep.mubr.f32.mxu0 0.0
  %637 = vmatmul.mubr.f32.gmra.mrb[0].mxu0 %v263
  %v638 = vpop.f32.mrb[0].mxu0
  %v639 = vadd.f32 %v88, %v638
  %v640 = vpop.f32.mrb[0].mxu0
  %641 = vmatprep.mubr.f32.mxu0 0.0
  %642 = vmatmul.mubr.f32.gmra.mrb[0].mxu0 %v266
  %v643 = vpop.f32.mrb[0].mxu0
  %v644 = vadd.f32 %v88, %v643
  %v645 = vpop.f32.mrb[0].mxu0
  %646 = vmatprep.mubr.f32.mxu0 0.0
  %647 = vmatmul.mubr.f32.gmra.mrb[0].mxu0 %v269
  %v648 = vpop.f32.mrb[0].mxu0
  %v649 = vadd.f32 %v88, %v648
  %v650 = vpop.f32.mrb[0].mxu0
  %651 = vmatprep.mubr.f32.mxu0 0.0
  %652 = vmatmul.mubr.f32.gmra.mrb[0].mxu0 %v272
  %v653 = vpop.f32.mrb[0].mxu0
  %v654 = vadd.f32 %v88, %v653
  %v655 = vpop.f32.mrb[0].mxu0
  %656 = vmatprep.mubr.f32.mxu0 0.0
  %657 = vmatmul.mubr.f32.gmra.mrb[0].mxu0 %v275
  %v658 = vpop.f32.mrb[0].mxu0
  %v659 = vadd.f32 %v88, %v658
  %v660 = vpop.f32.mrb[0].mxu0
  %661 = vmatprep.mubr.f32.mxu0 0.0
  %662 = vmatmul.mubr.f32.gmra.mrb[0].mxu0 %v278
  %v663 = vpop.f32.mrb[0].mxu0
  %v664 = vadd.f32 %v88, %v663
  %v665 = vpop.f32.mrb[0].mxu0
  %666 = vmatprep.mubr.f32.mxu0 0.0
  %667 = vmatmul.mubr.f32.gmra.mrb[0].mxu0 %v281
  %v668 = vpop.f32.mrb[0].mxu0
  %v669 = vadd.f32 %v88, %v668
  %v670 = vpop.f32.mrb[0].mxu0
  %671 = vdwg.mxu0
  %vm672 = vcmp.ge.f32.partialorder %v354, 0.0
  %vm673 = vcmp.ge.f32.partialorder %v359, 0.0
  %vm674 = vcmp.ge.f32.partialorder %v364, 0.0
  %vm675 = vcmp.ge.f32.partialorder %v369, 0.0
  %vm676 = vcmp.ge.f32.partialorder %v374, 0.0
  %vm677 = vcmp.ge.f32.partialorder %v379, 0.0
  %vm678 = vcmp.ge.f32.partialorder %v384, 0.0
  %vm679 = vcmp.ge.f32.partialorder %v389, 0.0
  %vm680 = vcmp.ge.f32.partialorder %v394, 0.0
  %vm681 = vcmp.ge.f32.partialorder %v399, 0.0
  %vm682 = vcmp.ge.f32.partialorder %v404, 0.0
  %vm683 = vcmp.ge.f32.partialorder %v409, 0.0
  %vm684 = vcmp.ge.f32.partialorder %v414, 0.0
  %vm685 = vcmp.ge.f32.partialorder %v419, 0.0
  %vm686 = vcmp.ge.f32.partialorder %v424, 0.0
  %vm687 = vcmp.ge.f32.partialorder %v429, 0.0
  %vm688 = vcmp.ge.f32.partialorder %v434, 0.0
  %vm689 = vcmp.ge.f32.partialorder %v439, 0.0
  %vm690 = vcmp.ge.f32.partialorder %v444, 0.0
  %vm691 = vcmp.ge.f32.partialorder %v449, 0.0
  %vm692 = vcmp.ge.f32.partialorder %v454, 0.0
  %vm693 = vcmp.ge.f32.partialorder %v459, 0.0
  %vm694 = vcmp.ge.f32.partialorder %v464, 0.0
  %vm695 = vcmp.ge.f32.partialorder %v469, 0.0
  %vm696 = vcmp.ge.f32.partialorder %v474, 0.0
  %vm697 = vcmp.ge.f32.partialorder %v479, 0.0
  %vm698 = vcmp.ge.f32.partialorder %v484, 0.0
  %vm699 = vcmp.ge.f32.partialorder %v489, 0.0
  %vm700 = vcmp.ge.f32.partialorder %v494, 0.0
  %vm701 = vcmp.ge.f32.partialorder %v499, 0.0
  %vm702 = vcmp.ge.f32.partialorder %v504, 0.0
  %vm703 = vcmp.ge.f32.partialorder %v509, 0.0
  %vm704 = vcmp.ge.f32.partialorder %v514, 0.0
  %vm705 = vcmp.ge.f32.partialorder %v519, 0.0
  %vm706 = vcmp.ge.f32.partialorder %v524, 0.0
  %vm707 = vcmp.ge.f32.partialorder %v529, 0.0
  %vm708 = vcmp.ge.f32.partialorder %v534, 0.0
  %vm709 = vcmp.ge.f32.partialorder %v539, 0.0
  %vm710 = vcmp.ge.f32.partialorder %v544, 0.0
  %vm711 = vcmp.ge.f32.partialorder %v549, 0.0
  %vm712 = vcmp.ge.f32.partialorder %v554, 0.0
  %vm713 = vcmp.ge.f32.partialorder %v559, 0.0
  %vm714 = vcmp.ge.f32.partialorder %v564, 0.0
  %vm715 = vcmp.ge.f32.partialorder %v569, 0.0
  %vm716 = vcmp.ge.f32.partialorder %v574, 0.0
  %vm717 = vcmp.ge.f32.partialorder %v579, 0.0
  %vm718 = vcmp.ge.f32.partialorder %v584, 0.0
  %vm719 = vcmp.ge.f32.partialorder %v589, 0.0
  %vm720 = vcmp.ge.f32.partialorder %v594, 0.0
  %vm721 = vcmp.ge.f32.partialorder %v599, 0.0
  %vm722 = vcmp.ge.f32.partialorder %v604, 0.0
  %vm723 = vcmp.ge.f32.partialorder %v609, 0.0
  %vm724 = vcmp.ge.f32.partialorder %v614, 0.0
  %vm725 = vcmp.ge.f32.partialorder %v619, 0.0
  %vm726 = vcmp.ge.f32.partialorder %v624, 0.0
  %vm727 = vcmp.ge.f32.partialorder %v629, 0.0
  %vm728 = vcmp.ge.f32.partialorder %v634, 0.0
  %vm729 = vcmp.ge.f32.partialorder %v639, 0.0
  %vm730 = vcmp.ge.f32.partialorder %v644, 0.0
  %vm731 = vcmp.ge.f32.partialorder %v649, 0.0
  %vm732 = vcmp.ge.f32.partialorder %v654, 0.0
  %vm733 = vcmp.ge.f32.partialorder %v659, 0.0
  %vm734 = vcmp.ge.f32.partialorder %v664, 0.0
  %vm735 = vcmp.ge.f32.partialorder %v669, 0.0
  %v736 = vmul.f32 %v354, 0.2
  %v737 = vmul.f32 %v359, 0.2
  %v738 = vmul.f32 %v364, 0.2
  %v739 = vmul.f32 %v369, 0.2
  %v740 = vmul.f32 %v374, 0.2
  %v741 = vmul.f32 %v379, 0.2
  %v742 = vmul.f32 %v384, 0.2
  %v743 = vmul.f32 %v389, 0.2
  %v744 = vmul.f32 %v394, 0.2
  %v745 = vmul.f32 %v399, 0.2
  %v746 = vmul.f32 %v404, 0.2
  %v747 = vmul.f32 %v409, 0.2
  %v748 = vmul.f32 %v414, 0.2
  %v749 = vmul.f32 %v419, 0.2
  %v750 = vmul.f32 %v424, 0.2
  %v751 = vmul.f32 %v429, 0.2
  %v752 = vmul.f32 %v434, 0.2
  %v753 = vmul.f32 %v439, 0.2
  %v754 = vmul.f32 %v444, 0.2
  %v755 = vmul.f32 %v449, 0.2
  %v756 = vmul.f32 %v454, 0.2
  %v757 = vmul.f32 %v459, 0.2
  %v758 = vmul.f32 %v464, 0.2
  %v759 = vmul.f32 %v469, 0.2
  %v760 = vmul.f32 %v474, 0.2
  %v761 = vmul.f32 %v479, 0.2
  %v762 = vmul.f32 %v484, 0.2
  %v763 = vmul.f32 %v489, 0.2
  %v764 = vmul.f32 %v494, 0.2
  %v765 = vmul.f32 %v499, 0.2
  %v766 = vmul.f32 %v504, 0.2
  %v767 = vmul.f32 %v509, 0.2
  %v768 = vmul.f32 %v514, 0.2
  %v769 = vmul.f32 %v519, 0.2
  %v770 = vmul.f32 %v524, 0.2
  %v771 = vmul.f32 %v529, 0.2
  %v772 = vmul.f32 %v534, 0.2
  %v773 = vmul.f32 %v539, 0.2
  %v774 = vmul.f32 %v544, 0.2
  %v775 = vmul.f32 %v549, 0.2
  %v776 = vmul.f32 %v554, 0.2
  %v777 = vmul.f32 %v559, 0.2
  %v778 = vmul.f32 %v564, 0.2
  %v779 = vmul.f32 %v569, 0.2
  %v780 = vmul.f32 %v574, 0.2
  %v781 = vmul.f32 %v579, 0.2
  %v782 = vmul.f32 %v584, 0.2
  %v783 = vmul.f32 %v589, 0.2
  %v784 = vmul.f32 %v594, 0.2
  %v785 = vmul.f32 %v599, 0.2
  %v786 = vmul.f32 %v604, 0.2
  %v787 = vmul.f32 %v609, 0.2
  %v788 = vmul.f32 %v614, 0.2
  %v789 = vmul.f32 %v619, 0.2
  %v790 = vmul.f32 %v624, 0.2
  %v791 = vmul.f32 %v629, 0.2
  %v792 = vmul.f32 %v634, 0.2
  %v793 = vmul.f32 %v639, 0.2
  %v794 = vmul.f32 %v644, 0.2
  %v795 = vmul.f32 %v649, 0.2
  %v796 = vmul.f32 %v654, 0.2
  %v797 = vmul.f32 %v659, 0.2
  %v798 = vmul.f32 %v664, 0.2
  %v799 = vmul.f32 %v669, 0.2
  %v800 = vsel %vm672, %v354, %v736
  %v801 = vsel %vm673, %v359, %v737
  %v802 = vsel %vm674, %v364, %v738
  %v803 = vsel %vm675, %v369, %v739
  %v804 = vsel %vm676, %v374, %v740
  %v805 = vsel %vm677, %v379, %v741
  %v806 = vsel %vm678, %v384, %v742
  %v807 = vsel %vm679, %v389, %v743
  %v808 = vsel %vm680, %v394, %v744
  %v809 = vsel %vm681, %v399, %v745
  %v810 = vsel %vm682, %v404, %v746
  %v811 = vsel %vm683, %v409, %v747
  %v812 = vsel %vm684, %v414, %v748
  %v813 = vsel %vm685, %v419, %v749
  %v814 = vsel %vm686, %v424, %v750
  %v815 = vsel %vm687, %v429, %v751
  %v816 = vsel %vm688, %v434, %v752
  %v817 = vsel %vm689, %v439, %v753
  %v818 = vsel %vm690, %v444, %v754
  %v819 = vsel %vm691, %v449, %v755
  %v820 = vsel %vm692, %v454, %v756
  %v821 = vsel %vm693, %v459, %v757
  %v822 = vsel %vm694, %v464, %v758
  %v823 = vsel %vm695, %v469, %v759
  %v824 = vsel %vm696, %v474, %v760
  %v825 = vsel %vm697, %v479, %v761
  %v826 = vsel %vm698, %v484, %v762
  %v827 = vsel %vm699, %v489, %v763
  %v828 = vsel %vm700, %v494, %v764
  %v829 = vsel %vm701, %v499, %v765
  %v830 = vsel %vm702, %v504, %v766
  %v831 = vsel %vm703, %v509, %v767
  %v832 = vsel %vm704, %v514, %v768
  %v833 = vsel %vm705, %v519, %v769
  %v834 = vsel %vm706, %v524, %v770
  %v835 = vsel %vm707, %v529, %v771
  %v836 = vsel %vm708, %v534, %v772
  %v837 = vsel %vm709, %v539, %v773
  %v838 = vsel %vm710, %v544, %v774
  %v839 = vsel %vm711, %v549, %v775
  %v840 = vsel %vm712, %v554, %v776
  %v841 = vsel %vm713, %v559, %v777
  %v842 = vsel %vm714, %v564, %v778
  %v843 = vsel %vm715, %v569, %v779
  %v844 = vsel %vm716, %v574, %v780
  %v845 = vsel %vm717, %v579, %v781
  %v846 = vsel %vm718, %v584, %v782
  %v847 = vsel %vm719, %v589, %v783
  %v848 = vsel %vm720, %v594, %v784
  %v849 = vsel %vm721, %v599, %v785
  %v850 = vsel %vm722, %v604, %v786
  %v851 = vsel %vm723, %v609, %v787
  %v852 = vsel %vm724, %v614, %v788
  %v853 = vsel %vm725, %v619, %v789
  %v854 = vsel %vm726, %v624, %v790
  %v855 = vsel %vm727, %v629, %v791
  %v856 = vsel %vm728, %v634, %v792
  %v857 = vsel %vm729, %v639, %v793
  %v858 = vsel %vm730, %v644, %v794
  %v859 = vsel %vm731, %v649, %v795
  %v860 = vsel %vm732, %v654, %v796
  %v861 = vsel %vm733, %v659, %v797
  %v862 = vsel %vm734, %v664, %v798
  %v863 = vsel %vm735, %v669, %v799
  %vm864 = vcmask 130048
  %v865 = vsel %vm864, %v800, 0.0
  %v866 = vsel %vm864, %v801, 0.0
  %v867 = vadd.f32 %v865, %v866
  %v868 = vsel %vm864, %v802, 0.0
  %v869 = vadd.f32 %v867, %v868
  %v870 = vsel %vm864, %v803, 0.0
  %v871 = vadd.f32 %v869, %v870
  %v872 = vsel %vm864, %v804, 0.0
  %v873 = vadd.f32 %v871, %v872
  %v874 = vsel %vm864, %v805, 0.0
  %v875 = vadd.f32 %v873, %v874
  %v876 = vsel %vm864, %v806, 0.0
  %v877 = vadd.f32 %v875, %v876
  %v878 = vsel %vm864, %v807, 0.0
  %v879 = vadd.f32 %v877, %v878
  %v880 = vsel %vm864, %v808, 0.0
  %v881 = vadd.f32 %v879, %v880
  %v882 = vsel %vm864, %v809, 0.0
  %v883 = vadd.f32 %v881, %v882
  %v884 = vsel %vm864, %v810, 0.0
  %v885 = vadd.f32 %v883, %v884
  %v886 = vsel %vm864, %v811, 0.0
  %v887 = vadd.f32 %v885, %v886
  %v888 = vsel %vm864, %v812, 0.0
  %v889 = vadd.f32 %v887, %v888
  %v890 = vsel %vm864, %v813, 0.0
  %v891 = vadd.f32 %v889, %v890
  %v892 = vsel %vm864, %v814, 0.0
  %v893 = vadd.f32 %v891, %v892
  %v894 = vsel %vm864, %v815, 0.0
  %v895 = vadd.f32 %v893, %v894
  %v896 = vsel %vm864, %v816, 0.0
  %v897 = vadd.f32 %v895, %v896
  %v898 = vsel %vm864, %v817, 0.0
  %v899 = vadd.f32 %v897, %v898
  %v900 = vsel %vm864, %v818, 0.0
  %v901 = vadd.f32 %v899, %v900
  %v902 = vsel %vm864, %v819, 0.0
  %v903 = vadd.f32 %v901, %v902
  %v904 = vsel %vm864, %v820, 0.0
  %v905 = vadd.f32 %v903, %v904
  %v906 = vsel %vm864, %v821, 0.0
  %v907 = vadd.f32 %v905, %v906
  %v908 = vsel %vm864, %v822, 0.0
  %v909 = vadd.f32 %v907, %v908
  %v910 = vsel %vm864, %v823, 0.0
  %v911 = vadd.f32 %v909, %v910
  %v912 = vsel %vm864, %v824, 0.0
  %v913 = vadd.f32 %v911, %v912
  %v914 = vsel %vm864, %v825, 0.0
  %v915 = vadd.f32 %v913, %v914
  %v916 = vsel %vm864, %v826, 0.0
  %v917 = vadd.f32 %v915, %v916
  %v918 = vsel %vm864, %v827, 0.0
  %v919 = vadd.f32 %v917, %v918
  %v920 = vsel %vm864, %v828, 0.0
  %v921 = vadd.f32 %v919, %v920
  %v922 = vsel %vm864, %v829, 0.0
  %v923 = vadd.f32 %v921, %v922
  %v924 = vsel %vm864, %v830, 0.0
  %v925 = vadd.f32 %v923, %v924
  %v926 = vsel %vm864, %v831, 0.0
  %v927 = vadd.f32 %v925, %v926
  %v928 = vsel %vm864, %v832, 0.0
  %v929 = vadd.f32 %v927, %v928
  %v930 = vsel %vm864, %v833, 0.0
  %v931 = vadd.f32 %v929, %v930
  %v932 = vsel %vm864, %v834, 0.0
  %v933 = vadd.f32 %v931, %v932
  %v934 = vsel %vm864, %v835, 0.0
  %v935 = vadd.f32 %v933, %v934
  %v936 = vsel %vm864, %v836, 0.0
  %v937 = vadd.f32 %v935, %v936
  %v938 = vsel %vm864, %v837, 0.0
  %v939 = vadd.f32 %v937, %v938
  %v940 = vsel %vm864, %v838, 0.0
  %v941 = vadd.f32 %v939, %v940
  %v942 = vsel %vm864, %v839, 0.0
  %v943 = vadd.f32 %v941, %v942
  %v944 = vsel %vm864, %v840, 0.0
  %v945 = vadd.f32 %v943, %v944
  %v946 = vsel %vm864, %v841, 0.0
  %v947 = vadd.f32 %v945, %v946
  %v948 = vsel %vm864, %v842, 0.0
  %v949 = vadd.f32 %v947, %v948
  %v950 = vsel %vm864, %v843, 0.0
  %v951 = vadd.f32 %v949, %v950
  %v952 = vsel %vm864, %v844, 0.0
  %v953 = vadd.f32 %v951, %v952
  %v954 = vsel %vm864, %v845, 0.0
  %v955 = vadd.f32 %v953, %v954
  %v956 = vsel %vm864, %v846, 0.0
  %v957 = vadd.f32 %v955, %v956
  %v958 = vsel %vm864, %v847, 0.0
  %v959 = vadd.f32 %v957, %v958
  %v960 = vsel %vm864, %v848, 0.0
  %v961 = vadd.f32 %v959, %v960
  %v962 = vsel %vm864, %v849, 0.0
  %v963 = vadd.f32 %v961, %v962
  %v964 = vsel %vm864, %v850, 0.0
  %v965 = vadd.f32 %v963, %v964
  %v966 = vsel %vm864, %v851, 0.0
  %v967 = vadd.f32 %v965, %v966
  %v968 = vsel %vm864, %v852, 0.0
  %v969 = vadd.f32 %v967, %v968
  %v970 = vsel %vm864, %v853, 0.0
  %v971 = vadd.f32 %v969, %v970
  %v972 = vsel %vm864, %v854, 0.0
  %v973 = vadd.f32 %v971, %v972
  %v974 = vsel %vm864, %v855, 0.0
  %v975 = vadd.f32 %v973, %v974
  %v976 = vsel %vm864, %v856, 0.0
  %v977 = vadd.f32 %v975, %v976
  %v978 = vsel %vm864, %v857, 0.0
  %v979 = vadd.f32 %v977, %v978
  %v980 = vsel %vm864, %v858, 0.0
  %v981 = vadd.f32 %v979, %v980
  %v982 = vsel %vm864, %v859, 0.0
  %v983 = vadd.f32 %v981, %v982
  %v984 = vsel %vm864, %v860, 0.0
  %v985 = vadd.f32 %v983, %v984
  %v986 = vsel %vm864, %v861, 0.0
  %v987 = vadd.f32 %v985, %v986
  %v988 = vsel %vm864, %v862, 0.0
  %v989 = vadd.f32 %v987, %v988
  %v990 = vsel %vm864, %v863, 0.0
  %v991 = vadd.f32 %v989, %v990
  %v992 = vrot.slane %v991, 4
  %v993 = vadd.f32 %v991, %v992
  %v994 = vrot.slane %v993, 2
  %v995 = vadd.f32 %v993, %v994
  %v996 = vrot.slane %v995, 1
  %v997 = vadd.f32 %v995, %v996
  %v998 = vrcp.pop 512.0
  %v999 = vmul.f32 %v997, %v998
  %v1000 = vsub.f32 %v800, %v999
  %v1001 = vsub.f32 %v801, %v999
  %v1002 = vsub.f32 %v802, %v999
  %v1003 = vsub.f32 %v803, %v999
  %v1004 = vsub.f32 %v804, %v999
  %v1005 = vsub.f32 %v805, %v999
  %v1006 = vsub.f32 %v806, %v999
  %v1007 = vsub.f32 %v807, %v999
  %v1008 = vsub.f32 %v808, %v999
  %v1009 = vsub.f32 %v809, %v999
  %v1010 = vsub.f32 %v810, %v999
  %v1011 = vsub.f32 %v811, %v999
  %v1012 = vsub.f32 %v812, %v999
  %v1013 = vsub.f32 %v813, %v999
  %v1014 = vsub.f32 %v814, %v999
  %v1015 = vsub.f32 %v815, %v999
  %v1016 = vsub.f32 %v816, %v999
  %v1017 = vsub.f32 %v817, %v999
  %v1018 = vsub.f32 %v818, %v999
  %v1019 = vsub.f32 %v819, %v999
  %v1020 = vsub.f32 %v820, %v999
  %v1021 = vsub.f32 %v821, %v999
  %v1022 = vsub.f32 %v822, %v999
  %v1023 = vsub.f32 %v823, %v999
  %v1024 = vsub.f32 %v824, %v999
  %v1025 = vsub.f32 %v825, %v999
  %v1026 = vsub.f32 %v826, %v999
  %v1027 = vsub.f32 %v827, %v999
  %v1028 = vsub.f32 %v828, %v999
  %v1029 = vsub.f32 %v829, %v999
  %v1030 = vsub.f32 %v830, %v999
  %v1031 = vsub.f32 %v831, %v999
  %v1032 = vsub.f32 %v832, %v999
  %v1033 = vsub.f32 %v833, %v999
  %v1034 = vsub.f32 %v834, %v999
  %v1035 = vsub.f32 %v835, %v999
  %v1036 = vsub.f32 %v836, %v999
  %v1037 = vsub.f32 %v837, %v999
  %v1038 = vsub.f32 %v838, %v999
  %v1039 = vsub.f32 %v839, %v999
  %v1040 = vsub.f32 %v840, %v999
  %v1041 = vsub.f32 %v841, %v999
  %v1042 = vsub.f32 %v842, %v999
  %v1043 = vsub.f32 %v843, %v999
  %v1044 = vsub.f32 %v844, %v999
  %v1045 = vsub.f32 %v845, %v999
  %v1046 = vsub.f32 %v846, %v999
  %v1047 = vsub.f32 %v847, %v999
  %v1048 = vsub.f32 %v848, %v999
  %v1049 = vsub.f32 %v849, %v999
  %v1050 = vsub.f32 %v850, %v999
  %v1051 = vsub.f32 %v851, %v999
  %v1052 = vsub.f32 %v852, %v999
  %v1053 = vsub.f32 %v853, %v999
  %v1054 = vsub.f32 %v854, %v999
  %v1055 = vsub.f32 %v855, %v999
  %v1056 = vsub.f32 %v856, %v999
  %v1057 = vsub.f32 %v857, %v999
  %v1058 = vsub.f32 %v858, %v999
  %v1059 = vsub.f32 %v859, %v999
  %v1060 = vsub.f32 %v860, %v999
  %v1061 = vsub.f32 %v861, %v999
  %v1062 = vsub.f32 %v862, %v999
  %v1063 = vsub.f32 %v863, %v999
  %v1064 = vmul.f32 %v1000, %v1000
  %v1065 = vmul.f32 %v1001, %v1001
  %v1066 = vmul.f32 %v1002, %v1002
  %v1067 = vmul.f32 %v1003, %v1003
  %v1068 = vmul.f32 %v1004, %v1004
  %v1069 = vmul.f32 %v1005, %v1005
  %v1070 = vmul.f32 %v1006, %v1006
  %v1071 = vmul.f32 %v1007, %v1007
  %v1072 = vmul.f32 %v1008, %v1008
  %v1073 = vmul.f32 %v1009, %v1009
  %v1074 = vmul.f32 %v1010, %v1010
  %v1075 = vmul.f32 %v1011, %v1011
  %v1076 = vmul.f32 %v1012, %v1012
  %v1077 = vmul.f32 %v1013, %v1013
  %v1078 = vmul.f32 %v1014, %v1014
  %v1079 = vmul.f32 %v1015, %v1015
  %v1080 = vmul.f32 %v1016, %v1016
  %v1081 = vmul.f32 %v1017, %v1017
  %v1082 = vmul.f32 %v1018, %v1018
  %v1083 = vmul.f32 %v1019, %v1019
  %v1084 = vmul.f32 %v1020, %v1020
  %v1085 = vmul.f32 %v1021, %v1021
  %v1086 = vmul.f32 %v1022, %v1022
  %v1087 = vmul.f32 %v1023, %v1023
  %v1088 = vmul.f32 %v1024, %v1024
  %v1089 = vmul.f32 %v1025, %v1025
  %v1090 = vmul.f32 %v1026, %v1026
  %v1091 = vmul.f32 %v1027, %v1027
  %v1092 = vmul.f32 %v1028, %v1028
  %v1093 = vmul.f32 %v1029, %v1029
  %v1094 = vmul.f32 %v1030, %v1030
  %v1095 = vmul.f32 %v1031, %v1031
  %v1096 = vmul.f32 %v1032, %v1032
  %v1097 = vmul.f32 %v1033, %v1033
  %v1098 = vmul.f32 %v1034, %v1034
  %v1099 = vmul.f32 %v1035, %v1035
  %v1100 = vmul.f32 %v1036, %v1036
  %v1101 = vmul.f32 %v1037, %v1037
  %v1102 = vmul.f32 %v1038, %v1038
  %v1103 = vmul.f32 %v1039, %v1039
  %v1104 = vmul.f32 %v1040, %v1040
  %v1105 = vmul.f32 %v1041, %v1041
  %v1106 = vmul.f32 %v1042, %v1042
  %v1107 = vmul.f32 %v1043, %v1043
  %v1108 = vmul.f32 %v1044, %v1044
  %v1109 = vmul.f32 %v1045, %v1045
  %v1110 = vmul.f32 %v1046, %v1046
  %v1111 = vmul.f32 %v1047, %v1047
  %v1112 = vmul.f32 %v1048, %v1048
  %v1113 = vmul.f32 %v1049, %v1049
  %v1114 = vmul.f32 %v1050, %v1050
  %v1115 = vmul.f32 %v1051, %v1051
  %v1116 = vmul.f32 %v1052, %v1052
  %v1117 = vmul.f32 %v1053, %v1053
  %v1118 = vmul.f32 %v1054, %v1054
  %v1119 = vmul.f32 %v1055, %v1055
  %v1120 = vmul.f32 %v1056, %v1056
  %v1121 = vmul.f32 %v1057, %v1057
  %v1122 = vmul.f32 %v1058, %v1058
  %v1123 = vmul.f32 %v1059, %v1059
  %v1124 = vmul.f32 %v1060, %v1060
  %v1125 = vmul.f32 %v1061, %v1061
  %v1126 = vmul.f32 %v1062, %v1062
  %v1127 = vmul.f32 %v1063, %v1063
  %v1128 = vsel %vm864, %v1064, 0.0
  %v1129 = vsel %vm864, %v1065, 0.0
  %v1130 = vadd.f32 %v1128, %v1129
  %v1131 = vsel %vm864, %v1066, 0.0
  %v1132 = vadd.f32 %v1130, %v1131
  %v1133 = vsel %vm864, %v1067, 0.0
  %v1134 = vadd.f32 %v1132, %v1133
  %v1135 = vsel %vm864, %v1068, 0.0
  %v1136 = vadd.f32 %v1134, %v1135
  %v1137 = vsel %vm864, %v1069, 0.0
  %v1138 = vadd.f32 %v1136, %v1137
  %v1139 = vsel %vm864, %v1070, 0.0
  %v1140 = vadd.f32 %v1138, %v1139
  %v1141 = vsel %vm864, %v1071, 0.0
  %v1142 = vadd.f32 %v1140, %v1141
  %v1143 = vsel %vm864, %v1072, 0.0
  %v1144 = vadd.f32 %v1142, %v1143
  %v1145 = vsel %vm864, %v1073, 0.0
  %v1146 = vadd.f32 %v1144, %v1145
  %v1147 = vsel %vm864, %v1074, 0.0
  %v1148 = vadd.f32 %v1146, %v1147
  %v1149 = vsel %vm864, %v1075, 0.0
  %v1150 = vadd.f32 %v1148, %v1149
  %v1151 = vsel %vm864, %v1076, 0.0
  %v1152 = vadd.f32 %v1150, %v1151
  %v1153 = vsel %vm864, %v1077, 0.0
  %v1154 = vadd.f32 %v1152, %v1153
  %v1155 = vsel %vm864, %v1078, 0.0
  %v1156 = vadd.f32 %v1154, %v1155
  %v1157 = vsel %vm864, %v1079, 0.0
  %v1158 = vadd.f32 %v1156, %v1157
  %v1159 = vsel %vm864, %v1080, 0.0
  %v1160 = vadd.f32 %v1158, %v1159
  %v1161 = vsel %vm864, %v1081, 0.0
  %v1162 = vadd.f32 %v1160, %v1161
  %v1163 = vsel %vm864, %v1082, 0.0
  %v1164 = vadd.f32 %v1162, %v1163
  %v1165 = vsel %vm864, %v1083, 0.0
  %v1166 = vadd.f32 %v1164, %v1165
  %v1167 = vsel %vm864, %v1084, 0.0
  %v1168 = vadd.f32 %v1166, %v1167
  %v1169 = vsel %vm864, %v1085, 0.0
  %v1170 = vadd.f32 %v1168, %v1169
  %v1171 = vsel %vm864, %v1086, 0.0
  %v1172 = vadd.f32 %v1170, %v1171
  %v1173 = vsel %vm864, %v1087, 0.0
  %v1174 = vadd.f32 %v1172, %v1173
  %v1175 = vsel %vm864, %v1088, 0.0
  %v1176 = vadd.f32 %v1174, %v1175
  %v1177 = vsel %vm864, %v1089, 0.0
  %v1178 = vadd.f32 %v1176, %v1177
  %v1179 = vsel %vm864, %v1090, 0.0
  %v1180 = vadd.f32 %v1178, %v1179
  %v1181 = vsel %vm864, %v1091, 0.0
  %v1182 = vadd.f32 %v1180, %v1181
  %v1183 = vsel %vm864, %v1092, 0.0
  %v1184 = vadd.f32 %v1182, %v1183
  %v1185 = vsel %vm864, %v1093, 0.0
  %v1186 = vadd.f32 %v1184, %v1185
  %v1187 = vsel %vm864, %v1094, 0.0
  %v1188 = vadd.f32 %v1186, %v1187
  %v1189 = vsel %vm864, %v1095, 0.0
  %v1190 = vadd.f32 %v1188, %v1189
  %v1191 = vsel %vm864, %v1096, 0.0
  %v1192 = vadd.f32 %v1190, %v1191
  %v1193 = vsel %vm864, %v1097, 0.0
  %v1194 = vadd.f32 %v1192, %v1193
  %v1195 = vsel %vm864, %v1098, 0.0
  %v1196 = vadd.f32 %v1194, %v1195
  %v1197 = vsel %vm864, %v1099, 0.0
  %v1198 = vadd.f32 %v1196, %v1197
  %v1199 = vsel %vm864, %v1100, 0.0
  %v1200 = vadd.f32 %v1198, %v1199
  %v1201 = vsel %vm864, %v1101, 0.0
  %v1202 = vadd.f32 %v1200, %v1201
  %v1203 = vsel %vm864, %v1102, 0.0
  %v1204 = vadd.f32 %v1202, %v1203
  %v1205 = vsel %vm864, %v1103, 0.0
  %v1206 = vadd.f32 %v1204, %v1205
  %v1207 = vsel %vm864, %v1104, 0.0
  %v1208 = vadd.f32 %v1206, %v1207
  %v1209 = vsel %vm864, %v1105, 0.0
  %v1210 = vadd.f32 %v1208, %v1209
  %v1211 = vsel %vm864, %v1106, 0.0
  %v1212 = vadd.f32 %v1210, %v1211
  %v1213 = vsel %vm864, %v1107, 0.0
  %v1214 = vadd.f32 %v1212, %v1213
  %v1215 = vsel %vm864, %v1108, 0.0
  %v1216 = vadd.f32 %v1214, %v1215
  %v1217 = vsel %vm864, %v1109, 0.0
  %v1218 = vadd.f32 %v1216, %v1217
  %v1219 = vsel %vm864, %v1110, 0.0
  %v1220 = vadd.f32 %v1218, %v1219
  %v1221 = vsel %vm864, %v1111, 0.0
  %v1222 = vadd.f32 %v1220, %v1221
  %v1223 = vsel %vm864, %v1112, 0.0
  %v1224 = vadd.f32 %v1222, %v1223
  %v1225 = vsel %vm864, %v1113, 0.0
  %v1226 = vadd.f32 %v1224, %v1225
  %v1227 = vsel %vm864, %v1114, 0.0
  %v1228 = vadd.f32 %v1226, %v1227
  %v1229 = vsel %vm864, %v1115, 0.0
  %v1230 = vadd.f32 %v1228, %v1229
  %v1231 = vsel %vm864, %v1116, 0.0
  %v1232 = vadd.f32 %v1230, %v1231
  %v1233 = vsel %vm864, %v1117, 0.0
  %v1234 = vadd.f32 %v1232, %v1233
  %v1235 = vsel %vm864, %v1118, 0.0
  %v1236 = vadd.f32 %v1234, %v1235
  %v1237 = vsel %vm864, %v1119, 0.0
  %v1238 = vadd.f32 %v1236, %v1237
  %v1239 = vsel %vm864, %v1120, 0.0
  %v1240 = vadd.f32 %v1238, %v1239
  %v1241 = vsel %vm864, %v1121, 0.0
  %v1242 = vadd.f32 %v1240, %v1241
  %v1243 = vsel %vm864, %v1122, 0.0
  %v1244 = vadd.f32 %v1242, %v1243
  %v1245 = vsel %vm864, %v1123, 0.0
  %v1246 = vadd.f32 %v1244, %v1245
  %v1247 = vsel %vm864, %v1124, 0.0
  %v1248 = vadd.f32 %v1246, %v1247
  %v1249 = vsel %vm864, %v1125, 0.0
  %v1250 = vadd.f32 %v1248, %v1249
  %v1251 = vsel %vm864, %v1126, 0.0
  %v1252 = vadd.f32 %v1250, %v1251
  %v1253 = vsel %vm864, %v1127, 0.0
  %v1254 = vadd.f32 %v1252, %v1253
  %v1255 = vrot.slane %v1254, 4
  %v1256 = vadd.f32 %v1254, %v1255
  %v1257 = vrot.slane %v1256, 2
  %v1258 = vadd.f32 %v1256, %v1257
  %v1259 = vrot.slane %v1258, 1
  %v1260 = vadd.f32 %v1258, %v1259
  %v1261 = vmul.f32 %v1260, %v998
  %v1262 = vadd.f32 %v1261, 1e-05
  %v1263 = vrsqrt.pop %v1262
  %v1264 = vmul.f32 %v1000, %v1263
  %v1265 = vmul.f32 %v1001, %v1263
  %v1266 = vmul.f32 %v1002, %v1263
  %v1267 = vmul.f32 %v1003, %v1263
  %v1268 = vmul.f32 %v1004, %v1263
  %v1269 = vmul.f32 %v1005, %v1263
  %v1270 = vmul.f32 %v1006, %v1263
  %v1271 = vmul.f32 %v1007, %v1263
  %v1272 = vmul.f32 %v1008, %v1263
  %v1273 = vmul.f32 %v1009, %v1263
  %v1274 = vmul.f32 %v1010, %v1263
  %v1275 = vmul.f32 %v1011, %v1263
  %v1276 = vmul.f32 %v1012, %v1263
  %v1277 = vmul.f32 %v1013, %v1263
  %v1278 = vmul.f32 %v1014, %v1263
  %v1279 = vmul.f32 %v1015, %v1263
  %v1280 = vmul.f32 %v1016, %v1263
  %v1281 = vmul.f32 %v1017, %v1263
  %v1282 = vmul.f32 %v1018, %v1263
  %v1283 = vmul.f32 %v1019, %v1263
  %v1284 = vmul.f32 %v1020, %v1263
  %v1285 = vmul.f32 %v1021, %v1263
  %v1286 = vmul.f32 %v1022, %v1263
  %v1287 = vmul.f32 %v1023, %v1263
  %v1288 = vmul.f32 %v1024, %v1263
  %v1289 = vmul.f32 %v1025, %v1263
  %v1290 = vmul.f32 %v1026, %v1263
  %v1291 = vmul.f32 %v1027, %v1263
  %v1292 = vmul.f32 %v1028, %v1263
  %v1293 = vmul.f32 %v1029, %v1263
  %v1294 = vmul.f32 %v1030, %v1263
  %v1295 = vmul.f32 %v1031, %v1263
  %v1296 = vmul.f32 %v1032, %v1263
  %v1297 = vmul.f32 %v1033, %v1263
  %v1298 = vmul.f32 %v1034, %v1263
  %v1299 = vmul.f32 %v1035, %v1263
  %v1300 = vmul.f32 %v1036, %v1263
  %v1301 = vmul.f32 %v1037, %v1263
  %v1302 = vmul.f32 %v1038, %v1263
  %v1303 = vmul.f32 %v1039, %v1263
  %v1304 = vmul.f32 %v1040, %v1263
  %v1305 = vmul.f32 %v1041, %v1263
  %v1306 = vmul.f32 %v1042, %v1263
  %v1307 = vmul.f32 %v1043, %v1263
  %v1308 = vmul.f32 %v1044, %v1263
  %v1309 = vmul.f32 %v1045, %v1263
  %v1310 = vmul.f32 %v1046, %v1263
  %v1311 = vmul.f32 %v1047, %v1263
  %v1312 = vmul.f32 %v1048, %v1263
  %v1313 = vmul.f32 %v1049, %v1263
  %v1314 = vmul.f32 %v1050, %v1263
  %v1315 = vmul.f32 %v1051, %v1263
  %v1316 = vmul.f32 %v1052, %v1263
  %v1317 = vmul.f32 %v1053, %v1263
  %v1318 = vmul.f32 %v1054, %v1263
  %v1319 = vmul.f32 %v1055, %v1263
  %v1320 = vmul.f32 %v1056, %v1263
  %v1321 = vmul.f32 %v1057, %v1263
  %v1322 = vmul.f32 %v1058, %v1263
  %v1323 = vmul.f32 %v1059, %v1263
  %v1324 = vmul.f32 %v1060, %v1263
  %v1325 = vmul.f32 %v1061, %v1263
  %v1326 = vmul.f32 %v1062, %v1263
  %v1327 = vmul.f32 %v1063, %v1263
  %1328 = vst.msk [vmem:[%s3] sm:$0xff] %vm864, %v1264
  %1329 = vst.msk [vmem:[%s3 + $0x8] sm:$0xff] %vm864, %v1265
  %1330 = vst.msk [vmem:[%s3 + $0x10] sm:$0xff] %vm864, %v1266
  %1331 = vst.msk [vmem:[%s3 + $0x18] sm:$0xff] %vm864, %v1267
  %1332 = vst.msk [vmem:[%s3 + $0x20] sm:$0xff] %vm864, %v1268
  %1333 = vst.msk [vmem:[%s3 + $0x28] sm:$0xff] %vm864, %v1269
  %1334 = vst.msk [vmem:[%s3 + $0x30] sm:$0xff] %vm864, %v1270
  %1335 = vst.msk [vmem:[%s3 + $0x38] sm:$0xff] %vm864, %v1271
  %1336 = vst.msk [vmem:[%s3 + $0x40] sm:$0xff] %vm864, %v1272
  %1337 = vst.msk [vmem:[%s3 + $0x48] sm:$0xff] %vm864, %v1273
  %1338 = vst.msk [vmem:[%s3 + $0x50] sm:$0xff] %vm864, %v1274
  %1339 = vst.msk [vmem:[%s3 + $0x58] sm:$0xff] %vm864, %v1275
  %1340 = vst.msk [vmem:[%s3 + $0x60] sm:$0xff] %vm864, %v1276
  %1341 = vst.msk [vmem:[%s3 + $0x68] sm:$0xff] %vm864, %v1277
  %1342 = vst.msk [vmem:[%s3 + $0x70] sm:$0xff] %vm864, %v1278
  %1343 = vst.msk [vmem:[%s3 + $0x78] sm:$0xff] %vm864, %v1279
  %1344 = vst.msk [vmem:[%s3 + $0x80] sm:$0xff] %vm864, %v1280
  %1345 = vst.msk [vmem:[%s3 + $0x88] sm:$0xff] %vm864, %v1281
  %1346 = vst.msk [vmem:[%s3 + $0x90] sm:$0xff] %vm864, %v1282
  %1347 = vst.msk [vmem:[%s3 + $0x98] sm:$0xff] %vm864, %v1283
  %1348 = vst.msk [vmem:[%s3 + $0xa0] sm:$0xff] %vm864, %v1284
  %1349 = vst.msk [vmem:[%s3 + $0xa8] sm:$0xff] %vm864, %v1285
  %1350 = vst.msk [vmem:[%s3 + $0xb0] sm:$0xff] %vm864, %v1286
  %1351 = vst.msk [vmem:[%s3 + $0xb8] sm:$0xff] %vm864, %v1287
  %1352 = vst.msk [vmem:[%s3 + $0xc0] sm:$0xff] %vm864, %v1288
  %1353 = vst.msk [vmem:[%s3 + $0xc8] sm:$0xff] %vm864, %v1289
  %1354 = vst.msk [vmem:[%s3 + $0xd0] sm:$0xff] %vm864, %v1290
  %1355 = vst.msk [vmem:[%s3 + $0xd8] sm:$0xff] %vm864, %v1291
  %1356 = vst.msk [vmem:[%s3 + $0xe0] sm:$0xff] %vm864, %v1292
  %1357 = vst.msk [vmem:[%s3 + $0xe8] sm:$0xff] %vm864, %v1293
  %1358 = vst.msk [vmem:[%s3 + $0xf0] sm:$0xff] %vm864, %v1294
  %1359 = vst.msk [vmem:[%s3 + $0xf8] sm:$0xff] %vm864, %v1295
  %1360 = vst.msk [vmem:[%s3 + $0x100] sm:$0xff] %vm864, %v1296
  %1361 = vst.msk [vmem:[%s3 + $0x108] sm:$0xff] %vm864, %v1297
  %1362 = vst.msk [vmem:[%s3 + $0x110] sm:$0xff] %vm864, %v1298
  %1363 = vst.msk [vmem:[%s3 + $0x118] sm:$0xff] %vm864, %v1299
  %1364 = vst.msk [vmem:[%s3 + $0x120] sm:$0xff] %vm864, %v1300
  %1365 = vst.msk [vmem:[%s3 + $0x128] sm:$0xff] %vm864, %v1301
  %1366 = vst.msk [vmem:[%s3 + $0x130] sm:$0xff] %vm864, %v1302
  %1367 = vst.msk [vmem:[%s3 + $0x138] sm:$0xff] %vm864, %v1303
  %1368 = vst.msk [vmem:[%s3 + $0x140] sm:$0xff] %vm864, %v1304
  %1369 = vst.msk [vmem:[%s3 + $0x148] sm:$0xff] %vm864, %v1305
  %1370 = vst.msk [vmem:[%s3 + $0x150] sm:$0xff] %vm864, %v1306
  %1371 = vst.msk [vmem:[%s3 + $0x158] sm:$0xff] %vm864, %v1307
  %1372 = vst.msk [vmem:[%s3 + $0x160] sm:$0xff] %vm864, %v1308
  %1373 = vst.msk [vmem:[%s3 + $0x168] sm:$0xff] %vm864, %v1309
  %1374 = vst.msk [vmem:[%s3 + $0x170] sm:$0xff] %vm864, %v1310
  %1375 = vst.msk [vmem:[%s3 + $0x178] sm:$0xff] %vm864, %v1311
  %1376 = vst.msk [vmem:[%s3 + $0x180] sm:$0xff] %vm864, %v1312
  %1377 = vst.msk [vmem:[%s3 + $0x188] sm:$0xff] %vm864, %v1313
  %1378 = vst.msk [vmem:[%s3 + $0x190] sm:$0xff] %vm864, %v1314
  %1379 = vst.msk [vmem:[%s3 + $0x198] sm:$0xff] %vm864, %v1315
  %1380 = vst.msk [vmem:[%s3 + $0x1a0] sm:$0xff] %vm864, %v1316
  %1381 = vst.msk [vmem:[%s3 + $0x1a8] sm:$0xff] %vm864, %v1317
  %1382 = vst.msk [vmem:[%s3 + $0x1b0] sm:$0xff] %vm864, %v1318
  %1383 = vst.msk [vmem:[%s3 + $0x1b8] sm:$0xff] %vm864, %v1319
  %1384 = vst.msk [vmem:[%s3 + $0x1c0] sm:$0xff] %vm864, %v1320
  %1385 = vst.msk [vmem:[%s3 + $0x1c8] sm:$0xff] %vm864, %v1321
  %1386 = vst.msk [vmem:[%s3 + $0x1d0] sm:$0xff] %vm864, %v1322
  %1387 = vst.msk [vmem:[%s3 + $0x1d8] sm:$0xff] %vm864, %v1323
  %1388 = vst.msk [vmem:[%s3 + $0x1e0] sm:$0xff] %vm864, %v1324
  %1389 = vst.msk [vmem:[%s3 + $0x1e8] sm:$0xff] %vm864, %v1325
  %1390 = vst.msk [vmem:[%s3 + $0x1f0] sm:$0xff] %vm864, %v1326
  %1391 = vst.msk [vmem:[%s3 + $0x1f8] sm:$0xff] %vm864, %v1327
  // Predicated region
  $region14: #{cond_forward.4} parent=0 // pred_check
    _
  $region15: #{cond_forward.4} parent=0 // pred_check_branch
    %1393 = sbr.rel (0) target = $region17
  $region16: #{cond_forward.4} parent=0 // pred_region
    _
  $region17: #{cond_forward.4} parent=0 // pred_fallthru
    _
  // Predicated region
  $region18: #{cond_forward.4} parent=0 // pred_check
    _
  $region19: #{cond_forward.4} parent=0 // pred_check_branch
    %1395 = sbr.rel (0) target = $region21
  $region20: #{cond_forward.4} parent=0 // pred_region
    _
  $region21: #{cond_forward.4} parent=0 // pred_fallthru
    _

// kernel: cond_forward.3
$region0: #{cond_forward.3}
  #allocation0 [shape = 'u32[]', space=smem, size = 0x4, offset = 0x4, fixed_abs, tag = 'smem constant byte address 0x4 - core index']
  #allocation1 [shape = 'u32[144,128]{1,0:T(1,128)}', space=vmem, size = 0x12000, scoped, tag = 'internal scratch']
  %s0 = inlined_call_operand.vmem [shape: f32[2048,25], index: 0, kind: input, shape index: {}]
  %s1 = inlined_call_operand.vmem [shape: f32[25,4], index: 1, kind: input, shape index: {}]
  %s2 = inlined_call_operand.vmem [shape: f32[1,4], index: 2, kind: input, shape index: {}]
  %s3 = inlined_call_operand.vmem [shape: f32[2048,4], index: 3, kind: output, shape index: {}]
  %s4 = sld [smem:[#allocation0]]
  $region22: #{cond_forward.3} parent=0
    _
  %s6 = ssub.s32 1, %s4
  %s7 = scalar_select 0, %s6, %s4
  // Predicated region
  $region2: #{cond_forward.3} parent=0 // pred_check
    _
  $region3: #{cond_forward.3} parent=0 // pred_check_branch
    %9 = sbr.rel (0) target = $region5
  $region4: #{cond_forward.3} parent=0 // pred_region
    _
  $region5: #{cond_forward.3} parent=0 // pred_fallthru
    _
  // Predicated region
  $region6: #{cond_forward.3} parent=0 // pred_check
    _
  $region7: #{cond_forward.3} parent=0 // pred_check_branch
    %11 = sbr.rel (0) target = $region9
  $region8: #{cond_forward.3} parent=0 // pred_region
    _
  $region9: #{cond_forward.3} parent=0 // pred_fallthru
    _
  // Predicated region
  $region10: #{cond_forward.3} parent=0 // pred_check
    _
  $region11: #{cond_forward.3} parent=0 // pred_check_branch
    %13 = sbr.rel (0) target = $region13
  $region12: #{cond_forward.3} parent=0 // pred_region
    _
  $region13: #{cond_forward.3} parent=0 // pred_fallthru
    _
  %v14 = vld [vmem:[%s0] sm:$0xff]
  %v15 = vld [vmem:[%s0 + $0x8] sm:$0xff]
  %v16 = vld [vmem:[%s0 + $0x10] sm:$0xff]
  %v17 = vld [vmem:[%s0 + $0x18] sm:$0xff]
  %v18 = vld [vmem:[%s0 + $0x20] sm:$0xff]
  %v19 = vld [vmem:[%s0 + $0x28] sm:$0xff]
  %v20 = vld [vmem:[%s0 + $0x30] sm:$0xff]
  %v21 = vld [vmem:[%s0 + $0x38] sm:$0xff]
  %v22 = vld [vmem:[%s0 + $0x40] sm:$0xff]
  %v23 = vld [vmem:[%s0 + $0x48] sm:$0xff]
  %v24 = vld [vmem:[%s0 + $0x50] sm:$0xff]
  %v25 = vld [vmem:[%s0 + $0x58] sm:$0xff]
  %v26 = vld [vmem:[%s0 + $0x60] sm:$0xff]
  %v27 = vld [vmem:[%s0 + $0x68] sm:$0xff]
  %v28 = vld [vmem:[%s0 + $0x70] sm:$0xff]
  %v29 = vld [vmem:[%s0 + $0x78] sm:$0xff]
  %v30 = vld [vmem:[%s0 + $0x80] sm:$0xff]
  %v31 = vld [vmem:[%s0 + $0x88] sm:$0xff]
  %v32 = vld [vmem:[%s0 + $0x90] sm:$0xff]
  %v33 = vld [vmem:[%s0 + $0x98] sm:$0xff]
  %v34 = vld [vmem:[%s0 + $0xa0] sm:$0xff]
  %v35 = vld [vmem:[%s0 + $0xa8] sm:$0xff]
  %v36 = vld [vmem:[%s0 + $0xb0] sm:$0xff]
  %v37 = vld [vmem:[%s0 + $0xb8] sm:$0xff]
  %v38 = vld [vmem:[%s0 + $0xc0] sm:$0xff]
  %v39 = vld [vmem:[%s0 + $0xc8] sm:$0xff]
  %v40 = vld [vmem:[%s0 + $0xd0] sm:$0xff]
  %v41 = vld [vmem:[%s0 + $0xd8] sm:$0xff]
  %v42 = vld [vmem:[%s0 + $0xe0] sm:$0xff]
  %v43 = vld [vmem:[%s0 + $0xe8] sm:$0xff]
  %v44 = vld [vmem:[%s0 + $0xf0] sm:$0xff]
  %v45 = vld [vmem:[%s0 + $0xf8] sm:$0xff]
  %v46 = vld [vmem:[%s0 + $0x100] sm:$0xff]
  %v47 = vld [vmem:[%s0 + $0x108] sm:$0xff]
  %v48 = vld [vmem:[%s0 + $0x110] sm:$0xff]
  %v49 = vld [vmem:[%s0 + $0x118] sm:$0xff]
  %v50 = vld [vmem:[%s0 + $0x120] sm:$0xff]
  %v51 = vld [vmem:[%s0 + $0x128] sm:$0xff]
  %v52 = vld [vmem:[%s0 + $0x130] sm:$0xff]
  %v53 = vld [vmem:[%s0 + $0x138] sm:$0xff]
  %v54 = vld [vmem:[%s0 + $0x140] sm:$0xff]
  %v55 = vld [vmem:[%s0 + $0x148] sm:$0xff]
  %v56 = vld [vmem:[%s0 + $0x150] sm:$0xff]
  %v57 = vld [vmem:[%s0 + $0x158] sm:$0xff]
  %v58 = vld [vmem:[%s0 + $0x160] sm:$0xff]
  %v59 = vld [vmem:[%s0 + $0x168] sm:$0xff]
  %v60 = vld [vmem:[%s0 + $0x170] sm:$0xff]
  %v61 = vld [vmem:[%s0 + $0x178] sm:$0xff]
  %v62 = vld [vmem:[%s0 + $0x180] sm:$0xff]
  %v63 = vld [vmem:[%s0 + $0x188] sm:$0xff]
  %v64 = vld [vmem:[%s0 + $0x190] sm:$0xff]
  %v65 = vld [vmem:[%s0 + $0x198] sm:$0xff]
  %v66 = vld [vmem:[%s0 + $0x1a0] sm:$0xff]
  %v67 = vld [vmem:[%s0 + $0x1a8] sm:$0xff]
  %v68 = vld [vmem:[%s0 + $0x1b0] sm:$0xff]
  %v69 = vld [vmem:[%s0 + $0x1b8] sm:$0xff]
  %v70 = vld [vmem:[%s0 + $0x1c0] sm:$0xff]
  %v71 = vld [vmem:[%s0 + $0x1c8] sm:$0xff]
  %v72 = vld [vmem:[%s0 + $0x1d0] sm:$0xff]
  %v73 = vld [vmem:[%s0 + $0x1d8] sm:$0xff]
  %v74 = vld [vmem:[%s0 + $0x1e0] sm:$0xff]
  %v75 = vld [vmem:[%s0 + $0x1e8] sm:$0xff]
  %v76 = vld [vmem:[%s0 + $0x1f0] sm:$0xff]
  %v77 = vld [vmem:[%s0 + $0x1f8] sm:$0xff]
  %v78 = vld [vmem:[%s0 + $0x200] sm:$0xff]
  %v79 = vld [vmem:[%s0 + $0x208] sm:$0xff]
  %v80 = vld [vmem:[%s0 + $0x210] sm:$0xff]
  %v81 = vld [vmem:[%s0 + $0x218] sm:$0xff]
  %v82 = vld [vmem:[%s0 + $0x220] sm:$0xff]
  %v83 = vld [vmem:[%s0 + $0x228] sm:$0xff]
  %v84 = vld [vmem:[%s0 + $0x230] sm:$0xff]
  %v85 = vld [vmem:[%s0 + $0x238] sm:$0xff]
  %v86 = vld [vmem:[%s0 + $0x240] sm:$0xff]
  %v87 = vld [vmem:[%s0 + $0x248] sm:$0xff]
  %v88 = vld [vmem:[%s0 + $0x250] sm:$0xff]
  %v89 = vld [vmem:[%s0 + $0x258] sm:$0xff]
  %v90 = vld [vmem:[%s0 + $0x260] sm:$0xff]
  %v91 = vld [vmem:[%s0 + $0x268] sm:$0xff]
  %v92 = vld [vmem:[%s0 + $0x270] sm:$0xff]
  %v93 = vld [vmem:[%s0 + $0x278] sm:$0xff]
  %v94 = vld [vmem:[%s0 + $0x280] sm:$0xff]
  %v95 = vld [vmem:[%s0 + $0x288] sm:$0xff]
  %v96 = vld [vmem:[%s0 + $0x290] sm:$0xff]
  %v97 = vld [vmem:[%s0 + $0x298] sm:$0xff]
  %v98 = vld [vmem:[%s0 + $0x2a0] sm:$0xff]
  %v99 = vld [vmem:[%s0 + $0x2a8] sm:$0xff]
  %v100 = vld [vmem:[%s0 + $0x2b0] sm:$0xff]
  %v101 = vld [vmem:[%s0 + $0x2b8] sm:$0xff]
  %v102 = vld [vmem:[%s0 + $0x2c0] sm:$0xff]
  %v103 = vld [vmem:[%s0 + $0x2c8] sm:$0xff]
  %v104 = vld [vmem:[%s0 + $0x2d0] sm:$0xff]
  %v105 = vld [vmem:[%s0 + $0x2d8] sm:$0xff]
  %v106 = vld [vmem:[%s0 + $0x2e0] sm:$0xff]
  %v107 = vld [vmem:[%s0 + $0x2e8] sm:$0xff]
  %v108 = vld [vmem:[%s0 + $0x2f0] sm:$0xff]
  %v109 = vld [vmem:[%s0 + $0x2f8] sm:$0xff]
  %v110 = vld [vmem:[%s0 + $0x300] sm:$0xff]
  %v111 = vld [vmem:[%s0 + $0x308] sm:$0xff]
  %v112 = vld [vmem:[%s0 + $0x310] sm:$0xff]
  %v113 = vld [vmem:[%s0 + $0x318] sm:$0xff]
  %v114 = vld [vmem:[%s0 + $0x320] sm:$0xff]
  %v115 = vld [vmem:[%s0 + $0x328] sm:$0xff]
  %v116 = vld [vmem:[%s0 + $0x330] sm:$0xff]
  %v117 = vld [vmem:[%s0 + $0x338] sm:$0xff]
  %v118 = vld [vmem:[%s0 + $0x340] sm:$0xff]
  %v119 = vld [vmem:[%s0 + $0x348] sm:$0xff]
  %v120 = vld [vmem:[%s0 + $0x350] sm:$0xff]
  %v121 = vld [vmem:[%s0 + $0x358] sm:$0xff]
  %v122 = vld [vmem:[%s0 + $0x360] sm:$0xff]
  %v123 = vld [vmem:[%s0 + $0x368] sm:$0xff]
  %v124 = vld [vmem:[%s0 + $0x370] sm:$0xff]
  %v125 = vld [vmem:[%s0 + $0x378] sm:$0xff]
  %v126 = vld [vmem:[%s0 + $0x380] sm:$0xff]
  %v127 = vld [vmem:[%s0 + $0x388] sm:$0xff]
  %v128 = vld [vmem:[%s0 + $0x390] sm:$0xff]
  %v129 = vld [vmem:[%s0 + $0x398] sm:$0xff]
  %v130 = vld [vmem:[%s0 + $0x3a0] sm:$0xff]
  %v131 = vld [vmem:[%s0 + $0x3a8] sm:$0xff]
  %v132 = vld [vmem:[%s0 + $0x3b0] sm:$0xff]
  %v133 = vld [vmem:[%s0 + $0x3b8] sm:$0xff]
  %v134 = vld [vmem:[%s0 + $0x3c0] sm:$0xff]
  %v135 = vld [vmem:[%s0 + $0x3c8] sm:$0xff]
  %v136 = vld [vmem:[%s0 + $0x3d0] sm:$0xff]
  %v137 = vld [vmem:[%s0 + $0x3d8] sm:$0xff]
  %v138 = vld [vmem:[%s0 + $0x3e0] sm:$0xff]
  %v139 = vld [vmem:[%s0 + $0x3e8] sm:$0xff]
  %v140 = vld [vmem:[%s0 + $0x3f0] sm:$0xff]
  %v141 = vld [vmem:[%s0 + $0x3f8] sm:$0xff]
  %v142 = vld [vmem:[%s0 + $0x400] sm:$0xff]
  %v143 = vld [vmem:[%s0 + $0x408] sm:$0xff]
  %v144 = vld [vmem:[%s0 + $0x410] sm:$0xff]
  %v145 = vld [vmem:[%s0 + $0x418] sm:$0xff]
  %v146 = vld [vmem:[%s0 + $0x420] sm:$0xff]
  %v147 = vld [vmem:[%s0 + $0x428] sm:$0xff]
  %v148 = vld [vmem:[%s0 + $0x430] sm:$0xff]
  %v149 = vld [vmem:[%s0 + $0x438] sm:$0xff]
  %v150 = vld [vmem:[%s0 + $0x440] sm:$0xff]
  %v151 = vld [vmem:[%s0 + $0x448] sm:$0xff]
  %v152 = vld [vmem:[%s0 + $0x450] sm:$0xff]
  %v153 = vld [vmem:[%s0 + $0x458] sm:$0xff]
  %v154 = vld [vmem:[%s0 + $0x460] sm:$0xff]
  %v155 = vld [vmem:[%s0 + $0x468] sm:$0xff]
  %v156 = vld [vmem:[%s0 + $0x470] sm:$0xff]
  %v157 = vld [vmem:[%s0 + $0x478] sm:$0xff]
  %v158 = vld [vmem:[%s0 + $0x480] sm:$0xff]
  %v159 = vld [vmem:[%s0 + $0x488] sm:$0xff]
  %v160 = vld [vmem:[%s0 + $0x490] sm:$0xff]
  %v161 = vld [vmem:[%s0 + $0x498] sm:$0xff]
  %v162 = vld [vmem:[%s0 + $0x4a0] sm:$0xff]
  %v163 = vld [vmem:[%s0 + $0x4a8] sm:$0xff]
  %v164 = vld [vmem:[%s0 + $0x4b0] sm:$0xff]
  %v165 = vld [vmem:[%s0 + $0x4b8] sm:$0xff]
  %v166 = vld [vmem:[%s0 + $0x4c0] sm:$0xff]
  %v167 = vld [vmem:[%s0 + $0x4c8] sm:$0xff]
  %v168 = vld [vmem:[%s0 + $0x4d0] sm:$0xff]
  %v169 = vld [vmem:[%s0 + $0x4d8] sm:$0xff]
  %v170 = vld [vmem:[%s0 + $0x4e0] sm:$0xff]
  %v171 = vld [vmem:[%s0 + $0x4e8] sm:$0xff]
  %v172 = vld [vmem:[%s0 + $0x4f0] sm:$0xff]
  %v173 = vld [vmem:[%s0 + $0x4f8] sm:$0xff]
  %v174 = vld [vmem:[%s0 + $0x500] sm:$0xff]
  %v175 = vld [vmem:[%s0 + $0x508] sm:$0xff]
  %v176 = vld [vmem:[%s0 + $0x510] sm:$0xff]
  %v177 = vld [vmem:[%s0 + $0x518] sm:$0xff]
  %v178 = vld [vmem:[%s0 + $0x520] sm:$0xff]
  %v179 = vld [vmem:[%s0 + $0x528] sm:$0xff]
  %v180 = vld [vmem:[%s0 + $0x530] sm:$0xff]
  %v181 = vld [vmem:[%s0 + $0x538] sm:$0xff]
  %v182 = vld [vmem:[%s0 + $0x540] sm:$0xff]
  %v183 = vld [vmem:[%s0 + $0x548] sm:$0xff]
  %v184 = vld [vmem:[%s0 + $0x550] sm:$0xff]
  %v185 = vld [vmem:[%s0 + $0x558] sm:$0xff]
  %v186 = vld [vmem:[%s0 + $0x560] sm:$0xff]
  %v187 = vld [vmem:[%s0 + $0x568] sm:$0xff]
  %v188 = vld [vmem:[%s0 + $0x570] sm:$0xff]
  %v189 = vld [vmem:[%s0 + $0x578] sm:$0xff]
  %v190 = vld [vmem:[%s0 + $0x580] sm:$0xff]
  %v191 = vld [vmem:[%s0 + $0x588] sm:$0xff]
  %v192 = vld [vmem:[%s0 + $0x590] sm:$0xff]
  %v193 = vld [vmem:[%s0 + $0x598] sm:$0xff]
  %v194 = vld [vmem:[%s0 + $0x5a0] sm:$0xff]
  %v195 = vld [vmem:[%s0 + $0x5a8] sm:$0xff]
  %v196 = vld [vmem:[%s0 + $0x5b0] sm:$0xff]
  %v197 = vld [vmem:[%s0 + $0x5b8] sm:$0xff]
  %v198 = vld [vmem:[%s0 + $0x5c0] sm:$0xff]
  %v199 = vld [vmem:[%s0 + $0x5c8] sm:$0xff]
  %v200 = vld [vmem:[%s0 + $0x5d0] sm:$0xff]
  %v201 = vld [vmem:[%s0 + $0x5d8] sm:$0xff]
  %v202 = vld [vmem:[%s0 + $0x5e0] sm:$0xff]
  %v203 = vld [vmem:[%s0 + $0x5e8] sm:$0xff]
  %v204 = vld [vmem:[%s0 + $0x5f0] sm:$0xff]
  %v205 = vld [vmem:[%s0 + $0x5f8] sm:$0xff]
  %v206 = vld [vmem:[%s0 + $0x600] sm:$0xff]
  %v207 = vld [vmem:[%s0 + $0x608] sm:$0xff]
  %v208 = vld [vmem:[%s0 + $0x610] sm:$0xff]
  %v209 = vld [vmem:[%s0 + $0x618] sm:$0xff]
  %v210 = vld [vmem:[%s0 + $0x620] sm:$0xff]
  %v211 = vld [vmem:[%s0 + $0x628] sm:$0xff]
  %v212 = vld [vmem:[%s0 + $0x630] sm:$0xff]
  %v213 = vld [vmem:[%s0 + $0x638] sm:$0xff]
  %v214 = vld [vmem:[%s0 + $0x640] sm:$0xff]
  %v215 = vld [vmem:[%s0 + $0x648] sm:$0xff]
  %v216 = vld [vmem:[%s0 + $0x650] sm:$0xff]
  %v217 = vld [vmem:[%s0 + $0x658] sm:$0xff]
  %v218 = vld [vmem:[%s0 + $0x660] sm:$0xff]
  %v219 = vld [vmem:[%s0 + $0x668] sm:$0xff]
  %v220 = vld [vmem:[%s0 + $0x670] sm:$0xff]
  %v221 = vld [vmem:[%s0 + $0x678] sm:$0xff]
  %v222 = vld [vmem:[%s0 + $0x680] sm:$0xff]
  %v223 = vld [vmem:[%s0 + $0x688] sm:$0xff]
  %v224 = vld [vmem:[%s0 + $0x690] sm:$0xff]
  %v225 = vld [vmem:[%s0 + $0x698] sm:$0xff]
  %v226 = vld [vmem:[%s0 + $0x6a0] sm:$0xff]
  %v227 = vld [vmem:[%s0 + $0x6a8] sm:$0xff]
  %v228 = vld [vmem:[%s0 + $0x6b0] sm:$0xff]
  %v229 = vld [vmem:[%s0 + $0x6b8] sm:$0xff]
  %v230 = vld [vmem:[%s0 + $0x6c0] sm:$0xff]
  %v231 = vld [vmem:[%s0 + $0x6c8] sm:$0xff]
  %v232 = vld [vmem:[%s0 + $0x6d0] sm:$0xff]
  %v233 = vld [vmem:[%s0 + $0x6d8] sm:$0xff]
  %v234 = vld [vmem:[%s0 + $0x6e0] sm:$0xff]
  %v235 = vld [vmem:[%s0 + $0x6e8] sm:$0xff]
  %v236 = vld [vmem:[%s0 + $0x6f0] sm:$0xff]
  %v237 = vld [vmem:[%s0 + $0x6f8] sm:$0xff]
  %v238 = vld [vmem:[%s0 + $0x700] sm:$0xff]
  %v239 = vld [vmem:[%s0 + $0x708] sm:$0xff]
  %v240 = vld [vmem:[%s0 + $0x710] sm:$0xff]
  %v241 = vld [vmem:[%s0 + $0x718] sm:$0xff]
  %v242 = vld [vmem:[%s0 + $0x720] sm:$0xff]
  %v243 = vld [vmem:[%s0 + $0x728] sm:$0xff]
  %v244 = vld [vmem:[%s0 + $0x730] sm:$0xff]
  %v245 = vld [vmem:[%s0 + $0x738] sm:$0xff]
  %v246 = vld [vmem:[%s0 + $0x740] sm:$0xff]
  %v247 = vld [vmem:[%s0 + $0x748] sm:$0xff]
  %v248 = vld [vmem:[%s0 + $0x750] sm:$0xff]
  %v249 = vld [vmem:[%s0 + $0x758] sm:$0xff]
  %v250 = vld [vmem:[%s0 + $0x760] sm:$0xff]
  %v251 = vld [vmem:[%s0 + $0x768] sm:$0xff]
  %v252 = vld [vmem:[%s0 + $0x770] sm:$0xff]
  %v253 = vld [vmem:[%s0 + $0x778] sm:$0xff]
  %v254 = vld [vmem:[%s0 + $0x780] sm:$0xff]
  %v255 = vld [vmem:[%s0 + $0x788] sm:$0xff]
  %v256 = vld [vmem:[%s0 + $0x790] sm:$0xff]
  %v257 = vld [vmem:[%s0 + $0x798] sm:$0xff]
  %v258 = vld [vmem:[%s0 + $0x7a0] sm:$0xff]
  %v259 = vld [vmem:[%s0 + $0x7a8] sm:$0xff]
  %v260 = vld [vmem:[%s0 + $0x7b0] sm:$0xff]
  %v261 = vld [vmem:[%s0 + $0x7b8] sm:$0xff]
  %v262 = vld [vmem:[%s0 + $0x7c0] sm:$0xff]
  %v263 = vld [vmem:[%s0 + $0x7c8] sm:$0xff]
  %v264 = vld [vmem:[%s0 + $0x7d0] sm:$0xff]
  %v265 = vld [vmem:[%s0 + $0x7d8] sm:$0xff]
  %v266 = vld [vmem:[%s0 + $0x7e0] sm:$0xff]
  %v267 = vld [vmem:[%s0 + $0x7e8] sm:$0xff]
  %v268 = vld [vmem:[%s0 + $0x7f0] sm:$0xff]
  %v269 = vld [vmem:[%s0 + $0x7f8] sm:$0xff]
  %v270 = vld [vmem:[%s1] sm:$0xff]
  %v271 = vld [vmem:[%s1 + $0x8] sm:$0xff]
  %v272 = vld [vmem:[%s1 + $0x10] sm:$0xff]
  %v273 = vld [vmem:[%s1 + $0x18] sm:$0x1]
  %v274 = vld [vmem:[%s2] sm:$0x1]
  %v276 = vlaneseq
  %v277 = vshrl.u32 %v276, 7
  %v278 = vsub.s32 0, %v277
  %v279 = vrot.slane %v274, %v278
  %vm281 = vcmask 203776
  %v283 = vsel %vm281, %v14, 0
  %v286 = vsel %vm281, %v15, 0
  %v289 = vsel %vm281, %v16, 0
  %v292 = vsel %vm281, %v17, 0
  %v295 = vsel %vm281, %v18, 0
  %v298 = vsel %vm281, %v19, 0
  %v301 = vsel %vm281, %v20, 0
  %v304 = vsel %vm281, %v21, 0
  %v307 = vsel %vm281, %v22, 0
  %v310 = vsel %vm281, %v23, 0
  %v313 = vsel %vm281, %v24, 0
  %v316 = vsel %vm281, %v25, 0
  %v319 = vsel %vm281, %v26, 0
  %v322 = vsel %vm281, %v27, 0
  %v325 = vsel %vm281, %v28, 0
  %v328 = vsel %vm281, %v29, 0
  %v331 = vsel %vm281, %v30, 0
  %v334 = vsel %vm281, %v31, 0
  %v337 = vsel %vm281, %v32, 0
  %v340 = vsel %vm281, %v33, 0
  %v343 = vsel %vm281, %v34, 0
  %v346 = vsel %vm281, %v35, 0
  %v349 = vsel %vm281, %v36, 0
  %v352 = vsel %vm281, %v37, 0
  %v355 = vsel %vm281, %v38, 0
  %v358 = vsel %vm281, %v39, 0
  %v361 = vsel %vm281, %v40, 0
  %v364 = vsel %vm281, %v41, 0
  %v367 = vsel %vm281, %v42, 0
  %v370 = vsel %vm281, %v43, 0
  %v373 = vsel %vm281, %v44, 0
  %v376 = vsel %vm281, %v45, 0
  %v379 = vsel %vm281, %v46, 0
  %v382 = vsel %vm281, %v47, 0
  %v385 = vsel %vm281, %v48, 0
  %v388 = vsel %vm281, %v49, 0
  %v391 = vsel %vm281, %v50, 0
  %v394 = vsel %vm281, %v51, 0
  %v397 = vsel %vm281, %v52, 0
  %v400 = vsel %vm281, %v53, 0
  %v403 = vsel %vm281, %v54, 0
  %v406 = vsel %vm281, %v55, 0
  %v409 = vsel %vm281, %v56, 0
  %v412 = vsel %vm281, %v57, 0
  %v415 = vsel %vm281, %v58, 0
  %v418 = vsel %vm281, %v59, 0
  %v421 = vsel %vm281, %v60, 0
  %v424 = vsel %vm281, %v61, 0
  %v427 = vsel %vm281, %v62, 0
  %v430 = vsel %vm281, %v63, 0
  %v433 = vsel %vm281, %v64, 0
  %v436 = vsel %vm281, %v65, 0
  %v439 = vsel %vm281, %v66, 0
  %v442 = vsel %vm281, %v67, 0
  %v445 = vsel %vm281, %v68, 0
  %v448 = vsel %vm281, %v69, 0
  %v451 = vsel %vm281, %v70, 0
  %v454 = vsel %vm281, %v71, 0
  %v457 = vsel %vm281, %v72, 0
  %v460 = vsel %vm281, %v73, 0
  %v463 = vsel %vm281, %v74, 0
  %v466 = vsel %vm281, %v75, 0
  %v469 = vsel %vm281, %v76, 0
  %v472 = vsel %vm281, %v77, 0
  %v475 = vsel %vm281, %v78, 0
  %v478 = vsel %vm281, %v79, 0
  %v481 = vsel %vm281, %v80, 0
  %v484 = vsel %vm281, %v81, 0
  %v487 = vsel %vm281, %v82, 0
  %v490 = vsel %vm281, %v83, 0
  %v493 = vsel %vm281, %v84, 0
  %v496 = vsel %vm281, %v85, 0
  %v499 = vsel %vm281, %v86, 0
  %v502 = vsel %vm281, %v87, 0
  %v505 = vsel %vm281, %v88, 0
  %v508 = vsel %vm281, %v89, 0
  %v511 = vsel %vm281, %v90, 0
  %v514 = vsel %vm281, %v91, 0
  %v517 = vsel %vm281, %v92, 0
  %v520 = vsel %vm281, %v93, 0
  %v523 = vsel %vm281, %v94, 0
  %v526 = vsel %vm281, %v95, 0
  %v529 = vsel %vm281, %v96, 0
  %v532 = vsel %vm281, %v97, 0
  %v535 = vsel %vm281, %v98, 0
  %v538 = vsel %vm281, %v99, 0
  %v541 = vsel %vm281, %v100, 0
  %v544 = vsel %vm281, %v101, 0
  %v547 = vsel %vm281, %v102, 0
  %v550 = vsel %vm281, %v103, 0
  %v553 = vsel %vm281, %v104, 0
  %v556 = vsel %vm281, %v105, 0
  %v559 = vsel %vm281, %v106, 0
  %v562 = vsel %vm281, %v107, 0
  %v565 = vsel %vm281, %v108, 0
  %v568 = vsel %vm281, %v109, 0
  %v571 = vsel %vm281, %v110, 0
  %v574 = vsel %vm281, %v111, 0
  %v577 = vsel %vm281, %v112, 0
  %v580 = vsel %vm281, %v113, 0
  %v583 = vsel %vm281, %v114, 0
  %v586 = vsel %vm281, %v115, 0
  %v589 = vsel %vm281, %v116, 0
  %v592 = vsel %vm281, %v117, 0
  %v595 = vsel %vm281, %v118, 0
  %v598 = vsel %vm281, %v119, 0
  %v601 = vsel %vm281, %v120, 0
  %v604 = vsel %vm281, %v121, 0
  %v607 = vsel %vm281, %v122, 0
  %v610 = vsel %vm281, %v123, 0
  %v613 = vsel %vm281, %v124, 0
  %v616 = vsel %vm281, %v125, 0
  %v619 = vsel %vm281, %v126, 0
  %v622 = vsel %vm281, %v127, 0
  %v625 = vsel %vm281, %v128, 0
  %v628 = vsel %vm281, %v129, 0
  %v631 = vsel %vm281, %v130, 0
  %v634 = vsel %vm281, %v131, 0
  %v637 = vsel %vm281, %v132, 0
  %v640 = vsel %vm281, %v133, 0
  %v643 = vsel %vm281, %v134, 0
  %v646 = vsel %vm281, %v135, 0
  %v649 = vsel %vm281, %v136, 0
  %v652 = vsel %vm281, %v137, 0
  %v655 = vsel %vm281, %v138, 0
  %v658 = vsel %vm281, %v139, 0
  %v661 = vsel %vm281, %v140, 0
  %v664 = vsel %vm281, %v141, 0
  %v667 = vsel %vm281, %v142, 0
  %v670 = vsel %vm281, %v143, 0
  %v673 = vsel %vm281, %v144, 0
  %v676 = vsel %vm281, %v145, 0
  %v679 = vsel %vm281, %v146, 0
  %v682 = vsel %vm281, %v147, 0
  %v685 = vsel %vm281, %v148, 0
  %v688 = vsel %vm281, %v149, 0
  %v691 = vsel %vm281, %v150, 0
  %v694 = vsel %vm281, %v151, 0
  %v697 = vsel %vm281, %v152, 0
  %v700 = vsel %vm281, %v153, 0
  %v703 = vsel %vm281, %v154, 0
  %v706 = vsel %vm281, %v155, 0
  %v709 = vsel %vm281, %v156, 0
  %v712 = vsel %vm281, %v157, 0
  %v715 = vsel %vm281, %v158, 0
  %v718 = vsel %vm281, %v159, 0
  %v721 = vsel %vm281, %v160, 0
  %v724 = vsel %vm281, %v161, 0
  %v727 = vsel %vm281, %v162, 0
  %v730 = vsel %vm281, %v163, 0
  %v733 = vsel %vm281, %v164, 0
  %v736 = vsel %vm281, %v165, 0
  %v739 = vsel %vm281, %v166, 0
  %v742 = vsel %vm281, %v167, 0
  %v745 = vsel %vm281, %v168, 0
  %v748 = vsel %vm281, %v169, 0
  %v751 = vsel %vm281, %v170, 0
  %v754 = vsel %vm281, %v171, 0
  %v757 = vsel %vm281, %v172, 0
  %v760 = vsel %vm281, %v173, 0
  %v763 = vsel %vm281, %v174, 0
  %v766 = vsel %vm281, %v175, 0
  %v769 = vsel %vm281, %v176, 0
  %v772 = vsel %vm281, %v177, 0
  %v775 = vsel %vm281, %v178, 0
  %v778 = vsel %vm281, %v179, 0
  %v781 = vsel %vm281, %v180, 0
  %v784 = vsel %vm281, %v181, 0
  %v787 = vsel %vm281, %v182, 0
  %v790 = vsel %vm281, %v183, 0
  %v793 = vsel %vm281, %v184, 0
  %v796 = vsel %vm281, %v185, 0
  %v799 = vsel %vm281, %v186, 0
  %v802 = vsel %vm281, %v187, 0
  %v805 = vsel %vm281, %v188, 0
  %v808 = vsel %vm281, %v189, 0
  %v811 = vsel %vm281, %v190, 0
  %v814 = vsel %vm281, %v191, 0
  %v817 = vsel %vm281, %v192, 0
  %v820 = vsel %vm281, %v193, 0
  %v823 = vsel %vm281, %v194, 0
  %v826 = vsel %vm281, %v195, 0
  %v829 = vsel %vm281, %v196, 0
  %v832 = vsel %vm281, %v197, 0
  %v835 = vsel %vm281, %v198, 0
  %v838 = vsel %vm281, %v199, 0
  %v841 = vsel %vm281, %v200, 0
  %v844 = vsel %vm281, %v201, 0
  %v847 = vsel %vm281, %v202, 0
  %v850 = vsel %vm281, %v203, 0
  %v853 = vsel %vm281, %v204, 0
  %v856 = vsel %vm281, %v205, 0
  %v859 = vsel %vm281, %v206, 0
  %v862 = vsel %vm281, %v207, 0
  %v865 = vsel %vm281, %v208, 0
  %v868 = vsel %vm281, %v209, 0
  %v871 = vsel %vm281, %v210, 0
  %v874 = vsel %vm281, %v211, 0
  %v877 = vsel %vm281, %v212, 0
  %v880 = vsel %vm281, %v213, 0
  %v883 = vsel %vm281, %v214, 0
  %v886 = vsel %vm281, %v215, 0
  %v889 = vsel %vm281, %v216, 0
  %v892 = vsel %vm281, %v217, 0
  %v895 = vsel %vm281, %v218, 0
  %v898 = vsel %vm281, %v219, 0
  %v901 = vsel %vm281, %v220, 0
  %v904 = vsel %vm281, %v221, 0
  %v907 = vsel %vm281, %v222, 0
  %v910 = vsel %vm281, %v223, 0
  %v913 = vsel %vm281, %v224, 0
  %v916 = vsel %vm281, %v225, 0
  %v919 = vsel %vm281, %v226, 0
  %v922 = vsel %vm281, %v227, 0
  %v925 = vsel %vm281, %v228, 0
  %v928 = vsel %vm281, %v229, 0
  %v931 = vsel %vm281, %v230, 0
  %v934 = vsel %vm281, %v231, 0
  %v937 = vsel %vm281, %v232, 0
  %v940 = vsel %vm281, %v233, 0
  %v943 = vsel %vm281, %v234, 0
  %v946 = vsel %vm281, %v235, 0
  %v949 = vsel %vm281, %v236, 0
  %v952 = vsel %vm281, %v237, 0
  %v955 = vsel %vm281, %v238, 0
  %v958 = vsel %vm281, %v239, 0
  %v961 = vsel %vm281, %v240, 0
  %v964 = vsel %vm281, %v241, 0
  %v967 = vsel %vm281, %v242, 0
  %v970 = vsel %vm281, %v243, 0
  %v973 = vsel %vm281, %v244, 0
  %v976 = vsel %vm281, %v245, 0
  %v979 = vsel %vm281, %v246, 0
  %v982 = vsel %vm281, %v247, 0
  %v985 = vsel %vm281, %v248, 0
  %v988 = vsel %vm281, %v249, 0
  %v991 = vsel %vm281, %v250, 0
  %v994 = vsel %vm281, %v251, 0
  %v997 = vsel %vm281, %v252, 0
  %v1000 = vsel %vm281, %v253, 0
  %v1003 = vsel %vm281, %v254, 0
  %v1006 = vsel %vm281, %v255, 0
  %v1009 = vsel %vm281, %v256, 0
  %v1012 = vsel %vm281, %v257, 0
  %v1015 = vsel %vm281, %v258, 0
  %v1018 = vsel %vm281, %v259, 0
  %v1021 = vsel %vm281, %v260, 0
  %v1024 = vsel %vm281, %v261, 0
  %v1027 = vsel %vm281, %v262, 0
  %v1030 = vsel %vm281, %v263, 0
  %v1033 = vsel %vm281, %v264, 0
  %v1036 = vsel %vm281, %v265, 0
  %v1039 = vsel %vm281, %v266, 0
  %v1042 = vsel %vm281, %v267, 0
  %v1045 = vsel %vm281, %v268, 0
  %v1048 = vsel %vm281, %v269, 0
  %vm1050 = vcmask 1040384
  %v1052 = vsel %vm1050, %v273, 0
  %1054 = vmatprep.subr.mxu0 0.0
  %1055 = vmatpush1.msra.mxu0 %v270
  %1056 = vmatprep.subr.mxu0 0.0
  %1057 = vmatpush1.msra.mxu0 %v271
  %1058 = vmatprep.subr.mxu0 0.0
  %1059 = vmatpush1.msra.mxu0 %v272
  %1060 = vmatprep.subr.mxu0 0.0
  %1061 = vmatpush1.msra.mxu0 %v1052
  %1062 = vmatprep.subr.mxu0 0.0
  %1063 = vmatpush1.msra.mxu0 0.0
  %1064 = vmatprep.subr.mxu0 0.0
  %1065 = vmatpush1.msra.mxu0 0.0
  %1066 = vmatprep.subr.mxu0 0.0
  %1067 = vmatpush1.msra.mxu0 0.0
  %1068 = vmatprep.subr.mxu0 0.0
  %1069 = vmatpush1.msra.mxu0 0.0
  %1070 = vmatprep.subr.mxu0 0.0
  %1071 = vmatpush1.msra.mxu0 0.0
  %1072 = vmatprep.subr.mxu0 0.0
  %1073 = vmatpush1.msra.mxu0 0.0
  %1074 = vmatprep.subr.mxu0 0.0
  %1075 = vmatpush1.msra.mxu0 0.0
  %1076 = vmatprep.subr.mxu0 0.0
  %1077 = vmatpush1.msra.mxu0 0.0
  %1078 = vmatprep.subr.mxu0 0.0
  %1079 = vmatpush1.msra.mxu0 0.0
  %1080 = vmatprep.subr.mxu0 0.0
  %1081 = vmatpush1.msra.mxu0 0.0
  %1082 = vmatprep.subr.mxu0 0.0
  %1083 = vmatpush1.msra.mxu0 0.0
  %1084 = vmatprep.subr.mxu0 0.0
  %1085 = vmatpush1.msra.mxu0 0.0
  %1086 = vmatprep.subr.mxu0 0.0
  %1087 = vmatpush1.msra.mxu0 0.0
  %1088 = vmatprep.subr.mxu0 0.0
  %1089 = vmatpush1.msra.mxu0 0.0
  %1090 = vmatprep.subr.mxu0 0.0
  %1091 = vmatpush1.msra.mxu0 0.0
  %1092 = vmatprep.subr.mxu0 0.0
  %1093 = vmatpush1.msra.mxu0 0.0
  %1094 = vmatprep.subr.mxu0 0.0
  %1095 = vmatpush1.msra.mxu0 0.0
  %1096 = vmatprep.subr.mxu0 0.0
  %1097 = vmatpush1.msra.mxu0 0.0
  %1098 = vmatprep.subr.mxu0 0.0
  %1099 = vmatpush1.msra.mxu0 0.0
  %1100 = vmatprep.subr.mxu0 0.0
  %1101 = vmatpush1.msra.mxu0 0.0
  %1102 = vmatprep.subr.mxu0 0.0
  %1103 = vmatpush1.msra.mxu0 0.0
  %1104 = vmatprep.subr.mxu0 0.0
  %1105 = vmatpush1.msra.mxu0 0.0
  %1106 = vmatprep.subr.mxu0 0.0
  %1107 = vmatpush1.msra.mxu0 0.0
  %1108 = vmatprep.subr.mxu0 0.0
  %1109 = vmatpush1.msra.mxu0 0.0
  %1110 = vmatprep.subr.mxu0 0.0
  %1111 = vmatpush1.msra.mxu0 0.0
  %1112 = vmatprep.subr.mxu0 0.0
  %1113 = vmatpush1.msra.mxu0 0.0
  %1114 = vmatprep.subr.mxu0 0.0
  %1115 = vmatpush1.msra.mxu0 0.0
  %1116 = vmatprep.subr.mxu0 0.0
  %1117 = vmatpush1.msra.mxu0 0.0
  %1118 = vmatprep.mubr.f32.mxu0 0.0
  %1119 = vmatmul.mubr.f32.gmra.mrb[0].mxu0 %v283
  %v1120 = vpop.f32.mrb[0].mxu0
  %v1121 = vadd.f32 %v279, %v1120
  %v1122 = vpop.f32.mrb[0].mxu0
  %1123 = vmatprep.mubr.f32.mxu0 0.0
  %1124 = vmatmul.mubr.f32.gmra.mrb[0].mxu0 %v286
  %v1125 = vpop.f32.mrb[0].mxu0
  %v1126 = vadd.f32 %v279, %v1125
  %v1127 = vpop.f32.mrb[0].mxu0
  %1128 = vmatprep.mubr.f32.mxu0 0.0
  %1129 = vmatmul.mubr.f32.gmra.mrb[0].mxu0 %v289
  %v1130 = vpop.f32.mrb[0].mxu0
  %v1131 = vadd.f32 %v279, %v1130
  %v1132 = vpop.f32.mrb[0].mxu0
  %1133 = vmatprep.mubr.f32.mxu0 0.0
  %1134 = vmatmul.mubr.f32.gmra.mrb[0].mxu0 %v292
  %v1135 = vpop.f32.mrb[0].mxu0
  %v1136 = vadd.f32 %v279, %v1135
  %v1137 = vpop.f32.mrb[0].mxu0
  %1138 = vmatprep.mubr.f32.mxu0 0.0
  %1139 = vmatmul.mubr.f32.gmra.mrb[0].mxu0 %v295
  %v1140 = vpop.f32.mrb[0].mxu0
  %v1141 = vadd.f32 %v279, %v1140
  %v1142 = vpop.f32.mrb[0].mxu0
  %1143 = vmatprep.mubr.f32.mxu0 0.0
  %1144 = vmatmul.mubr.f32.gmra.mrb[0].mxu0 %v298
  %v1145 = vpop.f32.mrb[0].mxu0
  %v1146 = vadd.f32 %v279, %v1145
  %v1147 = vpop.f32.mrb[0].mxu0
  %1148 = vmatprep.mubr.f32.mxu0 0.0
  %1149 = vmatmul.mubr.f32.gmra.mrb[0].mxu0 %v301
  %v1150 = vpop.f32.mrb[0].mxu0
  %v1151 = vadd.f32 %v279, %v1150
  %v1152 = vpop.f32.mrb[0].mxu0
  %1153 = vmatprep.mubr.f32.mxu0 0.0
  %1154 = vmatmul.mubr.f32.gmra.mrb[0].mxu0 %v304
  %v1155 = vpop.f32.mrb[0].mxu0
  %v1156 = vadd.f32 %v279, %v1155
  %v1157 = vpop.f32.mrb[0].mxu0
  %1158 = vmatprep.mubr.f32.mxu0 0.0
  %1159 = vmatmul.mubr.f32.gmra.mrb[0].mxu0 %v307
  %v1160 = vpop.f32.mrb[0].mxu0
  %v1161 = vadd.f32 %v279, %v1160
  %v1162 = vpop.f32.mrb[0].mxu0
  %1163 = vmatprep.mubr.f32.mxu0 0.0
  %1164 = vmatmul.mubr.f32.gmra.mrb[0].mxu0 %v310
  %v1165 = vpop.f32.mrb[0].mxu0
  %v1166 = vadd.f32 %v279, %v1165
  %v1167 = vpop.f32.mrb[0].mxu0
  %1168 = vmatprep.mubr.f32.mxu0 0.0
  %1169 = vmatmul.mubr.f32.gmra.mrb[0].mxu0 %v313
  %v1170 = vpop.f32.mrb[0].mxu0
  %v1171 = vadd.f32 %v279, %v1170
  %v1172 = vpop.f32.mrb[0].mxu0
  %1173 = vmatprep.mubr.f32.mxu0 0.0
  %1174 = vmatmul.mubr.f32.gmra.mrb[0].mxu0 %v316
  %v1175 = vpop.f32.mrb[0].mxu0
  %v1176 = vadd.f32 %v279, %v1175
  %v1177 = vpop.f32.mrb[0].mxu0
  %1178 = vmatprep.mubr.f32.mxu0 0.0
  %1179 = vmatmul.mubr.f32.gmra.mrb[0].mxu0 %v319
  %v1180 = vpop.f32.mrb[0].mxu0
  %v1181 = vadd.f32 %v279, %v1180
  %v1182 = vpop.f32.mrb[0].mxu0
  %1183 = vmatprep.mubr.f32.mxu0 0.0
  %1184 = vmatmul.mubr.f32.gmra.mrb[0].mxu0 %v322
  %v1185 = vpop.f32.mrb[0].mxu0
  %v1186 = vadd.f32 %v279, %v1185
  %v1187 = vpop.f32.mrb[0].mxu0
  %1188 = vmatprep.mubr.f32.mxu0 0.0
  %1189 = vmatmul.mubr.f32.gmra.mrb[0].mxu0 %v325
  %v1190 = vpop.f32.mrb[0].mxu0
  %v1191 = vadd.f32 %v279, %v1190
  %v1192 = vpop.f32.mrb[0].mxu0
  %1193 = vmatprep.mubr.f32.mxu0 0.0
  %1194 = vmatmul.mubr.f32.gmra.mrb[0].mxu0 %v328
  %v1195 = vpop.f32.mrb[0].mxu0
  %v1196 = vadd.f32 %v279, %v1195
  %v1197 = vpop.f32.mrb[0].mxu0
  %1198 = vmatprep.mubr.f32.mxu0 0.0
  %1199 = vmatmul.mubr.f32.gmra.mrb[0].mxu0 %v331
  %v1200 = vpop.f32.mrb[0].mxu0
  %v1201 = vadd.f32 %v279, %v1200
  %v1202 = vpop.f32.mrb[0].mxu0
  %1203 = vmatprep.mubr.f32.mxu0 0.0
  %1204 = vmatmul.mubr.f32.gmra.mrb[0].mxu0 %v334
  %v1205 = vpop.f32.mrb[0].mxu0
  %v1206 = vadd.f32 %v279, %v1205
  %v1207 = vpop.f32.mrb[0].mxu0
  %1208 = vmatprep.mubr.f32.mxu0 0.0
  %1209 = vmatmul.mubr.f32.gmra.mrb[0].mxu0 %v337
  %v1210 = vpop.f32.mrb[0].mxu0
  %v1211 = vadd.f32 %v279, %v1210
  %v1212 = vpop.f32.mrb[0].mxu0
  %1213 = vmatprep.mubr.f32.mxu0 0.0
  %1214 = vmatmul.mubr.f32.gmra.mrb[0].mxu0 %v340
  %v1215 = vpop.f32.mrb[0].mxu0
  %v1216 = vadd.f32 %v279, %v1215
  %v1217 = vpop.f32.mrb[0].mxu0
  %1218 = vmatprep.mubr.f32.mxu0 0.0
  %1219 = vmatmul.mubr.f32.gmra.mrb[0].mxu0 %v343
  %v1220 = vpop.f32.mrb[0].mxu0
  %v1221 = vadd.f32 %v279, %v1220
  %v1222 = vpop.f32.mrb[0].mxu0
  %1223 = vmatprep.mubr.f32.mxu0 0.0
  %1224 = vmatmul.mubr.f32.gmra.mrb[0].mxu0 %v346
  %v1225 = vpop.f32.mrb[0].mxu0
  %v1226 = vadd.f32 %v279, %v1225
  %v1227 = vpop.f32.mrb[0].mxu0
  %1228 = vmatprep.mubr.f32.mxu0 0.0
  %1229 = vmatmul.mubr.f32.gmra.mrb[0].mxu0 %v349
  %v1230 = vpop.f32.mrb[0].mxu0
  %v1231 = vadd.f32 %v279, %v1230
  %v1232 = vpop.f32.mrb[0].mxu0
  %1233 = vmatprep.mubr.f32.mxu0 0.0
  %1234 = vmatmul.mubr.f32.gmra.mrb[0].mxu0 %v352
  %v1235 = vpop.f32.mrb[0].mxu0
  %v1236 = vadd.f32 %v279, %v1235
  %v1237 = vpop.f32.mrb[0].mxu0
  %1238 = vmatprep.mubr.f32.mxu0 0.0
  %1239 = vmatmul.mubr.f32.gmra.mrb[0].mxu0 %v355
  %v1240 = vpop.f32.mrb[0].mxu0
  %v1241 = vadd.f32 %v279, %v1240
  %v1242 = vpop.f32.mrb[0].mxu0
  %1243 = vmatprep.mubr.f32.mxu0 0.0
  %1244 = vmatmul.mubr.f32.gmra.mrb[0].mxu0 %v358
  %v1245 = vpop.f32.mrb[0].mxu0
  %v1246 = vadd.f32 %v279, %v1245
  %v1247 = vpop.f32.mrb[0].mxu0
  %1248 = vmatprep.mubr.f32.mxu0 0.0
  %1249 = vmatmul.mubr.f32.gmra.mrb[0].mxu0 %v361
  %v1250 = vpop.f32.mrb[0].mxu0
  %v1251 = vadd.f32 %v279, %v1250
  %v1252 = vpop.f32.mrb[0].mxu0
  %1253 = vmatprep.mubr.f32.mxu0 0.0
  %1254 = vmatmul.mubr.f32.gmra.mrb[0].mxu0 %v364
  %v1255 = vpop.f32.mrb[0].mxu0
  %v1256 = vadd.f32 %v279, %v1255
  %v1257 = vpop.f32.mrb[0].mxu0
  %1258 = vmatprep.mubr.f32.mxu0 0.0
  %1259 = vmatmul.mubr.f32.gmra.mrb[0].mxu0 %v367
  %v1260 = vpop.f32.mrb[0].mxu0
  %v1261 = vadd.f32 %v279, %v1260
  %v1262 = vpop.f32.mrb[0].mxu0
  %1263 = vmatprep.mubr.f32.mxu0 0.0
  %1264 = vmatmul.mubr.f32.gmra.mrb[0].mxu0 %v370
  %v1265 = vpop.f32.mrb[0].mxu0
  %v1266 = vadd.f32 %v279, %v1265
  %v1267 = vpop.f32.mrb[0].mxu0
  %1268 = vmatprep.mubr.f32.mxu0 0.0
  %1269 = vmatmul.mubr.f32.gmra.mrb[0].mxu0 %v373
  %v1270 = vpop.f32.mrb[0].mxu0
  %v1271 = vadd.f32 %v279, %v1270
  %v1272 = vpop.f32.mrb[0].mxu0
  %1273 = vmatprep.mubr.f32.mxu0 0.0
  %1274 = vmatmul.mubr.f32.gmra.mrb[0].mxu0 %v376
  %v1275 = vpop.f32.mrb[0].mxu0
  %v1276 = vadd.f32 %v279, %v1275
  %v1277 = vpop.f32.mrb[0].mxu0
  %1278 = vmatprep.mubr.f32.mxu0 0.0
  %1279 = vmatmul.mubr.f32.gmra.mrb[0].mxu0 %v379
  %v1280 = vpop.f32.mrb[0].mxu0
  %v1281 = vadd.f32 %v279, %v1280
  %v1282 = vpop.f32.mrb[0].mxu0
  %1283 = vmatprep.mubr.f32.mxu0 0.0
  %1284 = vmatmul.mubr.f32.gmra.mrb[0].mxu0 %v382
  %v1285 = vpop.f32.mrb[0].mxu0
  %v1286 = vadd.f32 %v279, %v1285
  %v1287 = vpop.f32.mrb[0].mxu0
  %1288 = vmatprep.mubr.f32.mxu0 0.0
  %1289 = vmatmul.mubr.f32.gmra.mrb[0].mxu0 %v385
  %v1290 = vpop.f32.mrb[0].mxu0
  %v1291 = vadd.f32 %v279, %v1290
  %v1292 = vpop.f32.mrb[0].mxu0
  %1293 = vmatprep.mubr.f32.mxu0 0.0
  %1294 = vmatmul.mubr.f32.gmra.mrb[0].mxu0 %v388
  %v1295 = vpop.f32.mrb[0].mxu0
  %v1296 = vadd.f32 %v279, %v1295
  %v1297 = vpop.f32.mrb[0].mxu0
  %1298 = vmatprep.mubr.f32.mxu0 0.0
  %1299 = vmatmul.mubr.f32.gmra.mrb[0].mxu0 %v391
  %v1300 = vpop.f32.mrb[0].mxu0
  %v1301 = vadd.f32 %v279, %v1300
  %v1302 = vpop.f32.mrb[0].mxu0
  %1303 = vmatprep.mubr.f32.mxu0 0.0
  %1304 = vmatmul.mubr.f32.gmra.mrb[0].mxu0 %v394
  %v1305 = vpop.f32.mrb[0].mxu0
  %v1306 = vadd.f32 %v279, %v1305
  %v1307 = vpop.f32.mrb[0].mxu0
  %1308 = vmatprep.mubr.f32.mxu0 0.0
  %1309 = vmatmul.mubr.f32.gmra.mrb[0].mxu0 %v397
  %v1310 = vpop.f32.mrb[0].mxu0
  %v1311 = vadd.f32 %v279, %v1310
  %v1312 = vpop.f32.mrb[0].mxu0
  %1313 = vmatprep.mubr.f32.mxu0 0.0
  %1314 = vmatmul.mubr.f32.gmra.mrb[0].mxu0 %v400
  %v1315 = vpop.f32.mrb[0].mxu0
  %v1316 = vadd.f32 %v279, %v1315
  %v1317 = vpop.f32.mrb[0].mxu0
  %1318 = vmatprep.mubr.f32.mxu0 0.0
  %1319 = vmatmul.mubr.f32.gmra.mrb[0].mxu0 %v403
  %v1320 = vpop.f32.mrb[0].mxu0
  %v1321 = vadd.f32 %v279, %v1320
  %v1322 = vpop.f32.mrb[0].mxu0
  %1323 = vmatprep.mubr.f32.mxu0 0.0
  %1324 = vmatmul.mubr.f32.gmra.mrb[0].mxu0 %v406
  %v1325 = vpop.f32.mrb[0].mxu0
  %v1326 = vadd.f32 %v279, %v1325
  %v1327 = vpop.f32.mrb[0].mxu0
  %1328 = vmatprep.mubr.f32.mxu0 0.0
  %1329 = vmatmul.mubr.f32.gmra.mrb[0].mxu0 %v409
  %v1330 = vpop.f32.mrb[0].mxu0
  %v1331 = vadd.f32 %v279, %v1330
  %v1332 = vpop.f32.mrb[0].mxu0
  %1333 = vmatprep.mubr.f32.mxu0 0.0
  %1334 = vmatmul.mubr.f32.gmra.mrb[0].mxu0 %v412
  %v1335 = vpop.f32.mrb[0].mxu0
  %v1336 = vadd.f32 %v279, %v1335
  %v1337 = vpop.f32.mrb[0].mxu0
  %1338 = vmatprep.mubr.f32.mxu0 0.0
  %1339 = vmatmul.mubr.f32.gmra.mrb[0].mxu0 %v415
  %v1340 = vpop.f32.mrb[0].mxu0
  %v1341 = vadd.f32 %v279, %v1340
  %v1342 = vpop.f32.mrb[0].mxu0
  %1343 = vmatprep.mubr.f32.mxu0 0.0
  %1344 = vmatmul.mubr.f32.gmra.mrb[0].mxu0 %v418
  %v1345 = vpop.f32.mrb[0].mxu0
  %v1346 = vadd.f32 %v279, %v1345
  %v1347 = vpop.f32.mrb[0].mxu0
  %1348 = vmatprep.mubr.f32.mxu0 0.0
  %1349 = vmatmul.mubr.f32.gmra.mrb[0].mxu0 %v421
  %v1350 = vpop.f32.mrb[0].mxu0
  %v1351 = vadd.f32 %v279, %v1350
  %v1352 = vpop.f32.mrb[0].mxu0
  %1353 = vmatprep.mubr.f32.mxu0 0.0
  %1354 = vmatmul.mubr.f32.gmra.mrb[0].mxu0 %v424
  %v1355 = vpop.f32.mrb[0].mxu0
  %v1356 = vadd.f32 %v279, %v1355
  %v1357 = vpop.f32.mrb[0].mxu0
  %1358 = vmatprep.mubr.f32.mxu0 0.0
  %1359 = vmatmul.mubr.f32.gmra.mrb[0].mxu0 %v427
  %v1360 = vpop.f32.mrb[0].mxu0
  %v1361 = vadd.f32 %v279, %v1360
  %v1362 = vpop.f32.mrb[0].mxu0
  %1363 = vmatprep.mubr.f32.mxu0 0.0
  %1364 = vmatmul.mubr.f32.gmra.mrb[0].mxu0 %v430
  %v1365 = vpop.f32.mrb[0].mxu0
  %v1366 = vadd.f32 %v279, %v1365
  %v1367 = vpop.f32.mrb[0].mxu0
  %1368 = vmatprep.mubr.f32.mxu0 0.0
  %1369 = vmatmul.mubr.f32.gmra.mrb[0].mxu0 %v433
  %v1370 = vpop.f32.mrb[0].mxu0
  %v1371 = vadd.f32 %v279, %v1370
  %v1372 = vpop.f32.mrb[0].mxu0
  %1373 = vmatprep.mubr.f32.mxu0 0.0
  %1374 = vmatmul.mubr.f32.gmra.mrb[0].mxu0 %v436
  %v1375 = vpop.f32.mrb[0].mxu0
  %v1376 = vadd.f32 %v279, %v1375
  %v1377 = vpop.f32.mrb[0].mxu0
  %1378 = vmatprep.mubr.f32.mxu0 0.0
  %1379 = vmatmul.mubr.f32.gmra.mrb[0].mxu0 %v439
  %v1380 = vpop.f32.mrb[0].mxu0
  %v1381 = vadd.f32 %v279, %v1380
  %v1382 = vpop.f32.mrb[0].mxu0
  %1383 = vmatprep.mubr.f32.mxu0 0.0
  %1384 = vmatmul.mubr.f32.gmra.mrb[0].mxu0 %v442
  %v1385 = vpop.f32.mrb[0].mxu0
  %v1386 = vadd.f32 %v279, %v1385
  %v1387 = vpop.f32.mrb[0].mxu0
  %1388 = vmatprep.mubr.f32.mxu0 0.0
  %1389 = vmatmul.mubr.f32.gmra.mrb[0].mxu0 %v445
  %v1390 = vpop.f32.mrb[0].mxu0
  %v1391 = vadd.f32 %v279, %v1390
  %v1392 = vpop.f32.mrb[0].mxu0
  %1393 = vmatprep.mubr.f32.mxu0 0.0
  %1394 = vmatmul.mubr.f32.gmra.mrb[0].mxu0 %v448
  %v1395 = vpop.f32.mrb[0].mxu0
  %v1396 = vadd.f32 %v279, %v1395
  %v1397 = vpop.f32.mrb[0].mxu0
  %1398 = vmatprep.mubr.f32.mxu0 0.0
  %1399 = vmatmul.mubr.f32.gmra.mrb[0].mxu0 %v451
  %v1400 = vpop.f32.mrb[0].mxu0
  %v1401 = vadd.f32 %v279, %v1400
  %v1402 = vpop.f32.mrb[0].mxu0
  %1403 = vmatprep.mubr.f32.mxu0 0.0
  %1404 = vmatmul.mubr.f32.gmra.mrb[0].mxu0 %v454
  %v1405 = vpop.f32.mrb[0].mxu0
  %v1406 = vadd.f32 %v279, %v1405
  %v1407 = vpop.f32.mrb[0].mxu0
  %1408 = vmatprep.mubr.f32.mxu0 0.0
  %1409 = vmatmul.mubr.f32.gmra.mrb[0].mxu0 %v457
  %v1410 = vpop.f32.mrb[0].mxu0
  %v1411 = vadd.f32 %v279, %v1410
  %v1412 = vpop.f32.mrb[0].mxu0
  %1413 = vmatprep.mubr.f32.mxu0 0.0
  %1414 = vmatmul.mubr.f32.gmra.mrb[0].mxu0 %v460
  %v1415 = vpop.f32.mrb[0].mxu0
  %v1416 = vadd.f32 %v279, %v1415
  %v1417 = vpop.f32.mrb[0].mxu0
  %1418 = vmatprep.mubr.f32.mxu0 0.0
  %1419 = vmatmul.mubr.f32.gmra.mrb[0].mxu0 %v463
  %v1420 = vpop.f32.mrb[0].mxu0
  %v1421 = vadd.f32 %v279, %v1420
  %v1422 = vpop.f32.mrb[0].mxu0
  %1423 = vmatprep.mubr.f32.mxu0 0.0
  %1424 = vmatmul.mubr.f32.gmra.mrb[0].mxu0 %v466
  %v1425 = vpop.f32.mrb[0].mxu0
  %v1426 = vadd.f32 %v279, %v1425
  %v1427 = vpop.f32.mrb[0].mxu0
  %1428 = vmatprep.mubr.f32.mxu0 0.0
  %1429 = vmatmul.mubr.f32.gmra.mrb[0].mxu0 %v469
  %v1430 = vpop.f32.mrb[0].mxu0
  %v1431 = vadd.f32 %v279, %v1430
  %v1432 = vpop.f32.mrb[0].mxu0
  %1433 = vmatprep.mubr.f32.mxu0 0.0
  %1434 = vmatmul.mubr.f32.gmra.mrb[0].mxu0 %v472
  %v1435 = vpop.f32.mrb[0].mxu0
  %v1436 = vadd.f32 %v279, %v1435
  %v1437 = vpop.f32.mrb[0].mxu0
  %1438 = vmatprep.mubr.f32.mxu0 0.0
  %1439 = vmatmul.mubr.f32.gmra.mrb[0].mxu0 %v475
  %v1440 = vpop.f32.mrb[0].mxu0
  %v1441 = vadd.f32 %v279, %v1440
  %v1442 = vpop.f32.mrb[0].mxu0
  %1443 = vmatprep.mubr.f32.mxu0 0.0
  %1444 = vmatmul.mubr.f32.gmra.mrb[0].mxu0 %v478
  %v1445 = vpop.f32.mrb[0].mxu0
  %v1446 = vadd.f32 %v279, %v1445
  %v1447 = vpop.f32.mrb[0].mxu0
  %1448 = vmatprep.mubr.f32.mxu0 0.0
  %1449 = vmatmul.mubr.f32.gmra.mrb[0].mxu0 %v481
  %v1450 = vpop.f32.mrb[0].mxu0
  %v1451 = vadd.f32 %v279, %v1450
  %v1452 = vpop.f32.mrb[0].mxu0
  %1453 = vmatprep.mubr.f32.mxu0 0.0
  %1454 = vmatmul.mubr.f32.gmra.mrb[0].mxu0 %v484
  %v1455 = vpop.f32.mrb[0].mxu0
  %v1456 = vadd.f32 %v279, %v1455
  %v1457 = vpop.f32.mrb[0].mxu0
  %1458 = vmatprep.mubr.f32.mxu0 0.0
  %1459 = vmatmul.mubr.f32.gmra.mrb[0].mxu0 %v487
  %v1460 = vpop.f32.mrb[0].mxu0
  %v1461 = vadd.f32 %v279, %v1460
  %v1462 = vpop.f32.mrb[0].mxu0
  %1463 = vmatprep.mubr.f32.mxu0 0.0
  %1464 = vmatmul.mubr.f32.gmra.mrb[0].mxu0 %v490
  %v1465 = vpop.f32.mrb[0].mxu0
  %v1466 = vadd.f32 %v279, %v1465
  %v1467 = vpop.f32.mrb[0].mxu0
  %1468 = vmatprep.mubr.f32.mxu0 0.0
  %1469 = vmatmul.mubr.f32.gmra.mrb[0].mxu0 %v493
  %v1470 = vpop.f32.mrb[0].mxu0
  %v1471 = vadd.f32 %v279, %v1470
  %v1472 = vpop.f32.mrb[0].mxu0
  %1473 = vmatprep.mubr.f32.mxu0 0.0
  %1474 = vmatmul.mubr.f32.gmra.mrb[0].mxu0 %v496
  %v1475 = vpop.f32.mrb[0].mxu0
  %v1476 = vadd.f32 %v279, %v1475
  %v1477 = vpop.f32.mrb[0].mxu0
  %1478 = vmatprep.mubr.f32.mxu0 0.0
  %1479 = vmatmul.mubr.f32.gmra.mrb[0].mxu0 %v499
  %v1480 = vpop.f32.mrb[0].mxu0
  %v1481 = vadd.f32 %v279, %v1480
  %v1482 = vpop.f32.mrb[0].mxu0
  %1483 = vmatprep.mubr.f32.mxu0 0.0
  %1484 = vmatmul.mubr.f32.gmra.mrb[0].mxu0 %v502
  %v1485 = vpop.f32.mrb[0].mxu0
  %v1486 = vadd.f32 %v279, %v1485
  %v1487 = vpop.f32.mrb[0].mxu0
  %1488 = vmatprep.mubr.f32.mxu0 0.0
  %1489 = vmatmul.mubr.f32.gmra.mrb[0].mxu0 %v505
  %v1490 = vpop.f32.mrb[0].mxu0
  %v1491 = vadd.f32 %v279, %v1490
  %v1492 = vpop.f32.mrb[0].mxu0
  %1493 = vmatprep.mubr.f32.mxu0 0.0
  %1494 = vmatmul.mubr.f32.gmra.mrb[0].mxu0 %v508
  %v1495 = vpop.f32.mrb[0].mxu0
  %v1496 = vadd.f32 %v279, %v1495
  %v1497 = vpop.f32.mrb[0].mxu0
  %1498 = vmatprep.mubr.f32.mxu0 0.0
  %1499 = vmatmul.mubr.f32.gmra.mrb[0].mxu0 %v511
  %v1500 = vpop.f32.mrb[0].mxu0
  %v1501 = vadd.f32 %v279, %v1500
  %v1502 = vpop.f32.mrb[0].mxu0
  %1503 = vmatprep.mubr.f32.mxu0 0.0
  %1504 = vmatmul.mubr.f32.gmra.mrb[0].mxu0 %v514
  %v1505 = vpop.f32.mrb[0].mxu0
  %v1506 = vadd.f32 %v279, %v1505
  %v1507 = vpop.f32.mrb[0].mxu0
  %1508 = vmatprep.mubr.f32.mxu0 0.0
  %1509 = vmatmul.mubr.f32.gmra.mrb[0].mxu0 %v517
  %v1510 = vpop.f32.mrb[0].mxu0
  %v1511 = vadd.f32 %v279, %v1510
  %v1512 = vpop.f32.mrb[0].mxu0
  %1513 = vmatprep.mubr.f32.mxu0 0.0
  %1514 = vmatmul.mubr.f32.gmra.mrb[0].mxu0 %v520
  %v1515 = vpop.f32.mrb[0].mxu0
  %v1516 = vadd.f32 %v279, %v1515
  %v1517 = vpop.f32.mrb[0].mxu0
  %1518 = vmatprep.mubr.f32.mxu0 0.0
  %1519 = vmatmul.mubr.f32.gmra.mrb[0].mxu0 %v523
  %v1520 = vpop.f32.mrb[0].mxu0
  %v1521 = vadd.f32 %v279, %v1520
  %v1522 = vpop.f32.mrb[0].mxu0
  %1523 = vmatprep.mubr.f32.mxu0 0.0
  %1524 = vmatmul.mubr.f32.gmra.mrb[0].mxu0 %v526
  %v1525 = vpop.f32.mrb[0].mxu0
  %v1526 = vadd.f32 %v279, %v1525
  %v1527 = vpop.f32.mrb[0].mxu0
  %1528 = vmatprep.mubr.f32.mxu0 0.0
  %1529 = vmatmul.mubr.f32.gmra.mrb[0].mxu0 %v529
  %v1530 = vpop.f32.mrb[0].mxu0
  %v1531 = vadd.f32 %v279, %v1530
  %v1532 = vpop.f32.mrb[0].mxu0
  %1533 = vmatprep.mubr.f32.mxu0 0.0
  %1534 = vmatmul.mubr.f32.gmra.mrb[0].mxu0 %v532
  %v1535 = vpop.f32.mrb[0].mxu0
  %v1536 = vadd.f32 %v279, %v1535
  %v1537 = vpop.f32.mrb[0].mxu0
  %1538 = vmatprep.mubr.f32.mxu0 0.0
  %1539 = vmatmul.mubr.f32.gmra.mrb[0].mxu0 %v535
  %v1540 = vpop.f32.mrb[0].mxu0
  %v1541 = vadd.f32 %v279, %v1540
  %v1542 = vpop.f32.mrb[0].mxu0
  %1543 = vmatprep.mubr.f32.mxu0 0.0
  %1544 = vmatmul.mubr.f32.gmra.mrb[0].mxu0 %v538
  %v1545 = vpop.f32.mrb[0].mxu0
  %v1546 = vadd.f32 %v279, %v1545
  %v1547 = vpop.f32.mrb[0].mxu0
  %1548 = vmatprep.mubr.f32.mxu0 0.0
  %1549 = vmatmul.mubr.f32.gmra.mrb[0].mxu0 %v541
  %v1550 = vpop.f32.mrb[0].mxu0
  %v1551 = vadd.f32 %v279, %v1550
  %v1552 = vpop.f32.mrb[0].mxu0
  %1553 = vmatprep.mubr.f32.mxu0 0.0
  %1554 = vmatmul.mubr.f32.gmra.mrb[0].mxu0 %v544
  %v1555 = vpop.f32.mrb[0].mxu0
  %v1556 = vadd.f32 %v279, %v1555
  %v1557 = vpop.f32.mrb[0].mxu0
  %1558 = vmatprep.mubr.f32.mxu0 0.0
  %1559 = vmatmul.mubr.f32.gmra.mrb[0].mxu0 %v547
  %v1560 = vpop.f32.mrb[0].mxu0
  %v1561 = vadd.f32 %v279, %v1560
  %v1562 = vpop.f32.mrb[0].mxu0
  %1563 = vmatprep.mubr.f32.mxu0 0.0
  %1564 = vmatmul.mubr.f32.gmra.mrb[0].mxu0 %v550
  %v1565 = vpop.f32.mrb[0].mxu0
  %v1566 = vadd.f32 %v279, %v1565
  %v1567 = vpop.f32.mrb[0].mxu0
  %1568 = vmatprep.mubr.f32.mxu0 0.0
  %1569 = vmatmul.mubr.f32.gmra.mrb[0].mxu0 %v553
  %v1570 = vpop.f32.mrb[0].mxu0
  %v1571 = vadd.f32 %v279, %v1570
  %v1572 = vpop.f32.mrb[0].mxu0
  %1573 = vmatprep.mubr.f32.mxu0 0.0
  %1574 = vmatmul.mubr.f32.gmra.mrb[0].mxu0 %v556
  %v1575 = vpop.f32.mrb[0].mxu0
  %v1576 = vadd.f32 %v279, %v1575
  %v1577 = vpop.f32.mrb[0].mxu0
  %1578 = vmatprep.mubr.f32.mxu0 0.0
  %1579 = vmatmul.mubr.f32.gmra.mrb[0].mxu0 %v559
  %v1580 = vpop.f32.mrb[0].mxu0
  %v1581 = vadd.f32 %v279, %v1580
  %v1582 = vpop.f32.mrb[0].mxu0
  %1583 = vmatprep.mubr.f32.mxu0 0.0
  %1584 = vmatmul.mubr.f32.gmra.mrb[0].mxu0 %v562
  %v1585 = vpop.f32.mrb[0].mxu0
  %v1586 = vadd.f32 %v279, %v1585
  %v1587 = vpop.f32.mrb[0].mxu0
  %1588 = vmatprep.mubr.f32.mxu0 0.0
  %1589 = vmatmul.mubr.f32.gmra.mrb[0].mxu0 %v565
  %v1590 = vpop.f32.mrb[0].mxu0
  %v1591 = vadd.f32 %v279, %v1590
  %v1592 = vpop.f32.mrb[0].mxu0
  %1593 = vmatprep.mubr.f32.mxu0 0.0
  %1594 = vmatmul.mubr.f32.gmra.mrb[0].mxu0 %v568
  %v1595 = vpop.f32.mrb[0].mxu0
  %v1596 = vadd.f32 %v279, %v1595
  %v1597 = vpop.f32.mrb[0].mxu0
  %1598 = vmatprep.mubr.f32.mxu0 0.0
  %1599 = vmatmul.mubr.f32.gmra.mrb[0].mxu0 %v571
  %v1600 = vpop.f32.mrb[0].mxu0
  %v1601 = vadd.f32 %v279, %v1600
  %v1602 = vpop.f32.mrb[0].mxu0
  %1603 = vmatprep.mubr.f32.mxu0 0.0
  %1604 = vmatmul.mubr.f32.gmra.mrb[0].mxu0 %v574
  %v1605 = vpop.f32.mrb[0].mxu0
  %v1606 = vadd.f32 %v279, %v1605
  %v1607 = vpop.f32.mrb[0].mxu0
  %1608 = vmatprep.mubr.f32.mxu0 0.0
  %1609 = vmatmul.mubr.f32.gmra.mrb[0].mxu0 %v577
  %v1610 = vpop.f32.mrb[0].mxu0
  %v1611 = vadd.f32 %v279, %v1610
  %v1612 = vpop.f32.mrb[0].mxu0
  %1613 = vmatprep.mubr.f32.mxu0 0.0
  %1614 = vmatmul.mubr.f32.gmra.mrb[0].mxu0 %v580
  %v1615 = vpop.f32.mrb[0].mxu0
  %v1616 = vadd.f32 %v279, %v1615
  %v1617 = vpop.f32.mrb[0].mxu0
  %1618 = vmatprep.mubr.f32.mxu0 0.0
  %1619 = vmatmul.mubr.f32.gmra.mrb[0].mxu0 %v583
  %v1620 = vpop.f32.mrb[0].mxu0
  %v1621 = vadd.f32 %v279, %v1620
  %v1622 = vpop.f32.mrb[0].mxu0
  %1623 = vmatprep.mubr.f32.mxu0 0.0
  %1624 = vmatmul.mubr.f32.gmra.mrb[0].mxu0 %v586
  %v1625 = vpop.f32.mrb[0].mxu0
  %v1626 = vadd.f32 %v279, %v1625
  %v1627 = vpop.f32.mrb[0].mxu0
  %1628 = vmatprep.mubr.f32.mxu0 0.0
  %1629 = vmatmul.mubr.f32.gmra.mrb[0].mxu0 %v589
  %v1630 = vpop.f32.mrb[0].mxu0
  %v1631 = vadd.f32 %v279, %v1630
  %v1632 = vpop.f32.mrb[0].mxu0
  %1633 = vmatprep.mubr.f32.mxu0 0.0
  %1634 = vmatmul.mubr.f32.gmra.mrb[0].mxu0 %v592
  %v1635 = vpop.f32.mrb[0].mxu0
  %v1636 = vadd.f32 %v279, %v1635
  %v1637 = vpop.f32.mrb[0].mxu0
  %1638 = vmatprep.mubr.f32.mxu0 0.0
  %1639 = vmatmul.mubr.f32.gmra.mrb[0].mxu0 %v595
  %v1640 = vpop.f32.mrb[0].mxu0
  %v1641 = vadd.f32 %v279, %v1640
  %v1642 = vpop.f32.mrb[0].mxu0
  %1643 = vmatprep.mubr.f32.mxu0 0.0
  %1644 = vmatmul.mubr.f32.gmra.mrb[0].mxu0 %v598
  %v1645 = vpop.f32.mrb[0].mxu0
  %v1646 = vadd.f32 %v279, %v1645
  %v1647 = vpop.f32.mrb[0].mxu0
  %1648 = vmatprep.mubr.f32.mxu0 0.0
  %1649 = vmatmul.mubr.f32.gmra.mrb[0].mxu0 %v601
  %v1650 = vpop.f32.mrb[0].mxu0
  %v1651 = vadd.f32 %v279, %v1650
  %v1652 = vpop.f32.mrb[0].mxu0
  %1653 = vmatprep.mubr.f32.mxu0 0.0
  %1654 = vmatmul.mubr.f32.gmra.mrb[0].mxu0 %v604
  %v1655 = vpop.f32.mrb[0].mxu0
  %v1656 = vadd.f32 %v279, %v1655
  %v1657 = vpop.f32.mrb[0].mxu0
  %1658 = vmatprep.mubr.f32.mxu0 0.0
  %1659 = vmatmul.mubr.f32.gmra.mrb[0].mxu0 %v607
  %v1660 = vpop.f32.mrb[0].mxu0
  %v1661 = vadd.f32 %v279, %v1660
  %v1662 = vpop.f32.mrb[0].mxu0
  %1663 = vmatprep.mubr.f32.mxu0 0.0
  %1664 = vmatmul.mubr.f32.gmra.mrb[0].mxu0 %v610
  %v1665 = vpop.f32.mrb[0].mxu0
  %v1666 = vadd.f32 %v279, %v1665
  %v1667 = vpop.f32.mrb[0].mxu0
  %1668 = vmatprep.mubr.f32.mxu0 0.0
  %1669 = vmatmul.mubr.f32.gmra.mrb[0].mxu0 %v613
  %v1670 = vpop.f32.mrb[0].mxu0
  %v1671 = vadd.f32 %v279, %v1670
  %v1672 = vpop.f32.mrb[0].mxu0
  %1673 = vmatprep.mubr.f32.mxu0 0.0
  %1674 = vmatmul.mubr.f32.gmra.mrb[0].mxu0 %v616
  %v1675 = vpop.f32.mrb[0].mxu0
  %v1676 = vadd.f32 %v279, %v1675
  %v1677 = vpop.f32.mrb[0].mxu0
  %1678 = vmatprep.mubr.f32.mxu0 0.0
  %1679 = vmatmul.mubr.f32.gmra.mrb[0].mxu0 %v619
  %v1680 = vpop.f32.mrb[0].mxu0
  %v1681 = vadd.f32 %v279, %v1680
  %v1682 = vpop.f32.mrb[0].mxu0
  %1683 = vmatprep.mubr.f32.mxu0 0.0
  %1684 = vmatmul.mubr.f32.gmra.mrb[0].mxu0 %v622
  %v1685 = vpop.f32.mrb[0].mxu0
  %v1686 = vadd.f32 %v279, %v1685
  %v1687 = vpop.f32.mrb[0].mxu0
  %1688 = vmatprep.mubr.f32.mxu0 0.0
  %1689 = vmatmul.mubr.f32.gmra.mrb[0].mxu0 %v625
  %v1690 = vpop.f32.mrb[0].mxu0
  %v1691 = vadd.f32 %v279, %v1690
  %v1692 = vpop.f32.mrb[0].mxu0
  %1693 = vmatprep.mubr.f32.mxu0 0.0
  %1694 = vmatmul.mubr.f32.gmra.mrb[0].mxu0 %v628
  %v1695 = vpop.f32.mrb[0].mxu0
  %v1696 = vadd.f32 %v279, %v1695
  %v1697 = vpop.f32.mrb[0].mxu0
  %1698 = vmatprep.mubr.f32.mxu0 0.0
  %1699 = vmatmul.mubr.f32.gmra.mrb[0].mxu0 %v631
  %v1700 = vpop.f32.mrb[0].mxu0
  %v1701 = vadd.f32 %v279, %v1700
  %v1702 = vpop.f32.mrb[0].mxu0
  %1703 = vmatprep.mubr.f32.mxu0 0.0
  %1704 = vmatmul.mubr.f32.gmra.mrb[0].mxu0 %v634
  %v1705 = vpop.f32.mrb[0].mxu0
  %v1706 = vadd.f32 %v279, %v1705
  %v1707 = vpop.f32.mrb[0].mxu0
  %1708 = vmatprep.mubr.f32.mxu0 0.0
  %1709 = vmatmul.mubr.f32.gmra.mrb[0].mxu0 %v637
  %v1710 = vpop.f32.mrb[0].mxu0
  %v1711 = vadd.f32 %v279, %v1710
  %v1712 = vpop.f32.mrb[0].mxu0
  %1713 = vmatprep.mubr.f32.mxu0 0.0
  %1714 = vmatmul.mubr.f32.gmra.mrb[0].mxu0 %v640
  %v1715 = vpop.f32.mrb[0].mxu0
  %v1716 = vadd.f32 %v279, %v1715
  %v1717 = vpop.f32.mrb[0].mxu0
  %1718 = vmatprep.mubr.f32.mxu0 0.0
  %1719 = vmatmul.mubr.f32.gmra.mrb[0].mxu0 %v643
  %v1720 = vpop.f32.mrb[0].mxu0
  %v1721 = vadd.f32 %v279, %v1720
  %v1722 = vpop.f32.mrb[0].mxu0
  %1723 = vmatprep.mubr.f32.mxu0 0.0
  %1724 = vmatmul.mubr.f32.gmra.mrb[0].mxu0 %v646
  %v1725 = vpop.f32.mrb[0].mxu0
  %v1726 = vadd.f32 %v279, %v1725
  %v1727 = vpop.f32.mrb[0].mxu0
  %1728 = vmatprep.mubr.f32.mxu0 0.0
  %1729 = vmatmul.mubr.f32.gmra.mrb[0].mxu0 %v649
  %v1730 = vpop.f32.mrb[0].mxu0
  %v1731 = vadd.f32 %v279, %v1730
  %v1732 = vpop.f32.mrb[0].mxu0
  %1733 = vmatprep.mubr.f32.mxu0 0.0
  %1734 = vmatmul.mubr.f32.gmra.mrb[0].mxu0 %v652
  %v1735 = vpop.f32.mrb[0].mxu0
  %v1736 = vadd.f32 %v279, %v1735
  %v1737 = vpop.f32.mrb[0].mxu0
  %1738 = vmatprep.mubr.f32.mxu0 0.0
  %1739 = vmatmul.mubr.f32.gmra.mrb[0].mxu0 %v655
  %v1740 = vpop.f32.mrb[0].mxu0
  %v1741 = vadd.f32 %v279, %v1740
  %v1742 = vpop.f32.mrb[0].mxu0
  %1743 = vmatprep.mubr.f32.mxu0 0.0
  %1744 = vmatmul.mubr.f32.gmra.mrb[0].mxu0 %v658
  %v1745 = vpop.f32.mrb[0].mxu0
  %v1746 = vadd.f32 %v279, %v1745
  %v1747 = vpop.f32.mrb[0].mxu0
  %1748 = vmatprep.mubr.f32.mxu0 0.0
  %1749 = vmatmul.mubr.f32.gmra.mrb[0].mxu0 %v661
  %v1750 = vpop.f32.mrb[0].mxu0
  %v1751 = vadd.f32 %v279, %v1750
  %v1752 = vpop.f32.mrb[0].mxu0
  %1753 = vmatprep.mubr.f32.mxu0 0.0
  %1754 = vmatmul.mubr.f32.gmra.mrb[0].mxu0 %v664
  %v1755 = vpop.f32.mrb[0].mxu0
  %v1756 = vadd.f32 %v279, %v1755
  %v1757 = vpop.f32.mrb[0].mxu0
  %1758 = vmatprep.mubr.f32.mxu0 0.0
  %1759 = vmatmul.mubr.f32.gmra.mrb[0].mxu0 %v667
  %v1760 = vpop.f32.mrb[0].mxu0
  %v1761 = vadd.f32 %v279, %v1760
  %v1762 = vpop.f32.mrb[0].mxu0
  %1763 = vmatprep.mubr.f32.mxu0 0.0
  %1764 = vmatmul.mubr.f32.gmra.mrb[0].mxu0 %v670
  %v1765 = vpop.f32.mrb[0].mxu0
  %v1766 = vadd.f32 %v279, %v1765
  %v1767 = vpop.f32.mrb[0].mxu0
  %1768 = vmatprep.mubr.f32.mxu0 0.0
  %1769 = vmatmul.mubr.f32.gmra.mrb[0].mxu0 %v673
  %v1770 = vpop.f32.mrb[0].mxu0
  %v1771 = vadd.f32 %v279, %v1770
  %v1772 = vpop.f32.mrb[0].mxu0
  %1773 = vmatprep.mubr.f32.mxu0 0.0
  %1774 = vmatmul.mubr.f32.gmra.mrb[0].mxu0 %v676
  %v1775 = vpop.f32.mrb[0].mxu0
  %v1776 = vadd.f32 %v279, %v1775
  %v1777 = vpop.f32.mrb[0].mxu0
  %1778 = vmatprep.mubr.f32.mxu0 0.0
  %1779 = vmatmul.mubr.f32.gmra.mrb[0].mxu0 %v679
  %v1780 = vpop.f32.mrb[0].mxu0
  %v1781 = vadd.f32 %v279, %v1780
  %v1782 = vpop.f32.mrb[0].mxu0
  %1783 = vmatprep.mubr.f32.mxu0 0.0
  %1784 = vmatmul.mubr.f32.gmra.mrb[0].mxu0 %v682
  %v1785 = vpop.f32.mrb[0].mxu0
  %v1786 = vadd.f32 %v279, %v1785
  %v1787 = vpop.f32.mrb[0].mxu0
  %1788 = vmatprep.mubr.f32.mxu0 0.0
  %1789 = vmatmul.mubr.f32.gmra.mrb[0].mxu0 %v685
  %v1790 = vpop.f32.mrb[0].mxu0
  %v1791 = vadd.f32 %v279, %v1790
  %v1792 = vpop.f32.mrb[0].mxu0
  %1793 = vmatprep.mubr.f32.mxu0 0.0
  %1794 = vmatmul.mubr.f32.gmra.mrb[0].mxu0 %v688
  %v1795 = vpop.f32.mrb[0].mxu0
  %v1796 = vadd.f32 %v279, %v1795
  %v1797 = vpop.f32.mrb[0].mxu0
  %1798 = vmatprep.mubr.f32.mxu0 0.0
  %1799 = vmatmul.mubr.f32.gmra.mrb[0].mxu0 %v691
  %v1800 = vpop.f32.mrb[0].mxu0
  %v1801 = vadd.f32 %v279, %v1800
  %v1802 = vpop.f32.mrb[0].mxu0
  %1803 = vmatprep.mubr.f32.mxu0 0.0
  %1804 = vmatmul.mubr.f32.gmra.mrb[0].mxu0 %v694
  %v1805 = vpop.f32.mrb[0].mxu0
  %v1806 = vadd.f32 %v279, %v1805
  %v1807 = vpop.f32.mrb[0].mxu0
  %1808 = vmatprep.mubr.f32.mxu0 0.0
  %1809 = vmatmul.mubr.f32.gmra.mrb[0].mxu0 %v697
  %v1810 = vpop.f32.mrb[0].mxu0
  %v1811 = vadd.f32 %v279, %v1810
  %v1812 = vpop.f32.mrb[0].mxu0
  %1813 = vmatprep.mubr.f32.mxu0 0.0
  %1814 = vmatmul.mubr.f32.gmra.mrb[0].mxu0 %v700
  %v1815 = vpop.f32.mrb[0].mxu0
  %v1816 = vadd.f32 %v279, %v1815
  %v1817 = vpop.f32.mrb[0].mxu0
  %1818 = vmatprep.mubr.f32.mxu0 0.0
  %1819 = vmatmul.mubr.f32.gmra.mrb[0].mxu0 %v703
  %v1820 = vpop.f32.mrb[0].mxu0
  %v1821 = vadd.f32 %v279, %v1820
  %v1822 = vpop.f32.mrb[0].mxu0
  %1823 = vmatprep.mubr.f32.mxu0 0.0
  %1824 = vmatmul.mubr.f32.gmra.mrb[0].mxu0 %v706
  %v1825 = vpop.f32.mrb[0].mxu0
  %v1826 = vadd.f32 %v279, %v1825
  %v1827 = vpop.f32.mrb[0].mxu0
  %1828 = vmatprep.mubr.f32.mxu0 0.0
  %1829 = vmatmul.mubr.f32.gmra.mrb[0].mxu0 %v709
  %v1830 = vpop.f32.mrb[0].mxu0
  %v1831 = vadd.f32 %v279, %v1830
  %v1832 = vpop.f32.mrb[0].mxu0
  %1833 = vmatprep.mubr.f32.mxu0 0.0
  %1834 = vmatmul.mubr.f32.gmra.mrb[0].mxu0 %v712
  %v1835 = vpop.f32.mrb[0].mxu0
  %v1836 = vadd.f32 %v279, %v1835
  %v1837 = vpop.f32.mrb[0].mxu0
  %1838 = vmatprep.mubr.f32.mxu0 0.0
  %1839 = vmatmul.mubr.f32.gmra.mrb[0].mxu0 %v715
  %v1840 = vpop.f32.mrb[0].mxu0
  %v1841 = vadd.f32 %v279, %v1840
  %v1842 = vpop.f32.mrb[0].mxu0
  %1843 = vmatprep.mubr.f32.mxu0 0.0
  %1844 = vmatmul.mubr.f32.gmra.mrb[0].mxu0 %v718
  %v1845 = vpop.f32.mrb[0].mxu0
  %v1846 = vadd.f32 %v279, %v1845
  %v1847 = vpop.f32.mrb[0].mxu0
  %1848 = vmatprep.mubr.f32.mxu0 0.0
  %1849 = vmatmul.mubr.f32.gmra.mrb[0].mxu0 %v721
  %v1850 = vpop.f32.mrb[0].mxu0
  %v1851 = vadd.f32 %v279, %v1850
  %v1852 = vpop.f32.mrb[0].mxu0
  %1853 = vmatprep.mubr.f32.mxu0 0.0
  %1854 = vmatmul.mubr.f32.gmra.mrb[0].mxu0 %v724
  %v1855 = vpop.f32.mrb[0].mxu0
  %v1856 = vadd.f32 %v279, %v1855
  %v1857 = vpop.f32.mrb[0].mxu0
  %1858 = vmatprep.mubr.f32.mxu0 0.0
  %1859 = vmatmul.mubr.f32.gmra.mrb[0].mxu0 %v727
  %v1860 = vpop.f32.mrb[0].mxu0
  %v1861 = vadd.f32 %v279, %v1860
  %v1862 = vpop.f32.mrb[0].mxu0
  %1863 = vmatprep.mubr.f32.mxu0 0.0
  %1864 = vmatmul.mubr.f32.gmra.mrb[0].mxu0 %v730
  %v1865 = vpop.f32.mrb[0].mxu0
  %v1866 = vadd.f32 %v279, %v1865
  %v1867 = vpop.f32.mrb[0].mxu0
  %1868 = vmatprep.mubr.f32.mxu0 0.0
  %1869 = vmatmul.mubr.f32.gmra.mrb[0].mxu0 %v733
  %v1870 = vpop.f32.mrb[0].mxu0
  %v1871 = vadd.f32 %v279, %v1870
  %v1872 = vpop.f32.mrb[0].mxu0
  %1873 = vmatprep.mubr.f32.mxu0 0.0
  %1874 = vmatmul.mubr.f32.gmra.mrb[0].mxu0 %v736
  %v1875 = vpop.f32.mrb[0].mxu0
  %v1876 = vadd.f32 %v279, %v1875
  %v1877 = vpop.f32.mrb[0].mxu0
  %1878 = vmatprep.mubr.f32.mxu0 0.0
  %1879 = vmatmul.mubr.f32.gmra.mrb[0].mxu0 %v739
  %v1880 = vpop.f32.mrb[0].mxu0
  %v1881 = vadd.f32 %v279, %v1880
  %v1882 = vpop.f32.mrb[0].mxu0
  %1883 = vmatprep.mubr.f32.mxu0 0.0
  %1884 = vmatmul.mubr.f32.gmra.mrb[0].mxu0 %v742
  %v1885 = vpop.f32.mrb[0].mxu0
  %v1886 = vadd.f32 %v279, %v1885
  %v1887 = vpop.f32.mrb[0].mxu0
  %1888 = vmatprep.mubr.f32.mxu0 0.0
  %1889 = vmatmul.mubr.f32.gmra.mrb[0].mxu0 %v745
  %v1890 = vpop.f32.mrb[0].mxu0
  %v1891 = vadd.f32 %v279, %v1890
  %v1892 = vpop.f32.mrb[0].mxu0
  %1893 = vmatprep.mubr.f32.mxu0 0.0
  %1894 = vmatmul.mubr.f32.gmra.mrb[0].mxu0 %v748
  %v1895 = vpop.f32.mrb[0].mxu0
  %v1896 = vadd.f32 %v279, %v1895
  %v1897 = vpop.f32.mrb[0].mxu0
  %1898 = vmatprep.mubr.f32.mxu0 0.0
  %1899 = vmatmul.mubr.f32.gmra.mrb[0].mxu0 %v751
  %v1900 = vpop.f32.mrb[0].mxu0
  %v1901 = vadd.f32 %v279, %v1900
  %v1902 = vpop.f32.mrb[0].mxu0
  %1903 = vmatprep.mubr.f32.mxu0 0.0
  %1904 = vmatmul.mubr.f32.gmra.mrb[0].mxu0 %v754
  %v1905 = vpop.f32.mrb[0].mxu0
  %v1906 = vadd.f32 %v279, %v1905
  %v1907 = vpop.f32.mrb[0].mxu0
  %1908 = vmatprep.mubr.f32.mxu0 0.0
  %1909 = vmatmul.mubr.f32.gmra.mrb[0].mxu0 %v757
  %v1910 = vpop.f32.mrb[0].mxu0
  %v1911 = vadd.f32 %v279, %v1910
  %v1912 = vpop.f32.mrb[0].mxu0
  %1913 = vmatprep.mubr.f32.mxu0 0.0
  %1914 = vmatmul.mubr.f32.gmra.mrb[0].mxu0 %v760
  %v1915 = vpop.f32.mrb[0].mxu0
  %v1916 = vadd.f32 %v279, %v1915
  %v1917 = vpop.f32.mrb[0].mxu0
  %1918 = vmatprep.mubr.f32.mxu0 0.0
  %1919 = vmatmul.mubr.f32.gmra.mrb[0].mxu0 %v763
  %v1920 = vpop.f32.mrb[0].mxu0
  %v1921 = vadd.f32 %v279, %v1920
  %v1922 = vpop.f32.mrb[0].mxu0
  %1923 = vmatprep.mubr.f32.mxu0 0.0
  %1924 = vmatmul.mubr.f32.gmra.mrb[0].mxu0 %v766
  %v1925 = vpop.f32.mrb[0].mxu0
  %v1926 = vadd.f32 %v279, %v1925
  %v1927 = vpop.f32.mrb[0].mxu0
  %1928 = vmatprep.mubr.f32.mxu0 0.0
  %1929 = vmatmul.mubr.f32.gmra.mrb[0].mxu0 %v769
  %v1930 = vpop.f32.mrb[0].mxu0
  %v1931 = vadd.f32 %v279, %v1930
  %v1932 = vpop.f32.mrb[0].mxu0
  %1933 = vmatprep.mubr.f32.mxu0 0.0
  %1934 = vmatmul.mubr.f32.gmra.mrb[0].mxu0 %v772
  %v1935 = vpop.f32.mrb[0].mxu0
  %v1936 = vadd.f32 %v279, %v1935
  %v1937 = vpop.f32.mrb[0].mxu0
  %1938 = vmatprep.mubr.f32.mxu0 0.0
  %1939 = vmatmul.mubr.f32.gmra.mrb[0].mxu0 %v775
  %v1940 = vpop.f32.mrb[0].mxu0
  %v1941 = vadd.f32 %v279, %v1940
  %v1942 = vpop.f32.mrb[0].mxu0
  %1943 = vmatprep.mubr.f32.mxu0 0.0
  %1944 = vmatmul.mubr.f32.gmra.mrb[0].mxu0 %v778
  %v1945 = vpop.f32.mrb[0].mxu0
  %v1946 = vadd.f32 %v279, %v1945
  %v1947 = vpop.f32.mrb[0].mxu0
  %1948 = vmatprep.mubr.f32.mxu0 0.0
  %1949 = vmatmul.mubr.f32.gmra.mrb[0].mxu0 %v781
  %v1950 = vpop.f32.mrb[0].mxu0
  %v1951 = vadd.f32 %v279, %v1950
  %v1952 = vpop.f32.mrb[0].mxu0
  %1953 = vmatprep.mubr.f32.mxu0 0.0
  %1954 = vmatmul.mubr.f32.gmra.mrb[0].mxu0 %v784
  %v1955 = vpop.f32.mrb[0].mxu0
  %v1956 = vadd.f32 %v279, %v1955
  %v1957 = vpop.f32.mrb[0].mxu0
  %1958 = vmatprep.mubr.f32.mxu0 0.0
  %1959 = vmatmul.mubr.f32.gmra.mrb[0].mxu0 %v787
  %v1960 = vpop.f32.mrb[0].mxu0
  %v1961 = vadd.f32 %v279, %v1960
  %v1962 = vpop.f32.mrb[0].mxu0
  %1963 = vmatprep.mubr.f32.mxu0 0.0
  %1964 = vmatmul.mubr.f32.gmra.mrb[0].mxu0 %v790
  %v1965 = vpop.f32.mrb[0].mxu0
  %v1966 = vadd.f32 %v279, %v1965
  %v1967 = vpop.f32.mrb[0].mxu0
  %1968 = vmatprep.mubr.f32.mxu0 0.0
  %1969 = vmatmul.mubr.f32.gmra.mrb[0].mxu0 %v793
  %v1970 = vpop.f32.mrb[0].mxu0
  %v1971 = vadd.f32 %v279, %v1970
  %v1972 = vpop.f32.mrb[0].mxu0
  %1973 = vmatprep.mubr.f32.mxu0 0.0
  %1974 = vmatmul.mubr.f32.gmra.mrb[0].mxu0 %v796
  %v1975 = vpop.f32.mrb[0].mxu0
  %v1976 = vadd.f32 %v279, %v1975
  %v1977 = vpop.f32.mrb[0].mxu0
  %1978 = vmatprep.mubr.f32.mxu0 0.0
  %1979 = vmatmul.mubr.f32.gmra.mrb[0].mxu0 %v799
  %v1980 = vpop.f32.mrb[0].mxu0
  %v1981 = vadd.f32 %v279, %v1980
  %v1982 = vpop.f32.mrb[0].mxu0
  %1983 = vmatprep.mubr.f32.mxu0 0.0
  %1984 = vmatmul.mubr.f32.gmra.mrb[0].mxu0 %v802
  %v1985 = vpop.f32.mrb[0].mxu0
  %v1986 = vadd.f32 %v279, %v1985
  %v1987 = vpop.f32.mrb[0].mxu0
  %1988 = vmatprep.mubr.f32.mxu0 0.0
  %1989 = vmatmul.mubr.f32.gmra.mrb[0].mxu0 %v805
  %v1990 = vpop.f32.mrb[0].mxu0
  %v1991 = vadd.f32 %v279, %v1990
  %v1992 = vpop.f32.mrb[0].mxu0
  %1993 = vmatprep.mubr.f32.mxu0 0.0
  %1994 = vmatmul.mubr.f32.gmra.mrb[0].mxu0 %v808
  %v1995 = vpop.f32.mrb[0].mxu0
  %v1996 = vadd.f32 %v279, %v1995
  %v1997 = vpop.f32.mrb[0].mxu0
  %1998 = vmatprep.mubr.f32.mxu0 0.0
  %1999 = vmatmul.mubr.f32.gmra.mrb[0].mxu0 %v811
  %v2000 = vpop.f32.mrb[0].mxu0
  %v2001 = vadd.f32 %v279, %v2000
  %v2002 = vpop.f32.mrb[0].mxu0
  %2003 = vmatprep.mubr.f32.mxu0 0.0
  %2004 = vmatmul.mubr.f32.gmra.mrb[0].mxu0 %v814
  %v2005 = vpop.f32.mrb[0].mxu0
  %v2006 = vadd.f32 %v279, %v2005
  %v2007 = vpop.f32.mrb[0].mxu0
  %2008 = vmatprep.mubr.f32.mxu0 0.0
  %2009 = vmatmul.mubr.f32.gmra.mrb[0].mxu0 %v817
  %v2010 = vpop.f32.mrb[0].mxu0
  %v2011 = vadd.f32 %v279, %v2010
  %v2012 = vpop.f32.mrb[0].mxu0
  %2013 = vmatprep.mubr.f32.mxu0 0.0
  %2014 = vmatmul.mubr.f32.gmra.mrb[0].mxu0 %v820
  %v2015 = vpop.f32.mrb[0].mxu0
  %v2016 = vadd.f32 %v279, %v2015
  %v2017 = vpop.f32.mrb[0].mxu0
  %2018 = vmatprep.mubr.f32.mxu0 0.0
  %2019 = vmatmul.mubr.f32.gmra.mrb[0].mxu0 %v823
  %v2020 = vpop.f32.mrb[0].mxu0
  %v2021 = vadd.f32 %v279, %v2020
  %v2022 = vpop.f32.mrb[0].mxu0
  %2023 = vmatprep.mubr.f32.mxu0 0.0
  %2024 = vmatmul.mubr.f32.gmra.mrb[0].mxu0 %v826
  %v2025 = vpop.f32.mrb[0].mxu0
  %v2026 = vadd.f32 %v279, %v2025
  %v2027 = vpop.f32.mrb[0].mxu0
  %2028 = vmatprep.mubr.f32.mxu0 0.0
  %2029 = vmatmul.mubr.f32.gmra.mrb[0].mxu0 %v829
  %v2030 = vpop.f32.mrb[0].mxu0
  %v2031 = vadd.f32 %v279, %v2030
  %v2032 = vpop.f32.mrb[0].mxu0
  %2033 = vmatprep.mubr.f32.mxu0 0.0
  %2034 = vmatmul.mubr.f32.gmra.mrb[0].mxu0 %v832
  %v2035 = vpop.f32.mrb[0].mxu0
  %v2036 = vadd.f32 %v279, %v2035
  %v2037 = vpop.f32.mrb[0].mxu0
  %2038 = vmatprep.mubr.f32.mxu0 0.0
  %2039 = vmatmul.mubr.f32.gmra.mrb[0].mxu0 %v835
  %v2040 = vpop.f32.mrb[0].mxu0
  %v2041 = vadd.f32 %v279, %v2040
  %v2042 = vpop.f32.mrb[0].mxu0
  %2043 = vmatprep.mubr.f32.mxu0 0.0
  %2044 = vmatmul.mubr.f32.gmra.mrb[0].mxu0 %v838
  %v2045 = vpop.f32.mrb[0].mxu0
  %v2046 = vadd.f32 %v279, %v2045
  %v2047 = vpop.f32.mrb[0].mxu0
  %2048 = vmatprep.mubr.f32.mxu0 0.0
  %2049 = vmatmul.mubr.f32.gmra.mrb[0].mxu0 %v841
  %v2050 = vpop.f32.mrb[0].mxu0
  %v2051 = vadd.f32 %v279, %v2050
  %v2052 = vpop.f32.mrb[0].mxu0
  %2053 = vmatprep.mubr.f32.mxu0 0.0
  %2054 = vmatmul.mubr.f32.gmra.mrb[0].mxu0 %v844
  %v2055 = vpop.f32.mrb[0].mxu0
  %v2056 = vadd.f32 %v279, %v2055
  %v2057 = vpop.f32.mrb[0].mxu0
  %2058 = vmatprep.mubr.f32.mxu0 0.0
  %2059 = vmatmul.mubr.f32.gmra.mrb[0].mxu0 %v847
  %v2060 = vpop.f32.mrb[0].mxu0
  %v2061 = vadd.f32 %v279, %v2060
  %v2062 = vpop.f32.mrb[0].mxu0
  %2063 = vmatprep.mubr.f32.mxu0 0.0
  %2064 = vmatmul.mubr.f32.gmra.mrb[0].mxu0 %v850
  %v2065 = vpop.f32.mrb[0].mxu0
  %v2066 = vadd.f32 %v279, %v2065
  %v2067 = vpop.f32.mrb[0].mxu0
  %2068 = vmatprep.mubr.f32.mxu0 0.0
  %2069 = vmatmul.mubr.f32.gmra.mrb[0].mxu0 %v853
  %v2070 = vpop.f32.mrb[0].mxu0
  %v2071 = vadd.f32 %v279, %v2070
  %v2072 = vpop.f32.mrb[0].mxu0
  %2073 = vmatprep.mubr.f32.mxu0 0.0
  %2074 = vmatmul.mubr.f32.gmra.mrb[0].mxu0 %v856
  %v2075 = vpop.f32.mrb[0].mxu0
  %v2076 = vadd.f32 %v279, %v2075
  %v2077 = vpop.f32.mrb[0].mxu0
  %2078 = vmatprep.mubr.f32.mxu0 0.0
  %2079 = vmatmul.mubr.f32.gmra.mrb[0].mxu0 %v859
  %v2080 = vpop.f32.mrb[0].mxu0
  %v2081 = vadd.f32 %v279, %v2080
  %v2082 = vpop.f32.mrb[0].mxu0
  %2083 = vmatprep.mubr.f32.mxu0 0.0
  %2084 = vmatmul.mubr.f32.gmra.mrb[0].mxu0 %v862
  %v2085 = vpop.f32.mrb[0].mxu0
  %v2086 = vadd.f32 %v279, %v2085
  %v2087 = vpop.f32.mrb[0].mxu0
  %2088 = vmatprep.mubr.f32.mxu0 0.0
  %2089 = vmatmul.mubr.f32.gmra.mrb[0].mxu0 %v865
  %v2090 = vpop.f32.mrb[0].mxu0
  %v2091 = vadd.f32 %v279, %v2090
  %v2092 = vpop.f32.mrb[0].mxu0
  %2093 = vmatprep.mubr.f32.mxu0 0.0
  %2094 = vmatmul.mubr.f32.gmra.mrb[0].mxu0 %v868
  %v2095 = vpop.f32.mrb[0].mxu0
  %v2096 = vadd.f32 %v279, %v2095
  %v2097 = vpop.f32.mrb[0].mxu0
  %2098 = vmatprep.mubr.f32.mxu0 0.0
  %2099 = vmatmul.mubr.f32.gmra.mrb[0].mxu0 %v871
  %v2100 = vpop.f32.mrb[0].mxu0
  %v2101 = vadd.f32 %v279, %v2100
  %v2102 = vpop.f32.mrb[0].mxu0
  %2103 = vmatprep.mubr.f32.mxu0 0.0
  %2104 = vmatmul.mubr.f32.gmra.mrb[0].mxu0 %v874
  %v2105 = vpop.f32.mrb[0].mxu0
  %v2106 = vadd.f32 %v279, %v2105
  %v2107 = vpop.f32.mrb[0].mxu0
  %2108 = vmatprep.mubr.f32.mxu0 0.0
  %2109 = vmatmul.mubr.f32.gmra.mrb[0].mxu0 %v877
  %v2110 = vpop.f32.mrb[0].mxu0
  %v2111 = vadd.f32 %v279, %v2110
  %v2112 = vpop.f32.mrb[0].mxu0
  %2113 = vmatprep.mubr.f32.mxu0 0.0
  %2114 = vmatmul.mubr.f32.gmra.mrb[0].mxu0 %v880
  %v2115 = vpop.f32.mrb[0].mxu0
  %v2116 = vadd.f32 %v279, %v2115
  %v2117 = vpop.f32.mrb[0].mxu0
  %2118 = vmatprep.mubr.f32.mxu0 0.0
  %2119 = vmatmul.mubr.f32.gmra.mrb[0].mxu0 %v883
  %v2120 = vpop.f32.mrb[0].mxu0
  %v2121 = vadd.f32 %v279, %v2120
  %v2122 = vpop.f32.mrb[0].mxu0
  %2123 = vmatprep.mubr.f32.mxu0 0.0
  %2124 = vmatmul.mubr.f32.gmra.mrb[0].mxu0 %v886
  %v2125 = vpop.f32.mrb[0].mxu0
  %v2126 = vadd.f32 %v279, %v2125
  %v2127 = vpop.f32.mrb[0].mxu0
  %2128 = vmatprep.mubr.f32.mxu0 0.0
  %2129 = vmatmul.mubr.f32.gmra.mrb[0].mxu0 %v889
  %v2130 = vpop.f32.mrb[0].mxu0
  %v2131 = vadd.f32 %v279, %v2130
  %v2132 = vpop.f32.mrb[0].mxu0
  %2133 = vmatprep.mubr.f32.mxu0 0.0
  %2134 = vmatmul.mubr.f32.gmra.mrb[0].mxu0 %v892
  %v2135 = vpop.f32.mrb[0].mxu0
  %v2136 = vadd.f32 %v279, %v2135
  %v2137 = vpop.f32.mrb[0].mxu0
  %2138 = vmatprep.mubr.f32.mxu0 0.0
  %2139 = vmatmul.mubr.f32.gmra.mrb[0].mxu0 %v895
  %v2140 = vpop.f32.mrb[0].mxu0
  %v2141 = vadd.f32 %v279, %v2140
  %v2142 = vpop.f32.mrb[0].mxu0
  %2143 = vmatprep.mubr.f32.mxu0 0.0
  %2144 = vmatmul.mubr.f32.gmra.mrb[0].mxu0 %v898
  %v2145 = vpop.f32.mrb[0].mxu0
  %v2146 = vadd.f32 %v279, %v2145
  %v2147 = vpop.f32.mrb[0].mxu0
  %2148 = vmatprep.mubr.f32.mxu0 0.0
  %2149 = vmatmul.mubr.f32.gmra.mrb[0].mxu0 %v901
  %v2150 = vpop.f32.mrb[0].mxu0
  %v2151 = vadd.f32 %v279, %v2150
  %v2152 = vpop.f32.mrb[0].mxu0
  %2153 = vmatprep.mubr.f32.mxu0 0.0
  %2154 = vmatmul.mubr.f32.gmra.mrb[0].mxu0 %v904
  %v2155 = vpop.f32.mrb[0].mxu0
  %v2156 = vadd.f32 %v279, %v2155
  %v2157 = vpop.f32.mrb[0].mxu0
  %2158 = vmatprep.mubr.f32.mxu0 0.0
  %2159 = vmatmul.mubr.f32.gmra.mrb[0].mxu0 %v907
  %v2160 = vpop.f32.mrb[0].mxu0
  %v2161 = vadd.f32 %v279, %v2160
  %v2162 = vpop.f32.mrb[0].mxu0
  %2163 = vmatprep.mubr.f32.mxu0 0.0
  %2164 = vmatmul.mubr.f32.gmra.mrb[0].mxu0 %v910
  %v2165 = vpop.f32.mrb[0].mxu0
  %v2166 = vadd.f32 %v279, %v2165
  %v2167 = vpop.f32.mrb[0].mxu0
  %2168 = vmatprep.mubr.f32.mxu0 0.0
  %2169 = vmatmul.mubr.f32.gmra.mrb[0].mxu0 %v913
  %v2170 = vpop.f32.mrb[0].mxu0
  %v2171 = vadd.f32 %v279, %v2170
  %v2172 = vpop.f32.mrb[0].mxu0
  %2173 = vmatprep.mubr.f32.mxu0 0.0
  %2174 = vmatmul.mubr.f32.gmra.mrb[0].mxu0 %v916
  %v2175 = vpop.f32.mrb[0].mxu0
  %v2176 = vadd.f32 %v279, %v2175
  %v2177 = vpop.f32.mrb[0].mxu0
  %2178 = vmatprep.mubr.f32.mxu0 0.0
  %2179 = vmatmul.mubr.f32.gmra.mrb[0].mxu0 %v919
  %v2180 = vpop.f32.mrb[0].mxu0
  %v2181 = vadd.f32 %v279, %v2180
  %v2182 = vpop.f32.mrb[0].mxu0
  %2183 = vmatprep.mubr.f32.mxu0 0.0
  %2184 = vmatmul.mubr.f32.gmra.mrb[0].mxu0 %v922
  %v2185 = vpop.f32.mrb[0].mxu0
  %v2186 = vadd.f32 %v279, %v2185
  %v2187 = vpop.f32.mrb[0].mxu0
  %2188 = vmatprep.mubr.f32.mxu0 0.0
  %2189 = vmatmul.mubr.f32.gmra.mrb[0].mxu0 %v925
  %v2190 = vpop.f32.mrb[0].mxu0
  %v2191 = vadd.f32 %v279, %v2190
  %v2192 = vpop.f32.mrb[0].mxu0
  %2193 = vmatprep.mubr.f32.mxu0 0.0
  %2194 = vmatmul.mubr.f32.gmra.mrb[0].mxu0 %v928
  %v2195 = vpop.f32.mrb[0].mxu0
  %v2196 = vadd.f32 %v279, %v2195
  %v2197 = vpop.f32.mrb[0].mxu0
  %2198 = vmatprep.mubr.f32.mxu0 0.0
  %2199 = vmatmul.mubr.f32.gmra.mrb[0].mxu0 %v931
  %v2200 = vpop.f32.mrb[0].mxu0
  %v2201 = vadd.f32 %v279, %v2200
  %v2202 = vpop.f32.mrb[0].mxu0
  %2203 = vmatprep.mubr.f32.mxu0 0.0
  %2204 = vmatmul.mubr.f32.gmra.mrb[0].mxu0 %v934
  %v2205 = vpop.f32.mrb[0].mxu0
  %v2206 = vadd.f32 %v279, %v2205
  %v2207 = vpop.f32.mrb[0].mxu0
  %2208 = vmatprep.mubr.f32.mxu0 0.0
  %2209 = vmatmul.mubr.f32.gmra.mrb[0].mxu0 %v937
  %v2210 = vpop.f32.mrb[0].mxu0
  %v2211 = vadd.f32 %v279, %v2210
  %v2212 = vpop.f32.mrb[0].mxu0
  %2213 = vmatprep.mubr.f32.mxu0 0.0
  %2214 = vmatmul.mubr.f32.gmra.mrb[0].mxu0 %v940
  %v2215 = vpop.f32.mrb[0].mxu0
  %v2216 = vadd.f32 %v279, %v2215
  %v2217 = vpop.f32.mrb[0].mxu0
  %2218 = vmatprep.mubr.f32.mxu0 0.0
  %2219 = vmatmul.mubr.f32.gmra.mrb[0].mxu0 %v943
  %v2220 = vpop.f32.mrb[0].mxu0
  %v2221 = vadd.f32 %v279, %v2220
  %v2222 = vpop.f32.mrb[0].mxu0
  %2223 = vmatprep.mubr.f32.mxu0 0.0
  %2224 = vmatmul.mubr.f32.gmra.mrb[0].mxu0 %v946
  %v2225 = vpop.f32.mrb[0].mxu0
  %v2226 = vadd.f32 %v279, %v2225
  %v2227 = vpop.f32.mrb[0].mxu0
  %2228 = vmatprep.mubr.f32.mxu0 0.0
  %2229 = vmatmul.mubr.f32.gmra.mrb[0].mxu0 %v949
  %v2230 = vpop.f32.mrb[0].mxu0
  %v2231 = vadd.f32 %v279, %v2230
  %v2232 = vpop.f32.mrb[0].mxu0
  %2233 = vmatprep.mubr.f32.mxu0 0.0
  %2234 = vmatmul.mubr.f32.gmra.mrb[0].mxu0 %v952
  %v2235 = vpop.f32.mrb[0].mxu0
  %v2236 = vadd.f32 %v279, %v2235
  %v2237 = vpop.f32.mrb[0].mxu0
  %2238 = vmatprep.mubr.f32.mxu0 0.0
  %2239 = vmatmul.mubr.f32.gmra.mrb[0].mxu0 %v955
  %v2240 = vpop.f32.mrb[0].mxu0
  %v2241 = vadd.f32 %v279, %v2240
  %v2242 = vpop.f32.mrb[0].mxu0
  %2243 = vmatprep.mubr.f32.mxu0 0.0
  %2244 = vmatmul.mubr.f32.gmra.mrb[0].mxu0 %v958
  %v2245 = vpop.f32.mrb[0].mxu0
  %v2246 = vadd.f32 %v279, %v2245
  %v2247 = vpop.f32.mrb[0].mxu0
  %2248 = vmatprep.mubr.f32.mxu0 0.0
  %2249 = vmatmul.mubr.f32.gmra.mrb[0].mxu0 %v961
  %v2250 = vpop.f32.mrb[0].mxu0
  %v2251 = vadd.f32 %v279, %v2250
  %v2252 = vpop.f32.mrb[0].mxu0
  %2253 = vmatprep.mubr.f32.mxu0 0.0
  %2254 = vmatmul.mubr.f32.gmra.mrb[0].mxu0 %v964
  %v2255 = vpop.f32.mrb[0].mxu0
  %v2256 = vadd.f32 %v279, %v2255
  %v2257 = vpop.f32.mrb[0].mxu0
  %2258 = vmatprep.mubr.f32.mxu0 0.0
  %2259 = vmatmul.mubr.f32.gmra.mrb[0].mxu0 %v967
  %v2260 = vpop.f32.mrb[0].mxu0
  %v2261 = vadd.f32 %v279, %v2260
  %v2262 = vpop.f32.mrb[0].mxu0
  %2263 = vmatprep.mubr.f32.mxu0 0.0
  %2264 = vmatmul.mubr.f32.gmra.mrb[0].mxu0 %v970
  %v2265 = vpop.f32.mrb[0].mxu0
  %v2266 = vadd.f32 %v279, %v2265
  %v2267 = vpop.f32.mrb[0].mxu0
  %2268 = vmatprep.mubr.f32.mxu0 0.0
  %2269 = vmatmul.mubr.f32.gmra.mrb[0].mxu0 %v973
  %v2270 = vpop.f32.mrb[0].mxu0
  %v2271 = vadd.f32 %v279, %v2270
  %v2272 = vpop.f32.mrb[0].mxu0
  %2273 = vmatprep.mubr.f32.mxu0 0.0
  %2274 = vmatmul.mubr.f32.gmra.mrb[0].mxu0 %v976
  %v2275 = vpop.f32.mrb[0].mxu0
  %v2276 = vadd.f32 %v279, %v2275
  %v2277 = vpop.f32.mrb[0].mxu0
  %2278 = vmatprep.mubr.f32.mxu0 0.0
  %2279 = vmatmul.mubr.f32.gmra.mrb[0].mxu0 %v979
  %v2280 = vpop.f32.mrb[0].mxu0
  %v2281 = vadd.f32 %v279, %v2280
  %v2282 = vpop.f32.mrb[0].mxu0
  %2283 = vmatprep.mubr.f32.mxu0 0.0
  %2284 = vmatmul.mubr.f32.gmra.mrb[0].mxu0 %v982
  %v2285 = vpop.f32.mrb[0].mxu0
  %v2286 = vadd.f32 %v279, %v2285
  %v2287 = vpop.f32.mrb[0].mxu0
  %2288 = vmatprep.mubr.f32.mxu0 0.0
  %2289 = vmatmul.mubr.f32.gmra.mrb[0].mxu0 %v985
  %v2290 = vpop.f32.mrb[0].mxu0
  %v2291 = vadd.f32 %v279, %v2290
  %v2292 = vpop.f32.mrb[0].mxu0
  %2293 = vmatprep.mubr.f32.mxu0 0.0
  %2294 = vmatmul.mubr.f32.gmra.mrb[0].mxu0 %v988
  %v2295 = vpop.f32.mrb[0].mxu0
  %v2296 = vadd.f32 %v279, %v2295
  %v2297 = vpop.f32.mrb[0].mxu0
  %2298 = vmatprep.mubr.f32.mxu0 0.0
  %2299 = vmatmul.mubr.f32.gmra.mrb[0].mxu0 %v991
  %v2300 = vpop.f32.mrb[0].mxu0
  %v2301 = vadd.f32 %v279, %v2300
  %v2302 = vpop.f32.mrb[0].mxu0
  %2303 = vmatprep.mubr.f32.mxu0 0.0
  %2304 = vmatmul.mubr.f32.gmra.mrb[0].mxu0 %v994
  %v2305 = vpop.f32.mrb[0].mxu0
  %v2306 = vadd.f32 %v279, %v2305
  %v2307 = vpop.f32.mrb[0].mxu0
  %2308 = vmatprep.mubr.f32.mxu0 0.0
  %2309 = vmatmul.mubr.f32.gmra.mrb[0].mxu0 %v997
  %v2310 = vpop.f32.mrb[0].mxu0
  %v2311 = vadd.f32 %v279, %v2310
  %v2312 = vpop.f32.mrb[0].mxu0
  %2313 = vmatprep.mubr.f32.mxu0 0.0
  %2314 = vmatmul.mubr.f32.gmra.mrb[0].mxu0 %v1000
  %v2315 = vpop.f32.mrb[0].mxu0
  %v2316 = vadd.f32 %v279, %v2315
  %v2317 = vpop.f32.mrb[0].mxu0
  %2318 = vmatprep.mubr.f32.mxu0 0.0
  %2319 = vmatmul.mubr.f32.gmra.mrb[0].mxu0 %v1003
  %v2320 = vpop.f32.mrb[0].mxu0
  %v2321 = vadd.f32 %v279, %v2320
  %v2322 = vpop.f32.mrb[0].mxu0
  %2323 = vmatprep.mubr.f32.mxu0 0.0
  %2324 = vmatmul.mubr.f32.gmra.mrb[0].mxu0 %v1006
  %v2325 = vpop.f32.mrb[0].mxu0
  %v2326 = vadd.f32 %v279, %v2325
  %v2327 = vpop.f32.mrb[0].mxu0
  %2328 = vmatprep.mubr.f32.mxu0 0.0
  %2329 = vmatmul.mubr.f32.gmra.mrb[0].mxu0 %v1009
  %v2330 = vpop.f32.mrb[0].mxu0
  %v2331 = vadd.f32 %v279, %v2330
  %v2332 = vpop.f32.mrb[0].mxu0
  %2333 = vmatprep.mubr.f32.mxu0 0.0
  %2334 = vmatmul.mubr.f32.gmra.mrb[0].mxu0 %v1012
  %v2335 = vpop.f32.mrb[0].mxu0
  %v2336 = vadd.f32 %v279, %v2335
  %v2337 = vpop.f32.mrb[0].mxu0
  %2338 = vmatprep.mubr.f32.mxu0 0.0
  %2339 = vmatmul.mubr.f32.gmra.mrb[0].mxu0 %v1015
  %v2340 = vpop.f32.mrb[0].mxu0
  %v2341 = vadd.f32 %v279, %v2340
  %v2342 = vpop.f32.mrb[0].mxu0
  %2343 = vmatprep.mubr.f32.mxu0 0.0
  %2344 = vmatmul.mubr.f32.gmra.mrb[0].mxu0 %v1018
  %v2345 = vpop.f32.mrb[0].mxu0
  %v2346 = vadd.f32 %v279, %v2345
  %v2347 = vpop.f32.mrb[0].mxu0
  %2348 = vmatprep.mubr.f32.mxu0 0.0
  %2349 = vmatmul.mubr.f32.gmra.mrb[0].mxu0 %v1021
  %v2350 = vpop.f32.mrb[0].mxu0
  %v2351 = vadd.f32 %v279, %v2350
  %v2352 = vpop.f32.mrb[0].mxu0
  %2353 = vmatprep.mubr.f32.mxu0 0.0
  %2354 = vmatmul.mubr.f32.gmra.mrb[0].mxu0 %v1024
  %v2355 = vpop.f32.mrb[0].mxu0
  %v2356 = vadd.f32 %v279, %v2355
  %v2357 = vpop.f32.mrb[0].mxu0
  %2358 = vmatprep.mubr.f32.mxu0 0.0
  %2359 = vmatmul.mubr.f32.gmra.mrb[0].mxu0 %v1027
  %v2360 = vpop.f32.mrb[0].mxu0
  %v2361 = vadd.f32 %v279, %v2360
  %v2362 = vpop.f32.mrb[0].mxu0
  %2363 = vmatprep.mubr.f32.mxu0 0.0
  %2364 = vmatmul.mubr.f32.gmra.mrb[0].mxu0 %v1030
  %v2365 = vpop.f32.mrb[0].mxu0
  %v2366 = vadd.f32 %v279, %v2365
  %v2367 = vpop.f32.mrb[0].mxu0
  %2368 = vmatprep.mubr.f32.mxu0 0.0
  %2369 = vmatmul.mubr.f32.gmra.mrb[0].mxu0 %v1033
  %v2370 = vpop.f32.mrb[0].mxu0
  %v2371 = vadd.f32 %v279, %v2370
  %v2372 = vpop.f32.mrb[0].mxu0
  %2373 = vmatprep.mubr.f32.mxu0 0.0
  %2374 = vmatmul.mubr.f32.gmra.mrb[0].mxu0 %v1036
  %v2375 = vpop.f32.mrb[0].mxu0
  %v2376 = vadd.f32 %v279, %v2375
  %v2377 = vpop.f32.mrb[0].mxu0
  %2378 = vmatprep.mubr.f32.mxu0 0.0
  %2379 = vmatmul.mubr.f32.gmra.mrb[0].mxu0 %v1039
  %v2380 = vpop.f32.mrb[0].mxu0
  %v2381 = vadd.f32 %v279, %v2380
  %v2382 = vpop.f32.mrb[0].mxu0
  %2383 = vmatprep.mubr.f32.mxu0 0.0
  %2384 = vmatmul.mubr.f32.gmra.mrb[0].mxu0 %v1042
  %v2385 = vpop.f32.mrb[0].mxu0
  %v2386 = vadd.f32 %v279, %v2385
  %v2387 = vpop.f32.mrb[0].mxu0
  %2388 = vmatprep.mubr.f32.mxu0 0.0
  %2389 = vmatmul.mubr.f32.gmra.mrb[0].mxu0 %v1045
  %v2390 = vpop.f32.mrb[0].mxu0
  %v2391 = vadd.f32 %v279, %v2390
  %v2392 = vpop.f32.mrb[0].mxu0
  %2393 = vmatprep.mubr.f32.mxu0 0.0
  %2394 = vmatmul.mubr.f32.gmra.mrb[0].mxu0 %v1048
  %v2395 = vpop.f32.mrb[0].mxu0
  %v2396 = vadd.f32 %v279, %v2395
  %v2397 = vpop.f32.mrb[0].mxu0
  %2398 = vdwg.mxu0
  %vm2399 = vcmp.ge.f32.partialorder %v1121, 0.0
  %vm2400 = vcmp.ge.f32.partialorder %v1126, 0.0
  %vm2401 = vcmp.ge.f32.partialorder %v1131, 0.0
  %vm2402 = vcmp.ge.f32.partialorder %v1136, 0.0
  %vm2403 = vcmp.ge.f32.partialorder %v1141, 0.0
  %vm2404 = vcmp.ge.f32.partialorder %v1146, 0.0
  %vm2405 = vcmp.ge.f32.partialorder %v1151, 0.0
  %vm2406 = vcmp.ge.f32.partialorder %v1156, 0.0
  %vm2407 = vcmp.ge.f32.partialorder %v1161, 0.0
  %vm2408 = vcmp.ge.f32.partialorder %v1166, 0.0
  %vm2409 = vcmp.ge.f32.partialorder %v1171, 0.0
  %vm2410 = vcmp.ge.f32.partialorder %v1176, 0.0
  %vm2411 = vcmp.ge.f32.partialorder %v1181, 0.0
  %vm2412 = vcmp.ge.f32.partialorder %v1186, 0.0
  %vm2413 = vcmp.ge.f32.partialorder %v1191, 0.0
  %vm2414 = vcmp.ge.f32.partialorder %v1196, 0.0
  %vm2415 = vcmp.ge.f32.partialorder %v1201, 0.0
  %vm2416 = vcmp.ge.f32.partialorder %v1206, 0.0
  %vm2417 = vcmp.ge.f32.partialorder %v1211, 0.0
  %vm2418 = vcmp.ge.f32.partialorder %v1216, 0.0
  %vm2419 = vcmp.ge.f32.partialorder %v1221, 0.0
  %vm2420 = vcmp.ge.f32.partialorder %v1226, 0.0
  %vm2421 = vcmp.ge.f32.partialorder %v1231, 0.0
  %vm2422 = vcmp.ge.f32.partialorder %v1236, 0.0
  %vm2423 = vcmp.ge.f32.partialorder %v1241, 0.0
  %vm2424 = vcmp.ge.f32.partialorder %v1246, 0.0
  %vm2425 = vcmp.ge.f32.partialorder %v1251, 0.0
  %vm2426 = vcmp.ge.f32.partialorder %v1256, 0.0
  %vm2427 = vcmp.ge.f32.partialorder %v1261, 0.0
  %vm2428 = vcmp.ge.f32.partialorder %v1266, 0.0
  %vm2429 = vcmp.ge.f32.partialorder %v1271, 0.0
  %vm2430 = vcmp.ge.f32.partialorder %v1276, 0.0
  %vm2431 = vcmp.ge.f32.partialorder %v1281, 0.0
  %vm2432 = vcmp.ge.f32.partialorder %v1286, 0.0
  %vm2433 = vcmp.ge.f32.partialorder %v1291, 0.0
  %vm2434 = vcmp.ge.f32.partialorder %v1296, 0.0
  %vm2435 = vcmp.ge.f32.partialorder %v1301, 0.0
  %vm2436 = vcmp.ge.f32.partialorder %v1306, 0.0
  %vm2437 = vcmp.ge.f32.partialorder %v1311, 0.0
  %vm2438 = vcmp.ge.f32.partialorder %v1316, 0.0
  %vm2439 = vcmp.ge.f32.partialorder %v1321, 0.0
  %vm2440 = vcmp.ge.f32.partialorder %v1326, 0.0
  %vm2441 = vcmp.ge.f32.partialorder %v1331, 0.0
  %vm2442 = vcmp.ge.f32.partialorder %v1336, 0.0
  %vm2443 = vcmp.ge.f32.partialorder %v1341, 0.0
  %vm2444 = vcmp.ge.f32.partialorder %v1346, 0.0
  %vm2445 = vcmp.ge.f32.partialorder %v1351, 0.0
  %vm2446 = vcmp.ge.f32.partialorder %v1356, 0.0
  %vm2447 = vcmp.ge.f32.partialorder %v1361, 0.0
  %vm2448 = vcmp.ge.f32.partialorder %v1366, 0.0
  %vm2449 = vcmp.ge.f32.partialorder %v1371, 0.0
  %vm2450 = vcmp.ge.f32.partialorder %v1376, 0.0
  %vm2451 = vcmp.ge.f32.partialorder %v1381, 0.0
  %vm2452 = vcmp.ge.f32.partialorder %v1386, 0.0
  %vm2453 = vcmp.ge.f32.partialorder %v1391, 0.0
  %vm2454 = vcmp.ge.f32.partialorder %v1396, 0.0
  %vm2455 = vcmp.ge.f32.partialorder %v1401, 0.0
  %vm2456 = vcmp.ge.f32.partialorder %v1406, 0.0
  %vm2457 = vcmp.ge.f32.partialorder %v1411, 0.0
  %vm2458 = vcmp.ge.f32.partialorder %v1416, 0.0
  %vm2459 = vcmp.ge.f32.partialorder %v1421, 0.0
  %vm2460 = vcmp.ge.f32.partialorder %v1426, 0.0
  %vm2461 = vcmp.ge.f32.partialorder %v1431, 0.0
  %vm2462 = vcmp.ge.f32.partialorder %v1436, 0.0
  %vm2463 = vcmp.ge.f32.partialorder %v1441, 0.0
  %vm2464 = vcmp.ge.f32.partialorder %v1446, 0.0
  %vm2465 = vcmp.ge.f32.partialorder %v1451, 0.0
  %vm2466 = vcmp.ge.f32.partialorder %v1456, 0.0
  %vm2467 = vcmp.ge.f32.partialorder %v1461, 0.0
  %vm2468 = vcmp.ge.f32.partialorder %v1466, 0.0
  %vm2469 = vcmp.ge.f32.partialorder %v1471, 0.0
  %vm2470 = vcmp.ge.f32.partialorder %v1476, 0.0
  %vm2471 = vcmp.ge.f32.partialorder %v1481, 0.0
  %vm2472 = vcmp.ge.f32.partialorder %v1486, 0.0
  %vm2473 = vcmp.ge.f32.partialorder %v1491, 0.0
  %vm2474 = vcmp.ge.f32.partialorder %v1496, 0.0
  %vm2475 = vcmp.ge.f32.partialorder %v1501, 0.0
  %vm2476 = vcmp.ge.f32.partialorder %v1506, 0.0
  %vm2477 = vcmp.ge.f32.partialorder %v1511, 0.0
  %vm2478 = vcmp.ge.f32.partialorder %v1516, 0.0
  %vm2479 = vcmp.ge.f32.partialorder %v1521, 0.0
  %vm2480 = vcmp.ge.f32.partialorder %v1526, 0.0
  %vm2481 = vcmp.ge.f32.partialorder %v1531, 0.0
  %vm2482 = vcmp.ge.f32.partialorder %v1536, 0.0
  %vm2483 = vcmp.ge.f32.partialorder %v1541, 0.0
  %vm2484 = vcmp.ge.f32.partialorder %v1546, 0.0
  %vm2485 = vcmp.ge.f32.partialorder %v1551, 0.0
  %vm2486 = vcmp.ge.f32.partialorder %v1556, 0.0
  %vm2487 = vcmp.ge.f32.partialorder %v1561, 0.0
  %vm2488 = vcmp.ge.f32.partialorder %v1566, 0.0
  %vm2489 = vcmp.ge.f32.partialorder %v1571, 0.0
  %vm2490 = vcmp.ge.f32.partialorder %v1576, 0.0
  %vm2491 = vcmp.ge.f32.partialorder %v1581, 0.0
  %vm2492 = vcmp.ge.f32.partialorder %v1586, 0.0
  %vm2493 = vcmp.ge.f32.partialorder %v1591, 0.0
  %vm2494 = vcmp.ge.f32.partialorder %v1596, 0.0
  %vm2495 = vcmp.ge.f32.partialorder %v1601, 0.0
  %vm2496 = vcmp.ge.f32.partialorder %v1606, 0.0
  %vm2497 = vcmp.ge.f32.partialorder %v1611, 0.0
  %vm2498 = vcmp.ge.f32.partialorder %v1616, 0.0
  %vm2499 = vcmp.ge.f32.partialorder %v1621, 0.0
  %vm2500 = vcmp.ge.f32.partialorder %v1626, 0.0
  %vm2501 = vcmp.ge.f32.partialorder %v1631, 0.0
  %vm2502 = vcmp.ge.f32.partialorder %v1636, 0.0
  %vm2503 = vcmp.ge.f32.partialorder %v1641, 0.0
  %vm2504 = vcmp.ge.f32.partialorder %v1646, 0.0
  %vm2505 = vcmp.ge.f32.partialorder %v1651, 0.0
  %vm2506 = vcmp.ge.f32.partialorder %v1656, 0.0
  %vm2507 = vcmp.ge.f32.partialorder %v1661, 0.0
  %vm2508 = vcmp.ge.f32.partialorder %v1666, 0.0
  %vm2509 = vcmp.ge.f32.partialorder %v1671, 0.0
  %vm2510 = vcmp.ge.f32.partialorder %v1676, 0.0
  %vm2511 = vcmp.ge.f32.partialorder %v1681, 0.0
  %vm2512 = vcmp.ge.f32.partialorder %v1686, 0.0
  %vm2513 = vcmp.ge.f32.partialorder %v1691, 0.0
  %vm2514 = vcmp.ge.f32.partialorder %v1696, 0.0
  %vm2515 = vcmp.ge.f32.partialorder %v1701, 0.0
  %vm2516 = vcmp.ge.f32.partialorder %v1706, 0.0
  %vm2517 = vcmp.ge.f32.partialorder %v1711, 0.0
  %vm2518 = vcmp.ge.f32.partialorder %v1716, 0.0
  %vm2519 = vcmp.ge.f32.partialorder %v1721, 0.0
  %vm2520 = vcmp.ge.f32.partialorder %v1726, 0.0
  %vm2521 = vcmp.ge.f32.partialorder %v1731, 0.0
  %vm2522 = vcmp.ge.f32.partialorder %v1736, 0.0
  %vm2523 = vcmp.ge.f32.partialorder %v1741, 0.0
  %vm2524 = vcmp.ge.f32.partialorder %v1746, 0.0
  %vm2525 = vcmp.ge.f32.partialorder %v1751, 0.0
  %vm2526 = vcmp.ge.f32.partialorder %v1756, 0.0
  %vm2527 = vcmp.ge.f32.partialorder %v1761, 0.0
  %vm2528 = vcmp.ge.f32.partialorder %v1766, 0.0
  %vm2529 = vcmp.ge.f32.partialorder %v1771, 0.0
  %vm2530 = vcmp.ge.f32.partialorder %v1776, 0.0
  %vm2531 = vcmp.ge.f32.partialorder %v1781, 0.0
  %vm2532 = vcmp.ge.f32.partialorder %v1786, 0.0
  %vm2533 = vcmp.ge.f32.partialorder %v1791, 0.0
  %vm2534 = vcmp.ge.f32.partialorder %v1796, 0.0
  %vm2535 = vcmp.ge.f32.partialorder %v1801, 0.0
  %vm2536 = vcmp.ge.f32.partialorder %v1806, 0.0
  %vm2537 = vcmp.ge.f32.partialorder %v1811, 0.0
  %vm2538 = vcmp.ge.f32.partialorder %v1816, 0.0
  %vm2539 = vcmp.ge.f32.partialorder %v1821, 0.0
  %vm2540 = vcmp.ge.f32.partialorder %v1826, 0.0
  %vm2541 = vcmp.ge.f32.partialorder %v1831, 0.0
  %vm2542 = vcmp.ge.f32.partialorder %v1836, 0.0
  %vm2543 = vcmp.ge.f32.partialorder %v1841, 0.0
  %vm2544 = vcmp.ge.f32.partialorder %v1846, 0.0
  %vm2545 = vcmp.ge.f32.partialorder %v1851, 0.0
  %vm2546 = vcmp.ge.f32.partialorder %v1856, 0.0
  %vm2547 = vcmp.ge.f32.partialorder %v1861, 0.0
  %vm2548 = vcmp.ge.f32.partialorder %v1866, 0.0
  %vm2549 = vcmp.ge.f32.partialorder %v1871, 0.0
  %vm2550 = vcmp.ge.f32.partialorder %v1876, 0.0
  %vm2551 = vcmp.ge.f32.partialorder %v1881, 0.0
  %vm2552 = vcmp.ge.f32.partialorder %v1886, 0.0
  %vm2553 = vcmp.ge.f32.partialorder %v1891, 0.0
  %vm2554 = vcmp.ge.f32.partialorder %v1896, 0.0
  %vm2555 = vcmp.ge.f32.partialorder %v1901, 0.0
  %vm2556 = vcmp.ge.f32.partialorder %v1906, 0.0
  %vm2557 = vcmp.ge.f32.partialorder %v1911, 0.0
  %vm2558 = vcmp.ge.f32.partialorder %v1916, 0.0
  %vm2559 = vcmp.ge.f32.partialorder %v1921, 0.0
  %vm2560 = vcmp.ge.f32.partialorder %v1926, 0.0
  %vm2561 = vcmp.ge.f32.partialorder %v1931, 0.0
  %vm2562 = vcmp.ge.f32.partialorder %v1936, 0.0
  %vm2563 = vcmp.ge.f32.partialorder %v1941, 0.0
  %vm2564 = vcmp.ge.f32.partialorder %v1946, 0.0
  %vm2565 = vcmp.ge.f32.partialorder %v1951, 0.0
  %vm2566 = vcmp.ge.f32.partialorder %v1956, 0.0
  %vm2567 = vcmp.ge.f32.partialorder %v1961, 0.0
  %vm2568 = vcmp.ge.f32.partialorder %v1966, 0.0
  %vm2569 = vcmp.ge.f32.partialorder %v1971, 0.0
  %vm2570 = vcmp.ge.f32.partialorder %v1976, 0.0
  %vm2571 = vcmp.ge.f32.partialorder %v1981, 0.0
  %vm2572 = vcmp.ge.f32.partialorder %v1986, 0.0
  %vm2573 = vcmp.ge.f32.partialorder %v1991, 0.0
  %vm2574 = vcmp.ge.f32.partialorder %v1996, 0.0
  %vm2575 = vcmp.ge.f32.partialorder %v2001, 0.0
  %vm2576 = vcmp.ge.f32.partialorder %v2006, 0.0
  %vm2577 = vcmp.ge.f32.partialorder %v2011, 0.0
  %vm2578 = vcmp.ge.f32.partialorder %v2016, 0.0
  %vm2579 = vcmp.ge.f32.partialorder %v2021, 0.0
  %vm2580 = vcmp.ge.f32.partialorder %v2026, 0.0
  %vm2581 = vcmp.ge.f32.partialorder %v2031, 0.0
  %vm2582 = vcmp.ge.f32.partialorder %v2036, 0.0
  %vm2583 = vcmp.ge.f32.partialorder %v2041, 0.0
  %vm2584 = vcmp.ge.f32.partialorder %v2046, 0.0
  %vm2585 = vcmp.ge.f32.partialorder %v2051, 0.0
  %vm2586 = vcmp.ge.f32.partialorder %v2056, 0.0
  %vm2587 = vcmp.ge.f32.partialorder %v2061, 0.0
  %vm2588 = vcmp.ge.f32.partialorder %v2066, 0.0
  %vm2589 = vcmp.ge.f32.partialorder %v2071, 0.0
  %vm2590 = vcmp.ge.f32.partialorder %v2076, 0.0
  %vm2591 = vcmp.ge.f32.partialorder %v2081, 0.0
  %vm2592 = vcmp.ge.f32.partialorder %v2086, 0.0
  %vm2593 = vcmp.ge.f32.partialorder %v2091, 0.0
  %vm2594 = vcmp.ge.f32.partialorder %v2096, 0.0
  %vm2595 = vcmp.ge.f32.partialorder %v2101, 0.0
  %vm2596 = vcmp.ge.f32.partialorder %v2106, 0.0
  %vm2597 = vcmp.ge.f32.partialorder %v2111, 0.0
  %vm2598 = vcmp.ge.f32.partialorder %v2116, 0.0
  %vm2599 = vcmp.ge.f32.partialorder %v2121, 0.0
  %vm2600 = vcmp.ge.f32.partialorder %v2126, 0.0
  %vm2601 = vcmp.ge.f32.partialorder %v2131, 0.0
  %vm2602 = vcmp.ge.f32.partialorder %v2136, 0.0
  %vm2603 = vcmp.ge.f32.partialorder %v2141, 0.0
  %vm2604 = vcmp.ge.f32.partialorder %v2146, 0.0
  %vm2605 = vcmp.ge.f32.partialorder %v2151, 0.0
  %vm2606 = vcmp.ge.f32.partialorder %v2156, 0.0
  %vm2607 = vcmp.ge.f32.partialorder %v2161, 0.0
  %vm2608 = vcmp.ge.f32.partialorder %v2166, 0.0
  %vm2609 = vcmp.ge.f32.partialorder %v2171, 0.0
  %vm2610 = vcmp.ge.f32.partialorder %v2176, 0.0
  %vm2611 = vcmp.ge.f32.partialorder %v2181, 0.0
  %vm2612 = vcmp.ge.f32.partialorder %v2186, 0.0
  %vm2613 = vcmp.ge.f32.partialorder %v2191, 0.0
  %vm2614 = vcmp.ge.f32.partialorder %v2196, 0.0
  %vm2615 = vcmp.ge.f32.partialorder %v2201, 0.0
  %vm2616 = vcmp.ge.f32.partialorder %v2206, 0.0
  %vm2617 = vcmp.ge.f32.partialorder %v2211, 0.0
  %vm2618 = vcmp.ge.f32.partialorder %v2216, 0.0
  %vm2619 = vcmp.ge.f32.partialorder %v2221, 0.0
  %vm2620 = vcmp.ge.f32.partialorder %v2226, 0.0
  %vm2621 = vcmp.ge.f32.partialorder %v2231, 0.0
  %vm2622 = vcmp.ge.f32.partialorder %v2236, 0.0
  %vm2623 = vcmp.ge.f32.partialorder %v2241, 0.0
  %vm2624 = vcmp.ge.f32.partialorder %v2246, 0.0
  %vm2625 = vcmp.ge.f32.partialorder %v2251, 0.0
  %vm2626 = vcmp.ge.f32.partialorder %v2256, 0.0
  %vm2627 = vcmp.ge.f32.partialorder %v2261, 0.0
  %vm2628 = vcmp.ge.f32.partialorder %v2266, 0.0
  %vm2629 = vcmp.ge.f32.partialorder %v2271, 0.0
  %vm2630 = vcmp.ge.f32.partialorder %v2276, 0.0
  %vm2631 = vcmp.ge.f32.partialorder %v2281, 0.0
  %vm2632 = vcmp.ge.f32.partialorder %v2286, 0.0
  %vm2633 = vcmp.ge.f32.partialorder %v2291, 0.0
  %vm2634 = vcmp.ge.f32.partialorder %v2296, 0.0
  %vm2635 = vcmp.ge.f32.partialorder %v2301, 0.0
  %vm2636 = vcmp.ge.f32.partialorder %v2306, 0.0
  %vm2637 = vcmp.ge.f32.partialorder %v2311, 0.0
  %vm2638 = vcmp.ge.f32.partialorder %v2316, 0.0
  %vm2639 = vcmp.ge.f32.partialorder %v2321, 0.0
  %vm2640 = vcmp.ge.f32.partialorder %v2326, 0.0
  %vm2641 = vcmp.ge.f32.partialorder %v2331, 0.0
  %vm2642 = vcmp.ge.f32.partialorder %v2336, 0.0
  %vm2643 = vcmp.ge.f32.partialorder %v2341, 0.0
  %vm2644 = vcmp.ge.f32.partialorder %v2346, 0.0
  %vm2645 = vcmp.ge.f32.partialorder %v2351, 0.0
  %vm2646 = vcmp.ge.f32.partialorder %v2356, 0.0
  %vm2647 = vcmp.ge.f32.partialorder %v2361, 0.0
  %vm2648 = vcmp.ge.f32.partialorder %v2366, 0.0
  %vm2649 = vcmp.ge.f32.partialorder %v2371, 0.0
  %vm2650 = vcmp.ge.f32.partialorder %v2376, 0.0
  %vm2651 = vcmp.ge.f32.partialorder %v2381, 0.0
  %vm2652 = vcmp.ge.f32.partialorder %v2386, 0.0
  %vm2653 = vcmp.ge.f32.partialorder %v2391, 0.0
  %vm2654 = vcmp.ge.f32.partialorder %v2396, 0.0
  %v2655 = vmul.f32 %v1121, 0.2
  %v2656 = vmul.f32 %v1126, 0.2
  %v2657 = vmul.f32 %v1131, 0.2
  %v2658 = vmul.f32 %v1136, 0.2
  %v2659 = vmul.f32 %v1141, 0.2
  %v2660 = vmul.f32 %v1146, 0.2
  %v2661 = vmul.f32 %v1151, 0.2
  %v2662 = vmul.f32 %v1156, 0.2
  %v2663 = vmul.f32 %v1161, 0.2
  %v2664 = vmul.f32 %v1166, 0.2
  %v2665 = vmul.f32 %v1171, 0.2
  %v2666 = vmul.f32 %v1176, 0.2
  %v2667 = vmul.f32 %v1181, 0.2
  %v2668 = vmul.f32 %v1186, 0.2
  %v2669 = vmul.f32 %v1191, 0.2
  %v2670 = vmul.f32 %v1196, 0.2
  %v2671 = vmul.f32 %v1201, 0.2
  %v2672 = vmul.f32 %v1206, 0.2
  %v2673 = vmul.f32 %v1211, 0.2
  %v2674 = vmul.f32 %v1216, 0.2
  %v2675 = vmul.f32 %v1221, 0.2
  %v2676 = vmul.f32 %v1226, 0.2
  %v2677 = vmul.f32 %v1231, 0.2
  %v2678 = vmul.f32 %v1236, 0.2
  %v2679 = vmul.f32 %v1241, 0.2
  %v2680 = vmul.f32 %v1246, 0.2
  %v2681 = vmul.f32 %v1251, 0.2
  %v2682 = vmul.f32 %v1256, 0.2
  %v2683 = vmul.f32 %v1261, 0.2
  %v2684 = vmul.f32 %v1266, 0.2
  %v2685 = vmul.f32 %v1271, 0.2
  %v2686 = vmul.f32 %v1276, 0.2
  %v2687 = vmul.f32 %v1281, 0.2
  %v2688 = vmul.f32 %v1286, 0.2
  %v2689 = vmul.f32 %v1291, 0.2
  %v2690 = vmul.f32 %v1296, 0.2
  %v2691 = vmul.f32 %v1301, 0.2
  %v2692 = vmul.f32 %v1306, 0.2
  %v2693 = vmul.f32 %v1311, 0.2
  %v2694 = vmul.f32 %v1316, 0.2
  %v2695 = vmul.f32 %v1321, 0.2
  %v2696 = vmul.f32 %v1326, 0.2
  %v2697 = vmul.f32 %v1331, 0.2
  %v2698 = vmul.f32 %v1336, 0.2
  %v2699 = vmul.f32 %v1341, 0.2
  %v2700 = vmul.f32 %v1346, 0.2
  %v2701 = vmul.f32 %v1351, 0.2
  %v2702 = vmul.f32 %v1356, 0.2
  %v2703 = vmul.f32 %v1361, 0.2
  %v2704 = vmul.f32 %v1366, 0.2
  %v2705 = vmul.f32 %v1371, 0.2
  %v2706 = vmul.f32 %v1376, 0.2
  %v2707 = vmul.f32 %v1381, 0.2
  %v2708 = vmul.f32 %v1386, 0.2
  %v2709 = vmul.f32 %v1391, 0.2
  %v2710 = vmul.f32 %v1396, 0.2
  %v2711 = vmul.f32 %v1401, 0.2
  %v2712 = vmul.f32 %v1406, 0.2
  %v2713 = vmul.f32 %v1411, 0.2
  %v2714 = vmul.f32 %v1416, 0.2
  %v2715 = vmul.f32 %v1421, 0.2
  %v2716 = vmul.f32 %v1426, 0.2
  %v2717 = vmul.f32 %v1431, 0.2
  %v2718 = vmul.f32 %v1436, 0.2
  %v2719 = vmul.f32 %v1441, 0.2
  %v2720 = vmul.f32 %v1446, 0.2
  %v2721 = vmul.f32 %v1451, 0.2
  %v2722 = vmul.f32 %v1456, 0.2
  %v2723 = vmul.f32 %v1461, 0.2
  %v2724 = vmul.f32 %v1466, 0.2
  %v2725 = vmul.f32 %v1471, 0.2
  %v2726 = vmul.f32 %v1476, 0.2
  %v2727 = vmul.f32 %v1481, 0.2
  %v2728 = vmul.f32 %v1486, 0.2
  %v2729 = vmul.f32 %v1491, 0.2
  %v2730 = vmul.f32 %v1496, 0.2
  %v2731 = vmul.f32 %v1501, 0.2
  %v2732 = vmul.f32 %v1506, 0.2
  %v2733 = vmul.f32 %v1511, 0.2
  %v2734 = vmul.f32 %v1516, 0.2
  %v2735 = vmul.f32 %v1521, 0.2
  %v2736 = vmul.f32 %v1526, 0.2
  %v2737 = vmul.f32 %v1531, 0.2
  %v2738 = vmul.f32 %v1536, 0.2
  %v2739 = vmul.f32 %v1541, 0.2
  %v2740 = vmul.f32 %v1546, 0.2
  %v2741 = vmul.f32 %v1551, 0.2
  %v2742 = vmul.f32 %v1556, 0.2
  %v2743 = vmul.f32 %v1561, 0.2
  %v2744 = vmul.f32 %v1566, 0.2
  %v2745 = vmul.f32 %v1571, 0.2
  %v2746 = vmul.f32 %v1576, 0.2
  %v2747 = vmul.f32 %v1581, 0.2
  %v2748 = vmul.f32 %v1586, 0.2
  %v2749 = vmul.f32 %v1591, 0.2
  %v2750 = vmul.f32 %v1596, 0.2
  %v2751 = vmul.f32 %v1601, 0.2
  %v2752 = vmul.f32 %v1606, 0.2
  %v2753 = vmul.f32 %v1611, 0.2
  %v2754 = vmul.f32 %v1616, 0.2
  %v2755 = vmul.f32 %v1621, 0.2
  %v2756 = vmul.f32 %v1626, 0.2
  %v2757 = vmul.f32 %v1631, 0.2
  %v2758 = vmul.f32 %v1636, 0.2
  %v2759 = vmul.f32 %v1641, 0.2
  %v2760 = vmul.f32 %v1646, 0.2
  %v2761 = vmul.f32 %v1651, 0.2
  %v2762 = vmul.f32 %v1656, 0.2
  %v2763 = vmul.f32 %v1661, 0.2
  %v2764 = vmul.f32 %v1666, 0.2
  %v2765 = vmul.f32 %v1671, 0.2
  %v2766 = vmul.f32 %v1676, 0.2
  %v2767 = vmul.f32 %v1681, 0.2
  %v2768 = vmul.f32 %v1686, 0.2
  %v2769 = vmul.f32 %v1691, 0.2
  %v2770 = vmul.f32 %v1696, 0.2
  %v2771 = vmul.f32 %v1701, 0.2
  %v2772 = vmul.f32 %v1706, 0.2
  %v2773 = vmul.f32 %v1711, 0.2
  %v2774 = vmul.f32 %v1716, 0.2
  %v2775 = vmul.f32 %v1721, 0.2
  %v2776 = vmul.f32 %v1726, 0.2
  %v2777 = vmul.f32 %v1731, 0.2
  %v2778 = vmul.f32 %v1736, 0.2
  %v2779 = vmul.f32 %v1741, 0.2
  %v2780 = vmul.f32 %v1746, 0.2
  %v2781 = vmul.f32 %v1751, 0.2
  %v2782 = vmul.f32 %v1756, 0.2
  %v2783 = vmul.f32 %v1761, 0.2
  %v2784 = vmul.f32 %v1766, 0.2
  %v2785 = vmul.f32 %v1771, 0.2
  %v2786 = vmul.f32 %v1776, 0.2
  %v2787 = vmul.f32 %v1781, 0.2
  %v2788 = vmul.f32 %v1786, 0.2
  %v2789 = vmul.f32 %v1791, 0.2
  %v2790 = vmul.f32 %v1796, 0.2
  %v2791 = vmul.f32 %v1801, 0.2
  %v2792 = vmul.f32 %v1806, 0.2
  %v2793 = vmul.f32 %v1811, 0.2
  %v2794 = vmul.f32 %v1816, 0.2
  %v2795 = vmul.f32 %v1821, 0.2
  %v2796 = vmul.f32 %v1826, 0.2
  %v2797 = vmul.f32 %v1831, 0.2
  %v2798 = vmul.f32 %v1836, 0.2
  %v2799 = vmul.f32 %v1841, 0.2
  %v2800 = vmul.f32 %v1846, 0.2
  %v2801 = vmul.f32 %v1851, 0.2
  %v2802 = vmul.f32 %v1856, 0.2
  %v2803 = vmul.f32 %v1861, 0.2
  %v2804 = vmul.f32 %v1866, 0.2
  %v2805 = vmul.f32 %v1871, 0.2
  %v2806 = vmul.f32 %v1876, 0.2
  %v2807 = vmul.f32 %v1881, 0.2
  %v2808 = vmul.f32 %v1886, 0.2
  %v2809 = vmul.f32 %v1891, 0.2
  %v2810 = vmul.f32 %v1896, 0.2
  %v2811 = vmul.f32 %v1901, 0.2
  %v2812 = vmul.f32 %v1906, 0.2
  %v2813 = vmul.f32 %v1911, 0.2
  %v2814 = vmul.f32 %v1916, 0.2
  %v2815 = vmul.f32 %v1921, 0.2
  %v2816 = vmul.f32 %v1926, 0.2
  %v2817 = vmul.f32 %v1931, 0.2
  %v2818 = vmul.f32 %v1936, 0.2
  %v2819 = vmul.f32 %v1941, 0.2
  %v2820 = vmul.f32 %v1946, 0.2
  %v2821 = vmul.f32 %v1951, 0.2
  %v2822 = vmul.f32 %v1956, 0.2
  %v2823 = vmul.f32 %v1961, 0.2
  %v2824 = vmul.f32 %v1966, 0.2
  %v2825 = vmul.f32 %v1971, 0.2
  %v2826 = vmul.f32 %v1976, 0.2
  %v2827 = vmul.f32 %v1981, 0.2
  %v2828 = vmul.f32 %v1986, 0.2
  %v2829 = vmul.f32 %v1991, 0.2
  %v2830 = vmul.f32 %v1996, 0.2
  %v2831 = vmul.f32 %v2001, 0.2
  %v2832 = vmul.f32 %v2006, 0.2
  %v2833 = vmul.f32 %v2011, 0.2
  %v2834 = vmul.f32 %v2016, 0.2
  %v2835 = vmul.f32 %v2021, 0.2
  %v2836 = vmul.f32 %v2026, 0.2
  %v2837 = vmul.f32 %v2031, 0.2
  %v2838 = vmul.f32 %v2036, 0.2
  %v2839 = vmul.f32 %v2041, 0.2
  %v2840 = vmul.f32 %v2046, 0.2
  %v2841 = vmul.f32 %v2051, 0.2
  %v2842 = vmul.f32 %v2056, 0.2
  %v2843 = vmul.f32 %v2061, 0.2
  %v2844 = vmul.f32 %v2066, 0.2
  %v2845 = vmul.f32 %v2071, 0.2
  %v2846 = vmul.f32 %v2076, 0.2
  %v2847 = vmul.f32 %v2081, 0.2
  %v2848 = vmul.f32 %v2086, 0.2
  %v2849 = vmul.f32 %v2091, 0.2
  %v2850 = vmul.f32 %v2096, 0.2
  %v2851 = vmul.f32 %v2101, 0.2
  %v2852 = vmul.f32 %v2106, 0.2
  %v2853 = vmul.f32 %v2111, 0.2
  %v2854 = vmul.f32 %v2116, 0.2
  %v2855 = vmul.f32 %v2121, 0.2
  %v2856 = vmul.f32 %v2126, 0.2
  %v2857 = vmul.f32 %v2131, 0.2
  %v2858 = vmul.f32 %v2136, 0.2
  %v2859 = vmul.f32 %v2141, 0.2
  %v2860 = vmul.f32 %v2146, 0.2
  %v2861 = vmul.f32 %v2151, 0.2
  %v2862 = vmul.f32 %v2156, 0.2
  %v2863 = vmul.f32 %v2161, 0.2
  %v2864 = vmul.f32 %v2166, 0.2
  %v2865 = vmul.f32 %v2171, 0.2
  %v2866 = vmul.f32 %v2176, 0.2
  %v2867 = vmul.f32 %v2181, 0.2
  %v2868 = vmul.f32 %v2186, 0.2
  %v2869 = vmul.f32 %v2191, 0.2
  %v2870 = vmul.f32 %v2196, 0.2
  %v2871 = vmul.f32 %v2201, 0.2
  %v2872 = vmul.f32 %v2206, 0.2
  %v2873 = vmul.f32 %v2211, 0.2
  %v2874 = vmul.f32 %v2216, 0.2
  %v2875 = vmul.f32 %v2221, 0.2
  %v2876 = vmul.f32 %v2226, 0.2
  %v2877 = vmul.f32 %v2231, 0.2
  %v2878 = vmul.f32 %v2236, 0.2
  %v2879 = vmul.f32 %v2241, 0.2
  %v2880 = vmul.f32 %v2246, 0.2
  %v2881 = vmul.f32 %v2251, 0.2
  %v2882 = vmul.f32 %v2256, 0.2
  %v2883 = vmul.f32 %v2261, 0.2
  %v2884 = vmul.f32 %v2266, 0.2
  %v2885 = vmul.f32 %v2271, 0.2
  %v2886 = vmul.f32 %v2276, 0.2
  %v2887 = vmul.f32 %v2281, 0.2
  %v2888 = vmul.f32 %v2286, 0.2
  %v2889 = vmul.f32 %v2291, 0.2
  %v2890 = vmul.f32 %v2296, 0.2
  %v2891 = vmul.f32 %v2301, 0.2
  %v2892 = vmul.f32 %v2306, 0.2
  %v2893 = vmul.f32 %v2311, 0.2
  %v2894 = vmul.f32 %v2316, 0.2
  %v2895 = vmul.f32 %v2321, 0.2
  %v2896 = vmul.f32 %v2326, 0.2
  %v2897 = vmul.f32 %v2331, 0.2
  %v2898 = vmul.f32 %v2336, 0.2
  %v2899 = vmul.f32 %v2341, 0.2
  %v2900 = vmul.f32 %v2346, 0.2
  %v2901 = vmul.f32 %v2351, 0.2
  %v2902 = vmul.f32 %v2356, 0.2
  %v2903 = vmul.f32 %v2361, 0.2
  %v2904 = vmul.f32 %v2366, 0.2
  %v2905 = vmul.f32 %v2371, 0.2
  %v2906 = vmul.f32 %v2376, 0.2
  %v2907 = vmul.f32 %v2381, 0.2
  %v2908 = vmul.f32 %v2386, 0.2
  %v2909 = vmul.f32 %v2391, 0.2
  %v2910 = vmul.f32 %v2396, 0.2
  %v2911 = vsel %vm2399, %v1121, %v2655
  %v2912 = vsel %vm2400, %v1126, %v2656
  %v2913 = vsel %vm2401, %v1131, %v2657
  %v2914 = vsel %vm2402, %v1136, %v2658
  %v2915 = vsel %vm2403, %v1141, %v2659
  %v2916 = vsel %vm2404, %v1146, %v2660
  %v2917 = vsel %vm2405, %v1151, %v2661
  %v2918 = vsel %vm2406, %v1156, %v2662
  %v2919 = vsel %vm2407, %v1161, %v2663
  %v2920 = vsel %vm2408, %v1166, %v2664
  %v2921 = vsel %vm2409, %v1171, %v2665
  %v2922 = vsel %vm2410, %v1176, %v2666
  %v2923 = vsel %vm2411, %v1181, %v2667
  %v2924 = vsel %vm2412, %v1186, %v2668
  %v2925 = vsel %vm2413, %v1191, %v2669
  %v2926 = vsel %vm2414, %v1196, %v2670
  %v2927 = vsel %vm2415, %v1201, %v2671
  %v2928 = vsel %vm2416, %v1206, %v2672
  %v2929 = vsel %vm2417, %v1211, %v2673
  %v2930 = vsel %vm2418, %v1216, %v2674
  %v2931 = vsel %vm2419, %v1221, %v2675
  %v2932 = vsel %vm2420, %v1226, %v2676
  %v2933 = vsel %vm2421, %v1231, %v2677
  %v2934 = vsel %vm2422, %v1236, %v2678
  %v2935 = vsel %vm2423, %v1241, %v2679
  %v2936 = vsel %vm2424, %v1246, %v2680
  %v2937 = vsel %vm2425, %v1251, %v2681
  %v2938 = vsel %vm2426, %v1256, %v2682
  %v2939 = vsel %vm2427, %v1261, %v2683
  %v2940 = vsel %vm2428, %v1266, %v2684
  %v2941 = vsel %vm2429, %v1271, %v2685
  %v2942 = vsel %vm2430, %v1276, %v2686
  %v2943 = vsel %vm2431, %v1281, %v2687
  %v2944 = vsel %vm2432, %v1286, %v2688
  %v2945 = vsel %vm2433, %v1291, %v2689
  %v2946 = vsel %vm2434, %v1296, %v2690
  %v2947 = vsel %vm2435, %v1301, %v2691
  %v2948 = vsel %vm2436, %v1306, %v2692
  %v2949 = vsel %vm2437, %v1311, %v2693
  %v2950 = vsel %vm2438, %v1316, %v2694
  %v2951 = vsel %vm2439, %v1321, %v2695
  %v2952 = vsel %vm2440, %v1326, %v2696
  %v2953 = vsel %vm2441, %v1331, %v2697
  %v2954 = vsel %vm2442, %v1336, %v2698
  %v2955 = vsel %vm2443, %v1341, %v2699
  %v2956 = vsel %vm2444, %v1346, %v2700
  %v2957 = vsel %vm2445, %v1351, %v2701
  %v2958 = vsel %vm2446, %v1356, %v2702
  %v2959 = vsel %vm2447, %v1361, %v2703
  %v2960 = vsel %vm2448, %v1366, %v2704
  %v2961 = vsel %vm2449, %v1371, %v2705
  %v2962 = vsel %vm2450, %v1376, %v2706
  %v2963 = vsel %vm2451, %v1381, %v2707
  %v2964 = vsel %vm2452, %v1386, %v2708
  %v2965 = vsel %vm2453, %v1391, %v2709
  %v2966 = vsel %vm2454, %v1396, %v2710
  %v2967 = vsel %vm2455, %v1401, %v2711
  %v2968 = vsel %vm2456, %v1406, %v2712
  %v2969 = vsel %vm2457, %v1411, %v2713
  %v2970 = vsel %vm2458, %v1416, %v2714
  %v2971 = vsel %vm2459, %v1421, %v2715
  %v2972 = vsel %vm2460, %v1426, %v2716
  %v2973 = vsel %vm2461, %v1431, %v2717
  %v2974 = vsel %vm2462, %v1436, %v2718
  %v2975 = vsel %vm2463, %v1441, %v2719
  %v2976 = vsel %vm2464, %v1446, %v2720
  %v2977 = vsel %vm2465, %v1451, %v2721
  %v2978 = vsel %vm2466, %v1456, %v2722
  %v2979 = vsel %vm2467, %v1461, %v2723
  %v2980 = vsel %vm2468, %v1466, %v2724
  %v2981 = vsel %vm2469, %v1471, %v2725
  %v2982 = vsel %vm2470, %v1476, %v2726
  %v2983 = vsel %vm2471, %v1481, %v2727
  %v2984 = vsel %vm2472, %v1486, %v2728
  %v2985 = vsel %vm2473, %v1491, %v2729
  %v2986 = vsel %vm2474, %v1496, %v2730
  %v2987 = vsel %vm2475, %v1501, %v2731
  %v2988 = vsel %vm2476, %v1506, %v2732
  %v2989 = vsel %vm2477, %v1511, %v2733
  %v2990 = vsel %vm2478, %v1516, %v2734
  %v2991 = vsel %vm2479, %v1521, %v2735
  %v2992 = vsel %vm2480, %v1526, %v2736
  %v2993 = vsel %vm2481, %v1531, %v2737
  %v2994 = vsel %vm2482, %v1536, %v2738
  %v2995 = vsel %vm2483, %v1541, %v2739
  %v2996 = vsel %vm2484, %v1546, %v2740
  %v2997 = vsel %vm2485, %v1551, %v2741
  %v2998 = vsel %vm2486, %v1556, %v2742
  %v2999 = vsel %vm2487, %v1561, %v2743
  %v3000 = vsel %vm2488, %v1566, %v2744
  %v3001 = vsel %vm2489, %v1571, %v2745
  %v3002 = vsel %vm2490, %v1576, %v2746
  %v3003 = vsel %vm2491, %v1581, %v2747
  %v3004 = vsel %vm2492, %v1586, %v2748
  %v3005 = vsel %vm2493, %v1591, %v2749
  %v3006 = vsel %vm2494, %v1596, %v2750
  %v3007 = vsel %vm2495, %v1601, %v2751
  %v3008 = vsel %vm2496, %v1606, %v2752
  %v3009 = vsel %vm2497, %v1611, %v2753
  %v3010 = vsel %vm2498, %v1616, %v2754
  %v3011 = vsel %vm2499, %v1621, %v2755
  %v3012 = vsel %vm2500, %v1626, %v2756
  %v3013 = vsel %vm2501, %v1631, %v2757
  %v3014 = vsel %vm2502, %v1636, %v2758
  %v3015 = vsel %vm2503, %v1641, %v2759
  %v3016 = vsel %vm2504, %v1646, %v2760
  %v3017 = vsel %vm2505, %v1651, %v2761
  %v3018 = vsel %vm2506, %v1656, %v2762
  %v3019 = vsel %vm2507, %v1661, %v2763
  %v3020 = vsel %vm2508, %v1666, %v2764
  %v3021 = vsel %vm2509, %v1671, %v2765
  %v3022 = vsel %vm2510, %v1676, %v2766
  %v3023 = vsel %vm2511, %v1681, %v2767
  %v3024 = vsel %vm2512, %v1686, %v2768
  %v3025 = vsel %vm2513, %v1691, %v2769
  %v3026 = vsel %vm2514, %v1696, %v2770
  %v3027 = vsel %vm2515, %v1701, %v2771
  %v3028 = vsel %vm2516, %v1706, %v2772
  %v3029 = vsel %vm2517, %v1711, %v2773
  %v3030 = vsel %vm2518, %v1716, %v2774
  %v3031 = vsel %vm2519, %v1721, %v2775
  %v3032 = vsel %vm2520, %v1726, %v2776
  %v3033 = vsel %vm2521, %v1731, %v2777
  %v3034 = vsel %vm2522, %v1736, %v2778
  %v3035 = vsel %vm2523, %v1741, %v2779
  %v3036 = vsel %vm2524, %v1746, %v2780
  %v3037 = vsel %vm2525, %v1751, %v2781
  %v3038 = vsel %vm2526, %v1756, %v2782
  %v3039 = vsel %vm2527, %v1761, %v2783
  %v3040 = vsel %vm2528, %v1766, %v2784
  %v3041 = vsel %vm2529, %v1771, %v2785
  %v3042 = vsel %vm2530, %v1776, %v2786
  %v3043 = vsel %vm2531, %v1781, %v2787
  %v3044 = vsel %vm2532, %v1786, %v2788
  %v3045 = vsel %vm2533, %v1791, %v2789
  %v3046 = vsel %vm2534, %v1796, %v2790
  %v3047 = vsel %vm2535, %v1801, %v2791
  %v3048 = vsel %vm2536, %v1806, %v2792
  %v3049 = vsel %vm2537, %v1811, %v2793
  %v3050 = vsel %vm2538, %v1816, %v2794
  %v3051 = vsel %vm2539, %v1821, %v2795
  %v3052 = vsel %vm2540, %v1826, %v2796
  %v3053 = vsel %vm2541, %v1831, %v2797
  %v3054 = vsel %vm2542, %v1836, %v2798
  %v3055 = vsel %vm2543, %v1841, %v2799
  %v3056 = vsel %vm2544, %v1846, %v2800
  %v3057 = vsel %vm2545, %v1851, %v2801
  %v3058 = vsel %vm2546, %v1856, %v2802
  %v3059 = vsel %vm2547, %v1861, %v2803
  %v3060 = vsel %vm2548, %v1866, %v2804
  %v3061 = vsel %vm2549, %v1871, %v2805
  %v3062 = vsel %vm2550, %v1876, %v2806
  %v3063 = vsel %vm2551, %v1881, %v2807
  %v3064 = vsel %vm2552, %v1886, %v2808
  %v3065 = vsel %vm2553, %v1891, %v2809
  %v3066 = vsel %vm2554, %v1896, %v2810
  %v3067 = vsel %vm2555, %v1901, %v2811
  %v3068 = vsel %vm2556, %v1906, %v2812
  %v3069 = vsel %vm2557, %v1911, %v2813
  %v3070 = vsel %vm2558, %v1916, %v2814
  %v3071 = vsel %vm2559, %v1921, %v2815
  %v3072 = vsel %vm2560, %v1926, %v2816
  %v3073 = vsel %vm2561, %v1931, %v2817
  %v3074 = vsel %vm2562, %v1936, %v2818
  %v3075 = vsel %vm2563, %v1941, %v2819
  %v3076 = vsel %vm2564, %v1946, %v2820
  %v3077 = vsel %vm2565, %v1951, %v2821
  %v3078 = vsel %vm2566, %v1956, %v2822
  %v3079 = vsel %vm2567, %v1961, %v2823
  %v3080 = vsel %vm2568, %v1966, %v2824
  %v3081 = vsel %vm2569, %v1971, %v2825
  %v3082 = vsel %vm2570, %v1976, %v2826
  %v3083 = vsel %vm2571, %v1981, %v2827
  %v3084 = vsel %vm2572, %v1986, %v2828
  %v3085 = vsel %vm2573, %v1991, %v2829
  %v3086 = vsel %vm2574, %v1996, %v2830
  %v3087 = vsel %vm2575, %v2001, %v2831
  %v3088 = vsel %vm2576, %v2006, %v2832
  %v3089 = vsel %vm2577, %v2011, %v2833
  %v3090 = vsel %vm2578, %v2016, %v2834
  %v3091 = vsel %vm2579, %v2021, %v2835
  %v3092 = vsel %vm2580, %v2026, %v2836
  %v3093 = vsel %vm2581, %v2031, %v2837
  %v3094 = vsel %vm2582, %v2036, %v2838
  %v3095 = vsel %vm2583, %v2041, %v2839
  %v3096 = vsel %vm2584, %v2046, %v2840
  %v3097 = vsel %vm2585, %v2051, %v2841
  %v3098 = vsel %vm2586, %v2056, %v2842
  %v3099 = vsel %vm2587, %v2061, %v2843
  %v3100 = vsel %vm2588, %v2066, %v2844
  %v3101 = vsel %vm2589, %v2071, %v2845
  %v3102 = vsel %vm2590, %v2076, %v2846
  %v3103 = vsel %vm2591, %v2081, %v2847
  %v3104 = vsel %vm2592, %v2086, %v2848
  %v3105 = vsel %vm2593, %v2091, %v2849
  %v3106 = vsel %vm2594, %v2096, %v2850
  %v3107 = vsel %vm2595, %v2101, %v2851
  %v3108 = vsel %vm2596, %v2106, %v2852
  %v3109 = vsel %vm2597, %v2111, %v2853
  %v3110 = vsel %vm2598, %v2116, %v2854
  %v3111 = vsel %vm2599, %v2121, %v2855
  %v3112 = vsel %vm2600, %v2126, %v2856
  %v3113 = vsel %vm2601, %v2131, %v2857
  %v3114 = vsel %vm2602, %v2136, %v2858
  %v3115 = vsel %vm2603, %v2141, %v2859
  %v3116 = vsel %vm2604, %v2146, %v2860
  %v3117 = vsel %vm2605, %v2151, %v2861
  %v3118 = vsel %vm2606, %v2156, %v2862
  %v3119 = vsel %vm2607, %v2161, %v2863
  %v3120 = vsel %vm2608, %v2166, %v2864
  %v3121 = vsel %vm2609, %v2171, %v2865
  %v3122 = vsel %vm2610, %v2176, %v2866
  %v3123 = vsel %vm2611, %v2181, %v2867
  %v3124 = vsel %vm2612, %v2186, %v2868
  %v3125 = vsel %vm2613, %v2191, %v2869
  %v3126 = vsel %vm2614, %v2196, %v2870
  %v3127 = vsel %vm2615, %v2201, %v2871
  %v3128 = vsel %vm2616, %v2206, %v2872
  %v3129 = vsel %vm2617, %v2211, %v2873
  %v3130 = vsel %vm2618, %v2216, %v2874
  %v3131 = vsel %vm2619, %v2221, %v2875
  %v3132 = vsel %vm2620, %v2226, %v2876
  %v3133 = vsel %vm2621, %v2231, %v2877
  %v3134 = vsel %vm2622, %v2236, %v2878
  %v3135 = vsel %vm2623, %v2241, %v2879
  %v3136 = vsel %vm2624, %v2246, %v2880
  %v3137 = vsel %vm2625, %v2251, %v2881
  %v3138 = vsel %vm2626, %v2256, %v2882
  %v3139 = vsel %vm2627, %v2261, %v2883
  %v3140 = vsel %vm2628, %v2266, %v2884
  %v3141 = vsel %vm2629, %v2271, %v2885
  %v3142 = vsel %vm2630, %v2276, %v2886
  %v3143 = vsel %vm2631, %v2281, %v2887
  %v3144 = vsel %vm2632, %v2286, %v2888
  %v3145 = vsel %vm2633, %v2291, %v2889
  %v3146 = vsel %vm2634, %v2296, %v2890
  %v3147 = vsel %vm2635, %v2301, %v2891
  %v3148 = vsel %vm2636, %v2306, %v2892
  %v3149 = vsel %vm2637, %v2311, %v2893
  %v3150 = vsel %vm2638, %v2316, %v2894
  %v3151 = vsel %vm2639, %v2321, %v2895
  %v3152 = vsel %vm2640, %v2326, %v2896
  %v3153 = vsel %vm2641, %v2331, %v2897
  %v3154 = vsel %vm2642, %v2336, %v2898
  %v3155 = vsel %vm2643, %v2341, %v2899
  %v3156 = vsel %vm2644, %v2346, %v2900
  %v3157 = vsel %vm2645, %v2351, %v2901
  %v3158 = vsel %vm2646, %v2356, %v2902
  %v3159 = vsel %vm2647, %v2361, %v2903
  %v3160 = vsel %vm2648, %v2366, %v2904
  %v3161 = vsel %vm2649, %v2371, %v2905
  %v3162 = vsel %vm2650, %v2376, %v2906
  %v3163 = vsel %vm2651, %v2381, %v2907
  %v3164 = vsel %vm2652, %v2386, %v2908
  %v3165 = vsel %vm2653, %v2391, %v2909
  %v3166 = vsel %vm2654, %v2396, %v2910
  %vm3167 = vcmask 31744
  %v3168 = vsel %vm3167, %v2911, 0.0
  %v3169 = vsel %vm3167, %v2912, 0.0
  %v3170 = vadd.f32 %v3168, %v3169
  %v3171 = vsel %vm3167, %v2913, 0.0
  %v3172 = vadd.f32 %v3170, %v3171
  %v3173 = vsel %vm3167, %v2914, 0.0
  %v3174 = vadd.f32 %v3172, %v3173
  %v3175 = vsel %vm3167, %v2915, 0.0
  %v3176 = vadd.f32 %v3174, %v3175
  %v3177 = vsel %vm3167, %v2916, 0.0
  %v3178 = vadd.f32 %v3176, %v3177
  %v3179 = vsel %vm3167, %v2917, 0.0
  %v3180 = vadd.f32 %v3178, %v3179
  %v3181 = vsel %vm3167, %v2918, 0.0
  %v3182 = vadd.f32 %v3180, %v3181
  %v3183 = vsel %vm3167, %v2919, 0.0
  %v3184 = vadd.f32 %v3182, %v3183
  %v3185 = vsel %vm3167, %v2920, 0.0
  %v3186 = vadd.f32 %v3184, %v3185
  %v3187 = vsel %vm3167, %v2921, 0.0
  %v3188 = vadd.f32 %v3186, %v3187
  %v3189 = vsel %vm3167, %v2922, 0.0
  %v3190 = vadd.f32 %v3188, %v3189
  %v3191 = vsel %vm3167, %v2923, 0.0
  %v3192 = vadd.f32 %v3190, %v3191
  %v3193 = vsel %vm3167, %v2924, 0.0
  %v3194 = vadd.f32 %v3192, %v3193
  %v3195 = vsel %vm3167, %v2925, 0.0
  %v3196 = vadd.f32 %v3194, %v3195
  %v3197 = vsel %vm3167, %v2926, 0.0
  %v3198 = vadd.f32 %v3196, %v3197
  %v3199 = vsel %vm3167, %v2927, 0.0
  %v3200 = vadd.f32 %v3198, %v3199
  %v3201 = vsel %vm3167, %v2928, 0.0
  %v3202 = vadd.f32 %v3200, %v3201
  %v3203 = vsel %vm3167, %v2929, 0.0
  %v3204 = vadd.f32 %v3202, %v3203
  %v3205 = vsel %vm3167, %v2930, 0.0
  %v3206 = vadd.f32 %v3204, %v3205
  %v3207 = vsel %vm3167, %v2931, 0.0
  %v3208 = vadd.f32 %v3206, %v3207
  %v3209 = vsel %vm3167, %v2932, 0.0
  %v3210 = vadd.f32 %v3208, %v3209
  %v3211 = vsel %vm3167, %v2933, 0.0
  %v3212 = vadd.f32 %v3210, %v3211
  %v3213 = vsel %vm3167, %v2934, 0.0
  %v3214 = vadd.f32 %v3212, %v3213
  %v3215 = vsel %vm3167, %v2935, 0.0
  %v3216 = vadd.f32 %v3214, %v3215
  %v3217 = vsel %vm3167, %v2936, 0.0
  %v3218 = vadd.f32 %v3216, %v3217
  %v3219 = vsel %vm3167, %v2937, 0.0
  %v3220 = vadd.f32 %v3218, %v3219
  %v3221 = vsel %vm3167, %v2938, 0.0
  %v3222 = vadd.f32 %v3220, %v3221
  %v3223 = vsel %vm3167, %v2939, 0.0
  %v3224 = vadd.f32 %v3222, %v3223
  %v3225 = vsel %vm3167, %v2940, 0.0
  %v3226 = vadd.f32 %v3224, %v3225
  %v3227 = vsel %vm3167, %v2941, 0.0
  %v3228 = vadd.f32 %v3226, %v3227
  %v3229 = vsel %vm3167, %v2942, 0.0
  %v3230 = vadd.f32 %v3228, %v3229
  %v3231 = vsel %vm3167, %v2943, 0.0
  %v3232 = vadd.f32 %v3230, %v3231
  %v3233 = vsel %vm3167, %v2944, 0.0
  %v3234 = vadd.f32 %v3232, %v3233
  %v3235 = vsel %vm3167, %v2945, 0.0
  %v3236 = vadd.f32 %v3234, %v3235
  %v3237 = vsel %vm3167, %v2946, 0.0
  %v3238 = vadd.f32 %v3236, %v3237
  %v3239 = vsel %vm3167, %v2947, 0.0
  %v3240 = vadd.f32 %v3238, %v3239
  %v3241 = vsel %vm3167, %v2948, 0.0
  %v3242 = vadd.f32 %v3240, %v3241
  %v3243 = vsel %vm3167, %v2949, 0.0
  %v3244 = vadd.f32 %v3242, %v3243
  %v3245 = vsel %vm3167, %v2950, 0.0
  %v3246 = vadd.f32 %v3244, %v3245
  %v3247 = vsel %vm3167, %v2951, 0.0
  %v3248 = vadd.f32 %v3246, %v3247
  %v3249 = vsel %vm3167, %v2952, 0.0
  %v3250 = vadd.f32 %v3248, %v3249
  %v3251 = vsel %vm3167, %v2953, 0.0
  %v3252 = vadd.f32 %v3250, %v3251
  %v3253 = vsel %vm3167, %v2954, 0.0
  %v3254 = vadd.f32 %v3252, %v3253
  %v3255 = vsel %vm3167, %v2955, 0.0
  %v3256 = vadd.f32 %v3254, %v3255
  %v3257 = vsel %vm3167, %v2956, 0.0
  %v3258 = vadd.f32 %v3256, %v3257
  %v3259 = vsel %vm3167, %v2957, 0.0
  %v3260 = vadd.f32 %v3258, %v3259
  %v3261 = vsel %vm3167, %v2958, 0.0
  %v3262 = vadd.f32 %v3260, %v3261
  %v3263 = vsel %vm3167, %v2959, 0.0
  %v3264 = vadd.f32 %v3262, %v3263
  %v3265 = vsel %vm3167, %v2960, 0.0
  %v3266 = vadd.f32 %v3264, %v3265
  %v3267 = vsel %vm3167, %v2961, 0.0
  %v3268 = vadd.f32 %v3266, %v3267
  %v3269 = vsel %vm3167, %v2962, 0.0
  %v3270 = vadd.f32 %v3268, %v3269
  %v3271 = vsel %vm3167, %v2963, 0.0
  %v3272 = vadd.f32 %v3270, %v3271
  %v3273 = vsel %vm3167, %v2964, 0.0
  %v3274 = vadd.f32 %v3272, %v3273
  %v3275 = vsel %vm3167, %v2965, 0.0
  %v3276 = vadd.f32 %v3274, %v3275
  %v3277 = vsel %vm3167, %v2966, 0.0
  %v3278 = vadd.f32 %v3276, %v3277
  %v3279 = vsel %vm3167, %v2967, 0.0
  %v3280 = vadd.f32 %v3278, %v3279
  %v3281 = vsel %vm3167, %v2968, 0.0
  %v3282 = vadd.f32 %v3280, %v3281
  %v3283 = vsel %vm3167, %v2969, 0.0
  %v3284 = vadd.f32 %v3282, %v3283
  %v3285 = vsel %vm3167, %v2970, 0.0
  %v3286 = vadd.f32 %v3284, %v3285
  %v3287 = vsel %vm3167, %v2971, 0.0
  %v3288 = vadd.f32 %v3286, %v3287
  %v3289 = vsel %vm3167, %v2972, 0.0
  %v3290 = vadd.f32 %v3288, %v3289
  %v3291 = vsel %vm3167, %v2973, 0.0
  %v3292 = vadd.f32 %v3290, %v3291
  %v3293 = vsel %vm3167, %v2974, 0.0
  %v3294 = vadd.f32 %v3292, %v3293
  %v3295 = vsel %vm3167, %v2975, 0.0
  %v3296 = vadd.f32 %v3294, %v3295
  %v3297 = vsel %vm3167, %v2976, 0.0
  %v3298 = vadd.f32 %v3296, %v3297
  %v3299 = vsel %vm3167, %v2977, 0.0
  %v3300 = vadd.f32 %v3298, %v3299
  %v3301 = vsel %vm3167, %v2978, 0.0
  %v3302 = vadd.f32 %v3300, %v3301
  %v3303 = vsel %vm3167, %v2979, 0.0
  %v3304 = vadd.f32 %v3302, %v3303
  %v3305 = vsel %vm3167, %v2980, 0.0
  %v3306 = vadd.f32 %v3304, %v3305
  %v3307 = vsel %vm3167, %v2981, 0.0
  %v3308 = vadd.f32 %v3306, %v3307
  %v3309 = vsel %vm3167, %v2982, 0.0
  %v3310 = vadd.f32 %v3308, %v3309
  %v3311 = vsel %vm3167, %v2983, 0.0
  %v3312 = vadd.f32 %v3310, %v3311
  %v3313 = vsel %vm3167, %v2984, 0.0
  %v3314 = vadd.f32 %v3312, %v3313
  %v3315 = vsel %vm3167, %v2985, 0.0
  %v3316 = vadd.f32 %v3314, %v3315
  %v3317 = vsel %vm3167, %v2986, 0.0
  %v3318 = vadd.f32 %v3316, %v3317
  %v3319 = vsel %vm3167, %v2987, 0.0
  %v3320 = vadd.f32 %v3318, %v3319
  %v3321 = vsel %vm3167, %v2988, 0.0
  %v3322 = vadd.f32 %v3320, %v3321
  %v3323 = vsel %vm3167, %v2989, 0.0
  %v3324 = vadd.f32 %v3322, %v3323
  %v3325 = vsel %vm3167, %v2990, 0.0
  %v3326 = vadd.f32 %v3324, %v3325
  %v3327 = vsel %vm3167, %v2991, 0.0
  %v3328 = vadd.f32 %v3326, %v3327
  %v3329 = vsel %vm3167, %v2992, 0.0
  %v3330 = vadd.f32 %v3328, %v3329
  %v3331 = vsel %vm3167, %v2993, 0.0
  %v3332 = vadd.f32 %v3330, %v3331
  %v3333 = vsel %vm3167, %v2994, 0.0
  %v3334 = vadd.f32 %v3332, %v3333
  %v3335 = vsel %vm3167, %v2995, 0.0
  %v3336 = vadd.f32 %v3334, %v3335
  %v3337 = vsel %vm3167, %v2996, 0.0
  %v3338 = vadd.f32 %v3336, %v3337
  %v3339 = vsel %vm3167, %v2997, 0.0
  %v3340 = vadd.f32 %v3338, %v3339
  %v3341 = vsel %vm3167, %v2998, 0.0
  %v3342 = vadd.f32 %v3340, %v3341
  %v3343 = vsel %vm3167, %v2999, 0.0
  %v3344 = vadd.f32 %v3342, %v3343
  %v3345 = vsel %vm3167, %v3000, 0.0
  %v3346 = vadd.f32 %v3344, %v3345
  %v3347 = vsel %vm3167, %v3001, 0.0
  %v3348 = vadd.f32 %v3346, %v3347
  %v3349 = vsel %vm3167, %v3002, 0.0
  %v3350 = vadd.f32 %v3348, %v3349
  %v3351 = vsel %vm3167, %v3003, 0.0
  %v3352 = vadd.f32 %v3350, %v3351
  %v3353 = vsel %vm3167, %v3004, 0.0
  %v3354 = vadd.f32 %v3352, %v3353
  %v3355 = vsel %vm3167, %v3005, 0.0
  %v3356 = vadd.f32 %v3354, %v3355
  %v3357 = vsel %vm3167, %v3006, 0.0
  %v3358 = vadd.f32 %v3356, %v3357
  %v3359 = vsel %vm3167, %v3007, 0.0
  %v3360 = vadd.f32 %v3358, %v3359
  %v3361 = vsel %vm3167, %v3008, 0.0
  %v3362 = vadd.f32 %v3360, %v3361
  %v3363 = vsel %vm3167, %v3009, 0.0
  %v3364 = vadd.f32 %v3362, %v3363
  %v3365 = vsel %vm3167, %v3010, 0.0
  %v3366 = vadd.f32 %v3364, %v3365
  %v3367 = vsel %vm3167, %v3011, 0.0
  %v3368 = vadd.f32 %v3366, %v3367
  %v3369 = vsel %vm3167, %v3012, 0.0
  %v3370 = vadd.f32 %v3368, %v3369
  %v3371 = vsel %vm3167, %v3013, 0.0
  %v3372 = vadd.f32 %v3370, %v3371
  %v3373 = vsel %vm3167, %v3014, 0.0
  %v3374 = vadd.f32 %v3372, %v3373
  %v3375 = vsel %vm3167, %v3015, 0.0
  %v3376 = vadd.f32 %v3374, %v3375
  %v3377 = vsel %vm3167, %v3016, 0.0
  %v3378 = vadd.f32 %v3376, %v3377
  %v3379 = vsel %vm3167, %v3017, 0.0
  %v3380 = vadd.f32 %v3378, %v3379
  %v3381 = vsel %vm3167, %v3018, 0.0
  %v3382 = vadd.f32 %v3380, %v3381
  %v3383 = vsel %vm3167, %v3019, 0.0
  %v3384 = vadd.f32 %v3382, %v3383
  %v3385 = vsel %vm3167, %v3020, 0.0
  %v3386 = vadd.f32 %v3384, %v3385
  %v3387 = vsel %vm3167, %v3021, 0.0
  %v3388 = vadd.f32 %v3386, %v3387
  %v3389 = vsel %vm3167, %v3022, 0.0
  %v3390 = vadd.f32 %v3388, %v3389
  %v3391 = vsel %vm3167, %v3023, 0.0
  %v3392 = vadd.f32 %v3390, %v3391
  %v3393 = vsel %vm3167, %v3024, 0.0
  %v3394 = vadd.f32 %v3392, %v3393
  %v3395 = vsel %vm3167, %v3025, 0.0
  %v3396 = vadd.f32 %v3394, %v3395
  %v3397 = vsel %vm3167, %v3026, 0.0
  %v3398 = vadd.f32 %v3396, %v3397
  %v3399 = vsel %vm3167, %v3027, 0.0
  %v3400 = vadd.f32 %v3398, %v3399
  %v3401 = vsel %vm3167, %v3028, 0.0
  %v3402 = vadd.f32 %v3400, %v3401
  %v3403 = vsel %vm3167, %v3029, 0.0
  %v3404 = vadd.f32 %v3402, %v3403
  %v3405 = vsel %vm3167, %v3030, 0.0
  %v3406 = vadd.f32 %v3404, %v3405
  %v3407 = vsel %vm3167, %v3031, 0.0
  %v3408 = vadd.f32 %v3406, %v3407
  %v3409 = vsel %vm3167, %v3032, 0.0
  %v3410 = vadd.f32 %v3408, %v3409
  %v3411 = vsel %vm3167, %v3033, 0.0
  %v3412 = vadd.f32 %v3410, %v3411
  %v3413 = vsel %vm3167, %v3034, 0.0
  %v3414 = vadd.f32 %v3412, %v3413
  %v3415 = vsel %vm3167, %v3035, 0.0
  %v3416 = vadd.f32 %v3414, %v3415
  %v3417 = vsel %vm3167, %v3036, 0.0
  %v3418 = vadd.f32 %v3416, %v3417
  %v3419 = vsel %vm3167, %v3037, 0.0
  %v3420 = vadd.f32 %v3418, %v3419
  %v3421 = vsel %vm3167, %v3038, 0.0
  %v3422 = vadd.f32 %v3420, %v3421
  %v3423 = vsel %vm3167, %v3039, 0.0
  %v3424 = vadd.f32 %v3422, %v3423
  %v3425 = vsel %vm3167, %v3040, 0.0
  %v3426 = vadd.f32 %v3424, %v3425
  %v3427 = vsel %vm3167, %v3041, 0.0
  %v3428 = vadd.f32 %v3426, %v3427
  %v3429 = vsel %vm3167, %v3042, 0.0
  %v3430 = vadd.f32 %v3428, %v3429
  %v3431 = vsel %vm3167, %v3043, 0.0
  %v3432 = vadd.f32 %v3430, %v3431
  %v3433 = vsel %vm3167, %v3044, 0.0
  %v3434 = vadd.f32 %v3432, %v3433
  %v3435 = vsel %vm3167, %v3045, 0.0
  %v3436 = vadd.f32 %v3434, %v3435
  %v3437 = vsel %vm3167, %v3046, 0.0
  %v3438 = vadd.f32 %v3436, %v3437
  %v3439 = vsel %vm3167, %v3047, 0.0
  %v3440 = vadd.f32 %v3438, %v3439
  %v3441 = vsel %vm3167, %v3048, 0.0
  %v3442 = vadd.f32 %v3440, %v3441
  %v3443 = vsel %vm3167, %v3049, 0.0
  %v3444 = vadd.f32 %v3442, %v3443
  %v3445 = vsel %vm3167, %v3050, 0.0
  %v3446 = vadd.f32 %v3444, %v3445
  %v3447 = vsel %vm3167, %v3051, 0.0
  %v3448 = vadd.f32 %v3446, %v3447
  %v3449 = vsel %vm3167, %v3052, 0.0
  %v3450 = vadd.f32 %v3448, %v3449
  %v3451 = vsel %vm3167, %v3053, 0.0
  %v3452 = vadd.f32 %v3450, %v3451
  %v3453 = vsel %vm3167, %v3054, 0.0
  %v3454 = vadd.f32 %v3452, %v3453
  %v3455 = vsel %vm3167, %v3055, 0.0
  %v3456 = vadd.f32 %v3454, %v3455
  %v3457 = vsel %vm3167, %v3056, 0.0
  %v3458 = vadd.f32 %v3456, %v3457
  %v3459 = vsel %vm3167, %v3057, 0.0
  %v3460 = vadd.f32 %v3458, %v3459
  %v3461 = vsel %vm3167, %v3058, 0.0
  %v3462 = vadd.f32 %v3460, %v3461
  %v3463 = vsel %vm3167, %v3059, 0.0
  %v3464 = vadd.f32 %v3462, %v3463
  %v3465 = vsel %vm3167, %v3060, 0.0
  %v3466 = vadd.f32 %v3464, %v3465
  %v3467 = vsel %vm3167, %v3061, 0.0
  %v3468 = vadd.f32 %v3466, %v3467
  %v3469 = vsel %vm3167, %v3062, 0.0
  %v3470 = vadd.f32 %v3468, %v3469
  %v3471 = vsel %vm3167, %v3063, 0.0
  %v3472 = vadd.f32 %v3470, %v3471
  %v3473 = vsel %vm3167, %v3064, 0.0
  %v3474 = vadd.f32 %v3472, %v3473
  %v3475 = vsel %vm3167, %v3065, 0.0
  %v3476 = vadd.f32 %v3474, %v3475
  %v3477 = vsel %vm3167, %v3066, 0.0
  %v3478 = vadd.f32 %v3476, %v3477
  %v3479 = vsel %vm3167, %v3067, 0.0
  %v3480 = vadd.f32 %v3478, %v3479
  %v3481 = vsel %vm3167, %v3068, 0.0
  %v3482 = vadd.f32 %v3480, %v3481
  %v3483 = vsel %vm3167, %v3069, 0.0
  %v3484 = vadd.f32 %v3482, %v3483
  %v3485 = vsel %vm3167, %v3070, 0.0
  %v3486 = vadd.f32 %v3484, %v3485
  %v3487 = vsel %vm3167, %v3071, 0.0
  %v3488 = vadd.f32 %v3486, %v3487
  %v3489 = vsel %vm3167, %v3072, 0.0
  %v3490 = vadd.f32 %v3488, %v3489
  %v3491 = vsel %vm3167, %v3073, 0.0
  %v3492 = vadd.f32 %v3490, %v3491
  %v3493 = vsel %vm3167, %v3074, 0.0
  %v3494 = vadd.f32 %v3492, %v3493
  %v3495 = vsel %vm3167, %v3075, 0.0
  %v3496 = vadd.f32 %v3494, %v3495
  %v3497 = vsel %vm3167, %v3076, 0.0
  %v3498 = vadd.f32 %v3496, %v3497
  %v3499 = vsel %vm3167, %v3077, 0.0
  %v3500 = vadd.f32 %v3498, %v3499
  %v3501 = vsel %vm3167, %v3078, 0.0
  %v3502 = vadd.f32 %v3500, %v3501
  %v3503 = vsel %vm3167, %v3079, 0.0
  %v3504 = vadd.f32 %v3502, %v3503
  %v3505 = vsel %vm3167, %v3080, 0.0
  %v3506 = vadd.f32 %v3504, %v3505
  %v3507 = vsel %vm3167, %v3081, 0.0
  %v3508 = vadd.f32 %v3506, %v3507
  %v3509 = vsel %vm3167, %v3082, 0.0
  %v3510 = vadd.f32 %v3508, %v3509
  %v3511 = vsel %vm3167, %v3083, 0.0
  %v3512 = vadd.f32 %v3510, %v3511
  %v3513 = vsel %vm3167, %v3084, 0.0
  %v3514 = vadd.f32 %v3512, %v3513
  %v3515 = vsel %vm3167, %v3085, 0.0
  %v3516 = vadd.f32 %v3514, %v3515
  %v3517 = vsel %vm3167, %v3086, 0.0
  %v3518 = vadd.f32 %v3516, %v3517
  %v3519 = vsel %vm3167, %v3087, 0.0
  %v3520 = vadd.f32 %v3518, %v3519
  %v3521 = vsel %vm3167, %v3088, 0.0
  %v3522 = vadd.f32 %v3520, %v3521
  %v3523 = vsel %vm3167, %v3089, 0.0
  %v3524 = vadd.f32 %v3522, %v3523
  %v3525 = vsel %vm3167, %v3090, 0.0
  %v3526 = vadd.f32 %v3524, %v3525
  %v3527 = vsel %vm3167, %v3091, 0.0
  %v3528 = vadd.f32 %v3526, %v3527
  %v3529 = vsel %vm3167, %v3092, 0.0
  %v3530 = vadd.f32 %v3528, %v3529
  %v3531 = vsel %vm3167, %v3093, 0.0
  %v3532 = vadd.f32 %v3530, %v3531
  %v3533 = vsel %vm3167, %v3094, 0.0
  %v3534 = vadd.f32 %v3532, %v3533
  %v3535 = vsel %vm3167, %v3095, 0.0
  %v3536 = vadd.f32 %v3534, %v3535
  %v3537 = vsel %vm3167, %v3096, 0.0
  %v3538 = vadd.f32 %v3536, %v3537
  %v3539 = vsel %vm3167, %v3097, 0.0
  %v3540 = vadd.f32 %v3538, %v3539
  %v3541 = vsel %vm3167, %v3098, 0.0
  %v3542 = vadd.f32 %v3540, %v3541
  %v3543 = vsel %vm3167, %v3099, 0.0
  %v3544 = vadd.f32 %v3542, %v3543
  %v3545 = vsel %vm3167, %v3100, 0.0
  %v3546 = vadd.f32 %v3544, %v3545
  %v3547 = vsel %vm3167, %v3101, 0.0
  %v3548 = vadd.f32 %v3546, %v3547
  %v3549 = vsel %vm3167, %v3102, 0.0
  %v3550 = vadd.f32 %v3548, %v3549
  %v3551 = vsel %vm3167, %v3103, 0.0
  %v3552 = vadd.f32 %v3550, %v3551
  %v3553 = vsel %vm3167, %v3104, 0.0
  %v3554 = vadd.f32 %v3552, %v3553
  %v3555 = vsel %vm3167, %v3105, 0.0
  %v3556 = vadd.f32 %v3554, %v3555
  %v3557 = vsel %vm3167, %v3106, 0.0
  %v3558 = vadd.f32 %v3556, %v3557
  %v3559 = vsel %vm3167, %v3107, 0.0
  %v3560 = vadd.f32 %v3558, %v3559
  %v3561 = vsel %vm3167, %v3108, 0.0
  %v3562 = vadd.f32 %v3560, %v3561
  %v3563 = vsel %vm3167, %v3109, 0.0
  %v3564 = vadd.f32 %v3562, %v3563
  %v3565 = vsel %vm3167, %v3110, 0.0
  %v3566 = vadd.f32 %v3564, %v3565
  %v3567 = vsel %vm3167, %v3111, 0.0
  %v3568 = vadd.f32 %v3566, %v3567
  %v3569 = vsel %vm3167, %v3112, 0.0
  %v3570 = vadd.f32 %v3568, %v3569
  %v3571 = vsel %vm3167, %v3113, 0.0
  %v3572 = vadd.f32 %v3570, %v3571
  %v3573 = vsel %vm3167, %v3114, 0.0
  %v3574 = vadd.f32 %v3572, %v3573
  %v3575 = vsel %vm3167, %v3115, 0.0
  %v3576 = vadd.f32 %v3574, %v3575
  %v3577 = vsel %vm3167, %v3116, 0.0
  %v3578 = vadd.f32 %v3576, %v3577
  %v3579 = vsel %vm3167, %v3117, 0.0
  %v3580 = vadd.f32 %v3578, %v3579
  %v3581 = vsel %vm3167, %v3118, 0.0
  %v3582 = vadd.f32 %v3580, %v3581
  %v3583 = vsel %vm3167, %v3119, 0.0
  %v3584 = vadd.f32 %v3582, %v3583
  %v3585 = vsel %vm3167, %v3120, 0.0
  %v3586 = vadd.f32 %v3584, %v3585
  %v3587 = vsel %vm3167, %v3121, 0.0
  %v3588 = vadd.f32 %v3586, %v3587
  %v3589 = vsel %vm3167, %v3122, 0.0
  %v3590 = vadd.f32 %v3588, %v3589
  %v3591 = vsel %vm3167, %v3123, 0.0
  %v3592 = vadd.f32 %v3590, %v3591
  %v3593 = vsel %vm3167, %v3124, 0.0
  %v3594 = vadd.f32 %v3592, %v3593
  %v3595 = vsel %vm3167, %v3125, 0.0
  %v3596 = vadd.f32 %v3594, %v3595
  %v3597 = vsel %vm3167, %v3126, 0.0
  %v3598 = vadd.f32 %v3596, %v3597
  %v3599 = vsel %vm3167, %v3127, 0.0
  %v3600 = vadd.f32 %v3598, %v3599
  %v3601 = vsel %vm3167, %v3128, 0.0
  %v3602 = vadd.f32 %v3600, %v3601
  %v3603 = vsel %vm3167, %v3129, 0.0
  %v3604 = vadd.f32 %v3602, %v3603
  %v3605 = vsel %vm3167, %v3130, 0.0
  %v3606 = vadd.f32 %v3604, %v3605
  %v3607 = vsel %vm3167, %v3131, 0.0
  %v3608 = vadd.f32 %v3606, %v3607
  %v3609 = vsel %vm3167, %v3132, 0.0
  %v3610 = vadd.f32 %v3608, %v3609
  %v3611 = vsel %vm3167, %v3133, 0.0
  %v3612 = vadd.f32 %v3610, %v3611
  %v3613 = vsel %vm3167, %v3134, 0.0
  %v3614 = vadd.f32 %v3612, %v3613
  %v3615 = vsel %vm3167, %v3135, 0.0
  %v3616 = vadd.f32 %v3614, %v3615
  %v3617 = vsel %vm3167, %v3136, 0.0
  %v3618 = vadd.f32 %v3616, %v3617
  %v3619 = vsel %vm3167, %v3137, 0.0
  %v3620 = vadd.f32 %v3618, %v3619
  %v3621 = vsel %vm3167, %v3138, 0.0
  %v3622 = vadd.f32 %v3620, %v3621
  %v3623 = vsel %vm3167, %v3139, 0.0
  %v3624 = vadd.f32 %v3622, %v3623
  %v3625 = vsel %vm3167, %v3140, 0.0
  %v3626 = vadd.f32 %v3624, %v3625
  %v3627 = vsel %vm3167, %v3141, 0.0
  %v3628 = vadd.f32 %v3626, %v3627
  %v3629 = vsel %vm3167, %v3142, 0.0
  %v3630 = vadd.f32 %v3628, %v3629
  %v3631 = vsel %vm3167, %v3143, 0.0
  %v3632 = vadd.f32 %v3630, %v3631
  %v3633 = vsel %vm3167, %v3144, 0.0
  %v3634 = vadd.f32 %v3632, %v3633
  %v3635 = vsel %vm3167, %v3145, 0.0
  %v3636 = vadd.f32 %v3634, %v3635
  %v3637 = vsel %vm3167, %v3146, 0.0
  %v3638 = vadd.f32 %v3636, %v3637
  %v3639 = vsel %vm3167, %v3147, 0.0
  %v3640 = vadd.f32 %v3638, %v3639
  %v3641 = vsel %vm3167, %v3148, 0.0
  %v3642 = vadd.f32 %v3640, %v3641
  %v3643 = vsel %vm3167, %v3149, 0.0
  %v3644 = vadd.f32 %v3642, %v3643
  %v3645 = vsel %vm3167, %v3150, 0.0
  %v3646 = vadd.f32 %v3644, %v3645
  %v3647 = vsel %vm3167, %v3151, 0.0
  %v3648 = vadd.f32 %v3646, %v3647
  %v3649 = vsel %vm3167, %v3152, 0.0
  %v3650 = vadd.f32 %v3648, %v3649
  %v3651 = vsel %vm3167, %v3153, 0.0
  %v3652 = vadd.f32 %v3650, %v3651
  %v3653 = vsel %vm3167, %v3154, 0.0
  %v3654 = vadd.f32 %v3652, %v3653
  %v3655 = vsel %vm3167, %v3155, 0.0
  %v3656 = vadd.f32 %v3654, %v3655
  %v3657 = vsel %vm3167, %v3156, 0.0
  %v3658 = vadd.f32 %v3656, %v3657
  %v3659 = vsel %vm3167, %v3157, 0.0
  %v3660 = vadd.f32 %v3658, %v3659
  %v3661 = vsel %vm3167, %v3158, 0.0
  %v3662 = vadd.f32 %v3660, %v3661
  %v3663 = vsel %vm3167, %v3159, 0.0
  %v3664 = vadd.f32 %v3662, %v3663
  %v3665 = vsel %vm3167, %v3160, 0.0
  %v3666 = vadd.f32 %v3664, %v3665
  %v3667 = vsel %vm3167, %v3161, 0.0
  %v3668 = vadd.f32 %v3666, %v3667
  %v3669 = vsel %vm3167, %v3162, 0.0
  %v3670 = vadd.f32 %v3668, %v3669
  %v3671 = vsel %vm3167, %v3163, 0.0
  %v3672 = vadd.f32 %v3670, %v3671
  %v3673 = vsel %vm3167, %v3164, 0.0
  %v3674 = vadd.f32 %v3672, %v3673
  %v3675 = vsel %vm3167, %v3165, 0.0
  %v3676 = vadd.f32 %v3674, %v3675
  %v3677 = vsel %vm3167, %v3166, 0.0
  %v3678 = vadd.f32 %v3676, %v3677
  %v3679 = vrot.slane %v3678, 4
  %v3680 = vadd.f32 %v3678, %v3679
  %v3681 = vrot.slane %v3680, 2
  %v3682 = vadd.f32 %v3680, %v3681
  %v3683 = vrot.slane %v3682, 1
  %v3684 = vadd.f32 %v3682, %v3683
  %v3685 = vrcp.pop 2048.0
  %v3686 = vmul.f32 %v3684, %v3685
  %v3687 = vsub.f32 %v2911, %v3686
  %v3688 = vsub.f32 %v2912, %v3686
  %v3689 = vsub.f32 %v2913, %v3686
  %v3690 = vsub.f32 %v2914, %v3686
  %v3691 = vsub.f32 %v2915, %v3686
  %v3692 = vsub.f32 %v2916, %v3686
  %v3693 = vsub.f32 %v2917, %v3686
  %v3694 = vsub.f32 %v2918, %v3686
  %v3695 = vsub.f32 %v2919, %v3686
  %v3696 = vsub.f32 %v2920, %v3686
  %v3697 = vsub.f32 %v2921, %v3686
  %v3698 = vsub.f32 %v2922, %v3686
  %v3699 = vsub.f32 %v2923, %v3686
  %v3700 = vsub.f32 %v2924, %v3686
  %v3701 = vsub.f32 %v2925, %v3686
  %v3702 = vsub.f32 %v2926, %v3686
  %v3703 = vsub.f32 %v2927, %v3686
  %v3704 = vsub.f32 %v2928, %v3686
  %v3705 = vsub.f32 %v2929, %v3686
  %v3706 = vsub.f32 %v2930, %v3686
  %v3707 = vsub.f32 %v2931, %v3686
  %v3708 = vsub.f32 %v2932, %v3686
  %v3709 = vsub.f32 %v2933, %v3686
  %v3710 = vsub.f32 %v2934, %v3686
  %v3711 = vsub.f32 %v2935, %v3686
  %v3712 = vsub.f32 %v2936, %v3686
  %v3713 = vsub.f32 %v2937, %v3686
  %v3714 = vsub.f32 %v2938, %v3686
  %v3715 = vsub.f32 %v2939, %v3686
  %v3716 = vsub.f32 %v2940, %v3686
  %v3717 = vsub.f32 %v2941, %v3686
  %v3718 = vsub.f32 %v2942, %v3686
  %v3719 = vsub.f32 %v2943, %v3686
  %v3720 = vsub.f32 %v2944, %v3686
  %v3721 = vsub.f32 %v2945, %v3686
  %v3722 = vsub.f32 %v2946, %v3686
  %v3723 = vsub.f32 %v2947, %v3686
  %v3724 = vsub.f32 %v2948, %v3686
  %v3725 = vsub.f32 %v2949, %v3686
  %v3726 = vsub.f32 %v2950, %v3686
  %v3727 = vsub.f32 %v2951, %v3686
  %v3728 = vsub.f32 %v2952, %v3686
  %v3729 = vsub.f32 %v2953, %v3686
  %v3730 = vsub.f32 %v2954, %v3686
  %v3731 = vsub.f32 %v2955, %v3686
  %v3732 = vsub.f32 %v2956, %v3686
  %v3733 = vsub.f32 %v2957, %v3686
  %v3734 = vsub.f32 %v2958, %v3686
  %v3735 = vsub.f32 %v2959, %v3686
  %v3736 = vsub.f32 %v2960, %v3686
  %v3737 = vsub.f32 %v2961, %v3686
  %v3738 = vsub.f32 %v2962, %v3686
  %v3739 = vsub.f32 %v2963, %v3686
  %v3740 = vsub.f32 %v2964, %v3686
  %v3741 = vsub.f32 %v2965, %v3686
  %v3742 = vsub.f32 %v2966, %v3686
  %v3743 = vsub.f32 %v2967, %v3686
  %v3744 = vsub.f32 %v2968, %v3686
  %v3745 = vsub.f32 %v2969, %v3686
  %v3746 = vsub.f32 %v2970, %v3686
  %v3747 = vsub.f32 %v2971, %v3686
  %v3748 = vsub.f32 %v2972, %v3686
  %v3749 = vsub.f32 %v2973, %v3686
  %v3750 = vsub.f32 %v2974, %v3686
  %v3751 = vsub.f32 %v2975, %v3686
  %v3752 = vsub.f32 %v2976, %v3686
  %v3753 = vsub.f32 %v2977, %v3686
  %v3754 = vsub.f32 %v2978, %v3686
  %v3755 = vsub.f32 %v2979, %v3686
  %v3756 = vsub.f32 %v2980, %v3686
  %v3757 = vsub.f32 %v2981, %v3686
  %v3758 = vsub.f32 %v2982, %v3686
  %v3759 = vsub.f32 %v2983, %v3686
  %v3760 = vsub.f32 %v2984, %v3686
  %v3761 = vsub.f32 %v2985, %v3686
  %v3762 = vsub.f32 %v2986, %v3686
  %v3763 = vsub.f32 %v2987, %v3686
  %v3764 = vsub.f32 %v2988, %v3686
  %v3765 = vsub.f32 %v2989, %v3686
  %v3766 = vsub.f32 %v2990, %v3686
  %v3767 = vsub.f32 %v2991, %v3686
  %v3768 = vsub.f32 %v2992, %v3686
  %v3769 = vsub.f32 %v2993, %v3686
  %v3770 = vsub.f32 %v2994, %v3686
  %v3771 = vsub.f32 %v2995, %v3686
  %v3772 = vsub.f32 %v2996, %v3686
  %v3773 = vsub.f32 %v2997, %v3686
  %v3774 = vsub.f32 %v2998, %v3686
  %v3775 = vsub.f32 %v2999, %v3686
  %v3776 = vsub.f32 %v3000, %v3686
  %v3777 = vsub.f32 %v3001, %v3686
  %v3778 = vsub.f32 %v3002, %v3686
  %v3779 = vsub.f32 %v3003, %v3686
  %v3780 = vsub.f32 %v3004, %v3686
  %v3781 = vsub.f32 %v3005, %v3686
  %v3782 = vsub.f32 %v3006, %v3686
  %v3783 = vsub.f32 %v3007, %v3686
  %v3784 = vsub.f32 %v3008, %v3686
  %v3785 = vsub.f32 %v3009, %v3686
  %v3786 = vsub.f32 %v3010, %v3686
  %v3787 = vsub.f32 %v3011, %v3686
  %v3788 = vsub.f32 %v3012, %v3686
  %v3789 = vsub.f32 %v3013, %v3686
  %v3790 = vsub.f32 %v3014, %v3686
  %v3791 = vsub.f32 %v3015, %v3686
  %v3792 = vsub.f32 %v3016, %v3686
  %v3793 = vsub.f32 %v3017, %v3686
  %v3794 = vsub.f32 %v3018, %v3686
  %v3795 = vsub.f32 %v3019, %v3686
  %v3796 = vsub.f32 %v3020, %v3686
  %v3797 = vsub.f32 %v3021, %v3686
  %v3798 = vsub.f32 %v3022, %v3686
  %v3799 = vsub.f32 %v3023, %v3686
  %v3800 = vsub.f32 %v3024, %v3686
  %v3801 = vsub.f32 %v3025, %v3686
  %v3802 = vsub.f32 %v3026, %v3686
  %v3803 = vsub.f32 %v3027, %v3686
  %v3804 = vsub.f32 %v3028, %v3686
  %v3805 = vsub.f32 %v3029, %v3686
  %v3806 = vsub.f32 %v3030, %v3686
  %v3807 = vsub.f32 %v3031, %v3686
  %v3808 = vsub.f32 %v3032, %v3686
  %v3809 = vsub.f32 %v3033, %v3686
  %v3810 = vsub.f32 %v3034, %v3686
  %v3811 = vsub.f32 %v3035, %v3686
  %v3812 = vsub.f32 %v3036, %v3686
  %v3813 = vsub.f32 %v3037, %v3686
  %v3814 = vsub.f32 %v3038, %v3686
  %v3815 = vsub.f32 %v3039, %v3686
  %v3816 = vsub.f32 %v3040, %v3686
  %v3817 = vsub.f32 %v3041, %v3686
  %v3818 = vsub.f32 %v3042, %v3686
  %v3819 = vsub.f32 %v3043, %v3686
  %v3820 = vsub.f32 %v3044, %v3686
  %v3821 = vsub.f32 %v3045, %v3686
  %v3822 = vsub.f32 %v3046, %v3686
  %v3823 = vsub.f32 %v3047, %v3686
  %v3824 = vsub.f32 %v3048, %v3686
  %v3825 = vsub.f32 %v3049, %v3686
  %v3826 = vsub.f32 %v3050, %v3686
  %v3827 = vsub.f32 %v3051, %v3686
  %v3828 = vsub.f32 %v3052, %v3686
  %v3829 = vsub.f32 %v3053, %v3686
  %v3830 = vsub.f32 %v3054, %v3686
  %v3831 = vsub.f32 %v3055, %v3686
  %v3832 = vsub.f32 %v3056, %v3686
  %v3833 = vsub.f32 %v3057, %v3686
  %v3834 = vsub.f32 %v3058, %v3686
  %v3835 = vsub.f32 %v3059, %v3686
  %v3836 = vsub.f32 %v3060, %v3686
  %v3837 = vsub.f32 %v3061, %v3686
  %v3838 = vsub.f32 %v3062, %v3686
  %v3839 = vsub.f32 %v3063, %v3686
  %v3840 = vsub.f32 %v3064, %v3686
  %v3841 = vsub.f32 %v3065, %v3686
  %v3842 = vsub.f32 %v3066, %v3686
  %v3843 = vsub.f32 %v3067, %v3686
  %v3844 = vsub.f32 %v3068, %v3686
  %v3845 = vsub.f32 %v3069, %v3686
  %v3846 = vsub.f32 %v3070, %v3686
  %v3847 = vsub.f32 %v3071, %v3686
  %v3848 = vsub.f32 %v3072, %v3686
  %v3849 = vsub.f32 %v3073, %v3686
  %v3850 = vsub.f32 %v3074, %v3686
  %v3851 = vsub.f32 %v3075, %v3686
  %v3852 = vsub.f32 %v3076, %v3686
  %v3853 = vsub.f32 %v3077, %v3686
  %v3854 = vsub.f32 %v3078, %v3686
  %v3855 = vsub.f32 %v3079, %v3686
  %v3856 = vsub.f32 %v3080, %v3686
  %v3857 = vsub.f32 %v3081, %v3686
  %v3858 = vsub.f32 %v3082, %v3686
  %v3859 = vsub.f32 %v3083, %v3686
  %v3860 = vsub.f32 %v3084, %v3686
  %v3861 = vsub.f32 %v3085, %v3686
  %v3862 = vsub.f32 %v3086, %v3686
  %v3863 = vsub.f32 %v3087, %v3686
  %v3864 = vsub.f32 %v3088, %v3686
  %v3865 = vsub.f32 %v3089, %v3686
  %v3866 = vsub.f32 %v3090, %v3686
  %v3867 = vsub.f32 %v3091, %v3686
  %v3868 = vsub.f32 %v3092, %v3686
  %v3869 = vsub.f32 %v3093, %v3686
  %v3870 = vsub.f32 %v3094, %v3686
  %v3871 = vsub.f32 %v3095, %v3686
  %v3872 = vsub.f32 %v3096, %v3686
  %v3873 = vsub.f32 %v3097, %v3686
  %v3874 = vsub.f32 %v3098, %v3686
  %v3875 = vsub.f32 %v3099, %v3686
  %v3876 = vsub.f32 %v3100, %v3686
  %v3877 = vsub.f32 %v3101, %v3686
  %v3878 = vsub.f32 %v3102, %v3686
  %v3879 = vsub.f32 %v3103, %v3686
  %v3880 = vsub.f32 %v3104, %v3686
  %v3881 = vsub.f32 %v3105, %v3686
  %v3882 = vsub.f32 %v3106, %v3686
  %v3883 = vsub.f32 %v3107, %v3686
  %v3884 = vsub.f32 %v3108, %v3686
  %v3885 = vsub.f32 %v3109, %v3686
  %v3886 = vsub.f32 %v3110, %v3686
  %v3887 = vsub.f32 %v3111, %v3686
  %v3888 = vsub.f32 %v3112, %v3686
  %v3889 = vsub.f32 %v3113, %v3686
  %v3890 = vsub.f32 %v3114, %v3686
  %v3891 = vsub.f32 %v3115, %v3686
  %v3892 = vsub.f32 %v3116, %v3686
  %v3893 = vsub.f32 %v3117, %v3686
  %v3894 = vsub.f32 %v3118, %v3686
  %v3895 = vsub.f32 %v3119, %v3686
  %v3896 = vsub.f32 %v3120, %v3686
  %v3897 = vsub.f32 %v3121, %v3686
  %v3898 = vsub.f32 %v3122, %v3686
  %v3899 = vsub.f32 %v3123, %v3686
  %v3900 = vsub.f32 %v3124, %v3686
  %v3901 = vsub.f32 %v3125, %v3686
  %v3902 = vsub.f32 %v3126, %v3686
  %v3903 = vsub.f32 %v3127, %v3686
  %v3904 = vsub.f32 %v3128, %v3686
  %v3905 = vsub.f32 %v3129, %v3686
  %v3906 = vsub.f32 %v3130, %v3686
  %v3907 = vsub.f32 %v3131, %v3686
  %v3908 = vsub.f32 %v3132, %v3686
  %v3909 = vsub.f32 %v3133, %v3686
  %v3910 = vsub.f32 %v3134, %v3686
  %v3911 = vsub.f32 %v3135, %v3686
  %v3912 = vsub.f32 %v3136, %v3686
  %v3913 = vsub.f32 %v3137, %v3686
  %v3914 = vsub.f32 %v3138, %v3686
  %v3915 = vsub.f32 %v3139, %v3686
  %v3916 = vsub.f32 %v3140, %v3686
  %v3917 = vsub.f32 %v3141, %v3686
  %v3918 = vsub.f32 %v3142, %v3686
  %v3919 = vsub.f32 %v3143, %v3686
  %v3920 = vsub.f32 %v3144, %v3686
  %v3921 = vsub.f32 %v3145, %v3686
  %v3922 = vsub.f32 %v3146, %v3686
  %v3923 = vsub.f32 %v3147, %v3686
  %v3924 = vsub.f32 %v3148, %v3686
  %v3925 = vsub.f32 %v3149, %v3686
  %v3926 = vsub.f32 %v3150, %v3686
  %v3927 = vsub.f32 %v3151, %v3686
  %v3928 = vsub.f32 %v3152, %v3686
  %v3929 = vsub.f32 %v3153, %v3686
  %v3930 = vsub.f32 %v3154, %v3686
  %v3931 = vsub.f32 %v3155, %v3686
  %v3932 = vsub.f32 %v3156, %v3686
  %v3933 = vsub.f32 %v3157, %v3686
  %v3934 = vsub.f32 %v3158, %v3686
  %v3935 = vsub.f32 %v3159, %v3686
  %v3936 = vsub.f32 %v3160, %v3686
  %v3937 = vsub.f32 %v3161, %v3686
  %v3938 = vsub.f32 %v3162, %v3686
  %v3939 = vsub.f32 %v3163, %v3686
  %v3940 = vsub.f32 %v3164, %v3686
  %v3941 = vsub.f32 %v3165, %v3686
  %v3942 = vsub.f32 %v3166, %v3686
  %v3943 = vmul.f32 %v3687, %v3687
  %v3944 = vmul.f32 %v3688, %v3688
  %v3945 = vmul.f32 %v3689, %v3689
  %v3946 = vmul.f32 %v3690, %v3690
  %v3947 = vmul.f32 %v3691, %v3691
  %v3948 = vmul.f32 %v3692, %v3692
  %v3949 = vmul.f32 %v3693, %v3693
  %v3950 = vmul.f32 %v3694, %v3694
  %v3951 = vmul.f32 %v3695, %v3695
  %v3952 = vmul.f32 %v3696, %v3696
  %v3953 = vmul.f32 %v3697, %v3697
  %v3954 = vmul.f32 %v3698, %v3698
  %v3955 = vmul.f32 %v3699, %v3699
  %v3956 = vmul.f32 %v3700, %v3700
  %v3957 = vmul.f32 %v3701, %v3701
  %v3958 = vmul.f32 %v3702, %v3702
  %v3959 = vmul.f32 %v3703, %v3703
  %v3960 = vmul.f32 %v3704, %v3704
  %v3961 = vmul.f32 %v3705, %v3705
  %v3962 = vmul.f32 %v3706, %v3706
  %v3963 = vmul.f32 %v3707, %v3707
  %v3964 = vmul.f32 %v3708, %v3708
  %v3965 = vmul.f32 %v3709, %v3709
  %v3966 = vmul.f32 %v3710, %v3710
  %v3967 = vmul.f32 %v3711, %v3711
  %v3968 = vmul.f32 %v3712, %v3712
  %v3969 = vmul.f32 %v3713, %v3713
  %v3970 = vmul.f32 %v3714, %v3714
  %v3971 = vmul.f32 %v3715, %v3715
  %v3972 = vmul.f32 %v3716, %v3716
  %v3973 = vmul.f32 %v3717, %v3717
  %v3974 = vmul.f32 %v3718, %v3718
  %v3975 = vmul.f32 %v3719, %v3719
  %v3976 = vmul.f32 %v3720, %v3720
  %v3977 = vmul.f32 %v3721, %v3721
  %v3978 = vmul.f32 %v3722, %v3722
  %v3979 = vmul.f32 %v3723, %v3723
  %v3980 = vmul.f32 %v3724, %v3724
  %v3981 = vmul.f32 %v3725, %v3725
  %v3982 = vmul.f32 %v3726, %v3726
  %v3983 = vmul.f32 %v3727, %v3727
  %v3984 = vmul.f32 %v3728, %v3728
  %v3985 = vmul.f32 %v3729, %v3729
  %v3986 = vmul.f32 %v3730, %v3730
  %v3987 = vmul.f32 %v3731, %v3731
  %v3988 = vmul.f32 %v3732, %v3732
  %v3989 = vmul.f32 %v3733, %v3733
  %v3990 = vmul.f32 %v3734, %v3734
  %v3991 = vmul.f32 %v3735, %v3735
  %v3992 = vmul.f32 %v3736, %v3736
  %v3993 = vmul.f32 %v3737, %v3737
  %v3994 = vmul.f32 %v3738, %v3738
  %v3995 = vmul.f32 %v3739, %v3739
  %v3996 = vmul.f32 %v3740, %v3740
  %v3997 = vmul.f32 %v3741, %v3741
  %v3998 = vmul.f32 %v3742, %v3742
  %v3999 = vmul.f32 %v3743, %v3743
  %v4000 = vmul.f32 %v3744, %v3744
  %v4001 = vmul.f32 %v3745, %v3745
  %v4002 = vmul.f32 %v3746, %v3746
  %v4003 = vmul.f32 %v3747, %v3747
  %v4004 = vmul.f32 %v3748, %v3748
  %v4005 = vmul.f32 %v3749, %v3749
  %v4006 = vmul.f32 %v3750, %v3750
  %v4007 = vmul.f32 %v3751, %v3751
  %v4008 = vmul.f32 %v3752, %v3752
  %v4009 = vmul.f32 %v3753, %v3753
  %v4010 = vmul.f32 %v3754, %v3754
  %v4011 = vmul.f32 %v3755, %v3755
  %v4012 = vmul.f32 %v3756, %v3756
  %v4013 = vmul.f32 %v3757, %v3757
  %v4014 = vmul.f32 %v3758, %v3758
  %v4015 = vmul.f32 %v3759, %v3759
  %v4016 = vmul.f32 %v3760, %v3760
  %v4017 = vmul.f32 %v3761, %v3761
  %v4018 = vmul.f32 %v3762, %v3762
  %v4019 = vmul.f32 %v3763, %v3763
  %v4020 = vmul.f32 %v3764, %v3764
  %v4021 = vmul.f32 %v3765, %v3765
  %v4022 = vmul.f32 %v3766, %v3766
  %v4023 = vmul.f32 %v3767, %v3767
  %v4024 = vmul.f32 %v3768, %v3768
  %v4025 = vmul.f32 %v3769, %v3769
  %v4026 = vmul.f32 %v3770, %v3770
  %v4027 = vmul.f32 %v3771, %v3771
  %v4028 = vmul.f32 %v3772, %v3772
  %v4029 = vmul.f32 %v3773, %v3773
  %v4030 = vmul.f32 %v3774, %v3774
  %v4031 = vmul.f32 %v3775, %v3775
  %v4032 = vmul.f32 %v3776, %v3776
  %v4033 = vmul.f32 %v3777, %v3777
  %v4034 = vmul.f32 %v3778, %v3778
  %v4035 = vmul.f32 %v3779, %v3779
  %v4036 = vmul.f32 %v3780, %v3780
  %v4037 = vmul.f32 %v3781, %v3781
  %v4038 = vmul.f32 %v3782, %v3782
  %v4039 = vmul.f32 %v3783, %v3783
  %v4040 = vmul.f32 %v3784, %v3784
  %v4041 = vmul.f32 %v3785, %v3785
  %v4042 = vmul.f32 %v3786, %v3786
  %v4043 = vmul.f32 %v3787, %v3787
  %v4044 = vmul.f32 %v3788, %v3788
  %v4045 = vmul.f32 %v3789, %v3789
  %v4046 = vmul.f32 %v3790, %v3790
  %v4047 = vmul.f32 %v3791, %v3791
  %v4048 = vmul.f32 %v3792, %v3792
  %v4049 = vmul.f32 %v3793, %v3793
  %v4050 = vmul.f32 %v3794, %v3794
  %v4051 = vmul.f32 %v3795, %v3795
  %v4052 = vmul.f32 %v3796, %v3796
  %v4053 = vmul.f32 %v3797, %v3797
  %v4054 = vmul.f32 %v3798, %v3798
  %v4055 = vmul.f32 %v3799, %v3799
  %v4056 = vmul.f32 %v3800, %v3800
  %v4057 = vmul.f32 %v3801, %v3801
  %v4058 = vmul.f32 %v3802, %v3802
  %v4059 = vmul.f32 %v3803, %v3803
  %v4060 = vmul.f32 %v3804, %v3804
  %v4061 = vmul.f32 %v3805, %v3805
  %v4062 = vmul.f32 %v3806, %v3806
  %v4063 = vmul.f32 %v3807, %v3807
  %v4064 = vmul.f32 %v3808, %v3808
  %v4065 = vmul.f32 %v3809, %v3809
  %v4066 = vmul.f32 %v3810, %v3810
  %v4067 = vmul.f32 %v3811, %v3811
  %v4068 = vmul.f32 %v3812, %v3812
  %v4069 = vmul.f32 %v3813, %v3813
  %v4070 = vmul.f32 %v3814, %v3814
  %v4071 = vmul.f32 %v3815, %v3815
  %v4072 = vmul.f32 %v3816, %v3816
  %v4073 = vmul.f32 %v3817, %v3817
  %v4074 = vmul.f32 %v3818, %v3818
  %v4075 = vmul.f32 %v3819, %v3819
  %v4076 = vmul.f32 %v3820, %v3820
  %v4077 = vmul.f32 %v3821, %v3821
  %v4078 = vmul.f32 %v3822, %v3822
  %v4079 = vmul.f32 %v3823, %v3823
  %v4080 = vmul.f32 %v3824, %v3824
  %v4081 = vmul.f32 %v3825, %v3825
  %v4082 = vmul.f32 %v3826, %v3826
  %v4083 = vmul.f32 %v3827, %v3827
  %v4084 = vmul.f32 %v3828, %v3828
  %v4085 = vmul.f32 %v3829, %v3829
  %v4086 = vmul.f32 %v3830, %v3830
  %v4087 = vmul.f32 %v3831, %v3831
  %v4088 = vmul.f32 %v3832, %v3832
  %v4089 = vmul.f32 %v3833, %v3833
  %v4090 = vmul.f32 %v3834, %v3834
  %v4091 = vmul.f32 %v3835, %v3835
  %v4092 = vmul.f32 %v3836, %v3836
  %v4093 = vmul.f32 %v3837, %v3837
  %v4094 = vmul.f32 %v3838, %v3838
  %v4095 = vmul.f32 %v3839, %v3839
  %v4096 = vmul.f32 %v3840, %v3840
  %v4097 = vmul.f32 %v3841, %v3841
  %v4098 = vmul.f32 %v3842, %v3842
  %v4099 = vmul.f32 %v3843, %v3843
  %v4100 = vmul.f32 %v3844, %v3844
  %v4101 = vmul.f32 %v3845, %v3845
  %v4102 = vmul.f32 %v3846, %v3846
  %v4103 = vmul.f32 %v3847, %v3847
  %v4104 = vmul.f32 %v3848, %v3848
  %v4105 = vmul.f32 %v3849, %v3849
  %v4106 = vmul.f32 %v3850, %v3850
  %v4107 = vmul.f32 %v3851, %v3851
  %v4108 = vmul.f32 %v3852, %v3852
  %v4109 = vmul.f32 %v3853, %v3853
  %v4110 = vmul.f32 %v3854, %v3854
  %v4111 = vmul.f32 %v3855, %v3855
  %v4112 = vmul.f32 %v3856, %v3856
  %v4113 = vmul.f32 %v3857, %v3857
  %v4114 = vmul.f32 %v3858, %v3858
  %v4115 = vmul.f32 %v3859, %v3859
  %v4116 = vmul.f32 %v3860, %v3860
  %v4117 = vmul.f32 %v3861, %v3861
  %v4118 = vmul.f32 %v3862, %v3862
  %v4119 = vmul.f32 %v3863, %v3863
  %v4120 = vmul.f32 %v3864, %v3864
  %v4121 = vmul.f32 %v3865, %v3865
  %v4122 = vmul.f32 %v3866, %v3866
  %v4123 = vmul.f32 %v3867, %v3867
  %v4124 = vmul.f32 %v3868, %v3868
  %v4125 = vmul.f32 %v3869, %v3869
  %v4126 = vmul.f32 %v3870, %v3870
  %v4127 = vmul.f32 %v3871, %v3871
  %v4128 = vmul.f32 %v3872, %v3872
  %v4129 = vmul.f32 %v3873, %v3873
  %v4130 = vmul.f32 %v3874, %v3874
  %v4131 = vmul.f32 %v3875, %v3875
  %v4132 = vmul.f32 %v3876, %v3876
  %v4133 = vmul.f32 %v3877, %v3877
  %v4134 = vmul.f32 %v3878, %v3878
  %v4135 = vmul.f32 %v3879, %v3879
  %v4136 = vmul.f32 %v3880, %v3880
  %v4137 = vmul.f32 %v3881, %v3881
  %v4138 = vmul.f32 %v3882, %v3882
  %v4139 = vmul.f32 %v3883, %v3883
  %v4140 = vmul.f32 %v3884, %v3884
  %v4141 = vmul.f32 %v3885, %v3885
  %v4142 = vmul.f32 %v3886, %v3886
  %v4143 = vmul.f32 %v3887, %v3887
  %v4144 = vmul.f32 %v3888, %v3888
  %v4145 = vmul.f32 %v3889, %v3889
  %v4146 = vmul.f32 %v3890, %v3890
  %v4147 = vmul.f32 %v3891, %v3891
  %v4148 = vmul.f32 %v3892, %v3892
  %v4149 = vmul.f32 %v3893, %v3893
  %v4150 = vmul.f32 %v3894, %v3894
  %v4151 = vmul.f32 %v3895, %v3895
  %v4152 = vmul.f32 %v3896, %v3896
  %v4153 = vmul.f32 %v3897, %v3897
  %v4154 = vmul.f32 %v3898, %v3898
  %v4155 = vmul.f32 %v3899, %v3899
  %v4156 = vmul.f32 %v3900, %v3900
  %v4157 = vmul.f32 %v3901, %v3901
  %v4158 = vmul.f32 %v3902, %v3902
  %v4159 = vmul.f32 %v3903, %v3903
  %v4160 = vmul.f32 %v3904, %v3904
  %v4161 = vmul.f32 %v3905, %v3905
  %v4162 = vmul.f32 %v3906, %v3906
  %v4163 = vmul.f32 %v3907, %v3907
  %v4164 = vmul.f32 %v3908, %v3908
  %v4165 = vmul.f32 %v3909, %v3909
  %v4166 = vmul.f32 %v3910, %v3910
  %v4167 = vmul.f32 %v3911, %v3911
  %v4168 = vmul.f32 %v3912, %v3912
  %v4169 = vmul.f32 %v3913, %v3913
  %v4170 = vmul.f32 %v3914, %v3914
  %v4171 = vmul.f32 %v3915, %v3915
  %v4172 = vmul.f32 %v3916, %v3916
  %v4173 = vmul.f32 %v3917, %v3917
  %v4174 = vmul.f32 %v3918, %v3918
  %v4175 = vmul.f32 %v3919, %v3919
  %v4176 = vmul.f32 %v3920, %v3920
  %v4177 = vmul.f32 %v3921, %v3921
  %v4178 = vmul.f32 %v3922, %v3922
  %v4179 = vmul.f32 %v3923, %v3923
  %v4180 = vmul.f32 %v3924, %v3924
  %v4181 = vmul.f32 %v3925, %v3925
  %v4182 = vmul.f32 %v3926, %v3926
  %v4183 = vmul.f32 %v3927, %v3927
  %v4184 = vmul.f32 %v3928, %v3928
  %v4185 = vmul.f32 %v3929, %v3929
  %v4186 = vmul.f32 %v3930, %v3930
  %v4187 = vmul.f32 %v3931, %v3931
  %v4188 = vmul.f32 %v3932, %v3932
  %v4189 = vmul.f32 %v3933, %v3933
  %v4190 = vmul.f32 %v3934, %v3934
  %v4191 = vmul.f32 %v3935, %v3935
  %v4192 = vmul.f32 %v3936, %v3936
  %v4193 = vmul.f32 %v3937, %v3937
  %v4194 = vmul.f32 %v3938, %v3938
  %v4195 = vmul.f32 %v3939, %v3939
  %v4196 = vmul.f32 %v3940, %v3940
  %v4197 = vmul.f32 %v3941, %v3941
  %v4198 = vmul.f32 %v3942, %v3942
  %v4199 = vsel %vm3167, %v3943, 0.0
  %v4200 = vsel %vm3167, %v3944, 0.0
  %v4201 = vadd.f32 %v4199, %v4200
  %v4202 = vsel %vm3167, %v3945, 0.0
  %v4203 = vadd.f32 %v4201, %v4202
  %v4204 = vsel %vm3167, %v3946, 0.0
  %v4205 = vadd.f32 %v4203, %v4204
  %v4206 = vsel %vm3167, %v3947, 0.0
  %v4207 = vadd.f32 %v4205, %v4206
  %v4208 = vsel %vm3167, %v3948, 0.0
  %v4209 = vadd.f32 %v4207, %v4208
  %v4210 = vsel %vm3167, %v3949, 0.0
  %v4211 = vadd.f32 %v4209, %v4210
  %v4212 = vsel %vm3167, %v3950, 0.0
  %v4213 = vadd.f32 %v4211, %v4212
  %v4214 = vsel %vm3167, %v3951, 0.0
  %v4215 = vadd.f32 %v4213, %v4214
  %v4216 = vsel %vm3167, %v3952, 0.0
  %v4217 = vadd.f32 %v4215, %v4216
  %v4218 = vsel %vm3167, %v3953, 0.0
  %v4219 = vadd.f32 %v4217, %v4218
  %v4220 = vsel %vm3167, %v3954, 0.0
  %v4221 = vadd.f32 %v4219, %v4220
  %v4222 = vsel %vm3167, %v3955, 0.0
  %v4223 = vadd.f32 %v4221, %v4222
  %v4224 = vsel %vm3167, %v3956, 0.0
  %v4225 = vadd.f32 %v4223, %v4224
  %v4226 = vsel %vm3167, %v3957, 0.0
  %v4227 = vadd.f32 %v4225, %v4226
  %v4228 = vsel %vm3167, %v3958, 0.0
  %v4229 = vadd.f32 %v4227, %v4228
  %v4230 = vsel %vm3167, %v3959, 0.0
  %v4231 = vadd.f32 %v4229, %v4230
  %v4232 = vsel %vm3167, %v3960, 0.0
  %v4233 = vadd.f32 %v4231, %v4232
  %v4234 = vsel %vm3167, %v3961, 0.0
  %v4235 = vadd.f32 %v4233, %v4234
  %v4236 = vsel %vm3167, %v3962, 0.0
  %v4237 = vadd.f32 %v4235, %v4236
  %v4238 = vsel %vm3167, %v3963, 0.0
  %v4239 = vadd.f32 %v4237, %v4238
  %v4240 = vsel %vm3167, %v3964, 0.0
  %v4241 = vadd.f32 %v4239, %v4240
  %v4242 = vsel %vm3167, %v3965, 0.0
  %v4243 = vadd.f32 %v4241, %v4242
  %v4244 = vsel %vm3167, %v3966, 0.0
  %v4245 = vadd.f32 %v4243, %v4244
  %v4246 = vsel %vm3167, %v3967, 0.0
  %v4247 = vadd.f32 %v4245, %v4246
  %v4248 = vsel %vm3167, %v3968, 0.0
  %v4249 = vadd.f32 %v4247, %v4248
  %v4250 = vsel %vm3167, %v3969, 0.0
  %v4251 = vadd.f32 %v4249, %v4250
  %v4252 = vsel %vm3167, %v3970, 0.0
  %v4253 = vadd.f32 %v4251, %v4252
  %v4254 = vsel %vm3167, %v3971, 0.0
  %v4255 = vadd.f32 %v4253, %v4254
  %v4256 = vsel %vm3167, %v3972, 0.0
  %v4257 = vadd.f32 %v4255, %v4256
  %v4258 = vsel %vm3167, %v3973, 0.0
  %v4259 = vadd.f32 %v4257, %v4258
  %v4260 = vsel %vm3167, %v3974, 0.0
  %v4261 = vadd.f32 %v4259, %v4260
  %v4262 = vsel %vm3167, %v3975, 0.0
  %v4263 = vadd.f32 %v4261, %v4262
  %v4264 = vsel %vm3167, %v3976, 0.0
  %v4265 = vadd.f32 %v4263, %v4264
  %v4266 = vsel %vm3167, %v3977, 0.0
  %v4267 = vadd.f32 %v4265, %v4266
  %v4268 = vsel %vm3167, %v3978, 0.0
  %v4269 = vadd.f32 %v4267, %v4268
  %v4270 = vsel %vm3167, %v3979, 0.0
  %v4271 = vadd.f32 %v4269, %v4270
  %v4272 = vsel %vm3167, %v3980, 0.0
  %v4273 = vadd.f32 %v4271, %v4272
  %v4274 = vsel %vm3167, %v3981, 0.0
  %v4275 = vadd.f32 %v4273, %v4274
  %v4276 = vsel %vm3167, %v3982, 0.0
  %v4277 = vadd.f32 %v4275, %v4276
  %v4278 = vsel %vm3167, %v3983, 0.0
  %v4279 = vadd.f32 %v4277, %v4278
  %v4280 = vsel %vm3167, %v3984, 0.0
  %v4281 = vadd.f32 %v4279, %v4280
  %v4282 = vsel %vm3167, %v3985, 0.0
  %v4283 = vadd.f32 %v4281, %v4282
  %v4284 = vsel %vm3167, %v3986, 0.0
  %v4285 = vadd.f32 %v4283, %v4284
  %v4286 = vsel %vm3167, %v3987, 0.0
  %v4287 = vadd.f32 %v4285, %v4286
  %v4288 = vsel %vm3167, %v3988, 0.0
  %v4289 = vadd.f32 %v4287, %v4288
  %v4290 = vsel %vm3167, %v3989, 0.0
  %v4291 = vadd.f32 %v4289, %v4290
  %v4292 = vsel %vm3167, %v3990, 0.0
  %v4293 = vadd.f32 %v4291, %v4292
  %v4294 = vsel %vm3167, %v3991, 0.0
  %v4295 = vadd.f32 %v4293, %v4294
  %v4296 = vsel %vm3167, %v3992, 0.0
  %v4297 = vadd.f32 %v4295, %v4296
  %v4298 = vsel %vm3167, %v3993, 0.0
  %v4299 = vadd.f32 %v4297, %v4298
  %v4300 = vsel %vm3167, %v3994, 0.0
  %v4301 = vadd.f32 %v4299, %v4300
  %v4302 = vsel %vm3167, %v3995, 0.0
  %v4303 = vadd.f32 %v4301, %v4302
  %v4304 = vsel %vm3167, %v3996, 0.0
  %v4305 = vadd.f32 %v4303, %v4304
  %v4306 = vsel %vm3167, %v3997, 0.0
  %v4307 = vadd.f32 %v4305, %v4306
  %v4308 = vsel %vm3167, %v3998, 0.0
  %v4309 = vadd.f32 %v4307, %v4308
  %v4310 = vsel %vm3167, %v3999, 0.0
  %v4311 = vadd.f32 %v4309, %v4310
  %v4312 = vsel %vm3167, %v4000, 0.0
  %v4313 = vadd.f32 %v4311, %v4312
  %v4314 = vsel %vm3167, %v4001, 0.0
  %v4315 = vadd.f32 %v4313, %v4314
  %v4316 = vsel %vm3167, %v4002, 0.0
  %v4317 = vadd.f32 %v4315, %v4316
  %v4318 = vsel %vm3167, %v4003, 0.0
  %v4319 = vadd.f32 %v4317, %v4318
  %v4320 = vsel %vm3167, %v4004, 0.0
  %v4321 = vadd.f32 %v4319, %v4320
  %v4322 = vsel %vm3167, %v4005, 0.0
  %v4323 = vadd.f32 %v4321, %v4322
  %v4324 = vsel %vm3167, %v4006, 0.0
  %v4325 = vadd.f32 %v4323, %v4324
  %v4326 = vsel %vm3167, %v4007, 0.0
  %v4327 = vadd.f32 %v4325, %v4326
  %v4328 = vsel %vm3167, %v4008, 0.0
  %v4329 = vadd.f32 %v4327, %v4328
  %v4330 = vsel %vm3167, %v4009, 0.0
  %v4331 = vadd.f32 %v4329, %v4330
  %v4332 = vsel %vm3167, %v4010, 0.0
  %v4333 = vadd.f32 %v4331, %v4332
  %v4334 = vsel %vm3167, %v4011, 0.0
  %v4335 = vadd.f32 %v4333, %v4334
  %v4336 = vsel %vm3167, %v4012, 0.0
  %v4337 = vadd.f32 %v4335, %v4336
  %v4338 = vsel %vm3167, %v4013, 0.0
  %v4339 = vadd.f32 %v4337, %v4338
  %v4340 = vsel %vm3167, %v4014, 0.0
  %v4341 = vadd.f32 %v4339, %v4340
  %v4342 = vsel %vm3167, %v4015, 0.0
  %v4343 = vadd.f32 %v4341, %v4342
  %v4344 = vsel %vm3167, %v4016, 0.0
  %v4345 = vadd.f32 %v4343, %v4344
  %v4346 = vsel %vm3167, %v4017, 0.0
  %v4347 = vadd.f32 %v4345, %v4346
  %v4348 = vsel %vm3167, %v4018, 0.0
  %v4349 = vadd.f32 %v4347, %v4348
  %v4350 = vsel %vm3167, %v4019, 0.0
  %v4351 = vadd.f32 %v4349, %v4350
  %v4352 = vsel %vm3167, %v4020, 0.0
  %v4353 = vadd.f32 %v4351, %v4352
  %v4354 = vsel %vm3167, %v4021, 0.0
  %v4355 = vadd.f32 %v4353, %v4354
  %v4356 = vsel %vm3167, %v4022, 0.0
  %v4357 = vadd.f32 %v4355, %v4356
  %v4358 = vsel %vm3167, %v4023, 0.0
  %v4359 = vadd.f32 %v4357, %v4358
  %v4360 = vsel %vm3167, %v4024, 0.0
  %v4361 = vadd.f32 %v4359, %v4360
  %v4362 = vsel %vm3167, %v4025, 0.0
  %v4363 = vadd.f32 %v4361, %v4362
  %v4364 = vsel %vm3167, %v4026, 0.0
  %v4365 = vadd.f32 %v4363, %v4364
  %v4366 = vsel %vm3167, %v4027, 0.0
  %v4367 = vadd.f32 %v4365, %v4366
  %v4368 = vsel %vm3167, %v4028, 0.0
  %v4369 = vadd.f32 %v4367, %v4368
  %v4370 = vsel %vm3167, %v4029, 0.0
  %v4371 = vadd.f32 %v4369, %v4370
  %v4372 = vsel %vm3167, %v4030, 0.0
  %v4373 = vadd.f32 %v4371, %v4372
  %v4374 = vsel %vm3167, %v4031, 0.0
  %v4375 = vadd.f32 %v4373, %v4374
  %v4376 = vsel %vm3167, %v4032, 0.0
  %v4377 = vadd.f32 %v4375, %v4376
  %v4378 = vsel %vm3167, %v4033, 0.0
  %v4379 = vadd.f32 %v4377, %v4378
  %v4380 = vsel %vm3167, %v4034, 0.0
  %v4381 = vadd.f32 %v4379, %v4380
  %v4382 = vsel %vm3167, %v4035, 0.0
  %v4383 = vadd.f32 %v4381, %v4382
  %v4384 = vsel %vm3167, %v4036, 0.0
  %v4385 = vadd.f32 %v4383, %v4384
  %v4386 = vsel %vm3167, %v4037, 0.0
  %v4387 = vadd.f32 %v4385, %v4386
  %v4388 = vsel %vm3167, %v4038, 0.0
  %v4389 = vadd.f32 %v4387, %v4388
  %v4390 = vsel %vm3167, %v4039, 0.0
  %v4391 = vadd.f32 %v4389, %v4390
  %v4392 = vsel %vm3167, %v4040, 0.0
  %v4393 = vadd.f32 %v4391, %v4392
  %v4394 = vsel %vm3167, %v4041, 0.0
  %v4395 = vadd.f32 %v4393, %v4394
  %v4396 = vsel %vm3167, %v4042, 0.0
  %v4397 = vadd.f32 %v4395, %v4396
  %v4398 = vsel %vm3167, %v4043, 0.0
  %v4399 = vadd.f32 %v4397, %v4398
  %v4400 = vsel %vm3167, %v4044, 0.0
  %v4401 = vadd.f32 %v4399, %v4400
  %v4402 = vsel %vm3167, %v4045, 0.0
  %v4403 = vadd.f32 %v4401, %v4402
  %v4404 = vsel %vm3167, %v4046, 0.0
  %v4405 = vadd.f32 %v4403, %v4404
  %v4406 = vsel %vm3167, %v4047, 0.0
  %v4407 = vadd.f32 %v4405, %v4406
  %v4408 = vsel %vm3167, %v4048, 0.0
  %v4409 = vadd.f32 %v4407, %v4408
  %v4410 = vsel %vm3167, %v4049, 0.0
  %v4411 = vadd.f32 %v4409, %v4410
  %v4412 = vsel %vm3167, %v4050, 0.0
  %v4413 = vadd.f32 %v4411, %v4412
  %v4414 = vsel %vm3167, %v4051, 0.0
  %v4415 = vadd.f32 %v4413, %v4414
  %v4416 = vsel %vm3167, %v4052, 0.0
  %v4417 = vadd.f32 %v4415, %v4416
  %v4418 = vsel %vm3167, %v4053, 0.0
  %v4419 = vadd.f32 %v4417, %v4418
  %v4420 = vsel %vm3167, %v4054, 0.0
  %v4421 = vadd.f32 %v4419, %v4420
  %v4422 = vsel %vm3167, %v4055, 0.0
  %v4423 = vadd.f32 %v4421, %v4422
  %v4424 = vsel %vm3167, %v4056, 0.0
  %v4425 = vadd.f32 %v4423, %v4424
  %v4426 = vsel %vm3167, %v4057, 0.0
  %v4427 = vadd.f32 %v4425, %v4426
  %v4428 = vsel %vm3167, %v4058, 0.0
  %v4429 = vadd.f32 %v4427, %v4428
  %v4430 = vsel %vm3167, %v4059, 0.0
  %v4431 = vadd.f32 %v4429, %v4430
  %v4432 = vsel %vm3167, %v4060, 0.0
  %v4433 = vadd.f32 %v4431, %v4432
  %v4434 = vsel %vm3167, %v4061, 0.0
  %v4435 = vadd.f32 %v4433, %v4434
  %v4436 = vsel %vm3167, %v4062, 0.0
  %v4437 = vadd.f32 %v4435, %v4436
  %v4438 = vsel %vm3167, %v4063, 0.0
  %v4439 = vadd.f32 %v4437, %v4438
  %v4440 = vsel %vm3167, %v4064, 0.0
  %v4441 = vadd.f32 %v4439, %v4440
  %v4442 = vsel %vm3167, %v4065, 0.0
  %v4443 = vadd.f32 %v4441, %v4442
  %v4444 = vsel %vm3167, %v4066, 0.0
  %v4445 = vadd.f32 %v4443, %v4444
  %v4446 = vsel %vm3167, %v4067, 0.0
  %v4447 = vadd.f32 %v4445, %v4446
  %v4448 = vsel %vm3167, %v4068, 0.0
  %v4449 = vadd.f32 %v4447, %v4448
  %v4450 = vsel %vm3167, %v4069, 0.0
  %v4451 = vadd.f32 %v4449, %v4450
  %v4452 = vsel %vm3167, %v4070, 0.0
  %v4453 = vadd.f32 %v4451, %v4452
  %v4454 = vsel %vm3167, %v4071, 0.0
  %v4455 = vadd.f32 %v4453, %v4454
  %v4456 = vsel %vm3167, %v4072, 0.0
  %v4457 = vadd.f32 %v4455, %v4456
  %v4458 = vsel %vm3167, %v4073, 0.0
  %v4459 = vadd.f32 %v4457, %v4458
  %v4460 = vsel %vm3167, %v4074, 0.0
  %v4461 = vadd.f32 %v4459, %v4460
  %v4462 = vsel %vm3167, %v4075, 0.0
  %v4463 = vadd.f32 %v4461, %v4462
  %v4464 = vsel %vm3167, %v4076, 0.0
  %v4465 = vadd.f32 %v4463, %v4464
  %v4466 = vsel %vm3167, %v4077, 0.0
  %v4467 = vadd.f32 %v4465, %v4466
  %v4468 = vsel %vm3167, %v4078, 0.0
  %v4469 = vadd.f32 %v4467, %v4468
  %v4470 = vsel %vm3167, %v4079, 0.0
  %v4471 = vadd.f32 %v4469, %v4470
  %v4472 = vsel %vm3167, %v4080, 0.0
  %v4473 = vadd.f32 %v4471, %v4472
  %v4474 = vsel %vm3167, %v4081, 0.0
  %v4475 = vadd.f32 %v4473, %v4474
  %v4476 = vsel %vm3167, %v4082, 0.0
  %v4477 = vadd.f32 %v4475, %v4476
  %v4478 = vsel %vm3167, %v4083, 0.0
  %v4479 = vadd.f32 %v4477, %v4478
  %v4480 = vsel %vm3167, %v4084, 0.0
  %v4481 = vadd.f32 %v4479, %v4480
  %v4482 = vsel %vm3167, %v4085, 0.0
  %v4483 = vadd.f32 %v4481, %v4482
  %v4484 = vsel %vm3167, %v4086, 0.0
  %v4485 = vadd.f32 %v4483, %v4484
  %v4486 = vsel %vm3167, %v4087, 0.0
  %v4487 = vadd.f32 %v4485, %v4486
  %v4488 = vsel %vm3167, %v4088, 0.0
  %v4489 = vadd.f32 %v4487, %v4488
  %v4490 = vsel %vm3167, %v4089, 0.0
  %v4491 = vadd.f32 %v4489, %v4490
  %v4492 = vsel %vm3167, %v4090, 0.0
  %v4493 = vadd.f32 %v4491, %v4492
  %v4494 = vsel %vm3167, %v4091, 0.0
  %v4495 = vadd.f32 %v4493, %v4494
  %v4496 = vsel %vm3167, %v4092, 0.0
  %v4497 = vadd.f32 %v4495, %v4496
  %v4498 = vsel %vm3167, %v4093, 0.0
  %v4499 = vadd.f32 %v4497, %v4498
  %v4500 = vsel %vm3167, %v4094, 0.0
  %v4501 = vadd.f32 %v4499, %v4500
  %v4502 = vsel %vm3167, %v4095, 0.0
  %v4503 = vadd.f32 %v4501, %v4502
  %v4504 = vsel %vm3167, %v4096, 0.0
  %v4505 = vadd.f32 %v4503, %v4504
  %v4506 = vsel %vm3167, %v4097, 0.0
  %v4507 = vadd.f32 %v4505, %v4506
  %v4508 = vsel %vm3167, %v4098, 0.0
  %v4509 = vadd.f32 %v4507, %v4508
  %v4510 = vsel %vm3167, %v4099, 0.0
  %v4511 = vadd.f32 %v4509, %v4510
  %v4512 = vsel %vm3167, %v4100, 0.0
  %v4513 = vadd.f32 %v4511, %v4512
  %v4514 = vsel %vm3167, %v4101, 0.0
  %v4515 = vadd.f32 %v4513, %v4514
  %v4516 = vsel %vm3167, %v4102, 0.0
  %v4517 = vadd.f32 %v4515, %v4516
  %v4518 = vsel %vm3167, %v4103, 0.0
  %v4519 = vadd.f32 %v4517, %v4518
  %v4520 = vsel %vm3167, %v4104, 0.0
  %v4521 = vadd.f32 %v4519, %v4520
  %v4522 = vsel %vm3167, %v4105, 0.0
  %v4523 = vadd.f32 %v4521, %v4522
  %v4524 = vsel %vm3167, %v4106, 0.0
  %v4525 = vadd.f32 %v4523, %v4524
  %v4526 = vsel %vm3167, %v4107, 0.0
  %v4527 = vadd.f32 %v4525, %v4526
  %v4528 = vsel %vm3167, %v4108, 0.0
  %v4529 = vadd.f32 %v4527, %v4528
  %v4530 = vsel %vm3167, %v4109, 0.0
  %v4531 = vadd.f32 %v4529, %v4530
  %v4532 = vsel %vm3167, %v4110, 0.0
  %v4533 = vadd.f32 %v4531, %v4532
  %v4534 = vsel %vm3167, %v4111, 0.0
  %v4535 = vadd.f32 %v4533, %v4534
  %v4536 = vsel %vm3167, %v4112, 0.0
  %v4537 = vadd.f32 %v4535, %v4536
  %v4538 = vsel %vm3167, %v4113, 0.0
  %v4539 = vadd.f32 %v4537, %v4538
  %v4540 = vsel %vm3167, %v4114, 0.0
  %v4541 = vadd.f32 %v4539, %v4540
  %v4542 = vsel %vm3167, %v4115, 0.0
  %v4543 = vadd.f32 %v4541, %v4542
  %v4544 = vsel %vm3167, %v4116, 0.0
  %v4545 = vadd.f32 %v4543, %v4544
  %v4546 = vsel %vm3167, %v4117, 0.0
  %v4547 = vadd.f32 %v4545, %v4546
  %v4548 = vsel %vm3167, %v4118, 0.0
  %v4549 = vadd.f32 %v4547, %v4548
  %v4550 = vsel %vm3167, %v4119, 0.0
  %v4551 = vadd.f32 %v4549, %v4550
  %v4552 = vsel %vm3167, %v4120, 0.0
  %v4553 = vadd.f32 %v4551, %v4552
  %v4554 = vsel %vm3167, %v4121, 0.0
  %v4555 = vadd.f32 %v4553, %v4554
  %v4556 = vsel %vm3167, %v4122, 0.0
  %v4557 = vadd.f32 %v4555, %v4556
  %v4558 = vsel %vm3167, %v4123, 0.0
  %v4559 = vadd.f32 %v4557, %v4558
  %v4560 = vsel %vm3167, %v4124, 0.0
  %v4561 = vadd.f32 %v4559, %v4560
  %v4562 = vsel %vm3167, %v4125, 0.0
  %v4563 = vadd.f32 %v4561, %v4562
  %v4564 = vsel %vm3167, %v4126, 0.0
  %v4565 = vadd.f32 %v4563, %v4564
  %v4566 = vsel %vm3167, %v4127, 0.0
  %v4567 = vadd.f32 %v4565, %v4566
  %v4568 = vsel %vm3167, %v4128, 0.0
  %v4569 = vadd.f32 %v4567, %v4568
  %v4570 = vsel %vm3167, %v4129, 0.0
  %v4571 = vadd.f32 %v4569, %v4570
  %v4572 = vsel %vm3167, %v4130, 0.0
  %v4573 = vadd.f32 %v4571, %v4572
  %v4574 = vsel %vm3167, %v4131, 0.0
  %v4575 = vadd.f32 %v4573, %v4574
  %v4576 = vsel %vm3167, %v4132, 0.0
  %v4577 = vadd.f32 %v4575, %v4576
  %v4578 = vsel %vm3167, %v4133, 0.0
  %v4579 = vadd.f32 %v4577, %v4578
  %v4580 = vsel %vm3167, %v4134, 0.0
  %v4581 = vadd.f32 %v4579, %v4580
  %v4582 = vsel %vm3167, %v4135, 0.0
  %v4583 = vadd.f32 %v4581, %v4582
  %v4584 = vsel %vm3167, %v4136, 0.0
  %v4585 = vadd.f32 %v4583, %v4584
  %v4586 = vsel %vm3167, %v4137, 0.0
  %v4587 = vadd.f32 %v4585, %v4586
  %v4588 = vsel %vm3167, %v4138, 0.0
  %v4589 = vadd.f32 %v4587, %v4588
  %v4590 = vsel %vm3167, %v4139, 0.0
  %v4591 = vadd.f32 %v4589, %v4590
  %v4592 = vsel %vm3167, %v4140, 0.0
  %v4593 = vadd.f32 %v4591, %v4592
  %v4594 = vsel %vm3167, %v4141, 0.0
  %v4595 = vadd.f32 %v4593, %v4594
  %v4596 = vsel %vm3167, %v4142, 0.0
  %v4597 = vadd.f32 %v4595, %v4596
  %v4598 = vsel %vm3167, %v4143, 0.0
  %v4599 = vadd.f32 %v4597, %v4598
  %v4600 = vsel %vm3167, %v4144, 0.0
  %v4601 = vadd.f32 %v4599, %v4600
  %v4602 = vsel %vm3167, %v4145, 0.0
  %v4603 = vadd.f32 %v4601, %v4602
  %v4604 = vsel %vm3167, %v4146, 0.0
  %v4605 = vadd.f32 %v4603, %v4604
  %v4606 = vsel %vm3167, %v4147, 0.0
  %v4607 = vadd.f32 %v4605, %v4606
  %v4608 = vsel %vm3167, %v4148, 0.0
  %v4609 = vadd.f32 %v4607, %v4608
  %v4610 = vsel %vm3167, %v4149, 0.0
  %v4611 = vadd.f32 %v4609, %v4610
  %v4612 = vsel %vm3167, %v4150, 0.0
  %v4613 = vadd.f32 %v4611, %v4612
  %v4614 = vsel %vm3167, %v4151, 0.0
  %v4615 = vadd.f32 %v4613, %v4614
  %v4616 = vsel %vm3167, %v4152, 0.0
  %v4617 = vadd.f32 %v4615, %v4616
  %v4618 = vsel %vm3167, %v4153, 0.0
  %v4619 = vadd.f32 %v4617, %v4618
  %v4620 = vsel %vm3167, %v4154, 0.0
  %v4621 = vadd.f32 %v4619, %v4620
  %v4622 = vsel %vm3167, %v4155, 0.0
  %v4623 = vadd.f32 %v4621, %v4622
  %v4624 = vsel %vm3167, %v4156, 0.0
  %v4625 = vadd.f32 %v4623, %v4624
  %v4626 = vsel %vm3167, %v4157, 0.0
  %v4627 = vadd.f32 %v4625, %v4626
  %v4628 = vsel %vm3167, %v4158, 0.0
  %v4629 = vadd.f32 %v4627, %v4628
  %v4630 = vsel %vm3167, %v4159, 0.0
  %v4631 = vadd.f32 %v4629, %v4630
  %v4632 = vsel %vm3167, %v4160, 0.0
  %v4633 = vadd.f32 %v4631, %v4632
  %v4634 = vsel %vm3167, %v4161, 0.0
  %v4635 = vadd.f32 %v4633, %v4634
  %v4636 = vsel %vm3167, %v4162, 0.0
  %v4637 = vadd.f32 %v4635, %v4636
  %v4638 = vsel %vm3167, %v4163, 0.0
  %v4639 = vadd.f32 %v4637, %v4638
  %v4640 = vsel %vm3167, %v4164, 0.0
  %v4641 = vadd.f32 %v4639, %v4640
  %v4642 = vsel %vm3167, %v4165, 0.0
  %v4643 = vadd.f32 %v4641, %v4642
  %v4644 = vsel %vm3167, %v4166, 0.0
  %v4645 = vadd.f32 %v4643, %v4644
  %v4646 = vsel %vm3167, %v4167, 0.0
  %v4647 = vadd.f32 %v4645, %v4646
  %v4648 = vsel %vm3167, %v4168, 0.0
  %v4649 = vadd.f32 %v4647, %v4648
  %v4650 = vsel %vm3167, %v4169, 0.0
  %v4651 = vadd.f32 %v4649, %v4650
  %v4652 = vsel %vm3167, %v4170, 0.0
  %v4653 = vadd.f32 %v4651, %v4652
  %v4654 = vsel %vm3167, %v4171, 0.0
  %v4655 = vadd.f32 %v4653, %v4654
  %v4656 = vsel %vm3167, %v4172, 0.0
  %v4657 = vadd.f32 %v4655, %v4656
  %v4658 = vsel %vm3167, %v4173, 0.0
  %v4659 = vadd.f32 %v4657, %v4658
  %v4660 = vsel %vm3167, %v4174, 0.0
  %v4661 = vadd.f32 %v4659, %v4660
  %v4662 = vsel %vm3167, %v4175, 0.0
  %v4663 = vadd.f32 %v4661, %v4662
  %v4664 = vsel %vm3167, %v4176, 0.0
  %v4665 = vadd.f32 %v4663, %v4664
  %v4666 = vsel %vm3167, %v4177, 0.0
  %v4667 = vadd.f32 %v4665, %v4666
  %v4668 = vsel %vm3167, %v4178, 0.0
  %v4669 = vadd.f32 %v4667, %v4668
  %v4670 = vsel %vm3167, %v4179, 0.0
  %v4671 = vadd.f32 %v4669, %v4670
  %v4672 = vsel %vm3167, %v4180, 0.0
  %v4673 = vadd.f32 %v4671, %v4672
  %v4674 = vsel %vm3167, %v4181, 0.0
  %v4675 = vadd.f32 %v4673, %v4674
  %v4676 = vsel %vm3167, %v4182, 0.0
  %v4677 = vadd.f32 %v4675, %v4676
  %v4678 = vsel %vm3167, %v4183, 0.0
  %v4679 = vadd.f32 %v4677, %v4678
  %v4680 = vsel %vm3167, %v4184, 0.0
  %v4681 = vadd.f32 %v4679, %v4680
  %v4682 = vsel %vm3167, %v4185, 0.0
  %v4683 = vadd.f32 %v4681, %v4682
  %v4684 = vsel %vm3167, %v4186, 0.0
  %v4685 = vadd.f32 %v4683, %v4684
  %v4686 = vsel %vm3167, %v4187, 0.0
  %v4687 = vadd.f32 %v4685, %v4686
  %v4688 = vsel %vm3167, %v4188, 0.0
  %v4689 = vadd.f32 %v4687, %v4688
  %v4690 = vsel %vm3167, %v4189, 0.0
  %v4691 = vadd.f32 %v4689, %v4690
  %v4692 = vsel %vm3167, %v4190, 0.0
  %v4693 = vadd.f32 %v4691, %v4692
  %v4694 = vsel %vm3167, %v4191, 0.0
  %v4695 = vadd.f32 %v4693, %v4694
  %v4696 = vsel %vm3167, %v4192, 0.0
  %v4697 = vadd.f32 %v4695, %v4696
  %v4698 = vsel %vm3167, %v4193, 0.0
  %v4699 = vadd.f32 %v4697, %v4698
  %v4700 = vsel %vm3167, %v4194, 0.0
  %v4701 = vadd.f32 %v4699, %v4700
  %v4702 = vsel %vm3167, %v4195, 0.0
  %v4703 = vadd.f32 %v4701, %v4702
  %v4704 = vsel %vm3167, %v4196, 0.0
  %v4705 = vadd.f32 %v4703, %v4704
  %v4706 = vsel %vm3167, %v4197, 0.0
  %v4707 = vadd.f32 %v4705, %v4706
  %v4708 = vsel %vm3167, %v4198, 0.0
  %v4709 = vadd.f32 %v4707, %v4708
  %v4710 = vrot.slane %v4709, 4
  %v4711 = vadd.f32 %v4709, %v4710
  %v4712 = vrot.slane %v4711, 2
  %v4713 = vadd.f32 %v4711, %v4712
  %v4714 = vrot.slane %v4713, 1
  %v4715 = vadd.f32 %v4713, %v4714
  %v4716 = vmul.f32 %v4715, %v3685
  %v4717 = vadd.f32 %v4716, 1e-05
  %v4718 = vrsqrt.pop %v4717
  %v4719 = vmul.f32 %v3687, %v4718
  %v4720 = vmul.f32 %v3688, %v4718
  %v4721 = vmul.f32 %v3689, %v4718
  %v4722 = vmul.f32 %v3690, %v4718
  %v4723 = vmul.f32 %v3691, %v4718
  %v4724 = vmul.f32 %v3692, %v4718
  %v4725 = vmul.f32 %v3693, %v4718
  %v4726 = vmul.f32 %v3694, %v4718
  %v4727 = vmul.f32 %v3695, %v4718
  %v4728 = vmul.f32 %v3696, %v4718
  %v4729 = vmul.f32 %v3697, %v4718
  %v4730 = vmul.f32 %v3698, %v4718
  %v4731 = vmul.f32 %v3699, %v4718
  %v4732 = vmul.f32 %v3700, %v4718
  %v4733 = vmul.f32 %v3701, %v4718
  %v4734 = vmul.f32 %v3702, %v4718
  %v4735 = vmul.f32 %v3703, %v4718
  %v4736 = vmul.f32 %v3704, %v4718
  %v4737 = vmul.f32 %v3705, %v4718
  %v4738 = vmul.f32 %v3706, %v4718
  %v4739 = vmul.f32 %v3707, %v4718
  %v4740 = vmul.f32 %v3708, %v4718
  %v4741 = vmul.f32 %v3709, %v4718
  %v4742 = vmul.f32 %v3710, %v4718
  %v4743 = vmul.f32 %v3711, %v4718
  %v4744 = vmul.f32 %v3712, %v4718
  %v4745 = vmul.f32 %v3713, %v4718
  %v4746 = vmul.f32 %v3714, %v4718
  %v4747 = vmul.f32 %v3715, %v4718
  %v4748 = vmul.f32 %v3716, %v4718
  %v4749 = vmul.f32 %v3717, %v4718
  %v4750 = vmul.f32 %v3718, %v4718
  %v4751 = vmul.f32 %v3719, %v4718
  %v4752 = vmul.f32 %v3720, %v4718
  %v4753 = vmul.f32 %v3721, %v4718
  %v4754 = vmul.f32 %v3722, %v4718
  %v4755 = vmul.f32 %v3723, %v4718
  %v4756 = vmul.f32 %v3724, %v4718
  %v4757 = vmul.f32 %v3725, %v4718
  %v4758 = vmul.f32 %v3726, %v4718
  %v4759 = vmul.f32 %v3727, %v4718
  %v4760 = vmul.f32 %v3728, %v4718
  %v4761 = vmul.f32 %v3729, %v4718
  %v4762 = vmul.f32 %v3730, %v4718
  %v4763 = vmul.f32 %v3731, %v4718
  %v4764 = vmul.f32 %v3732, %v4718
  %v4765 = vmul.f32 %v3733, %v4718
  %v4766 = vmul.f32 %v3734, %v4718
  %v4767 = vmul.f32 %v3735, %v4718
  %v4768 = vmul.f32 %v3736, %v4718
  %v4769 = vmul.f32 %v3737, %v4718
  %v4770 = vmul.f32 %v3738, %v4718
  %v4771 = vmul.f32 %v3739, %v4718
  %v4772 = vmul.f32 %v3740, %v4718
  %v4773 = vmul.f32 %v3741, %v4718
  %v4774 = vmul.f32 %v3742, %v4718
  %v4775 = vmul.f32 %v3743, %v4718
  %v4776 = vmul.f32 %v3744, %v4718
  %v4777 = vmul.f32 %v3745, %v4718
  %v4778 = vmul.f32 %v3746, %v4718
  %v4779 = vmul.f32 %v3747, %v4718
  %v4780 = vmul.f32 %v3748, %v4718
  %v4781 = vmul.f32 %v3749, %v4718
  %v4782 = vmul.f32 %v3750, %v4718
  %v4783 = vmul.f32 %v3751, %v4718
  %v4784 = vmul.f32 %v3752, %v4718
  %v4785 = vmul.f32 %v3753, %v4718
  %v4786 = vmul.f32 %v3754, %v4718
  %v4787 = vmul.f32 %v3755, %v4718
  %v4788 = vmul.f32 %v3756, %v4718
  %v4789 = vmul.f32 %v3757, %v4718
  %v4790 = vmul.f32 %v3758, %v4718
  %v4791 = vmul.f32 %v3759, %v4718
  %v4792 = vmul.f32 %v3760, %v4718
  %v4793 = vmul.f32 %v3761, %v4718
  %v4794 = vmul.f32 %v3762, %v4718
  %v4795 = vmul.f32 %v3763, %v4718
  %v4796 = vmul.f32 %v3764, %v4718
  %v4797 = vmul.f32 %v3765, %v4718
  %v4798 = vmul.f32 %v3766, %v4718
  %v4799 = vmul.f32 %v3767, %v4718
  %v4800 = vmul.f32 %v3768, %v4718
  %v4801 = vmul.f32 %v3769, %v4718
  %v4802 = vmul.f32 %v3770, %v4718
  %v4803 = vmul.f32 %v3771, %v4718
  %v4804 = vmul.f32 %v3772, %v4718
  %v4805 = vmul.f32 %v3773, %v4718
  %v4806 = vmul.f32 %v3774, %v4718
  %v4807 = vmul.f32 %v3775, %v4718
  %v4808 = vmul.f32 %v3776, %v4718
  %v4809 = vmul.f32 %v3777, %v4718
  %v4810 = vmul.f32 %v3778, %v4718
  %v4811 = vmul.f32 %v3779, %v4718
  %v4812 = vmul.f32 %v3780, %v4718
  %v4813 = vmul.f32 %v3781, %v4718
  %v4814 = vmul.f32 %v3782, %v4718
  %v4815 = vmul.f32 %v3783, %v4718
  %v4816 = vmul.f32 %v3784, %v4718
  %v4817 = vmul.f32 %v3785, %v4718
  %v4818 = vmul.f32 %v3786, %v4718
  %v4819 = vmul.f32 %v3787, %v4718
  %v4820 = vmul.f32 %v3788, %v4718
  %v4821 = vmul.f32 %v3789, %v4718
  %v4822 = vmul.f32 %v3790, %v4718
  %v4823 = vmul.f32 %v3791, %v4718
  %v4824 = vmul.f32 %v3792, %v4718
  %v4825 = vmul.f32 %v3793, %v4718
  %v4826 = vmul.f32 %v3794, %v4718
  %v4827 = vmul.f32 %v3795, %v4718
  %v4828 = vmul.f32 %v3796, %v4718
  %v4829 = vmul.f32 %v3797, %v4718
  %v4830 = vmul.f32 %v3798, %v4718
  %v4831 = vmul.f32 %v3799, %v4718
  %v4832 = vmul.f32 %v3800, %v4718
  %v4833 = vmul.f32 %v3801, %v4718
  %v4834 = vmul.f32 %v3802, %v4718
  %v4835 = vmul.f32 %v3803, %v4718
  %v4836 = vmul.f32 %v3804, %v4718
  %v4837 = vmul.f32 %v3805, %v4718
  %v4838 = vmul.f32 %v3806, %v4718
  %v4839 = vmul.f32 %v3807, %v4718
  %v4840 = vmul.f32 %v3808, %v4718
  %v4841 = vmul.f32 %v3809, %v4718
  %v4842 = vmul.f32 %v3810, %v4718
  %v4843 = vmul.f32 %v3811, %v4718
  %v4844 = vmul.f32 %v3812, %v4718
  %v4845 = vmul.f32 %v3813, %v4718
  %v4846 = vmul.f32 %v3814, %v4718
  %v4847 = vmul.f32 %v3815, %v4718
  %v4848 = vmul.f32 %v3816, %v4718
  %v4849 = vmul.f32 %v3817, %v4718
  %v4850 = vmul.f32 %v3818, %v4718
  %v4851 = vmul.f32 %v3819, %v4718
  %v4852 = vmul.f32 %v3820, %v4718
  %v4853 = vmul.f32 %v3821, %v4718
  %v4854 = vmul.f32 %v3822, %v4718
  %v4855 = vmul.f32 %v3823, %v4718
  %v4856 = vmul.f32 %v3824, %v4718
  %v4857 = vmul.f32 %v3825, %v4718
  %v4858 = vmul.f32 %v3826, %v4718
  %v4859 = vmul.f32 %v3827, %v4718
  %v4860 = vmul.f32 %v3828, %v4718
  %v4861 = vmul.f32 %v3829, %v4718
  %v4862 = vmul.f32 %v3830, %v4718
  %v4863 = vmul.f32 %v3831, %v4718
  %v4864 = vmul.f32 %v3832, %v4718
  %v4865 = vmul.f32 %v3833, %v4718
  %v4866 = vmul.f32 %v3834, %v4718
  %v4867 = vmul.f32 %v3835, %v4718
  %v4868 = vmul.f32 %v3836, %v4718
  %v4869 = vmul.f32 %v3837, %v4718
  %v4870 = vmul.f32 %v3838, %v4718
  %v4871 = vmul.f32 %v3839, %v4718
  %v4872 = vmul.f32 %v3840, %v4718
  %v4873 = vmul.f32 %v3841, %v4718
  %v4874 = vmul.f32 %v3842, %v4718
  %v4875 = vmul.f32 %v3843, %v4718
  %v4876 = vmul.f32 %v3844, %v4718
  %v4877 = vmul.f32 %v3845, %v4718
  %v4878 = vmul.f32 %v3846, %v4718
  %v4879 = vmul.f32 %v3847, %v4718
  %v4880 = vmul.f32 %v3848, %v4718
  %v4881 = vmul.f32 %v3849, %v4718
  %v4882 = vmul.f32 %v3850, %v4718
  %v4883 = vmul.f32 %v3851, %v4718
  %v4884 = vmul.f32 %v3852, %v4718
  %v4885 = vmul.f32 %v3853, %v4718
  %v4886 = vmul.f32 %v3854, %v4718
  %v4887 = vmul.f32 %v3855, %v4718
  %v4888 = vmul.f32 %v3856, %v4718
  %v4889 = vmul.f32 %v3857, %v4718
  %v4890 = vmul.f32 %v3858, %v4718
  %v4891 = vmul.f32 %v3859, %v4718
  %v4892 = vmul.f32 %v3860, %v4718
  %v4893 = vmul.f32 %v3861, %v4718
  %v4894 = vmul.f32 %v3862, %v4718
  %v4895 = vmul.f32 %v3863, %v4718
  %v4896 = vmul.f32 %v3864, %v4718
  %v4897 = vmul.f32 %v3865, %v4718
  %v4898 = vmul.f32 %v3866, %v4718
  %v4899 = vmul.f32 %v3867, %v4718
  %v4900 = vmul.f32 %v3868, %v4718
  %v4901 = vmul.f32 %v3869, %v4718
  %v4902 = vmul.f32 %v3870, %v4718
  %v4903 = vmul.f32 %v3871, %v4718
  %v4904 = vmul.f32 %v3872, %v4718
  %v4905 = vmul.f32 %v3873, %v4718
  %v4906 = vmul.f32 %v3874, %v4718
  %v4907 = vmul.f32 %v3875, %v4718
  %v4908 = vmul.f32 %v3876, %v4718
  %v4909 = vmul.f32 %v3877, %v4718
  %v4910 = vmul.f32 %v3878, %v4718
  %v4911 = vmul.f32 %v3879, %v4718
  %v4912 = vmul.f32 %v3880, %v4718
  %v4913 = vmul.f32 %v3881, %v4718
  %v4914 = vmul.f32 %v3882, %v4718
  %v4915 = vmul.f32 %v3883, %v4718
  %v4916 = vmul.f32 %v3884, %v4718
  %v4917 = vmul.f32 %v3885, %v4718
  %v4918 = vmul.f32 %v3886, %v4718
  %v4919 = vmul.f32 %v3887, %v4718
  %v4920 = vmul.f32 %v3888, %v4718
  %v4921 = vmul.f32 %v3889, %v4718
  %v4922 = vmul.f32 %v3890, %v4718
  %v4923 = vmul.f32 %v3891, %v4718
  %v4924 = vmul.f32 %v3892, %v4718
  %v4925 = vmul.f32 %v3893, %v4718
  %v4926 = vmul.f32 %v3894, %v4718
  %v4927 = vmul.f32 %v3895, %v4718
  %v4928 = vmul.f32 %v3896, %v4718
  %v4929 = vmul.f32 %v3897, %v4718
  %v4930 = vmul.f32 %v3898, %v4718
  %v4931 = vmul.f32 %v3899, %v4718
  %v4932 = vmul.f32 %v3900, %v4718
  %v4933 = vmul.f32 %v3901, %v4718
  %v4934 = vmul.f32 %v3902, %v4718
  %v4935 = vmul.f32 %v3903, %v4718
  %v4936 = vmul.f32 %v3904, %v4718
  %v4937 = vmul.f32 %v3905, %v4718
  %v4938 = vmul.f32 %v3906, %v4718
  %v4939 = vmul.f32 %v3907, %v4718
  %v4940 = vmul.f32 %v3908, %v4718
  %v4941 = vmul.f32 %v3909, %v4718
  %v4942 = vmul.f32 %v3910, %v4718
  %v4943 = vmul.f32 %v3911, %v4718
  %v4944 = vmul.f32 %v3912, %v4718
  %v4945 = vmul.f32 %v3913, %v4718
  %v4946 = vmul.f32 %v3914, %v4718
  %v4947 = vmul.f32 %v3915, %v4718
  %v4948 = vmul.f32 %v3916, %v4718
  %v4949 = vmul.f32 %v3917, %v4718
  %v4950 = vmul.f32 %v3918, %v4718
  %v4951 = vmul.f32 %v3919, %v4718
  %v4952 = vmul.f32 %v3920, %v4718
  %v4953 = vmul.f32 %v3921, %v4718
  %v4954 = vmul.f32 %v3922, %v4718
  %v4955 = vmul.f32 %v3923, %v4718
  %v4956 = vmul.f32 %v3924, %v4718
  %v4957 = vmul.f32 %v3925, %v4718
  %v4958 = vmul.f32 %v3926, %v4718
  %v4959 = vmul.f32 %v3927, %v4718
  %v4960 = vmul.f32 %v3928, %v4718
  %v4961 = vmul.f32 %v3929, %v4718
  %v4962 = vmul.f32 %v3930, %v4718
  %v4963 = vmul.f32 %v3931, %v4718
  %v4964 = vmul.f32 %v3932, %v4718
  %v4965 = vmul.f32 %v3933, %v4718
  %v4966 = vmul.f32 %v3934, %v4718
  %v4967 = vmul.f32 %v3935, %v4718
  %v4968 = vmul.f32 %v3936, %v4718
  %v4969 = vmul.f32 %v3937, %v4718
  %v4970 = vmul.f32 %v3938, %v4718
  %v4971 = vmul.f32 %v3939, %v4718
  %v4972 = vmul.f32 %v3940, %v4718
  %v4973 = vmul.f32 %v3941, %v4718
  %v4974 = vmul.f32 %v3942, %v4718
  %4975 = vst.msk [vmem:[%s3] sm:$0xff] %vm3167, %v4719
  %4976 = vst.msk [vmem:[%s3 + $0x8] sm:$0xff] %vm3167, %v4720
  %4977 = vst.msk [vmem:[%s3 + $0x10] sm:$0xff] %vm3167, %v4721
  %4978 = vst.msk [vmem:[%s3 + $0x18] sm:$0xff] %vm3167, %v4722
  %4979 = vst.msk [vmem:[%s3 + $0x20] sm:$0xff] %vm3167, %v4723
  %4980 = vst.msk [vmem:[%s3 + $0x28] sm:$0xff] %vm3167, %v4724
  %4981 = vst.msk [vmem:[%s3 + $0x30] sm:$0xff] %vm3167, %v4725
  %4982 = vst.msk [vmem:[%s3 + $0x38] sm:$0xff] %vm3167, %v4726
  %4983 = vst.msk [vmem:[%s3 + $0x40] sm:$0xff] %vm3167, %v4727
  %4984 = vst.msk [vmem:[%s3 + $0x48] sm:$0xff] %vm3167, %v4728
  %4985 = vst.msk [vmem:[%s3 + $0x50] sm:$0xff] %vm3167, %v4729
  %4986 = vst.msk [vmem:[%s3 + $0x58] sm:$0xff] %vm3167, %v4730
  %4987 = vst.msk [vmem:[%s3 + $0x60] sm:$0xff] %vm3167, %v4731
  %4988 = vst.msk [vmem:[%s3 + $0x68] sm:$0xff] %vm3167, %v4732
  %4989 = vst.msk [vmem:[%s3 + $0x70] sm:$0xff] %vm3167, %v4733
  %4990 = vst.msk [vmem:[%s3 + $0x78] sm:$0xff] %vm3167, %v4734
  %4991 = vst.msk [vmem:[%s3 + $0x80] sm:$0xff] %vm3167, %v4735
  %4992 = vst.msk [vmem:[%s3 + $0x88] sm:$0xff] %vm3167, %v4736
  %4993 = vst.msk [vmem:[%s3 + $0x90] sm:$0xff] %vm3167, %v4737
  %4994 = vst.msk [vmem:[%s3 + $0x98] sm:$0xff] %vm3167, %v4738
  %4995 = vst.msk [vmem:[%s3 + $0xa0] sm:$0xff] %vm3167, %v4739
  %4996 = vst.msk [vmem:[%s3 + $0xa8] sm:$0xff] %vm3167, %v4740
  %4997 = vst.msk [vmem:[%s3 + $0xb0] sm:$0xff] %vm3167, %v4741
  %4998 = vst.msk [vmem:[%s3 + $0xb8] sm:$0xff] %vm3167, %v4742
  %4999 = vst.msk [vmem:[%s3 + $0xc0] sm:$0xff] %vm3167, %v4743
  %5000 = vst.msk [vmem:[%s3 + $0xc8] sm:$0xff] %vm3167, %v4744
  %5001 = vst.msk [vmem:[%s3 + $0xd0] sm:$0xff] %vm3167, %v4745
  %5002 = vst.msk [vmem:[%s3 + $0xd8] sm:$0xff] %vm3167, %v4746
  %5003 = vst.msk [vmem:[%s3 + $0xe0] sm:$0xff] %vm3167, %v4747
  %5004 = vst.msk [vmem:[%s3 + $0xe8] sm:$0xff] %vm3167, %v4748
  %5005 = vst.msk [vmem:[%s3 + $0xf0] sm:$0xff] %vm3167, %v4749
  %5006 = vst.msk [vmem:[%s3 + $0xf8] sm:$0xff] %vm3167, %v4750
  %5007 = vst.msk [vmem:[%s3 + $0x100] sm:$0xff] %vm3167, %v4751
  %5008 = vst.msk [vmem:[%s3 + $0x108] sm:$0xff] %vm3167, %v4752
  %5009 = vst.msk [vmem:[%s3 + $0x110] sm:$0xff] %vm3167, %v4753
  %5010 = vst.msk [vmem:[%s3 + $0x118] sm:$0xff] %vm3167, %v4754
  %5011 = vst.msk [vmem:[%s3 + $0x120] sm:$0xff] %vm3167, %v4755
  %5012 = vst.msk [vmem:[%s3 + $0x128] sm:$0xff] %vm3167, %v4756
  %5013 = vst.msk [vmem:[%s3 + $0x130] sm:$0xff] %vm3167, %v4757
  %5014 = vst.msk [vmem:[%s3 + $0x138] sm:$0xff] %vm3167, %v4758
  %5015 = vst.msk [vmem:[%s3 + $0x140] sm:$0xff] %vm3167, %v4759
  %5016 = vst.msk [vmem:[%s3 + $0x148] sm:$0xff] %vm3167, %v4760
  %5017 = vst.msk [vmem:[%s3 + $0x150] sm:$0xff] %vm3167, %v4761
  %5018 = vst.msk [vmem:[%s3 + $0x158] sm:$0xff] %vm3167, %v4762
  %5019 = vst.msk [vmem:[%s3 + $0x160] sm:$0xff] %vm3167, %v4763
  %5020 = vst.msk [vmem:[%s3 + $0x168] sm:$0xff] %vm3167, %v4764
  %5021 = vst.msk [vmem:[%s3 + $0x170] sm:$0xff] %vm3167, %v4765
  %5022 = vst.msk [vmem:[%s3 + $0x178] sm:$0xff] %vm3167, %v4766
  %5023 = vst.msk [vmem:[%s3 + $0x180] sm:$0xff] %vm3167, %v4767
  %5024 = vst.msk [vmem:[%s3 + $0x188] sm:$0xff] %vm3167, %v4768
  %5025 = vst.msk [vmem:[%s3 + $0x190] sm:$0xff] %vm3167, %v4769
  %5026 = vst.msk [vmem:[%s3 + $0x198] sm:$0xff] %vm3167, %v4770
  %5027 = vst.msk [vmem:[%s3 + $0x1a0] sm:$0xff] %vm3167, %v4771
  %5028 = vst.msk [vmem:[%s3 + $0x1a8] sm:$0xff] %vm3167, %v4772
  %5029 = vst.msk [vmem:[%s3 + $0x1b0] sm:$0xff] %vm3167, %v4773
  %5030 = vst.msk [vmem:[%s3 + $0x1b8] sm:$0xff] %vm3167, %v4774
  %5031 = vst.msk [vmem:[%s3 + $0x1c0] sm:$0xff] %vm3167, %v4775
  %5032 = vst.msk [vmem:[%s3 + $0x1c8] sm:$0xff] %vm3167, %v4776
  %5033 = vst.msk [vmem:[%s3 + $0x1d0] sm:$0xff] %vm3167, %v4777
  %5034 = vst.msk [vmem:[%s3 + $0x1d8] sm:$0xff] %vm3167, %v4778
  %5035 = vst.msk [vmem:[%s3 + $0x1e0] sm:$0xff] %vm3167, %v4779
  %5036 = vst.msk [vmem:[%s3 + $0x1e8] sm:$0xff] %vm3167, %v4780
  %5037 = vst.msk [vmem:[%s3 + $0x1f0] sm:$0xff] %vm3167, %v4781
  %5038 = vst.msk [vmem:[%s3 + $0x1f8] sm:$0xff] %vm3167, %v4782
  %5039 = vst.msk [vmem:[%s3 + $0x200] sm:$0xff] %vm3167, %v4783
  %5040 = vst.msk [vmem:[%s3 + $0x208] sm:$0xff] %vm3167, %v4784
  %5041 = vst.msk [vmem:[%s3 + $0x210] sm:$0xff] %vm3167, %v4785
  %5042 = vst.msk [vmem:[%s3 + $0x218] sm:$0xff] %vm3167, %v4786
  %5043 = vst.msk [vmem:[%s3 + $0x220] sm:$0xff] %vm3167, %v4787
  %5044 = vst.msk [vmem:[%s3 + $0x228] sm:$0xff] %vm3167, %v4788
  %5045 = vst.msk [vmem:[%s3 + $0x230] sm:$0xff] %vm3167, %v4789
  %5046 = vst.msk [vmem:[%s3 + $0x238] sm:$0xff] %vm3167, %v4790
  %5047 = vst.msk [vmem:[%s3 + $0x240] sm:$0xff] %vm3167, %v4791
  %5048 = vst.msk [vmem:[%s3 + $0x248] sm:$0xff] %vm3167, %v4792
  %5049 = vst.msk [vmem:[%s3 + $0x250] sm:$0xff] %vm3167, %v4793
  %5050 = vst.msk [vmem:[%s3 + $0x258] sm:$0xff] %vm3167, %v4794
  %5051 = vst.msk [vmem:[%s3 + $0x260] sm:$0xff] %vm3167, %v4795
  %5052 = vst.msk [vmem:[%s3 + $0x268] sm:$0xff] %vm3167, %v4796
  %5053 = vst.msk [vmem:[%s3 + $0x270] sm:$0xff] %vm3167, %v4797
  %5054 = vst.msk [vmem:[%s3 + $0x278] sm:$0xff] %vm3167, %v4798
  %5055 = vst.msk [vmem:[%s3 + $0x280] sm:$0xff] %vm3167, %v4799
  %5056 = vst.msk [vmem:[%s3 + $0x288] sm:$0xff] %vm3167, %v4800
  %5057 = vst.msk [vmem:[%s3 + $0x290] sm:$0xff] %vm3167, %v4801
  %5058 = vst.msk [vmem:[%s3 + $0x298] sm:$0xff] %vm3167, %v4802
  %5059 = vst.msk [vmem:[%s3 + $0x2a0] sm:$0xff] %vm3167, %v4803
  %5060 = vst.msk [vmem:[%s3 + $0x2a8] sm:$0xff] %vm3167, %v4804
  %5061 = vst.msk [vmem:[%s3 + $0x2b0] sm:$0xff] %vm3167, %v4805
  %5062 = vst.msk [vmem:[%s3 + $0x2b8] sm:$0xff] %vm3167, %v4806
  %5063 = vst.msk [vmem:[%s3 + $0x2c0] sm:$0xff] %vm3167, %v4807
  %5064 = vst.msk [vmem:[%s3 + $0x2c8] sm:$0xff] %vm3167, %v4808
  %5065 = vst.msk [vmem:[%s3 + $0x2d0] sm:$0xff] %vm3167, %v4809
  %5066 = vst.msk [vmem:[%s3 + $0x2d8] sm:$0xff] %vm3167, %v4810
  %5067 = vst.msk [vmem:[%s3 + $0x2e0] sm:$0xff] %vm3167, %v4811
  %5068 = vst.msk [vmem:[%s3 + $0x2e8] sm:$0xff] %vm3167, %v4812
  %5069 = vst.msk [vmem:[%s3 + $0x2f0] sm:$0xff] %vm3167, %v4813
  %5070 = vst.msk [vmem:[%s3 + $0x2f8] sm:$0xff] %vm3167, %v4814
  %5071 = vst.msk [vmem:[%s3 + $0x300] sm:$0xff] %vm3167, %v4815
  %5072 = vst.msk [vmem:[%s3 + $0x308] sm:$0xff] %vm3167, %v4816
  %5073 = vst.msk [vmem:[%s3 + $0x310] sm:$0xff] %vm3167, %v4817
  %5074 = vst.msk [vmem:[%s3 + $0x318] sm:$0xff] %vm3167, %v4818
  %5075 = vst.msk [vmem:[%s3 + $0x320] sm:$0xff] %vm3167, %v4819
  %5076 = vst.msk [vmem:[%s3 + $0x328] sm:$0xff] %vm3167, %v4820
  %5077 = vst.msk [vmem:[%s3 + $0x330] sm:$0xff] %vm3167, %v4821
  %5078 = vst.msk [vmem:[%s3 + $0x338] sm:$0xff] %vm3167, %v4822
  %5079 = vst.msk [vmem:[%s3 + $0x340] sm:$0xff] %vm3167, %v4823
  %5080 = vst.msk [vmem:[%s3 + $0x348] sm:$0xff] %vm3167, %v4824
  %5081 = vst.msk [vmem:[%s3 + $0x350] sm:$0xff] %vm3167, %v4825
  %5082 = vst.msk [vmem:[%s3 + $0x358] sm:$0xff] %vm3167, %v4826
  %5083 = vst.msk [vmem:[%s3 + $0x360] sm:$0xff] %vm3167, %v4827
  %5084 = vst.msk [vmem:[%s3 + $0x368] sm:$0xff] %vm3167, %v4828
  %5085 = vst.msk [vmem:[%s3 + $0x370] sm:$0xff] %vm3167, %v4829
  %5086 = vst.msk [vmem:[%s3 + $0x378] sm:$0xff] %vm3167, %v4830
  %5087 = vst.msk [vmem:[%s3 + $0x380] sm:$0xff] %vm3167, %v4831
  %5088 = vst.msk [vmem:[%s3 + $0x388] sm:$0xff] %vm3167, %v4832
  %5089 = vst.msk [vmem:[%s3 + $0x390] sm:$0xff] %vm3167, %v4833
  %5090 = vst.msk [vmem:[%s3 + $0x398] sm:$0xff] %vm3167, %v4834
  %5091 = vst.msk [vmem:[%s3 + $0x3a0] sm:$0xff] %vm3167, %v4835
  %5092 = vst.msk [vmem:[%s3 + $0x3a8] sm:$0xff] %vm3167, %v4836
  %5093 = vst.msk [vmem:[%s3 + $0x3b0] sm:$0xff] %vm3167, %v4837
  %5094 = vst.msk [vmem:[%s3 + $0x3b8] sm:$0xff] %vm3167, %v4838
  %5095 = vst.msk [vmem:[%s3 + $0x3c0] sm:$0xff] %vm3167, %v4839
  %5096 = vst.msk [vmem:[%s3 + $0x3c8] sm:$0xff] %vm3167, %v4840
  %5097 = vst.msk [vmem:[%s3 + $0x3d0] sm:$0xff] %vm3167, %v4841
  %5098 = vst.msk [vmem:[%s3 + $0x3d8] sm:$0xff] %vm3167, %v4842
  %5099 = vst.msk [vmem:[%s3 + $0x3e0] sm:$0xff] %vm3167, %v4843
  %5100 = vst.msk [vmem:[%s3 + $0x3e8] sm:$0xff] %vm3167, %v4844
  %5101 = vst.msk [vmem:[%s3 + $0x3f0] sm:$0xff] %vm3167, %v4845
  %5102 = vst.msk [vmem:[%s3 + $0x3f8] sm:$0xff] %vm3167, %v4846
  %5103 = vst.msk [vmem:[%s3 + $0x400] sm:$0xff] %vm3167, %v4847
  %5104 = vst.msk [vmem:[%s3 + $0x408] sm:$0xff] %vm3167, %v4848
  %5105 = vst.msk [vmem:[%s3 + $0x410] sm:$0xff] %vm3167, %v4849
  %5106 = vst.msk [vmem:[%s3 + $0x418] sm:$0xff] %vm3167, %v4850
  %5107 = vst.msk [vmem:[%s3 + $0x420] sm:$0xff] %vm3167, %v4851
  %5108 = vst.msk [vmem:[%s3 + $0x428] sm:$0xff] %vm3167, %v4852
  %5109 = vst.msk [vmem:[%s3 + $0x430] sm:$0xff] %vm3167, %v4853
  %5110 = vst.msk [vmem:[%s3 + $0x438] sm:$0xff] %vm3167, %v4854
  %5111 = vst.msk [vmem:[%s3 + $0x440] sm:$0xff] %vm3167, %v4855
  %5112 = vst.msk [vmem:[%s3 + $0x448] sm:$0xff] %vm3167, %v4856
  %5113 = vst.msk [vmem:[%s3 + $0x450] sm:$0xff] %vm3167, %v4857
  %5114 = vst.msk [vmem:[%s3 + $0x458] sm:$0xff] %vm3167, %v4858
  %5115 = vst.msk [vmem:[%s3 + $0x460] sm:$0xff] %vm3167, %v4859
  %5116 = vst.msk [vmem:[%s3 + $0x468] sm:$0xff] %vm3167, %v4860
  %5117 = vst.msk [vmem:[%s3 + $0x470] sm:$0xff] %vm3167, %v4861
  %5118 = vst.msk [vmem:[%s3 + $0x478] sm:$0xff] %vm3167, %v4862
  %5119 = vst.msk [vmem:[%s3 + $0x480] sm:$0xff] %vm3167, %v4863
  %5120 = vst.msk [vmem:[%s3 + $0x488] sm:$0xff] %vm3167, %v4864
  %5121 = vst.msk [vmem:[%s3 + $0x490] sm:$0xff] %vm3167, %v4865
  %5122 = vst.msk [vmem:[%s3 + $0x498] sm:$0xff] %vm3167, %v4866
  %5123 = vst.msk [vmem:[%s3 + $0x4a0] sm:$0xff] %vm3167, %v4867
  %5124 = vst.msk [vmem:[%s3 + $0x4a8] sm:$0xff] %vm3167, %v4868
  %5125 = vst.msk [vmem:[%s3 + $0x4b0] sm:$0xff] %vm3167, %v4869
  %5126 = vst.msk [vmem:[%s3 + $0x4b8] sm:$0xff] %vm3167, %v4870
  %5127 = vst.msk [vmem:[%s3 + $0x4c0] sm:$0xff] %vm3167, %v4871
  %5128 = vst.msk [vmem:[%s3 + $0x4c8] sm:$0xff] %vm3167, %v4872
  %5129 = vst.msk [vmem:[%s3 + $0x4d0] sm:$0xff] %vm3167, %v4873
  %5130 = vst.msk [vmem:[%s3 + $0x4d8] sm:$0xff] %vm3167, %v4874
  %5131 = vst.msk [vmem:[%s3 + $0x4e0] sm:$0xff] %vm3167, %v4875
  %5132 = vst.msk [vmem:[%s3 + $0x4e8] sm:$0xff] %vm3167, %v4876
  %5133 = vst.msk [vmem:[%s3 + $0x4f0] sm:$0xff] %vm3167, %v4877
  %5134 = vst.msk [vmem:[%s3 + $0x4f8] sm:$0xff] %vm3167, %v4878
  %5135 = vst.msk [vmem:[%s3 + $0x500] sm:$0xff] %vm3167, %v4879
  %5136 = vst.msk [vmem:[%s3 + $0x508] sm:$0xff] %vm3167, %v4880
  %5137 = vst.msk [vmem:[%s3 + $0x510] sm:$0xff] %vm3167, %v4881
  %5138 = vst.msk [vmem:[%s3 + $0x518] sm:$0xff] %vm3167, %v4882
  %5139 = vst.msk [vmem:[%s3 + $0x520] sm:$0xff] %vm3167, %v4883
  %5140 = vst.msk [vmem:[%s3 + $0x528] sm:$0xff] %vm3167, %v4884
  %5141 = vst.msk [vmem:[%s3 + $0x530] sm:$0xff] %vm3167, %v4885
  %5142 = vst.msk [vmem:[%s3 + $0x538] sm:$0xff] %vm3167, %v4886
  %5143 = vst.msk [vmem:[%s3 + $0x540] sm:$0xff] %vm3167, %v4887
  %5144 = vst.msk [vmem:[%s3 + $0x548] sm:$0xff] %vm3167, %v4888
  %5145 = vst.msk [vmem:[%s3 + $0x550] sm:$0xff] %vm3167, %v4889
  %5146 = vst.msk [vmem:[%s3 + $0x558] sm:$0xff] %vm3167, %v4890
  %5147 = vst.msk [vmem:[%s3 + $0x560] sm:$0xff] %vm3167, %v4891
  %5148 = vst.msk [vmem:[%s3 + $0x568] sm:$0xff] %vm3167, %v4892
  %5149 = vst.msk [vmem:[%s3 + $0x570] sm:$0xff] %vm3167, %v4893
  %5150 = vst.msk [vmem:[%s3 + $0x578] sm:$0xff] %vm3167, %v4894
  %5151 = vst.msk [vmem:[%s3 + $0x580] sm:$0xff] %vm3167, %v4895
  %5152 = vst.msk [vmem:[%s3 + $0x588] sm:$0xff] %vm3167, %v4896
  %5153 = vst.msk [vmem:[%s3 + $0x590] sm:$0xff] %vm3167, %v4897
  %5154 = vst.msk [vmem:[%s3 + $0x598] sm:$0xff] %vm3167, %v4898
  %5155 = vst.msk [vmem:[%s3 + $0x5a0] sm:$0xff] %vm3167, %v4899
  %5156 = vst.msk [vmem:[%s3 + $0x5a8] sm:$0xff] %vm3167, %v4900
  %5157 = vst.msk [vmem:[%s3 + $0x5b0] sm:$0xff] %vm3167, %v4901
  %5158 = vst.msk [vmem:[%s3 + $0x5b8] sm:$0xff] %vm3167, %v4902
  %5159 = vst.msk [vmem:[%s3 + $0x5c0] sm:$0xff] %vm3167, %v4903
  %5160 = vst.msk [vmem:[%s3 + $0x5c8] sm:$0xff] %vm3167, %v4904
  %5161 = vst.msk [vmem:[%s3 + $0x5d0] sm:$0xff] %vm3167, %v4905
  %5162 = vst.msk [vmem:[%s3 + $0x5d8] sm:$0xff] %vm3167, %v4906
  %5163 = vst.msk [vmem:[%s3 + $0x5e0] sm:$0xff] %vm3167, %v4907
  %5164 = vst.msk [vmem:[%s3 + $0x5e8] sm:$0xff] %vm3167, %v4908
  %5165 = vst.msk [vmem:[%s3 + $0x5f0] sm:$0xff] %vm3167, %v4909
  %5166 = vst.msk [vmem:[%s3 + $0x5f8] sm:$0xff] %vm3167, %v4910
  %5167 = vst.msk [vmem:[%s3 + $0x600] sm:$0xff] %vm3167, %v4911
  %5168 = vst.msk [vmem:[%s3 + $0x608] sm:$0xff] %vm3167, %v4912
  %5169 = vst.msk [vmem:[%s3 + $0x610] sm:$0xff] %vm3167, %v4913
  %5170 = vst.msk [vmem:[%s3 + $0x618] sm:$0xff] %vm3167, %v4914
  %5171 = vst.msk [vmem:[%s3 + $0x620] sm:$0xff] %vm3167, %v4915
  %5172 = vst.msk [vmem:[%s3 + $0x628] sm:$0xff] %vm3167, %v4916
  %5173 = vst.msk [vmem:[%s3 + $0x630] sm:$0xff] %vm3167, %v4917
  %5174 = vst.msk [vmem:[%s3 + $0x638] sm:$0xff] %vm3167, %v4918
  %5175 = vst.msk [vmem:[%s3 + $0x640] sm:$0xff] %vm3167, %v4919
  %5176 = vst.msk [vmem:[%s3 + $0x648] sm:$0xff] %vm3167, %v4920
  %5177 = vst.msk [vmem:[%s3 + $0x650] sm:$0xff] %vm3167, %v4921
  %5178 = vst.msk [vmem:[%s3 + $0x658] sm:$0xff] %vm3167, %v4922
  %5179 = vst.msk [vmem:[%s3 + $0x660] sm:$0xff] %vm3167, %v4923
  %5180 = vst.msk [vmem:[%s3 + $0x668] sm:$0xff] %vm3167, %v4924
  %5181 = vst.msk [vmem:[%s3 + $0x670] sm:$0xff] %vm3167, %v4925
  %5182 = vst.msk [vmem:[%s3 + $0x678] sm:$0xff] %vm3167, %v4926
  %5183 = vst.msk [vmem:[%s3 + $0x680] sm:$0xff] %vm3167, %v4927
  %5184 = vst.msk [vmem:[%s3 + $0x688] sm:$0xff] %vm3167, %v4928
  %5185 = vst.msk [vmem:[%s3 + $0x690] sm:$0xff] %vm3167, %v4929
  %5186 = vst.msk [vmem:[%s3 + $0x698] sm:$0xff] %vm3167, %v4930
  %5187 = vst.msk [vmem:[%s3 + $0x6a0] sm:$0xff] %vm3167, %v4931
  %5188 = vst.msk [vmem:[%s3 + $0x6a8] sm:$0xff] %vm3167, %v4932
  %5189 = vst.msk [vmem:[%s3 + $0x6b0] sm:$0xff] %vm3167, %v4933
  %5190 = vst.msk [vmem:[%s3 + $0x6b8] sm:$0xff] %vm3167, %v4934
  %5191 = vst.msk [vmem:[%s3 + $0x6c0] sm:$0xff] %vm3167, %v4935
  %5192 = vst.msk [vmem:[%s3 + $0x6c8] sm:$0xff] %vm3167, %v4936
  %5193 = vst.msk [vmem:[%s3 + $0x6d0] sm:$0xff] %vm3167, %v4937
  %5194 = vst.msk [vmem:[%s3 + $0x6d8] sm:$0xff] %vm3167, %v4938
  %5195 = vst.msk [vmem:[%s3 + $0x6e0] sm:$0xff] %vm3167, %v4939
  %5196 = vst.msk [vmem:[%s3 + $0x6e8] sm:$0xff] %vm3167, %v4940
  %5197 = vst.msk [vmem:[%s3 + $0x6f0] sm:$0xff] %vm3167, %v4941
  %5198 = vst.msk [vmem:[%s3 + $0x6f8] sm:$0xff] %vm3167, %v4942
  %5199 = vst.msk [vmem:[%s3 + $0x700] sm:$0xff] %vm3167, %v4943
  %5200 = vst.msk [vmem:[%s3 + $0x708] sm:$0xff] %vm3167, %v4944
  %5201 = vst.msk [vmem:[%s3 + $0x710] sm:$0xff] %vm3167, %v4945
  %5202 = vst.msk [vmem:[%s3 + $0x718] sm:$0xff] %vm3167, %v4946
  %5203 = vst.msk [vmem:[%s3 + $0x720] sm:$0xff] %vm3167, %v4947
  %5204 = vst.msk [vmem:[%s3 + $0x728] sm:$0xff] %vm3167, %v4948
  %5205 = vst.msk [vmem:[%s3 + $0x730] sm:$0xff] %vm3167, %v4949
  %5206 = vst.msk [vmem:[%s3 + $0x738] sm:$0xff] %vm3167, %v4950
  %5207 = vst.msk [vmem:[%s3 + $0x740] sm:$0xff] %vm3167, %v4951
  %5208 = vst.msk [vmem:[%s3 + $0x748] sm:$0xff] %vm3167, %v4952
  %5209 = vst.msk [vmem:[%s3 + $0x750] sm:$0xff] %vm3167, %v4953
  %5210 = vst.msk [vmem:[%s3 + $0x758] sm:$0xff] %vm3167, %v4954
  %5211 = vst.msk [vmem:[%s3 + $0x760] sm:$0xff] %vm3167, %v4955
  %5212 = vst.msk [vmem:[%s3 + $0x768] sm:$0xff] %vm3167, %v4956
  %5213 = vst.msk [vmem:[%s3 + $0x770] sm:$0xff] %vm3167, %v4957
  %5214 = vst.msk [vmem:[%s3 + $0x778] sm:$0xff] %vm3167, %v4958
  %5215 = vst.msk [vmem:[%s3 + $0x780] sm:$0xff] %vm3167, %v4959
  %5216 = vst.msk [vmem:[%s3 + $0x788] sm:$0xff] %vm3167, %v4960
  %5217 = vst.msk [vmem:[%s3 + $0x790] sm:$0xff] %vm3167, %v4961
  %5218 = vst.msk [vmem:[%s3 + $0x798] sm:$0xff] %vm3167, %v4962
  %5219 = vst.msk [vmem:[%s3 + $0x7a0] sm:$0xff] %vm3167, %v4963
  %5220 = vst.msk [vmem:[%s3 + $0x7a8] sm:$0xff] %vm3167, %v4964
  %5221 = vst.msk [vmem:[%s3 + $0x7b0] sm:$0xff] %vm3167, %v4965
  %5222 = vst.msk [vmem:[%s3 + $0x7b8] sm:$0xff] %vm3167, %v4966
  %5223 = vst.msk [vmem:[%s3 + $0x7c0] sm:$0xff] %vm3167, %v4967
  %5224 = vst.msk [vmem:[%s3 + $0x7c8] sm:$0xff] %vm3167, %v4968
  %5225 = vst.msk [vmem:[%s3 + $0x7d0] sm:$0xff] %vm3167, %v4969
  %5226 = vst.msk [vmem:[%s3 + $0x7d8] sm:$0xff] %vm3167, %v4970
  %5227 = vst.msk [vmem:[%s3 + $0x7e0] sm:$0xff] %vm3167, %v4971
  %5228 = vst.msk [vmem:[%s3 + $0x7e8] sm:$0xff] %vm3167, %v4972
  %5229 = vst.msk [vmem:[%s3 + $0x7f0] sm:$0xff] %vm3167, %v4973
  %5230 = vst.msk [vmem:[%s3 + $0x7f8] sm:$0xff] %vm3167, %v4974
  // Predicated region
  $region14: #{cond_forward.3} parent=0 // pred_check
    _
  $region15: #{cond_forward.3} parent=0 // pred_check_branch
    %5232 = sbr.rel (0) target = $region17
  $region16: #{cond_forward.3} parent=0 // pred_region
    _
  $region17: #{cond_forward.3} parent=0 // pred_fallthru
    _
  // Predicated region
  $region18: #{cond_forward.3} parent=0 // pred_check
    _
  $region19: #{cond_forward.3} parent=0 // pred_check_branch
    %5234 = sbr.rel (0) target = $region21
  $region20: #{cond_forward.3} parent=0 // pred_region
    _
  $region21: #{cond_forward.3} parent=0 // pred_fallthru
    _

// kernel: cond_forward.5
$region0: #{cond_forward.5}
  #allocation0 [shape = 'u32[]', space=smem, size = 0x4, offset = 0x4, fixed_abs, tag = 'smem constant byte address 0x4 - core index']
  #allocation1 [shape = 'u32[144,128]{1,0:T(1,128)}', space=vmem, size = 0x12000, scoped, tag = 'internal scratch']
  %s0 = inlined_call_operand.vmem [shape: f32[128,144], index: 0, kind: input, shape index: {}]
  %s1 = inlined_call_operand.vmem [shape: f32[144,64], index: 1, kind: input, shape index: {}]
  %s2 = inlined_call_operand.vmem [shape: f32[1,64], index: 2, kind: input, shape index: {}]
  %s3 = inlined_call_operand.hbm [shape: f32[128,64], index: 3, kind: output, shape index: {}]
  %s4 = sld [smem:[#allocation0]]
  $region22: #{cond_forward.5} parent=0
    _
  %s6 = ssub.s32 1, %s4
  %s7 = scalar_select 0, %s6, %s4
  $region1: #{cond_forward.5} parent=0
    #allocation2 [shape = 'u8[65536]{0}', space=vmem, size = 0x10000, scoped, tag = 'output window, operand 0, single buffered']
    #allocation3 [shape = 's32[1]{0}', space=sflag, size = 0x4, scoped, tag = 'scoped memory for cond_forward.5']
    %8 = vsyncpa [#allocation3], 0
    // Predicated region
    $region2: #{cond_forward.5} parent=1 // pred_check
      _
    $region3: #{cond_forward.5} parent=1 // pred_check_branch
      %10 = sbr.rel (0) target = $region5
    $region4: #{cond_forward.5} parent=1 // pred_region
      _
    $region5: #{cond_forward.5} parent=1 // pred_fallthru
      _
    // Predicated region
    $region6: #{cond_forward.5} parent=1 // pred_check
      _
    $region7: #{cond_forward.5} parent=1 // pred_check_branch
      %12 = sbr.rel (0) target = $region9
    $region8: #{cond_forward.5} parent=1 // pred_region
      _
    $region9: #{cond_forward.5} parent=1 // pred_fallthru
      _
    // Predicated region
    $region10: #{cond_forward.5} parent=1 // pred_check
      _
    $region11: #{cond_forward.5} parent=1 // pred_check_branch
      %14 = sbr.rel (0) target = $region13
    $region12: #{cond_forward.5} parent=1 // pred_region
      _
    $region13: #{cond_forward.5} parent=1 // pred_fallthru
      _
    %v15 = vld [vmem:[%s0] sm:$0xff]
    %v16 = vld [vmem:[%s0 + $0x8] sm:$0xff]
    %v17 = vld [vmem:[%s0 + $0x10] sm:$0xff]
    %v18 = vld [vmem:[%s0 + $0x18] sm:$0xff]
    %v19 = vld [vmem:[%s0 + $0x20] sm:$0xff]
    %v20 = vld [vmem:[%s0 + $0x28] sm:$0xff]
    %v21 = vld [vmem:[%s0 + $0x30] sm:$0xff]
    %v22 = vld [vmem:[%s0 + $0x38] sm:$0xff]
    %v23 = vld [vmem:[%s0 + $0x40] sm:$0xff]
    %v24 = vld [vmem:[%s0 + $0x48] sm:$0xff]
    %v25 = vld [vmem:[%s0 + $0x50] sm:$0xff]
    %v26 = vld [vmem:[%s0 + $0x58] sm:$0xff]
    %v27 = vld [vmem:[%s0 + $0x60] sm:$0xff]
    %v28 = vld [vmem:[%s0 + $0x68] sm:$0xff]
    %v29 = vld [vmem:[%s0 + $0x70] sm:$0xff]
    %v30 = vld [vmem:[%s0 + $0x78] sm:$0xff]
    %v31 = vld [vmem:[%s0 + $0x80] sm:$0xff]
    %v32 = vld [vmem:[%s0 + $0x88] sm:$0xff]
    %v33 = vld [vmem:[%s0 + $0x90] sm:$0xff]
    %v34 = vld [vmem:[%s0 + $0x98] sm:$0xff]
    %v35 = vld [vmem:[%s0 + $0xa0] sm:$0xff]
    %v36 = vld [vmem:[%s0 + $0xa8] sm:$0xff]
    %v37 = vld [vmem:[%s0 + $0xb0] sm:$0xff]
    %v38 = vld [vmem:[%s0 + $0xb8] sm:$0xff]
    %v39 = vld [vmem:[%s0 + $0xc0] sm:$0xff]
    %v40 = vld [vmem:[%s0 + $0xc8] sm:$0xff]
    %v41 = vld [vmem:[%s0 + $0xd0] sm:$0xff]
    %v42 = vld [vmem:[%s0 + $0xd8] sm:$0xff]
    %v43 = vld [vmem:[%s0 + $0xe0] sm:$0xff]
    %v44 = vld [vmem:[%s0 + $0xe8] sm:$0xff]
    %v45 = vld [vmem:[%s0 + $0xf0] sm:$0xff]
    %v46 = vld [vmem:[%s0 + $0xf8] sm:$0xff]
    %v47 = vld [vmem:[%s1] sm:$0xff]
    %v48 = vld [vmem:[%s1 + $0x8] sm:$0xff]
    %v49 = vld [vmem:[%s1 + $0x10] sm:$0xff]
    %v50 = vld [vmem:[%s1 + $0x18] sm:$0xff]
    %v51 = vld [vmem:[%s1 + $0x20] sm:$0xff]
    %v52 = vld [vmem:[%s1 + $0x28] sm:$0xff]
    %v53 = vld [vmem:[%s1 + $0x30] sm:$0xff]
    %v54 = vld [vmem:[%s1 + $0x38] sm:$0xff]
    %v55 = vld [vmem:[%s1 + $0x40] sm:$0xff]
    %v56 = vld [vmem:[%s1 + $0x48] sm:$0xff]
    %v57 = vld [vmem:[%s1 + $0x50] sm:$0xff]
    %v58 = vld [vmem:[%s1 + $0x58] sm:$0xff]
    %v59 = vld [vmem:[%s1 + $0x60] sm:$0xff]
    %v60 = vld [vmem:[%s1 + $0x68] sm:$0xff]
    %v61 = vld [vmem:[%s1 + $0x70] sm:$0xff]
    %v62 = vld [vmem:[%s1 + $0x78] sm:$0xff]
    %v63 = vld [vmem:[%s1 + $0x80] sm:$0xff]
    %v64 = vld [vmem:[%s1 + $0x88] sm:$0xff]
    %v65 = vld [vmem:[%s2] sm:$0x1]
    %v67 = vlaneseq
    %v68 = vshrl.u32 %v67, 7
    %v69 = vsub.s32 0, %v68
    %v70 = vrot.slane %v65, %v69
    %vm72 = vcmask 130048
    %v74 = vsel %vm72, %v16, 0
    %v77 = vsel %vm72, %v18, 0
    %v80 = vsel %vm72, %v20, 0
    %v83 = vsel %vm72, %v22, 0
    %v86 = vsel %vm72, %v24, 0
    %v89 = vsel %vm72, %v26, 0
    %v92 = vsel %vm72, %v28, 0
    %v95 = vsel %vm72, %v30, 0
    %v98 = vsel %vm72, %v32, 0
    %v101 = vsel %vm72, %v34, 0
    %v104 = vsel %vm72, %v36, 0
    %v107 = vsel %vm72, %v38, 0
    %v110 = vsel %vm72, %v40, 0
    %v113 = vsel %vm72, %v42, 0
    %v116 = vsel %vm72, %v44, 0
    %v119 = vsel %vm72, %v46, 0
    %121 = vmatprep.subr.mxu0 0.0
    %122 = vmatpush1.msra.mxu0 %v47
    %123 = vmatprep.subr.mxu0 0.0
    %124 = vmatpush1.msra.mxu0 %v48
    %125 = vmatprep.subr.mxu0 0.0
    %126 = vmatpush1.msra.mxu0 %v49
    %127 = vmatprep.subr.mxu0 0.0
    %128 = vmatpush1.msra.mxu0 %v50
    %129 = vmatprep.subr.mxu0 0.0
    %130 = vmatpush1.msra.mxu0 %v51
    %131 = vmatprep.subr.mxu0 0.0
    %132 = vmatpush1.msra.mxu0 %v52
    %133 = vmatprep.subr.mxu0 0.0
    %134 = vmatpush1.msra.mxu0 %v53
    %135 = vmatprep.subr.mxu0 0.0
    %136 = vmatpush1.msra.mxu0 %v54
    %137 = vmatprep.subr.mxu0 0.0
    %138 = vmatpush1.msra.mxu0 %v55
    %139 = vmatprep.subr.mxu0 0.0
    %140 = vmatpush1.msra.mxu0 %v56
    %141 = vmatprep.subr.mxu0 0.0
    %142 = vmatpush1.msra.mxu0 %v57
    %143 = vmatprep.subr.mxu0 0.0
    %144 = vmatpush1.msra.mxu0 %v58
    %145 = vmatprep.subr.mxu0 0.0
    %146 = vmatpush1.msra.mxu0 %v59
    %147 = vmatprep.subr.mxu0 0.0
    %148 = vmatpush1.msra.mxu0 %v60
    %149 = vmatprep.subr.mxu0 0.0
    %150 = vmatpush1.msra.mxu0 %v61
    %151 = vmatprep.subr.mxu0 0.0
    %152 = vmatpush1.msra.mxu0 %v62
    %153 = vmatprep.subr.mxu0 0.0
    %154 = vmatpush1.msra.mxu0 %v63
    %155 = vmatprep.subr.mxu0 0.0
    %156 = vmatpush1.msra.mxu0 %v64
    %157 = vmatprep.subr.mxu0 0.0
    %158 = vmatpush1.msra.mxu0 0.0
    %159 = vmatprep.subr.mxu0 0.0
    %160 = vmatpush1.msra.mxu0 0.0
    %161 = vmatprep.subr.mxu0 0.0
    %162 = vmatpush1.msra.mxu0 0.0
    %163 = vmatprep.subr.mxu0 0.0
    %164 = vmatpush1.msra.mxu0 0.0
    %165 = vmatprep.subr.mxu0 0.0
    %166 = vmatpush1.msra.mxu0 0.0
    %167 = vmatprep.subr.mxu0 0.0
    %168 = vmatpush1.msra.mxu0 0.0
    %169 = vmatprep.subr.mxu0 0.0
    %170 = vmatpush1.msra.mxu0 0.0
    %171 = vmatprep.subr.mxu0 0.0
    %172 = vmatpush1.msra.mxu0 0.0
    %173 = vmatprep.subr.mxu0 0.0
    %174 = vmatpush1.msra.mxu0 0.0
    %175 = vmatprep.subr.mxu0 0.0
    %176 = vmatpush1.msra.mxu0 0.0
    %177 = vmatprep.subr.mxu0 0.0
    %178 = vmatpush1.msra.mxu0 0.0
    %179 = vmatprep.subr.mxu0 0.0
    %180 = vmatpush1.msra.mxu0 0.0
    %181 = vmatprep.subr.mxu0 0.0
    %182 = vmatpush1.msra.mxu0 0.0
    %183 = vmatprep.subr.mxu0 0.0
    %184 = vmatpush1.msra.mxu0 0.0
    %185 = vmatprep.mubr.f32.mxu0 %v74
    %186 = vmatmul.mubr.f32.gmra.mrb[0].mxu0 %v15
    %v187 = vpop.f32.mrb[0].mxu0
    %v188 = vadd.f32 %v70, %v187
    %v189 = vpop.f32.mrb[0].mxu0
    %190 = vmatprep.mubr.f32.mxu0 %v77
    %191 = vmatmul.mubr.f32.gmra.mrb[0].mxu0 %v17
    %v192 = vpop.f32.mrb[0].mxu0
    %v193 = vadd.f32 %v70, %v192
    %v194 = vpop.f32.mrb[0].mxu0
    %195 = vmatprep.mubr.f32.mxu0 %v80
    %196 = vmatmul.mubr.f32.gmra.mrb[0].mxu0 %v19
    %v197 = vpop.f32.mrb[0].mxu0
    %v198 = vadd.f32 %v70, %v197
    %v199 = vpop.f32.mrb[0].mxu0
    %200 = vmatprep.mubr.f32.mxu0 %v83
    %201 = vmatmul.mubr.f32.gmra.mrb[0].mxu0 %v21
    %v202 = vpop.f32.mrb[0].mxu0
    %v203 = vadd.f32 %v70, %v202
    %v204 = vpop.f32.mrb[0].mxu0
    %205 = vmatprep.mubr.f32.mxu0 %v86
    %206 = vmatmul.mubr.f32.gmra.mrb[0].mxu0 %v23
    %v207 = vpop.f32.mrb[0].mxu0
    %v208 = vadd.f32 %v70, %v207
    %v209 = vpop.f32.mrb[0].mxu0
    %210 = vmatprep.mubr.f32.mxu0 %v89
    %211 = vmatmul.mubr.f32.gmra.mrb[0].mxu0 %v25
    %v212 = vpop.f32.mrb[0].mxu0
    %v213 = vadd.f32 %v70, %v212
    %v214 = vpop.f32.mrb[0].mxu0
    %215 = vmatprep.mubr.f32.mxu0 %v92
    %216 = vmatmul.mubr.f32.gmra.mrb[0].mxu0 %v27
    %v217 = vpop.f32.mrb[0].mxu0
    %v218 = vadd.f32 %v70, %v217
    %v219 = vpop.f32.mrb[0].mxu0
    %220 = vmatprep.mubr.f32.mxu0 %v95
    %221 = vmatmul.mubr.f32.gmra.mrb[0].mxu0 %v29
    %v222 = vpop.f32.mrb[0].mxu0
    %v223 = vadd.f32 %v70, %v222
    %v224 = vpop.f32.mrb[0].mxu0
    %225 = vmatprep.mubr.f32.mxu0 %v98
    %226 = vmatmul.mubr.f32.gmra.mrb[0].mxu0 %v31
    %v227 = vpop.f32.mrb[0].mxu0
    %v228 = vadd.f32 %v70, %v227
    %v229 = vpop.f32.mrb[0].mxu0
    %230 = vmatprep.mubr.f32.mxu0 %v101
    %231 = vmatmul.mubr.f32.gmra.mrb[0].mxu0 %v33
    %v232 = vpop.f32.mrb[0].mxu0
    %v233 = vadd.f32 %v70, %v232
    %v234 = vpop.f32.mrb[0].mxu0
    %235 = vmatprep.mubr.f32.mxu0 %v104
    %236 = vmatmul.mubr.f32.gmra.mrb[0].mxu0 %v35
    %v237 = vpop.f32.mrb[0].mxu0
    %v238 = vadd.f32 %v70, %v237
    %v239 = vpop.f32.mrb[0].mxu0
    %240 = vmatprep.mubr.f32.mxu0 %v107
    %241 = vmatmul.mubr.f32.gmra.mrb[0].mxu0 %v37
    %v242 = vpop.f32.mrb[0].mxu0
    %v243 = vadd.f32 %v70, %v242
    %v244 = vpop.f32.mrb[0].mxu0
    %245 = vmatprep.mubr.f32.mxu0 %v110
    %246 = vmatmul.mubr.f32.gmra.mrb[0].mxu0 %v39
    %v247 = vpop.f32.mrb[0].mxu0
    %v248 = vadd.f32 %v70, %v247
    %v249 = vpop.f32.mrb[0].mxu0
    %250 = vmatprep.mubr.f32.mxu0 %v113
    %251 = vmatmul.mubr.f32.gmra.mrb[0].mxu0 %v41
    %v252 = vpop.f32.mrb[0].mxu0
    %v253 = vadd.f32 %v70, %v252
    %v254 = vpop.f32.mrb[0].mxu0
    %255 = vmatprep.mubr.f32.mxu0 %v116
    %256 = vmatmul.mubr.f32.gmra.mrb[0].mxu0 %v43
    %v257 = vpop.f32.mrb[0].mxu0
    %v258 = vadd.f32 %v70, %v257
    %v259 = vpop.f32.mrb[0].mxu0
    %260 = vmatprep.mubr.f32.mxu0 %v119
    %261 = vmatmul.mubr.f32.gmra.mrb[0].mxu0 %v45
    %v262 = vpop.f32.mrb[0].mxu0
    %v263 = vadd.f32 %v70, %v262
    %v264 = vpop.f32.mrb[0].mxu0
    %265 = vdwg.mxu0
    %vm266 = vcmp.ge.f32.partialorder %v188, 0.0
    %vm267 = vcmp.ge.f32.partialorder %v193, 0.0
    %vm268 = vcmp.ge.f32.partialorder %v198, 0.0
    %vm269 = vcmp.ge.f32.partialorder %v203, 0.0
    %vm270 = vcmp.ge.f32.partialorder %v208, 0.0
    %vm271 = vcmp.ge.f32.partialorder %v213, 0.0
    %vm272 = vcmp.ge.f32.partialorder %v218, 0.0
    %vm273 = vcmp.ge.f32.partialorder %v223, 0.0
    %vm274 = vcmp.ge.f32.partialorder %v228, 0.0
    %vm275 = vcmp.ge.f32.partialorder %v233, 0.0
    %vm276 = vcmp.ge.f32.partialorder %v238, 0.0
    %vm277 = vcmp.ge.f32.partialorder %v243, 0.0
    %vm278 = vcmp.ge.f32.partialorder %v248, 0.0
    %vm279 = vcmp.ge.f32.partialorder %v253, 0.0
    %vm280 = vcmp.ge.f32.partialorder %v258, 0.0
    %vm281 = vcmp.ge.f32.partialorder %v263, 0.0
    %v282 = vmul.f32 %v188, 0.2
    %v283 = vmul.f32 %v193, 0.2
    %v284 = vmul.f32 %v198, 0.2
    %v285 = vmul.f32 %v203, 0.2
    %v286 = vmul.f32 %v208, 0.2
    %v287 = vmul.f32 %v213, 0.2
    %v288 = vmul.f32 %v218, 0.2
    %v289 = vmul.f32 %v223, 0.2
    %v290 = vmul.f32 %v228, 0.2
    %v291 = vmul.f32 %v233, 0.2
    %v292 = vmul.f32 %v238, 0.2
    %v293 = vmul.f32 %v243, 0.2
    %v294 = vmul.f32 %v248, 0.2
    %v295 = vmul.f32 %v253, 0.2
    %v296 = vmul.f32 %v258, 0.2
    %v297 = vmul.f32 %v263, 0.2
    %v298 = vsel %vm266, %v188, %v282
    %v299 = vsel %vm267, %v193, %v283
    %v300 = vsel %vm268, %v198, %v284
    %v301 = vsel %vm269, %v203, %v285
    %v302 = vsel %vm270, %v208, %v286
    %v303 = vsel %vm271, %v213, %v287
    %v304 = vsel %vm272, %v218, %v288
    %v305 = vsel %vm273, %v223, %v289
    %v306 = vsel %vm274, %v228, %v290
    %v307 = vsel %vm275, %v233, %v291
    %v308 = vsel %vm276, %v238, %v292
    %v309 = vsel %vm277, %v243, %v293
    %v310 = vsel %vm278, %v248, %v294
    %v311 = vsel %vm279, %v253, %v295
    %v312 = vsel %vm280, %v258, %v296
    %v313 = vsel %vm281, %v263, %v297
    %vm314 = vcmask 523264
    %315 = vst.msk [vmem:[#allocation2] sm:$0xff] %vm314, %v298
    %316 = vst.msk [vmem:[#allocation2 + $0x8] sm:$0xff] %vm314, %v299
    %317 = vst.msk [vmem:[#allocation2 + $0x10] sm:$0xff] %vm314, %v300
    %318 = vst.msk [vmem:[#allocation2 + $0x18] sm:$0xff] %vm314, %v301
    %319 = vst.msk [vmem:[#allocation2 + $0x20] sm:$0xff] %vm314, %v302
    %320 = vst.msk [vmem:[#allocation2 + $0x28] sm:$0xff] %vm314, %v303
    %321 = vst.msk [vmem:[#allocation2 + $0x30] sm:$0xff] %vm314, %v304
    %322 = vst.msk [vmem:[#allocation2 + $0x38] sm:$0xff] %vm314, %v305
    %323 = vst.msk [vmem:[#allocation2 + $0x40] sm:$0xff] %vm314, %v306
    %324 = vst.msk [vmem:[#allocation2 + $0x48] sm:$0xff] %vm314, %v307
    %325 = vst.msk [vmem:[#allocation2 + $0x50] sm:$0xff] %vm314, %v308
    %326 = vst.msk [vmem:[#allocation2 + $0x58] sm:$0xff] %vm314, %v309
    %327 = vst.msk [vmem:[#allocation2 + $0x60] sm:$0xff] %vm314, %v310
    %328 = vst.msk [vmem:[#allocation2 + $0x68] sm:$0xff] %vm314, %v311
    %329 = vst.msk [vmem:[#allocation2 + $0x70] sm:$0xff] %vm314, %v312
    %330 = vst.msk [vmem:[#allocation2 + $0x78] sm:$0xff] %vm314, %v313
    // Predicated region
    $region14: #{cond_forward.5} parent=1 // pred_check
      _
    $region15: #{cond_forward.5} parent=1 // pred_check_branch
      %332 = sbr.rel (0) target = $region17
    $region16: #{cond_forward.5} parent=1 // pred_region
      %s334 = ssub.s32 2048, 2048
      %335 = vsyncadd [#allocation3], %s334
      %s336 = sshll.u32 [#allocation2], 4
      %s337 = int_to_ptr.vmem [resolvable:$true] %s336
      %342 = dma.vmem_to_hbm [thread:$0]  %s337, 2048, %s3, [#allocation3], 128, 128, 8
    $region17: #{cond_forward.5} parent=1 // pred_fallthru
      _
    // Predicated region
    $region18: #{cond_forward.5} parent=1 // pred_check
      _
    $region19: #{cond_forward.5} parent=1 // pred_check_branch
      %344 = sbr.rel (0) target = $region21
    $region20: #{cond_forward.5} parent=1 // pred_region
      %345 = dma.done [#allocation3], 2048
    $region21: #{cond_forward.5} parent=1 // pred_fallthru
      _
    %346 = vsyncpa [#allocation3], 1

</llo_original>
